<compile_context>
chip_gen: v6e
topology: v6e:2x2x1
jax: 0.10.0
libtpu: 0.0.40
codegen_flags: <defaults>
</compile_context>

<pallas_src>
import numpy as np
import jax
import jax.numpy as jnp
from jax.experimental import pallas as pl
from jax.experimental.pallas import tpu as pltpu


# ----------------------------------------------------------------------------
# Small helpers
# ----------------------------------------------------------------------------
def _round_up(x, m):
    return (x + m - 1) // m * m


def _ctile(c):
    """Channel tile: full dim when small, else the largest of 256/128 dividing it."""
    if c <= 256:
        return c
    for t in (256, 128):
        if c % t == 0:
            return t
    return c            # odd channel count: full-dim (lane-padded) block


def _conv_dims(H, W):
    assert H % 2 == 0 and W % 2 == 0, "stride-2 conv expects even spatial dims"
    Ho, Wo = H // 2, W // 2
    Hq = Ho + 1                      # quadrant height of the padded input
    Wqp = _round_up(Wo + 1, 8)       # quadrant width, padded to 8 sublanes
    return Ho, Wo, Hq, Wqp


def _should_fold(n_batch, Ho, Hq, Wqp, C, Cout):
    """Fold the batch into the matmul M dim for the small-spatial (deep) layers."""
    rows = 4 * Hq * Wqp * n_batch
    small_m = n_batch * Ho * Wqp <= 512
    fits_vmem = rows * max(C, Cout) * 2 <= (4 << 20)
    return small_m and fits_vmem


# ----------------------------------------------------------------------------
# Quadrant-flat layout glue (XLA side; bf16, fuses into one relayout pass)
# ----------------------------------------------------------------------------
def _quadrant_flat(x_nhwc, Hq, Wqp, folded):
    """pad(1) + space-to-depth into stride-2 parity quadrants + flatten.

    Row order (per sample): (q*Hq + i)*Wqp + j  holds  pad(x)[2*i + q//2, 2*j + q%2];
    the folded variant interleaves the batch sample-minor so a whole-batch matmul
    M dim stays contiguous per conv tap.
    """
    N, H, W, C = x_nhwc.shape
    xp = jnp.pad(x_nhwc, ((0, 0), (1, 1), (1, 2 * Wqp - W - 1), (0, 0)))
    xq = xp.reshape(N, Hq, 2, Wqp, 2, C)
    xq = jnp.transpose(xq, (0, 2, 4, 1, 3, 5))            # (N, a, b, i, j, C)
    if folded:
        xq = jnp.transpose(xq, (1, 2, 3, 4, 0, 5)).reshape(4 * Hq * Wqp * N, C)
    else:
        xq = xq.reshape(N, 4 * Hq * Wqp, C)
    return xq


def _unflatten_conv_out(y, n_batch, Ho, Wo, Wqp, folded):
    """Conv-kernel output rows -> plain NHWC (drops the junk columns c >= Wo)."""
    Cout = y.shape[-1]
    if folded:
        y = y.reshape(Ho, Wqp, n_batch, Cout)[:, :Wo]
        y = jnp.transpose(y, (2, 0, 1, 3))
    else:
        y = y.reshape(n_batch, Ho, Wqp, Cout)[:, :, :Wo]
    return y                                              # (N, Ho, Wo, Cout)


# ----------------------------------------------------------------------------
# Fused Conv2d(k=3, s=2, p=1) + bias + LeakyReLU kernel (im2col-free, relayout-free)
# ----------------------------------------------------------------------------
def _make_conv_kernel(Hq, Wqp, Ho, nb, num_k, slope):
    """x_ref : (4*Hq*Wqp*nb, ck) bf16   quadrant-flat input rows
       w_ref : (9, ck, tn)       bf16   tap-major weights, tap t = 3*kh + kw
       b_ref : (1, tn)           f32
       o_ref : (Ho*Wqp*nb, tn)   bf16   row (r*Wqp + c)*nb + s; cols c >= Wo are junk
       acc   : (Ho*Wqp*nb, tn)   f32    persists across the Cin grid axis
    """
    Mq = Ho * Wqp * nb
    taps = []
    for kh in range(3):
        for kw in range(3):
            q = 2 * (kh % 2) + (kw % 2)
            base = ((q * Hq + kh // 2) * Wqp + kw // 2) * nb
            taps.append((base, 3 * kh + kw))

    def _finalize(o_ref, acc_ref, b_ref):
        y = acc_ref[...] + b_ref[...]                  # bias once, after K reduction
        y = jnp.where(y >= 0.0, y, slope * y)          # LeakyReLU
        o_ref[...] = y.astype(o_ref.dtype)

    if num_k == 1:
        # Single Cin step: no zero-init / pl.when; first tap stores with '='.
        def kernel(x_ref, w_ref, b_ref, o_ref, acc_ref):
            for i, (base, t) in enumerate(taps):
                d = jnp.dot(x_ref[base:base + Mq, :], w_ref[t],
                            preferred_element_type=jnp.float32)
                if i == 0:
                    acc_ref[...] = d
                else:
                    acc_ref[...] += d
            _finalize(o_ref, acc_ref, b_ref)
    else:
        def kernel(x_ref, w_ref, b_ref, o_ref, acc_ref):
            k = pl.program_id(2)

            @pl.when(k == 0)
            def _init():
                acc_ref[...] = jnp.zeros_like(acc_ref)

            for base, t in taps:
                acc_ref[...] += jnp.dot(x_ref[base:base + Mq, :], w_ref[t],
                                        preferred_element_type=jnp.float32)

            @pl.when(k == num_k - 1)
            def _fin():
                _finalize(o_ref, acc_ref, b_ref)

    return kernel


def conv3x3_s2_lrelu(xq, w9, b_row, *, n_batch, Ho, Hq, Wqp, folded, slope=0.01):
    """LeakyReLU(conv3x3/s2/p1(x) + b) on the quadrant-flat layout (bf16 out)."""
    C, Cout = w9.shape[1], w9.shape[2]
    ck, tn = _ctile(C), _ctile(Cout)
    num_k, nj = C // ck, Cout // tn
    nb = n_batch if folded else 1
    Mq = Ho * Wqp * nb
    rows = 4 * Hq * Wqp * nb

    kernel = _make_conv_kernel(Hq, Wqp, Ho, nb, num_k, slope)

    if folded:
        assert xq.shape == (rows, C)
        grid = (1, nj, num_k)
        in_specs = [pl.BlockSpec((rows, ck), lambda n, j, k: (0, k)),
                    pl.BlockSpec((9, ck, tn), lambda n, j, k: (0, k, j)),
                    pl.BlockSpec((1, tn), lambda n, j, k: (0, j))]
        out_specs = pl.BlockSpec((Mq, tn), lambda n, j, k: (0, j))
        out_shape = jax.ShapeDtypeStruct((Mq, Cout), jnp.bfloat16)
    else:
        assert xq.shape == (n_batch, rows, C)
        grid = (n_batch, nj, num_k)
        in_specs = [pl.BlockSpec((None, rows, ck), lambda n, j, k: (n, 0, k)),
                    pl.BlockSpec((9, ck, tn), lambda n, j, k: (0, k, j)),
                    pl.BlockSpec((1, tn), lambda n, j, k: (0, j))]
        out_specs = pl.BlockSpec((None, Mq, tn), lambda n, j, k: (n, 0, j))
        out_shape = jax.ShapeDtypeStruct((n_batch, Mq, Cout), jnp.bfloat16)

    # Real double-buffered block footprint + f32 accumulator; cap at 48 MiB so
    # v7x (64 MiB physical VMEM) keeps spill/internal-scratch headroom.
    blk = rows * ck * 2 + 9 * ck * tn * 2 + tn * 4 + Mq * tn * 2
    footprint = 2 * blk + Mq * tn * 4
    assert footprint < 44 * 2**20, "conv tile footprint too large for VMEM"
    vmem_limit = int(min(48 * 2**20, max(24 * 2**20, 2 * footprint)))

    flops = 2 * n_batch * Ho * Wqp * 9 * C * Cout
    bytes_accessed = (xq.size * 2 * nj
                      + w9.size * 2 * (1 if folded else n_batch)
                      + Cout * 4 + int(np.prod(out_shape.shape)) * 2)

    return pl.pallas_call(
        kernel,
        out_shape=out_shape,
        grid=grid,
        in_specs=in_specs,
        out_specs=out_specs,
        scratch_shapes=[pltpu.VMEM((Mq, tn), jnp.float32)],
        compiler_params=pltpu.CompilerParams(
            dimension_semantics=("parallel", "parallel", "arbitrary"),
            vmem_limit_bytes=vmem_limit),
        cost_estimate=pl.CostEstimate(flops=flops, transcendentals=0,
                                      bytes_accessed=bytes_accessed),
    )(xq, w9, b_row)


# ----------------------------------------------------------------------------
# EqualLinear: fused GEMM + bias (1/sqrt(in) scale already folded into the weight)
# ----------------------------------------------------------------------------
def _linear_kernel(x_ref, w_ref, b_ref, o_ref):
    acc = jnp.dot(x_ref[...].astype(jnp.bfloat16),
                  w_ref[...].astype(jnp.bfloat16),
                  preferred_element_type=jnp.float32)
    o_ref[...] = (acc + b_ref[...]).astype(o_ref.dtype)


def linear_bias(x, w, b_row):
    """y = x @ w + b   (x: (M,K), w: (K,N) pre-scaled bf16, b: (1,N) f32)."""
    M, K = x.shape
    N = w.shape[1]
    tn = _ctile(N)
    # Kept as a separate (tiny) kernel: it contracts the full Cout, which the conv
    # kernel may tile.  Output lanes are >=128 for the production 512-channel head.
    return pl.pallas_call(
        _linear_kernel,
        out_shape=jax.ShapeDtypeStruct((M, N), jnp.float32),
        grid=(1, N // tn),
        in_specs=[pl.BlockSpec((M, K), lambda i, j: (0, 0)),
                  pl.BlockSpec((K, tn), lambda i, j: (0, j)),
                  pl.BlockSpec((1, tn), lambda i, j: (0, j))],
        out_specs=pl.BlockSpec((M, tn), lambda i, j: (0, j)),
        compiler_params=pltpu.CompilerParams(
            dimension_semantics=("parallel", "parallel"),
            vmem_limit_bytes=32 * 1024 * 1024),
        cost_estimate=pl.CostEstimate(
            flops=2 * M * K * N, transcendentals=0,
            bytes_accessed=x.size * 2 + w.size * 2 + N * 4 + M * N * 4),
    )(x, w, b_row)


# ----------------------------------------------------------------------------
# Parameters (deterministic, synthetic), one-time prep, and the forward pass
# ----------------------------------------------------------------------------
def init_params(key, in_channels, out_channels, spatial):
    num_pools = int(np.log2(spatial))
    params = {"convs": []}
    cin = in_channels
    for _ in range(num_pools):
        key, kw, kb = jax.random.split(key, 3)
        w = jax.random.normal(kw, (out_channels, cin, 3, 3), jnp.float32)
        w = w * (1.4 / np.sqrt(9 * cin))          # keep activations O(1) across depth
        b = 0.1 * jax.random.normal(kb, (out_channels,), jnp.float32)
        params["convs"].append((w, b))
        cin = out_channels
    key, kw = jax.random.split(key)
    # EqualLinear: weight ~ randn(out, in) / lr_mul (lr_mul = 1), bias init 0.0
    lw = jax.random.normal(kw, (out_channels, out_channels), jnp.float32)
    lb = jnp.zeros((out_channels,), jnp.float32)
    params["linear"] = (lw, lb)
    return params


def prepare_params(params, lr_mul=1.0):
    """One-time (outside jit) weight layout / dtype prep; EqualLinear scale folded."""
    convs = []
    for (w, b) in params["convs"]:
        cout, cin = w.shape[0], w.shape[1]
        # (Cout, Cin, 3, 3) -> (kh, kw, Cin, Cout) -> (9, Cin, Cout), tap t = 3*kh + kw
        w9 = jnp.transpose(w, (2, 3, 1, 0)).reshape(9, cin, cout).astype(jnp.bfloat16)
        convs.append((w9, b.reshape(1, cout).astype(jnp.float32)))
    lw, lb = params["linear"]
    scale = 1.0 / np.sqrt(lw.shape[1]) * lr_mul
    wl = (jnp.transpose(lw) * scale).astype(jnp.bfloat16)
    bl = (lb * lr_mul).reshape(1, -1).astype(jnp.float32)
    return {"convs": convs, "linear": (wl, bl)}


@jax.jit
def map2style_forward(x_nchw, prepped):
    x = jnp.transpose(x_nchw, (0, 2, 3, 1)).astype(jnp.bfloat16)   # NCHW -> NHWC
    n_batch = x.shape[0]
    for (w9, b) in prepped["convs"]:
        C, Cout = w9.shape[1], w9.shape[2]
        H, W = x.shape[1], x.shape[2]
        Ho, Wo, Hq, Wqp = _conv_dims(H, W)
        folded = _should_fold(n_batch, Ho, Hq, Wqp, C, Cout)
        xq = _quadrant_flat(x, Hq, Wqp, folded)
        y = conv3x3_s2_lrelu(xq, w9, b, n_batch=n_batch, Ho=Ho, Hq=Hq, Wqp=Wqp,
                             folded=folded)
        x = _unflatten_conv_out(y, n_batch, Ho, Wo, Wqp, folded)
    wl, bl = prepped["linear"]
    x = x.reshape(n_batch, -1)          # spatial is 1x1 after num_pools stride-2 convs
    return linear_bias(x, wl, bl)


# ----------------------------------------------------------------------------
# Pure-JAX reference (correctness check only)
# ----------------------------------------------------------------------------
def reference_forward(x_nchw, params, out_channels):
    x = x_nchw.astype(jnp.float32)
    for (w, b) in params["convs"]:
        x = jax.lax.conv_general_dilated(
            x, w, window_strides=(2, 2), padding=((1, 1), (1, 1)),
            dimension_numbers=("NCHW", "OIHW", "NCHW"),
            precision=jax.lax.Precision.HIGHEST)
        x = x + b.reshape(1, -1, 1, 1)
        x = jnp.where(x >= 0, x, 0.01 * x)
    x = x.reshape(-1, out_channels)
    lw, lb = params["linear"]
    scale = 1.0 / np.sqrt(lw.shape[1])
    return jnp.dot(x, (lw * scale).T, precision=jax.lax.Precision.HIGHEST) + lb


def _run_case(key, batch, in_channels, out_channels, spatial, tol):
    kx, kp = jax.random.split(key)
    x = jax.random.normal(kx, (batch, in_channels, spatial, spatial), jnp.float32)
    params = init_params(kp, in_channels, out_channels, spatial)
    prepped = prepare_params(params)            # hoisted out of the jitted forward
    out = jax.block_until_ready(map2style_forward(x, prepped))
    ref = reference_forward(x, params, out_channels)
    # bf16 MXU inputs + bf16 inter-layer activations (f32 accumulate).
    np.testing.assert_allclose(np.asarray(out, dtype=np.float32), np.asarray(ref),
                               rtol=tol, atol=tol)
    assert out.shape == (batch, out_channels)


if __name__ == "__main__":
    key = jax.random.PRNGKey(0)
    k1, k2 = jax.random.split(key)
    # Small sanity case (sub-128 channel lanes; correctness only, not for tuning).
    _run_case(k1, 2, 4, 8, 16, 4e-2)
    # Production-representative case: exercises the non-folded (batch-gridded)
    # first layer, the batch-folded deep layers, Cin tiling (num_k=2) and two
    # Cout tiles (v7x megacore) at 512 channels.
    _run_case(k2, 2, 64, 512, 32, 4e-2)
    print("KERNEL_OK")
</pallas_src>

<mosaic_0001>
module attributes {stable_mosaic.version = 11 : i64} {
  func.func @kernel(%arg0: i32, %arg1: i32, %arg2: i32, %arg3: memref<1152x4xbf16, #tpu.memory_space<vmem>>, %arg4: memref<9x4x8xbf16, #tpu.memory_space<vmem>>, %arg5: memref<1x8xf32, #tpu.memory_space<vmem>>, %arg6: memref<256x8xbf16, #tpu.memory_space<vmem>>, %arg7: memref<256x8xf32, #tpu.memory_space<vmem>>) attributes {dimension_semantics = [#tpu.dimension_semantics<parallel>, #tpu.dimension_semantics<parallel>, #tpu.dimension_semantics<arbitrary>], iteration_bounds = array<i64: 1, 1, 1>, scalar_prefetch = 0 : i64, scratch_operands = 1 : i64, tpu.core_type = #tpu.core_type<tc>, window_params = [{transform_indices = @transform_0, window_bounds = array<i64: 1152, 4>}, {transform_indices = @transform_1, window_bounds = array<i64: 9, 4, 8>}, {transform_indices = @transform_2, window_bounds = array<i64: 1, 8>}, {transform_indices = @transform_3, window_bounds = array<i64: 256, 8>}]} {
    %c0 = arith.constant 0 : index
    %c0_0 = arith.constant 0 : index
    %0 = vector.load %arg3[%c0, %c0_0] : memref<1152x4xbf16, #tpu.memory_space<vmem>>, vector<256x4xbf16>
    %c0_1 = arith.constant 0 : index
    %c0_2 = arith.constant 0 : index
    %c0_3 = arith.constant 0 : index
    %1 = vector.load %arg4[%c0_1, %c0_2, %c0_3] : memref<9x4x8xbf16, #tpu.memory_space<vmem>>, vector<1x4x8xbf16>
    %2 = vector.shape_cast %1 : vector<1x4x8xbf16> to vector<4x8xbf16>
    %cst = arith.constant dense<0.000000e+00> : vector<256x8xf32>
    %3 = tpu.matmul %0, %2, %cst {dimension_numbers = #tpu.dot_dimension_numbers<[1], [0], [0], [1], [0, 0, 1, 1], [], []>} : vector<256x4xbf16>, vector<4x8xbf16>, vector<256x8xf32> -> vector<256x8xf32>
    %c0_4 = arith.constant 0 : index
    %c0_5 = arith.constant 0 : index
    %4 = vector.load %arg7[%c0_4, %c0_5] : memref<256x8xf32, #tpu.memory_space<vmem>>, vector<256x8xf32>
    tpu.vector_store %arg7[%c0_4, %c0_5], %3 {strides = array<i32>} : memref<256x8xf32, #tpu.memory_space<vmem>>, vector<256x8xf32>,
    %c288 = arith.constant 288 : index
    %c0_6 = arith.constant 0 : index
    %5 = vector.load %arg3[%c288, %c0_6] : memref<1152x4xbf16, #tpu.memory_space<vmem>>, vector<256x4xbf16>
    %c1 = arith.constant 1 : index
    %c0_7 = arith.constant 0 : index
    %c0_8 = arith.constant 0 : index
    %6 = vector.load %arg4[%c1, %c0_7, %c0_8] : memref<9x4x8xbf16, #tpu.memory_space<vmem>>, vector<1x4x8xbf16>
    %7 = vector.shape_cast %6 : vector<1x4x8xbf16> to vector<4x8xbf16>
    %cst_9 = arith.constant dense<0.000000e+00> : vector<256x8xf32>
    %8 = tpu.matmul %5, %7, %cst_9 {dimension_numbers = #tpu.dot_dimension_numbers<[1], [0], [0], [1], [0, 0, 1, 1], [], []>} : vector<256x4xbf16>, vector<4x8xbf16>, vector<256x8xf32> -> vector<256x8xf32>
    %c0_10 = arith.constant 0 : index
    %c0_11 = arith.constant 0 : index
    %9 = vector.load %arg7[%c0_10, %c0_11] : memref<256x8xf32, #tpu.memory_space<vmem>>, vector<256x8xf32>
    %10 = arith.addf %9, %8 : vector<256x8xf32>
    %c0_12 = arith.constant 0 : index
    %c0_13 = arith.constant 0 : index
    %11 = vector.load %arg7[%c0_12, %c0_13] : memref<256x8xf32, #tpu.memory_space<vmem>>, vector<256x8xf32>
    tpu.vector_store %arg7[%c0_12, %c0_13], %10 {strides = array<i32>} : memref<256x8xf32, #tpu.memory_space<vmem>>, vector<256x8xf32>,
    %c2 = arith.constant 2 : index
    %c0_14 = arith.constant 0 : index
    %12 = vector.load %arg3[%c2, %c0_14] : memref<1152x4xbf16, #tpu.memory_space<vmem>>, vector<256x4xbf16>
    %c2_15 = arith.constant 2 : index
    %c0_16 = arith.constant 0 : index
    %c0_17 = arith.constant 0 : index
    %13 = vector.load %arg4[%c2_15, %c0_16, %c0_17] : memref<9x4x8xbf16, #tpu.memory_space<vmem>>, vector<1x4x8xbf16>
    %14 = vector.shape_cast %13 : vector<1x4x8xbf16> to vector<4x8xbf16>
    %cst_18 = arith.constant dense<0.000000e+00> : vector<256x8xf32>
    %15 = tpu.matmul %12, %14, %cst_18 {dimension_numbers = #tpu.dot_dimension_numbers<[1], [0], [0], [1], [0, 0, 1, 1], [], []>} : vector<256x4xbf16>, vector<4x8xbf16>, vector<256x8xf32> -> vector<256x8xf32>
    %c0_19 = arith.constant 0 : index
    %c0_20 = arith.constant 0 : index
    %16 = vector.load %arg7[%c0_19, %c0_20] : memref<256x8xf32, #tpu.memory_space<vmem>>, vector<256x8xf32>
    %17 = arith.addf %16, %15 : vector<256x8xf32>
    %c0_21 = arith.constant 0 : index
    %c0_22 = arith.constant 0 : index
    %18 = vector.load %arg7[%c0_21, %c0_22] : memref<256x8xf32, #tpu.memory_space<vmem>>, vector<256x8xf32>
    tpu.vector_store %arg7[%c0_21, %c0_22], %17 {strides = array<i32>} : memref<256x8xf32, #tpu.memory_space<vmem>>, vector<256x8xf32>,
    %c576 = arith.constant 576 : index
    %c0_23 = arith.constant 0 : index
    %19 = vector.load %arg3[%c576, %c0_23] : memref<1152x4xbf16, #tpu.memory_space<vmem>>, vector<256x4xbf16>
    %c3 = arith.constant 3 : index
    %c0_24 = arith.constant 0 : index
    %c0_25 = arith.constant 0 : index
    %20 = vector.load %arg4[%c3, %c0_24, %c0_25] : memref<9x4x8xbf16, #tpu.memory_space<vmem>>, vector<1x4x8xbf16>
    %21 = vector.shape_cast %20 : vector<1x4x8xbf16> to vector<4x8xbf16>
    %cst_26 = arith.constant dense<0.000000e+00> : vector<256x8xf32>
    %22 = tpu.matmul %19, %21, %cst_26 {dimension_numbers = #tpu.dot_dimension_numbers<[1], [0], [0], [1], [0, 0, 1, 1], [], []>} : vector<256x4xbf16>, vector<4x8xbf16>, vector<256x8xf32> -> vector<256x8xf32>
    %c0_27 = arith.constant 0 : index
    %c0_28 = arith.constant 0 : index
    %23 = vector.load %arg7[%c0_27, %c0_28] : memref<256x8xf32, #tpu.memory_space<vmem>>, vector<256x8xf32>
    %24 = arith.addf %23, %22 : vector<256x8xf32>
    %c0_29 = arith.constant 0 : index
    %c0_30 = arith.constant 0 : index
    %25 = vector.load %arg7[%c0_29, %c0_30] : memref<256x8xf32, #tpu.memory_space<vmem>>, vector<256x8xf32>
    tpu.vector_store %arg7[%c0_29, %c0_30], %24 {strides = array<i32>} : memref<256x8xf32, #tpu.memory_space<vmem>>, vector<256x8xf32>,
    %c864 = arith.constant 864 : index
    %c0_31 = arith.constant 0 : index
    %26 = vector.load %arg3[%c864, %c0_31] : memref<1152x4xbf16, #tpu.memory_space<vmem>>, vector<256x4xbf16>
    %c4 = arith.constant 4 : index
    %c0_32 = arith.constant 0 : index
    %c0_33 = arith.constant 0 : index
    %27 = vector.load %arg4[%c4, %c0_32, %c0_33] : memref<9x4x8xbf16, #tpu.memory_space<vmem>>, vector<1x4x8xbf16>
    %28 = vector.shape_cast %27 : vector<1x4x8xbf16> to vector<4x8xbf16>
    %cst_34 = arith.constant dense<0.000000e+00> : vector<256x8xf32>
    %29 = tpu.matmul %26, %28, %cst_34 {dimension_numbers = #tpu.dot_dimension_numbers<[1], [0], [0], [1], [0, 0, 1, 1], [], []>} : vector<256x4xbf16>, vector<4x8xbf16>, vector<256x8xf32> -> vector<256x8xf32>
    %c0_35 = arith.constant 0 : index
    %c0_36 = arith.constant 0 : index
    %30 = vector.load %arg7[%c0_35, %c0_36] : memref<256x8xf32, #tpu.memory_space<vmem>>, vector<256x8xf32>
    %31 = arith.addf %30, %29 : vector<256x8xf32>
    %c0_37 = arith.constant 0 : index
    %c0_38 = arith.constant 0 : index
    %32 = vector.load %arg7[%c0_37, %c0_38] : memref<256x8xf32, #tpu.memory_space<vmem>>, vector<256x8xf32>
    tpu.vector_store %arg7[%c0_37, %c0_38], %31 {strides = array<i32>} : memref<256x8xf32, #tpu.memory_space<vmem>>, vector<256x8xf32>,
    %c578 = arith.constant 578 : index
    %c0_39 = arith.constant 0 : index
    %33 = vector.load %arg3[%c578, %c0_39] : memref<1152x4xbf16, #tpu.memory_space<vmem>>, vector<256x4xbf16>
    %c5 = arith.constant 5 : index
    %c0_40 = arith.constant 0 : index
    %c0_41 = arith.constant 0 : index
    %34 = vector.load %arg4[%c5, %c0_40, %c0_41] : memref<9x4x8xbf16, #tpu.memory_space<vmem>>, vector<1x4x8xbf16>
    %35 = vector.shape_cast %34 : vector<1x4x8xbf16> to vector<4x8xbf16>
    %cst_42 = arith.constant dense<0.000000e+00> : vector<256x8xf32>
    %36 = tpu.matmul %33, %35, %cst_42 {dimension_numbers = #tpu.dot_dimension_numbers<[1], [0], [0], [1], [0, 0, 1, 1], [], []>} : vector<256x4xbf16>, vector<4x8xbf16>, vector<256x8xf32> -> vector<256x8xf32>
    %c0_43 = arith.constant 0 : index
    %c0_44 = arith.constant 0 : index
    %37 = vector.load %arg7[%c0_43, %c0_44] : memref<256x8xf32, #tpu.memory_space<vmem>>, vector<256x8xf32>
    %38 = arith.addf %37, %36 : vector<256x8xf32>
    %c0_45 = arith.constant 0 : index
    %c0_46 = arith.constant 0 : index
    %39 = vector.load %arg7[%c0_45, %c0_46] : memref<256x8xf32, #tpu.memory_space<vmem>>, vector<256x8xf32>
    tpu.vector_store %arg7[%c0_45, %c0_46], %38 {strides = array<i32>} : memref<256x8xf32, #tpu.memory_space<vmem>>, vector<256x8xf32>,
    %c32 = arith.constant 32 : index
    %c0_47 = arith.constant 0 : index
    %40 = vector.load %arg3[%c32, %c0_47] : memref<1152x4xbf16, #tpu.memory_space<vmem>>, vector<256x4xbf16>
    %c6 = arith.constant 6 : index
    %c0_48 = arith.constant 0 : index
    %c0_49 = arith.constant 0 : index
    %41 = vector.load %arg4[%c6, %c0_48, %c0_49] : memref<9x4x8xbf16, #tpu.memory_space<vmem>>, vector<1x4x8xbf16>
    %42 = vector.shape_cast %41 : vector<1x4x8xbf16> to vector<4x8xbf16>
    %cst_50 = arith.constant dense<0.000000e+00> : vector<256x8xf32>
    %43 = tpu.matmul %40, %42, %cst_50 {dimension_numbers = #tpu.dot_dimension_numbers<[1], [0], [0], [1], [0, 0, 1, 1], [], []>} : vector<256x4xbf16>, vector<4x8xbf16>, vector<256x8xf32> -> vector<256x8xf32>
    %c0_51 = arith.constant 0 : index
    %c0_52 = arith.constant 0 : index
    %44 = vector.load %arg7[%c0_51, %c0_52] : memref<256x8xf32, #tpu.memory_space<vmem>>, vector<256x8xf32>
    %45 = arith.addf %44, %43 : vector<256x8xf32>
    %c0_53 = arith.constant 0 : index
    %c0_54 = arith.constant 0 : index
    %46 = vector.load %arg7[%c0_53, %c0_54] : memref<256x8xf32, #tpu.memory_space<vmem>>, vector<256x8xf32>
    tpu.vector_store %arg7[%c0_53, %c0_54], %45 {strides = array<i32>} : memref<256x8xf32, #tpu.memory_space<vmem>>, vector<256x8xf32>,
    %c320 = arith.constant 320 : index
    %c0_55 = arith.constant 0 : index
    %47 = vector.load %arg3[%c320, %c0_55] : memref<1152x4xbf16, #tpu.memory_space<vmem>>, vector<256x4xbf16>
    %c7 = arith.constant 7 : index
    %c0_56 = arith.constant 0 : index
    %c0_57 = arith.constant 0 : index
    %48 = vector.load %arg4[%c7, %c0_56, %c0_57] : memref<9x4x8xbf16, #tpu.memory_space<vmem>>, vector<1x4x8xbf16>
    %49 = vector.shape_cast %48 : vector<1x4x8xbf16> to vector<4x8xbf16>
    %cst_58 = arith.constant dense<0.000000e+00> : vector<256x8xf32>
    %50 = tpu.matmul %47, %49, %cst_58 {dimension_numbers = #tpu.dot_dimension_numbers<[1], [0], [0], [1], [0, 0, 1, 1], [], []>} : vector<256x4xbf16>, vector<4x8xbf16>, vector<256x8xf32> -> vector<256x8xf32>
    %c0_59 = arith.constant 0 : index
    %c0_60 = arith.constant 0 : index
    %51 = vector.load %arg7[%c0_59, %c0_60] : memref<256x8xf32, #tpu.memory_space<vmem>>, vector<256x8xf32>
    %52 = arith.addf %51, %50 : vector<256x8xf32>
    %c0_61 = arith.constant 0 : index
    %c0_62 = arith.constant 0 : index
    %53 = vector.load %arg7[%c0_61, %c0_62] : memref<256x8xf32, #tpu.memory_space<vmem>>, vector<256x8xf32>
    tpu.vector_store %arg7[%c0_61, %c0_62], %52 {strides = array<i32>} : memref<256x8xf32, #tpu.memory_space<vmem>>, vector<256x8xf32>,
    %c34 = arith.constant 34 : index
    %c0_63 = arith.constant 0 : index
    %54 = vector.load %arg3[%c34, %c0_63] : memref<1152x4xbf16, #tpu.memory_space<vmem>>, vector<256x4xbf16>
    %c8 = arith.constant 8 : index
    %c0_64 = arith.constant 0 : index
    %c0_65 = arith.constant 0 : index
    %55 = vector.load %arg4[%c8, %c0_64, %c0_65] : memref<9x4x8xbf16, #tpu.memory_space<vmem>>, vector<1x4x8xbf16>
    %56 = vector.shape_cast %55 : vector<1x4x8xbf16> to vector<4x8xbf16>
    %cst_66 = arith.constant dense<0.000000e+00> : vector<256x8xf32>
    %57 = tpu.matmul %54, %56, %cst_66 {dimension_numbers = #tpu.dot_dimension_numbers<[1], [0], [0], [1], [0, 0, 1, 1], [], []>} : vector<256x4xbf16>, vector<4x8xbf16>, vector<256x8xf32> -> vector<256x8xf32>
    %c0_67 = arith.constant 0 : index
    %c0_68 = arith.constant 0 : index
    %58 = vector.load %arg7[%c0_67, %c0_68] : memref<256x8xf32, #tpu.memory_space<vmem>>, vector<256x8xf32>
    %59 = arith.addf %58, %57 : vector<256x8xf32>
    %c0_69 = arith.constant 0 : index
    %c0_70 = arith.constant 0 : index
    %60 = vector.load %arg7[%c0_69, %c0_70] : memref<256x8xf32, #tpu.memory_space<vmem>>, vector<256x8xf32>
    tpu.vector_store %arg7[%c0_69, %c0_70], %59 {strides = array<i32>} : memref<256x8xf32, #tpu.memory_space<vmem>>, vector<256x8xf32>,
    %c0_71 = arith.constant 0 : index
    %c0_72 = arith.constant 0 : index
    %61 = vector.load %arg7[%c0_71, %c0_72] : memref<256x8xf32, #tpu.memory_space<vmem>>, vector<256x8xf32>
    %c0_73 = arith.constant 0 : index
    %c0_74 = arith.constant 0 : index
    %62 = vector.load %arg5[%c0_73, %c0_74] : memref<1x8xf32, #tpu.memory_space<vmem>>, vector<1x8xf32>
    %63 = vector.broadcast %62 : vector<1x8xf32> to vector<256x8xf32>
    %64 = arith.addf %61, %63 : vector<256x8xf32>
    %cst_75 = arith.constant 0.000000e+00 : f32
    %65 = vector.broadcast %cst_75 : f32 to vector<256x8xf32>
    %66 = arith.cmpf oge, %64, %65 : vector<256x8xf32>
    %cst_76 = arith.constant 0.00999999977 : f32
    %67 = vector.broadcast %cst_76 : f32 to vector<256x8xf32>
    %68 = arith.mulf %67, %64 : vector<256x8xf32>
    %69 = arith.select %66, %64, %68 : vector<256x8xi1>, vector<256x8xf32>
    %70 = arith.truncf %69 : vector<256x8xf32> to vector<256x8xbf16>
    %c0_77 = arith.constant 0 : index
    %c0_78 = arith.constant 0 : index
    %71 = vector.load %arg6[%c0_77, %c0_78] : memref<256x8xbf16, #tpu.memory_space<vmem>>, vector<256x8xbf16>
    tpu.vector_store %arg6[%c0_77, %c0_78], %70 {strides = array<i32>} : memref<256x8xbf16, #tpu.memory_space<vmem>>, vector<256x8xbf16>,
    return
  }
  func.func @transform_0(%arg0: i32, %arg1: i32, %arg2: i32) -> (i32, i32) {
    %c0_i32 = arith.constant 0 : i32
    %c0_i32_0 = arith.constant 0 : i32
    return %c0_i32, %arg2 : i32, i32
  }
  func.func @transform_1(%arg0: i32, %arg1: i32, %arg2: i32) -> (i32, i32, i32) {
    %c0_i32 = arith.constant 0 : i32
    %c0_i32_0 = arith.constant 0 : i32
    return %c0_i32, %arg2, %arg1 : i32, i32, i32
  }
  func.func @transform_2(%arg0: i32, %arg1: i32, %arg2: i32) -> (i32, i32) {
    %c0_i32 = arith.constant 0 : i32
    %c0_i32_0 = arith.constant 0 : i32
    return %c0_i32, %arg1 : i32, i32
  }
  func.func @transform_3(%arg0: i32, %arg1: i32, %arg2: i32) -> (i32, i32) {
    %c0_i32 = arith.constant 0 : i32
    %c0_i32_0 = arith.constant 0 : i32
    return %c0_i32, %arg1 : i32, i32
  }
}

module attributes {stable_mosaic.version = 11 : i64} {
  func.func @kernel(%arg0: i32, %arg1: i32, %arg2: i32, %arg3: memref<320x8xbf16, #tpu.memory_space<vmem>>, %arg4: memref<9x8x8xbf16, #tpu.memory_space<vmem>>, %arg5: memref<1x8xf32, #tpu.memory_space<vmem>>, %arg6: memref<64x8xbf16, #tpu.memory_space<vmem>>, %arg7: memref<64x8xf32, #tpu.memory_space<vmem>>) attributes {dimension_semantics = [#tpu.dimension_semantics<parallel>, #tpu.dimension_semantics<parallel>, #tpu.dimension_semantics<arbitrary>], iteration_bounds = array<i64: 1, 1, 1>, scalar_prefetch = 0 : i64, scratch_operands = 1 : i64, tpu.core_type = #tpu.core_type<tc>, window_params = [{transform_indices = @transform_0, window_bounds = array<i64: 320, 8>}, {transform_indices = @transform_1, window_bounds = array<i64: 9, 8, 8>}, {transform_indices = @transform_2, window_bounds = array<i64: 1, 8>}, {transform_indices = @transform_3, window_bounds = array<i64: 64, 8>}]} {
    %c0 = arith.constant 0 : index
    %c0_0 = arith.constant 0 : index
    %0 = vector.load %arg3[%c0, %c0_0] : memref<320x8xbf16, #tpu.memory_space<vmem>>, vector<64x8xbf16>
    %c0_1 = arith.constant 0 : index
    %c0_2 = arith.constant 0 : index
    %c0_3 = arith.constant 0 : index
    %1 = vector.load %arg4[%c0_1, %c0_2, %c0_3] : memref<9x8x8xbf16, #tpu.memory_space<vmem>>, vector<1x8x8xbf16>
    %2 = vector.shape_cast %1 : vector<1x8x8xbf16> to vector<8x8xbf16>
    %cst = arith.constant dense<0.000000e+00> : vector<64x8xf32>
    %3 = tpu.matmul %0, %2, %cst {dimension_numbers = #tpu.dot_dimension_numbers<[1], [0], [0], [1], [0, 0, 1, 1], [], []>} : vector<64x8xbf16>, vector<8x8xbf16>, vector<64x8xf32> -> vector<64x8xf32>
    %c0_4 = arith.constant 0 : index
    %c0_5 = arith.constant 0 : index
    %4 = vector.load %arg7[%c0_4, %c0_5] : memref<64x8xf32, #tpu.memory_space<vmem>>, vector<64x8xf32>
    tpu.vector_store %arg7[%c0_4, %c0_5], %3 {strides = array<i32>} : memref<64x8xf32, #tpu.memory_space<vmem>>, vector<64x8xf32>,
    %c80 = arith.constant 80 : index
    %c0_6 = arith.constant 0 : index
    %5 = vector.load %arg3[%c80, %c0_6] : memref<320x8xbf16, #tpu.memory_space<vmem>>, vector<64x8xbf16>
    %c1 = arith.constant 1 : index
    %c0_7 = arith.constant 0 : index
    %c0_8 = arith.constant 0 : index
    %6 = vector.load %arg4[%c1, %c0_7, %c0_8] : memref<9x8x8xbf16, #tpu.memory_space<vmem>>, vector<1x8x8xbf16>
    %7 = vector.shape_cast %6 : vector<1x8x8xbf16> to vector<8x8xbf16>
    %cst_9 = arith.constant dense<0.000000e+00> : vector<64x8xf32>
    %8 = tpu.matmul %5, %7, %cst_9 {dimension_numbers = #tpu.dot_dimension_numbers<[1], [0], [0], [1], [0, 0, 1, 1], [], []>} : vector<64x8xbf16>, vector<8x8xbf16>, vector<64x8xf32> -> vector<64x8xf32>
    %c0_10 = arith.constant 0 : index
    %c0_11 = arith.constant 0 : index
    %9 = vector.load %arg7[%c0_10, %c0_11] : memref<64x8xf32, #tpu.memory_space<vmem>>, vector<64x8xf32>
    %10 = arith.addf %9, %8 : vector<64x8xf32>
    %c0_12 = arith.constant 0 : index
    %c0_13 = arith.constant 0 : index
    %11 = vector.load %arg7[%c0_12, %c0_13] : memref<64x8xf32, #tpu.memory_space<vmem>>, vector<64x8xf32>
    tpu.vector_store %arg7[%c0_12, %c0_13], %10 {strides = array<i32>} : memref<64x8xf32, #tpu.memory_space<vmem>>, vector<64x8xf32>,
    %c2 = arith.constant 2 : index
    %c0_14 = arith.constant 0 : index
    %12 = vector.load %arg3[%c2, %c0_14] : memref<320x8xbf16, #tpu.memory_space<vmem>>, vector<64x8xbf16>
    %c2_15 = arith.constant 2 : index
    %c0_16 = arith.constant 0 : index
    %c0_17 = arith.constant 0 : index
    %13 = vector.load %arg4[%c2_15, %c0_16, %c0_17] : memref<9x8x8xbf16, #tpu.memory_space<vmem>>, vector<1x8x8xbf16>
    %14 = vector.shape_cast %13 : vector<1x8x8xbf16> to vector<8x8xbf16>
    %cst_18 = arith.constant dense<0.000000e+00> : vector<64x8xf32>
    %15 = tpu.matmul %12, %14, %cst_18 {dimension_numbers = #tpu.dot_dimension_numbers<[1], [0], [0], [1], [0, 0, 1, 1], [], []>} : vector<64x8xbf16>, vector<8x8xbf16>, vector<64x8xf32> -> vector<64x8xf32>
    %c0_19 = arith.constant 0 : index
    %c0_20 = arith.constant 0 : index
    %16 = vector.load %arg7[%c0_19, %c0_20] : memref<64x8xf32, #tpu.memory_space<vmem>>, vector<64x8xf32>
    %17 = arith.addf %16, %15 : vector<64x8xf32>
    %c0_21 = arith.constant 0 : index
    %c0_22 = arith.constant 0 : index
    %18 = vector.load %arg7[%c0_21, %c0_22] : memref<64x8xf32, #tpu.memory_space<vmem>>, vector<64x8xf32>
    tpu.vector_store %arg7[%c0_21, %c0_22], %17 {strides = array<i32>} : memref<64x8xf32, #tpu.memory_space<vmem>>, vector<64x8xf32>,
    %c160 = arith.constant 160 : index
    %c0_23 = arith.constant 0 : index
    %19 = vector.load %arg3[%c160, %c0_23] : memref<320x8xbf16, #tpu.memory_space<vmem>>, vector<64x8xbf16>
    %c3 = arith.constant 3 : index
    %c0_24 = arith.constant 0 : index
    %c0_25 = arith.constant 0 : index
    %20 = vector.load %arg4[%c3, %c0_24, %c0_25] : memref<9x8x8xbf16, #tpu.memory_space<vmem>>, vector<1x8x8xbf16>
    %21 = vector.shape_cast %20 : vector<1x8x8xbf16> to vector<8x8xbf16>
    %cst_26 = arith.constant dense<0.000000e+00> : vector<64x8xf32>
    %22 = tpu.matmul %19, %21, %cst_26 {dimension_numbers = #tpu.dot_dimension_numbers<[1], [0], [0], [1], [0, 0, 1, 1], [], []>} : vector<64x8xbf16>, vector<8x8xbf16>, vector<64x8xf32> -> vector<64x8xf32>
    %c0_27 = arith.constant 0 : index
    %c0_28 = arith.constant 0 : index
    %23 = vector.load %arg7[%c0_27, %c0_28] : memref<64x8xf32, #tpu.memory_space<vmem>>, vector<64x8xf32>
    %24 = arith.addf %23, %22 : vector<64x8xf32>
    %c0_29 = arith.constant 0 : index
    %c0_30 = arith.constant 0 : index
    %25 = vector.load %arg7[%c0_29, %c0_30] : memref<64x8xf32, #tpu.memory_space<vmem>>, vector<64x8xf32>
    tpu.vector_store %arg7[%c0_29, %c0_30], %24 {strides = array<i32>} : memref<64x8xf32, #tpu.memory_space<vmem>>, vector<64x8xf32>,
    %c240 = arith.constant 240 : index
    %c0_31 = arith.constant 0 : index
    %26 = vector.load %arg3[%c240, %c0_31] : memref<320x8xbf16, #tpu.memory_space<vmem>>, vector<64x8xbf16>
    %c4 = arith.constant 4 : index
    %c0_32 = arith.constant 0 : index
    %c0_33 = arith.constant 0 : index
    %27 = vector.load %arg4[%c4, %c0_32, %c0_33] : memref<9x8x8xbf16, #tpu.memory_space<vmem>>, vector<1x8x8xbf16>
    %28 = vector.shape_cast %27 : vector<1x8x8xbf16> to vector<8x8xbf16>
    %cst_34 = arith.constant dense<0.000000e+00> : vector<64x8xf32>
    %29 = tpu.matmul %26, %28, %cst_34 {dimension_numbers = #tpu.dot_dimension_numbers<[1], [0], [0], [1], [0, 0, 1, 1], [], []>} : vector<64x8xbf16>, vector<8x8xbf16>, vector<64x8xf32> -> vector<64x8xf32>
    %c0_35 = arith.constant 0 : index
    %c0_36 = arith.constant 0 : index
    %30 = vector.load %arg7[%c0_35, %c0_36] : memref<64x8xf32, #tpu.memory_space<vmem>>, vector<64x8xf32>
    %31 = arith.addf %30, %29 : vector<64x8xf32>
    %c0_37 = arith.constant 0 : index
    %c0_38 = arith.constant 0 : index
    %32 = vector.load %arg7[%c0_37, %c0_38] : memref<64x8xf32, #tpu.memory_space<vmem>>, vector<64x8xf32>
    tpu.vector_store %arg7[%c0_37, %c0_38], %31 {strides = array<i32>} : memref<64x8xf32, #tpu.memory_space<vmem>>, vector<64x8xf32>,
    %c162 = arith.constant 162 : index
    %c0_39 = arith.constant 0 : index
    %33 = vector.load %arg3[%c162, %c0_39] : memref<320x8xbf16, #tpu.memory_space<vmem>>, vector<64x8xbf16>
    %c5 = arith.constant 5 : index
    %c0_40 = arith.constant 0 : index
    %c0_41 = arith.constant 0 : index
    %34 = vector.load %arg4[%c5, %c0_40, %c0_41] : memref<9x8x8xbf16, #tpu.memory_space<vmem>>, vector<1x8x8xbf16>
    %35 = vector.shape_cast %34 : vector<1x8x8xbf16> to vector<8x8xbf16>
    %cst_42 = arith.constant dense<0.000000e+00> : vector<64x8xf32>
    %36 = tpu.matmul %33, %35, %cst_42 {dimension_numbers = #tpu.dot_dimension_numbers<[1], [0], [0], [1], [0, 0, 1, 1], [], []>} : vector<64x8xbf16>, vector<8x8xbf16>, vector<64x8xf32> -> vector<64x8xf32>
    %c0_43 = arith.constant 0 : index
    %c0_44 = arith.constant 0 : index
    %37 = vector.load %arg7[%c0_43, %c0_44] : memref<64x8xf32, #tpu.memory_space<vmem>>, vector<64x8xf32>
    %38 = arith.addf %37, %36 : vector<64x8xf32>
    %c0_45 = arith.constant 0 : index
    %c0_46 = arith.constant 0 : index
    %39 = vector.load %arg7[%c0_45, %c0_46] : memref<64x8xf32, #tpu.memory_space<vmem>>, vector<64x8xf32>
    tpu.vector_store %arg7[%c0_45, %c0_46], %38 {strides = array<i32>} : memref<64x8xf32, #tpu.memory_space<vmem>>, vector<64x8xf32>,
    %c16 = arith.constant 16 : index
    %c0_47 = arith.constant 0 : index
    %40 = vector.load %arg3[%c16, %c0_47] : memref<320x8xbf16, #tpu.memory_space<vmem>>, vector<64x8xbf16>
    %c6 = arith.constant 6 : index
    %c0_48 = arith.constant 0 : index
    %c0_49 = arith.constant 0 : index
    %41 = vector.load %arg4[%c6, %c0_48, %c0_49] : memref<9x8x8xbf16, #tpu.memory_space<vmem>>, vector<1x8x8xbf16>
    %42 = vector.shape_cast %41 : vector<1x8x8xbf16> to vector<8x8xbf16>
    %cst_50 = arith.constant dense<0.000000e+00> : vector<64x8xf32>
    %43 = tpu.matmul %40, %42, %cst_50 {dimension_numbers = #tpu.dot_dimension_numbers<[1], [0], [0], [1], [0, 0, 1, 1], [], []>} : vector<64x8xbf16>, vector<8x8xbf16>, vector<64x8xf32> -> vector<64x8xf32>
    %c0_51 = arith.constant 0 : index
    %c0_52 = arith.constant 0 : index
    %44 = vector.load %arg7[%c0_51, %c0_52] : memref<64x8xf32, #tpu.memory_space<vmem>>, vector<64x8xf32>
    %45 = arith.addf %44, %43 : vector<64x8xf32>
    %c0_53 = arith.constant 0 : index
    %c0_54 = arith.constant 0 : index
    %46 = vector.load %arg7[%c0_53, %c0_54] : memref<64x8xf32, #tpu.memory_space<vmem>>, vector<64x8xf32>
    tpu.vector_store %arg7[%c0_53, %c0_54], %45 {strides = array<i32>} : memref<64x8xf32, #tpu.memory_space<vmem>>, vector<64x8xf32>,
    %c96 = arith.constant 96 : index
    %c0_55 = arith.constant 0 : index
    %47 = vector.load %arg3[%c96, %c0_55] : memref<320x8xbf16, #tpu.memory_space<vmem>>, vector<64x8xbf16>
    %c7 = arith.constant 7 : index
    %c0_56 = arith.constant 0 : index
    %c0_57 = arith.constant 0 : index
    %48 = vector.load %arg4[%c7, %c0_56, %c0_57] : memref<9x8x8xbf16, #tpu.memory_space<vmem>>, vector<1x8x8xbf16>
    %49 = vector.shape_cast %48 : vector<1x8x8xbf16> to vector<8x8xbf16>
    %cst_58 = arith.constant dense<0.000000e+00> : vector<64x8xf32>
    %50 = tpu.matmul %47, %49, %cst_58 {dimension_numbers = #tpu.dot_dimension_numbers<[1], [0], [0], [1], [0, 0, 1, 1], [], []>} : vector<64x8xbf16>, vector<8x8xbf16>, vector<64x8xf32> -> vector<64x8xf32>
    %c0_59 = arith.constant 0 : index
    %c0_60 = arith.constant 0 : index
    %51 = vector.load %arg7[%c0_59, %c0_60] : memref<64x8xf32, #tpu.memory_space<vmem>>, vector<64x8xf32>
    %52 = arith.addf %51, %50 : vector<64x8xf32>
    %c0_61 = arith.constant 0 : index
    %c0_62 = arith.constant 0 : index
    %53 = vector.load %arg7[%c0_61, %c0_62] : memref<64x8xf32, #tpu.memory_space<vmem>>, vector<64x8xf32>
    tpu.vector_store %arg7[%c0_61, %c0_62], %52 {strides = array<i32>} : memref<64x8xf32, #tpu.memory_space<vmem>>, vector<64x8xf32>,
    %c18 = arith.constant 18 : index
    %c0_63 = arith.constant 0 : index
    %54 = vector.load %arg3[%c18, %c0_63] : memref<320x8xbf16, #tpu.memory_space<vmem>>, vector<64x8xbf16>
    %c8 = arith.constant 8 : index
    %c0_64 = arith.constant 0 : index
    %c0_65 = arith.constant 0 : index
    %55 = vector.load %arg4[%c8, %c0_64, %c0_65] : memref<9x8x8xbf16, #tpu.memory_space<vmem>>, vector<1x8x8xbf16>
    %56 = vector.shape_cast %55 : vector<1x8x8xbf16> to vector<8x8xbf16>
    %cst_66 = arith.constant dense<0.000000e+00> : vector<64x8xf32>
    %57 = tpu.matmul %54, %56, %cst_66 {dimension_numbers = #tpu.dot_dimension_numbers<[1], [0], [0], [1], [0, 0, 1, 1], [], []>} : vector<64x8xbf16>, vector<8x8xbf16>, vector<64x8xf32> -> vector<64x8xf32>
    %c0_67 = arith.constant 0 : index
    %c0_68 = arith.constant 0 : index
    %58 = vector.load %arg7[%c0_67, %c0_68] : memref<64x8xf32, #tpu.memory_space<vmem>>, vector<64x8xf32>
    %59 = arith.addf %58, %57 : vector<64x8xf32>
    %c0_69 = arith.constant 0 : index
    %c0_70 = arith.constant 0 : index
    %60 = vector.load %arg7[%c0_69, %c0_70] : memref<64x8xf32, #tpu.memory_space<vmem>>, vector<64x8xf32>
    tpu.vector_store %arg7[%c0_69, %c0_70], %59 {strides = array<i32>} : memref<64x8xf32, #tpu.memory_space<vmem>>, vector<64x8xf32>,
    %c0_71 = arith.constant 0 : index
    %c0_72 = arith.constant 0 : index
    %61 = vector.load %arg7[%c0_71, %c0_72] : memref<64x8xf32, #tpu.memory_space<vmem>>, vector<64x8xf32>
    %c0_73 = arith.constant 0 : index
    %c0_74 = arith.constant 0 : index
    %62 = vector.load %arg5[%c0_73, %c0_74] : memref<1x8xf32, #tpu.memory_space<vmem>>, vector<1x8xf32>
    %63 = vector.broadcast %62 : vector<1x8xf32> to vector<64x8xf32>
    %64 = arith.addf %61, %63 : vector<64x8xf32>
    %cst_75 = arith.constant 0.000000e+00 : f32
    %65 = vector.broadcast %cst_75 : f32 to vector<64x8xf32>
    %66 = arith.cmpf oge, %64, %65 : vector<64x8xf32>
    %cst_76 = arith.constant 0.00999999977 : f32
    %67 = vector.broadcast %cst_76 : f32 to vector<64x8xf32>
    %68 = arith.mulf %67, %64 : vector<64x8xf32>
    %69 = arith.select %66, %64, %68 : vector<64x8xi1>, vector<64x8xf32>
    %70 = arith.truncf %69 : vector<64x8xf32> to vector<64x8xbf16>
    %c0_77 = arith.constant 0 : index
    %c0_78 = arith.constant 0 : index
    %71 = vector.load %arg6[%c0_77, %c0_78] : memref<64x8xbf16, #tpu.memory_space<vmem>>, vector<64x8xbf16>
    tpu.vector_store %arg6[%c0_77, %c0_78], %70 {strides = array<i32>} : memref<64x8xbf16, #tpu.memory_space<vmem>>, vector<64x8xbf16>,
    return
  }
  func.func @transform_0(%arg0: i32, %arg1: i32, %arg2: i32) -> (i32, i32) {
    %c0_i32 = arith.constant 0 : i32
    %c0_i32_0 = arith.constant 0 : i32
    return %c0_i32, %arg2 : i32, i32
  }
  func.func @transform_1(%arg0: i32, %arg1: i32, %arg2: i32) -> (i32, i32, i32) {
    %c0_i32 = arith.constant 0 : i32
    %c0_i32_0 = arith.constant 0 : i32
    return %c0_i32, %arg2, %arg1 : i32, i32, i32
  }
  func.func @transform_2(%arg0: i32, %arg1: i32, %arg2: i32) -> (i32, i32) {
    %c0_i32 = arith.constant 0 : i32
    %c0_i32_0 = arith.constant 0 : i32
    return %c0_i32, %arg1 : i32, i32
  }
  func.func @transform_3(%arg0: i32, %arg1: i32, %arg2: i32) -> (i32, i32) {
    %c0_i32 = arith.constant 0 : i32
    %c0_i32_0 = arith.constant 0 : i32
    return %c0_i32, %arg1 : i32, i32
  }
}

module attributes {stable_mosaic.version = 11 : i64} {
  func.func @kernel(%arg0: i32, %arg1: i32, %arg2: i32, %arg3: memref<192x8xbf16, #tpu.memory_space<vmem>>, %arg4: memref<9x8x8xbf16, #tpu.memory_space<vmem>>, %arg5: memref<1x8xf32, #tpu.memory_space<vmem>>, %arg6: memref<32x8xbf16, #tpu.memory_space<vmem>>, %arg7: memref<32x8xf32, #tpu.memory_space<vmem>>) attributes {dimension_semantics = [#tpu.dimension_semantics<parallel>, #tpu.dimension_semantics<parallel>, #tpu.dimension_semantics<arbitrary>], iteration_bounds = array<i64: 1, 1, 1>, scalar_prefetch = 0 : i64, scratch_operands = 1 : i64, tpu.core_type = #tpu.core_type<tc>, window_params = [{transform_indices = @transform_0, window_bounds = array<i64: 192, 8>}, {transform_indices = @transform_1, window_bounds = array<i64: 9, 8, 8>}, {transform_indices = @transform_2, window_bounds = array<i64: 1, 8>}, {transform_indices = @transform_3, window_bounds = array<i64: 32, 8>}]} {
    %c0 = arith.constant 0 : index
    %c0_0 = arith.constant 0 : index
    %0 = vector.load %arg3[%c0, %c0_0] : memref<192x8xbf16, #tpu.memory_space<vmem>>, vector<32x8xbf16>
    %c0_1 = arith.constant 0 : index
    %c0_2 = arith.constant 0 : index
    %c0_3 = arith.constant 0 : index
    %1 = vector.load %arg4[%c0_1, %c0_2, %c0_3] : memref<9x8x8xbf16, #tpu.memory_space<vmem>>, vector<1x8x8xbf16>
    %2 = vector.shape_cast %1 : vector<1x8x8xbf16> to vector<8x8xbf16>
    %cst = arith.constant dense<0.000000e+00> : vector<32x8xf32>
    %3 = tpu.matmul %0, %2, %cst {dimension_numbers = #tpu.dot_dimension_numbers<[1], [0], [0], [1], [0, 0, 1, 1], [], []>} : vector<32x8xbf16>, vector<8x8xbf16>, vector<32x8xf32> -> vector<32x8xf32>
    %c0_4 = arith.constant 0 : index
    %c0_5 = arith.constant 0 : index
    %4 = vector.load %arg7[%c0_4, %c0_5] : memref<32x8xf32, #tpu.memory_space<vmem>>, vector<32x8xf32>
    tpu.vector_store %arg7[%c0_4, %c0_5], %3 {strides = array<i32>} : memref<32x8xf32, #tpu.memory_space<vmem>>, vector<32x8xf32>,
    %c48 = arith.constant 48 : index
    %c0_6 = arith.constant 0 : index
    %5 = vector.load %arg3[%c48, %c0_6] : memref<192x8xbf16, #tpu.memory_space<vmem>>, vector<32x8xbf16>
    %c1 = arith.constant 1 : index
    %c0_7 = arith.constant 0 : index
    %c0_8 = arith.constant 0 : index
    %6 = vector.load %arg4[%c1, %c0_7, %c0_8] : memref<9x8x8xbf16, #tpu.memory_space<vmem>>, vector<1x8x8xbf16>
    %7 = vector.shape_cast %6 : vector<1x8x8xbf16> to vector<8x8xbf16>
    %cst_9 = arith.constant dense<0.000000e+00> : vector<32x8xf32>
    %8 = tpu.matmul %5, %7, %cst_9 {dimension_numbers = #tpu.dot_dimension_numbers<[1], [0], [0], [1], [0, 0, 1, 1], [], []>} : vector<32x8xbf16>, vector<8x8xbf16>, vector<32x8xf32> -> vector<32x8xf32>
    %c0_10 = arith.constant 0 : index
    %c0_11 = arith.constant 0 : index
    %9 = vector.load %arg7[%c0_10, %c0_11] : memref<32x8xf32, #tpu.memory_space<vmem>>, vector<32x8xf32>
    %10 = arith.addf %9, %8 : vector<32x8xf32>
    %c0_12 = arith.constant 0 : index
    %c0_13 = arith.constant 0 : index
    %11 = vector.load %arg7[%c0_12, %c0_13] : memref<32x8xf32, #tpu.memory_space<vmem>>, vector<32x8xf32>
    tpu.vector_store %arg7[%c0_12, %c0_13], %10 {strides = array<i32>} : memref<32x8xf32, #tpu.memory_space<vmem>>, vector<32x8xf32>,
    %c2 = arith.constant 2 : index
    %c0_14 = arith.constant 0 : index
    %12 = vector.load %arg3[%c2, %c0_14] : memref<192x8xbf16, #tpu.memory_space<vmem>>, vector<32x8xbf16>
    %c2_15 = arith.constant 2 : index
    %c0_16 = arith.constant 0 : index
    %c0_17 = arith.constant 0 : index
    %13 = vector.load %arg4[%c2_15, %c0_16, %c0_17] : memref<9x8x8xbf16, #tpu.memory_space<vmem>>, vector<1x8x8xbf16>
    %14 = vector.shape_cast %13 : vector<1x8x8xbf16> to vector<8x8xbf16>
    %cst_18 = arith.constant dense<0.000000e+00> : vector<32x8xf32>
    %15 = tpu.matmul %12, %14, %cst_18 {dimension_numbers = #tpu.dot_dimension_numbers<[1], [0], [0], [1], [0, 0, 1, 1], [], []>} : vector<32x8xbf16>, vector<8x8xbf16>, vector<32x8xf32> -> vector<32x8xf32>
    %c0_19 = arith.constant 0 : index
    %c0_20 = arith.constant 0 : index
    %16 = vector.load %arg7[%c0_19, %c0_20] : memref<32x8xf32, #tpu.memory_space<vmem>>, vector<32x8xf32>
    %17 = arith.addf %16, %15 : vector<32x8xf32>
    %c0_21 = arith.constant 0 : index
    %c0_22 = arith.constant 0 : index
    %18 = vector.load %arg7[%c0_21, %c0_22] : memref<32x8xf32, #tpu.memory_space<vmem>>, vector<32x8xf32>
    tpu.vector_store %arg7[%c0_21, %c0_22], %17 {strides = array<i32>} : memref<32x8xf32, #tpu.memory_space<vmem>>, vector<32x8xf32>,
    %c96 = arith.constant 96 : index
    %c0_23 = arith.constant 0 : index
    %19 = vector.load %arg3[%c96, %c0_23] : memref<192x8xbf16, #tpu.memory_space<vmem>>, vector<32x8xbf16>
    %c3 = arith.constant 3 : index
    %c0_24 = arith.constant 0 : index
    %c0_25 = arith.constant 0 : index
    %20 = vector.load %arg4[%c3, %c0_24, %c0_25] : memref<9x8x8xbf16, #tpu.memory_space<vmem>>, vector<1x8x8xbf16>
    %21 = vector.shape_cast %20 : vector<1x8x8xbf16> to vector<8x8xbf16>
    %cst_26 = arith.constant dense<0.000000e+00> : vector<32x8xf32>
    %22 = tpu.matmul %19, %21, %cst_26 {dimension_numbers = #tpu.dot_dimension_numbers<[1], [0], [0], [1], [0, 0, 1, 1], [], []>} : vector<32x8xbf16>, vector<8x8xbf16>, vector<32x8xf32> -> vector<32x8xf32>
    %c0_27 = arith.constant 0 : index
    %c0_28 = arith.constant 0 : index
    %23 = vector.load %arg7[%c0_27, %c0_28] : memref<32x8xf32, #tpu.memory_space<vmem>>, vector<32x8xf32>
    %24 = arith.addf %23, %22 : vector<32x8xf32>
    %c0_29 = arith.constant 0 : index
    %c0_30 = arith.constant 0 : index
    %25 = vector.load %arg7[%c0_29, %c0_30] : memref<32x8xf32, #tpu.memory_space<vmem>>, vector<32x8xf32>
    tpu.vector_store %arg7[%c0_29, %c0_30], %24 {strides = array<i32>} : memref<32x8xf32, #tpu.memory_space<vmem>>, vector<32x8xf32>,
    %c144 = arith.constant 144 : index
    %c0_31 = arith.constant 0 : index
    %26 = vector.load %arg3[%c144, %c0_31] : memref<192x8xbf16, #tpu.memory_space<vmem>>, vector<32x8xbf16>
    %c4 = arith.constant 4 : index
    %c0_32 = arith.constant 0 : index
    %c0_33 = arith.constant 0 : index
    %27 = vector.load %arg4[%c4, %c0_32, %c0_33] : memref<9x8x8xbf16, #tpu.memory_space<vmem>>, vector<1x8x8xbf16>
    %28 = vector.shape_cast %27 : vector<1x8x8xbf16> to vector<8x8xbf16>
    %cst_34 = arith.constant dense<0.000000e+00> : vector<32x8xf32>
    %29 = tpu.matmul %26, %28, %cst_34 {dimension_numbers = #tpu.dot_dimension_numbers<[1], [0], [0], [1], [0, 0, 1, 1], [], []>} : vector<32x8xbf16>, vector<8x8xbf16>, vector<32x8xf32> -> vector<32x8xf32>
    %c0_35 = arith.constant 0 : index
    %c0_36 = arith.constant 0 : index
    %30 = vector.load %arg7[%c0_35, %c0_36] : memref<32x8xf32, #tpu.memory_space<vmem>>, vector<32x8xf32>
    %31 = arith.addf %30, %29 : vector<32x8xf32>
    %c0_37 = arith.constant 0 : index
    %c0_38 = arith.constant 0 : index
    %32 = vector.load %arg7[%c0_37, %c0_38] : memref<32x8xf32, #tpu.memory_space<vmem>>, vector<32x8xf32>
    tpu.vector_store %arg7[%c0_37, %c0_38], %31 {strides = array<i32>} : memref<32x8xf32, #tpu.memory_space<vmem>>, vector<32x8xf32>,
    %c98 = arith.constant 98 : index
    %c0_39 = arith.constant 0 : index
    %33 = vector.load %arg3[%c98, %c0_39] : memref<192x8xbf16, #tpu.memory_space<vmem>>, vector<32x8xbf16>
    %c5 = arith.constant 5 : index
    %c0_40 = arith.constant 0 : index
    %c0_41 = arith.constant 0 : index
    %34 = vector.load %arg4[%c5, %c0_40, %c0_41] : memref<9x8x8xbf16, #tpu.memory_space<vmem>>, vector<1x8x8xbf16>
    %35 = vector.shape_cast %34 : vector<1x8x8xbf16> to vector<8x8xbf16>
    %cst_42 = arith.constant dense<0.000000e+00> : vector<32x8xf32>
    %36 = tpu.matmul %33, %35, %cst_42 {dimension_numbers = #tpu.dot_dimension_numbers<[1], [0], [0], [1], [0, 0, 1, 1], [], []>} : vector<32x8xbf16>, vector<8x8xbf16>, vector<32x8xf32> -> vector<32x8xf32>
    %c0_43 = arith.constant 0 : index
    %c0_44 = arith.constant 0 : index
    %37 = vector.load %arg7[%c0_43, %c0_44] : memref<32x8xf32, #tpu.memory_space<vmem>>, vector<32x8xf32>
    %38 = arith.addf %37, %36 : vector<32x8xf32>
    %c0_45 = arith.constant 0 : index
    %c0_46 = arith.constant 0 : index
    %39 = vector.load %arg7[%c0_45, %c0_46] : memref<32x8xf32, #tpu.memory_space<vmem>>, vector<32x8xf32>
    tpu.vector_store %arg7[%c0_45, %c0_46], %38 {strides = array<i32>} : memref<32x8xf32, #tpu.memory_space<vmem>>, vector<32x8xf32>,
    %c16 = arith.constant 16 : index
    %c0_47 = arith.constant 0 : index
    %40 = vector.load %arg3[%c16, %c0_47] : memref<192x8xbf16, #tpu.memory_space<vmem>>, vector<32x8xbf16>
    %c6 = arith.constant 6 : index
    %c0_48 = arith.constant 0 : index
    %c0_49 = arith.constant 0 : index
    %41 = vector.load %arg4[%c6, %c0_48, %c0_49] : memref<9x8x8xbf16, #tpu.memory_space<vmem>>, vector<1x8x8xbf16>
    %42 = vector.shape_cast %41 : vector<1x8x8xbf16> to vector<8x8xbf16>
    %cst_50 = arith.constant dense<0.000000e+00> : vector<32x8xf32>
    %43 = tpu.matmul %40, %42, %cst_50 {dimension_numbers = #tpu.dot_dimension_numbers<[1], [0], [0], [1], [0, 0, 1, 1], [], []>} : vector<32x8xbf16>, vector<8x8xbf16>, vector<32x8xf32> -> vector<32x8xf32>
    %c0_51 = arith.constant 0 : index
    %c0_52 = arith.constant 0 : index
    %44 = vector.load %arg7[%c0_51, %c0_52] : memref<32x8xf32, #tpu.memory_space<vmem>>, vector<32x8xf32>
    %45 = arith.addf %44, %43 : vector<32x8xf32>
    %c0_53 = arith.constant 0 : index
    %c0_54 = arith.constant 0 : index
    %46 = vector.load %arg7[%c0_53, %c0_54] : memref<32x8xf32, #tpu.memory_space<vmem>>, vector<32x8xf32>
    tpu.vector_store %arg7[%c0_53, %c0_54], %45 {strides = array<i32>} : memref<32x8xf32, #tpu.memory_space<vmem>>, vector<32x8xf32>,
    %c64 = arith.constant 64 : index
    %c0_55 = arith.constant 0 : index
    %47 = vector.load %arg3[%c64, %c0_55] : memref<192x8xbf16, #tpu.memory_space<vmem>>, vector<32x8xbf16>
    %c7 = arith.constant 7 : index
    %c0_56 = arith.constant 0 : index
    %c0_57 = arith.constant 0 : index
    %48 = vector.load %arg4[%c7, %c0_56, %c0_57] : memref<9x8x8xbf16, #tpu.memory_space<vmem>>, vector<1x8x8xbf16>
    %49 = vector.shape_cast %48 : vector<1x8x8xbf16> to vector<8x8xbf16>
    %cst_58 = arith.constant dense<0.000000e+00> : vector<32x8xf32>
    %50 = tpu.matmul %47, %49, %cst_58 {dimension_numbers = #tpu.dot_dimension_numbers<[1], [0], [0], [1], [0, 0, 1, 1], [], []>} : vector<32x8xbf16>, vector<8x8xbf16>, vector<32x8xf32> -> vector<32x8xf32>
    %c0_59 = arith.constant 0 : index
    %c0_60 = arith.constant 0 : index
    %51 = vector.load %arg7[%c0_59, %c0_60] : memref<32x8xf32, #tpu.memory_space<vmem>>, vector<32x8xf32>
    %52 = arith.addf %51, %50 : vector<32x8xf32>
    %c0_61 = arith.constant 0 : index
    %c0_62 = arith.constant 0 : index
    %53 = vector.load %arg7[%c0_61, %c0_62] : memref<32x8xf32, #tpu.memory_space<vmem>>, vector<32x8xf32>
    tpu.vector_store %arg7[%c0_61, %c0_62], %52 {strides = array<i32>} : memref<32x8xf32, #tpu.memory_space<vmem>>, vector<32x8xf32>,
    %c18 = arith.constant 18 : index
    %c0_63 = arith.constant 0 : index
    %54 = vector.load %arg3[%c18, %c0_63] : memref<192x8xbf16, #tpu.memory_space<vmem>>, vector<32x8xbf16>
    %c8 = arith.constant 8 : index
    %c0_64 = arith.constant 0 : index
    %c0_65 = arith.constant 0 : index
    %55 = vector.load %arg4[%c8, %c0_64, %c0_65] : memref<9x8x8xbf16, #tpu.memory_space<vmem>>, vector<1x8x8xbf16>
    %56 = vector.shape_cast %55 : vector<1x8x8xbf16> to vector<8x8xbf16>
    %cst_66 = arith.constant dense<0.000000e+00> : vector<32x8xf32>
    %57 = tpu.matmul %54, %56, %cst_66 {dimension_numbers = #tpu.dot_dimension_numbers<[1], [0], [0], [1], [0, 0, 1, 1], [], []>} : vector<32x8xbf16>, vector<8x8xbf16>, vector<32x8xf32> -> vector<32x8xf32>
    %c0_67 = arith.constant 0 : index
    %c0_68 = arith.constant 0 : index
    %58 = vector.load %arg7[%c0_67, %c0_68] : memref<32x8xf32, #tpu.memory_space<vmem>>, vector<32x8xf32>
    %59 = arith.addf %58, %57 : vector<32x8xf32>
    %c0_69 = arith.constant 0 : index
    %c0_70 = arith.constant 0 : index
    %60 = vector.load %arg7[%c0_69, %c0_70] : memref<32x8xf32, #tpu.memory_space<vmem>>, vector<32x8xf32>
    tpu.vector_store %arg7[%c0_69, %c0_70], %59 {strides = array<i32>} : memref<32x8xf32, #tpu.memory_space<vmem>>, vector<32x8xf32>,
    %c0_71 = arith.constant 0 : index
    %c0_72 = arith.constant 0 : index
    %61 = vector.load %arg7[%c0_71, %c0_72] : memref<32x8xf32, #tpu.memory_space<vmem>>, vector<32x8xf32>
    %c0_73 = arith.constant 0 : index
    %c0_74 = arith.constant 0 : index
    %62 = vector.load %arg5[%c0_73, %c0_74] : memref<1x8xf32, #tpu.memory_space<vmem>>, vector<1x8xf32>
    %63 = vector.broadcast %62 : vector<1x8xf32> to vector<32x8xf32>
    %64 = arith.addf %61, %63 : vector<32x8xf32>
    %cst_75 = arith.constant 0.000000e+00 : f32
    %65 = vector.broadcast %cst_75 : f32 to vector<32x8xf32>
    %66 = arith.cmpf oge, %64, %65 : vector<32x8xf32>
    %cst_76 = arith.constant 0.00999999977 : f32
    %67 = vector.broadcast %cst_76 : f32 to vector<32x8xf32>
    %68 = arith.mulf %67, %64 : vector<32x8xf32>
    %69 = arith.select %66, %64, %68 : vector<32x8xi1>, vector<32x8xf32>
    %70 = arith.truncf %69 : vector<32x8xf32> to vector<32x8xbf16>
    %c0_77 = arith.constant 0 : index
    %c0_78 = arith.constant 0 : index
    %71 = vector.load %arg6[%c0_77, %c0_78] : memref<32x8xbf16, #tpu.memory_space<vmem>>, vector<32x8xbf16>
    tpu.vector_store %arg6[%c0_77, %c0_78], %70 {strides = array<i32>} : memref<32x8xbf16, #tpu.memory_space<vmem>>, vector<32x8xbf16>,
    return
  }
  func.func @transform_0(%arg0: i32, %arg1: i32, %arg2: i32) -> (i32, i32) {
    %c0_i32 = arith.constant 0 : i32
    %c0_i32_0 = arith.constant 0 : i32
    return %c0_i32, %arg2 : i32, i32
  }
  func.func @transform_1(%arg0: i32, %arg1: i32, %arg2: i32) -> (i32, i32, i32) {
    %c0_i32 = arith.constant 0 : i32
    %c0_i32_0 = arith.constant 0 : i32
    return %c0_i32, %arg2, %arg1 : i32, i32, i32
  }
  func.func @transform_2(%arg0: i32, %arg1: i32, %arg2: i32) -> (i32, i32) {
    %c0_i32 = arith.constant 0 : i32
    %c0_i32_0 = arith.constant 0 : i32
    return %c0_i32, %arg1 : i32, i32
  }
  func.func @transform_3(%arg0: i32, %arg1: i32, %arg2: i32) -> (i32, i32) {
    %c0_i32 = arith.constant 0 : i32
    %c0_i32_0 = arith.constant 0 : i32
    return %c0_i32, %arg1 : i32, i32
  }
}

module attributes {stable_mosaic.version = 11 : i64} {
  func.func @kernel(%arg0: i32, %arg1: i32, %arg2: i32, %arg3: memref<128x8xbf16, #tpu.memory_space<vmem>>, %arg4: memref<9x8x8xbf16, #tpu.memory_space<vmem>>, %arg5: memref<1x8xf32, #tpu.memory_space<vmem>>, %arg6: memref<16x8xbf16, #tpu.memory_space<vmem>>, %arg7: memref<16x8xf32, #tpu.memory_space<vmem>>) attributes {dimension_semantics = [#tpu.dimension_semantics<parallel>, #tpu.dimension_semantics<parallel>, #tpu.dimension_semantics<arbitrary>], iteration_bounds = array<i64: 1, 1, 1>, scalar_prefetch = 0 : i64, scratch_operands = 1 : i64, tpu.core_type = #tpu.core_type<tc>, window_params = [{transform_indices = @transform_0, window_bounds = array<i64: 128, 8>}, {transform_indices = @transform_1, window_bounds = array<i64: 9, 8, 8>}, {transform_indices = @transform_2, window_bounds = array<i64: 1, 8>}, {transform_indices = @transform_3, window_bounds = array<i64: 16, 8>}]} {
    %c0 = arith.constant 0 : index
    %c0_0 = arith.constant 0 : index
    %0 = vector.load %arg3[%c0, %c0_0] : memref<128x8xbf16, #tpu.memory_space<vmem>>, vector<16x8xbf16>
    %c0_1 = arith.constant 0 : index
    %c0_2 = arith.constant 0 : index
    %c0_3 = arith.constant 0 : index
    %1 = vector.load %arg4[%c0_1, %c0_2, %c0_3] : memref<9x8x8xbf16, #tpu.memory_space<vmem>>, vector<1x8x8xbf16>
    %2 = vector.shape_cast %1 : vector<1x8x8xbf16> to vector<8x8xbf16>
    %cst = arith.constant dense<0.000000e+00> : vector<16x8xf32>
    %3 = tpu.matmul %0, %2, %cst {dimension_numbers = #tpu.dot_dimension_numbers<[1], [0], [0], [1], [0, 0, 1, 1], [], []>} : vector<16x8xbf16>, vector<8x8xbf16>, vector<16x8xf32> -> vector<16x8xf32>
    %c0_4 = arith.constant 0 : index
    %c0_5 = arith.constant 0 : index
    %4 = vector.load %arg7[%c0_4, %c0_5] : memref<16x8xf32, #tpu.memory_space<vmem>>, vector<16x8xf32>
    tpu.vector_store %arg7[%c0_4, %c0_5], %3 {strides = array<i32>} : memref<16x8xf32, #tpu.memory_space<vmem>>, vector<16x8xf32>,
    %c32 = arith.constant 32 : index
    %c0_6 = arith.constant 0 : index
    %5 = vector.load %arg3[%c32, %c0_6] : memref<128x8xbf16, #tpu.memory_space<vmem>>, vector<16x8xbf16>
    %c1 = arith.constant 1 : index
    %c0_7 = arith.constant 0 : index
    %c0_8 = arith.constant 0 : index
    %6 = vector.load %arg4[%c1, %c0_7, %c0_8] : memref<9x8x8xbf16, #tpu.memory_space<vmem>>, vector<1x8x8xbf16>
    %7 = vector.shape_cast %6 : vector<1x8x8xbf16> to vector<8x8xbf16>
    %cst_9 = arith.constant dense<0.000000e+00> : vector<16x8xf32>
    %8 = tpu.matmul %5, %7, %cst_9 {dimension_numbers = #tpu.dot_dimension_numbers<[1], [0], [0], [1], [0, 0, 1, 1], [], []>} : vector<16x8xbf16>, vector<8x8xbf16>, vector<16x8xf32> -> vector<16x8xf32>
    %c0_10 = arith.constant 0 : index
    %c0_11 = arith.constant 0 : index
    %9 = vector.load %arg7[%c0_10, %c0_11] : memref<16x8xf32, #tpu.memory_space<vmem>>, vector<16x8xf32>
    %10 = arith.addf %9, %8 : vector<16x8xf32>
    %c0_12 = arith.constant 0 : index
    %c0_13 = arith.constant 0 : index
    %11 = vector.load %arg7[%c0_12, %c0_13] : memref<16x8xf32, #tpu.memory_space<vmem>>, vector<16x8xf32>
    tpu.vector_store %arg7[%c0_12, %c0_13], %10 {strides = array<i32>} : memref<16x8xf32, #tpu.memory_space<vmem>>, vector<16x8xf32>,
    %c2 = arith.constant 2 : index
    %c0_14 = arith.constant 0 : index
    %12 = vector.load %arg3[%c2, %c0_14] : memref<128x8xbf16, #tpu.memory_space<vmem>>, vector<16x8xbf16>
    %c2_15 = arith.constant 2 : index
    %c0_16 = arith.constant 0 : index
    %c0_17 = arith.constant 0 : index
    %13 = vector.load %arg4[%c2_15, %c0_16, %c0_17] : memref<9x8x8xbf16, #tpu.memory_space<vmem>>, vector<1x8x8xbf16>
    %14 = vector.shape_cast %13 : vector<1x8x8xbf16> to vector<8x8xbf16>
    %cst_18 = arith.constant dense<0.000000e+00> : vector<16x8xf32>
    %15 = tpu.matmul %12, %14, %cst_18 {dimension_numbers = #tpu.dot_dimension_numbers<[1], [0], [0], [1], [0, 0, 1, 1], [], []>} : vector<16x8xbf16>, vector<8x8xbf16>, vector<16x8xf32> -> vector<16x8xf32>
    %c0_19 = arith.constant 0 : index
    %c0_20 = arith.constant 0 : index
    %16 = vector.load %arg7[%c0_19, %c0_20] : memref<16x8xf32, #tpu.memory_space<vmem>>, vector<16x8xf32>
    %17 = arith.addf %16, %15 : vector<16x8xf32>
    %c0_21 = arith.constant 0 : index
    %c0_22 = arith.constant 0 : index
    %18 = vector.load %arg7[%c0_21, %c0_22] : memref<16x8xf32, #tpu.memory_space<vmem>>, vector<16x8xf32>
    tpu.vector_store %arg7[%c0_21, %c0_22], %17 {strides = array<i32>} : memref<16x8xf32, #tpu.memory_space<vmem>>, vector<16x8xf32>,
    %c64 = arith.constant 64 : index
    %c0_23 = arith.constant 0 : index
    %19 = vector.load %arg3[%c64, %c0_23] : memref<128x8xbf16, #tpu.memory_space<vmem>>, vector<16x8xbf16>
    %c3 = arith.constant 3 : index
    %c0_24 = arith.constant 0 : index
    %c0_25 = arith.constant 0 : index
    %20 = vector.load %arg4[%c3, %c0_24, %c0_25] : memref<9x8x8xbf16, #tpu.memory_space<vmem>>, vector<1x8x8xbf16>
    %21 = vector.shape_cast %20 : vector<1x8x8xbf16> to vector<8x8xbf16>
    %cst_26 = arith.constant dense<0.000000e+00> : vector<16x8xf32>
    %22 = tpu.matmul %19, %21, %cst_26 {dimension_numbers = #tpu.dot_dimension_numbers<[1], [0], [0], [1], [0, 0, 1, 1], [], []>} : vector<16x8xbf16>, vector<8x8xbf16>, vector<16x8xf32> -> vector<16x8xf32>
    %c0_27 = arith.constant 0 : index
    %c0_28 = arith.constant 0 : index
    %23 = vector.load %arg7[%c0_27, %c0_28] : memref<16x8xf32, #tpu.memory_space<vmem>>, vector<16x8xf32>
    %24 = arith.addf %23, %22 : vector<16x8xf32>
    %c0_29 = arith.constant 0 : index
    %c0_30 = arith.constant 0 : index
    %25 = vector.load %arg7[%c0_29, %c0_30] : memref<16x8xf32, #tpu.memory_space<vmem>>, vector<16x8xf32>
    tpu.vector_store %arg7[%c0_29, %c0_30], %24 {strides = array<i32>} : memref<16x8xf32, #tpu.memory_space<vmem>>, vector<16x8xf32>,
    %c96 = arith.constant 96 : index
    %c0_31 = arith.constant 0 : index
    %26 = vector.load %arg3[%c96, %c0_31] : memref<128x8xbf16, #tpu.memory_space<vmem>>, vector<16x8xbf16>
    %c4 = arith.constant 4 : index
    %c0_32 = arith.constant 0 : index
    %c0_33 = arith.constant 0 : index
    %27 = vector.load %arg4[%c4, %c0_32, %c0_33] : memref<9x8x8xbf16, #tpu.memory_space<vmem>>, vector<1x8x8xbf16>
    %28 = vector.shape_cast %27 : vector<1x8x8xbf16> to vector<8x8xbf16>
    %cst_34 = arith.constant dense<0.000000e+00> : vector<16x8xf32>
    %29 = tpu.matmul %26, %28, %cst_34 {dimension_numbers = #tpu.dot_dimension_numbers<[1], [0], [0], [1], [0, 0, 1, 1], [], []>} : vector<16x8xbf16>, vector<8x8xbf16>, vector<16x8xf32> -> vector<16x8xf32>
    %c0_35 = arith.constant 0 : index
    %c0_36 = arith.constant 0 : index
    %30 = vector.load %arg7[%c0_35, %c0_36] : memref<16x8xf32, #tpu.memory_space<vmem>>, vector<16x8xf32>
    %31 = arith.addf %30, %29 : vector<16x8xf32>
    %c0_37 = arith.constant 0 : index
    %c0_38 = arith.constant 0 : index
    %32 = vector.load %arg7[%c0_37, %c0_38] : memref<16x8xf32, #tpu.memory_space<vmem>>, vector<16x8xf32>
    tpu.vector_store %arg7[%c0_37, %c0_38], %31 {strides = array<i32>} : memref<16x8xf32, #tpu.memory_space<vmem>>, vector<16x8xf32>,
    %c66 = arith.constant 66 : index
    %c0_39 = arith.constant 0 : index
    %33 = vector.load %arg3[%c66, %c0_39] : memref<128x8xbf16, #tpu.memory_space<vmem>>, vector<16x8xbf16>
    %c5 = arith.constant 5 : index
    %c0_40 = arith.constant 0 : index
    %c0_41 = arith.constant 0 : index
    %34 = vector.load %arg4[%c5, %c0_40, %c0_41] : memref<9x8x8xbf16, #tpu.memory_space<vmem>>, vector<1x8x8xbf16>
    %35 = vector.shape_cast %34 : vector<1x8x8xbf16> to vector<8x8xbf16>
    %cst_42 = arith.constant dense<0.000000e+00> : vector<16x8xf32>
    %36 = tpu.matmul %33, %35, %cst_42 {dimension_numbers = #tpu.dot_dimension_numbers<[1], [0], [0], [1], [0, 0, 1, 1], [], []>} : vector<16x8xbf16>, vector<8x8xbf16>, vector<16x8xf32> -> vector<16x8xf32>
    %c0_43 = arith.constant 0 : index
    %c0_44 = arith.constant 0 : index
    %37 = vector.load %arg7[%c0_43, %c0_44] : memref<16x8xf32, #tpu.memory_space<vmem>>, vector<16x8xf32>
    %38 = arith.addf %37, %36 : vector<16x8xf32>
    %c0_45 = arith.constant 0 : index
    %c0_46 = arith.constant 0 : index
    %39 = vector.load %arg7[%c0_45, %c0_46] : memref<16x8xf32, #tpu.memory_space<vmem>>, vector<16x8xf32>
    tpu.vector_store %arg7[%c0_45, %c0_46], %38 {strides = array<i32>} : memref<16x8xf32, #tpu.memory_space<vmem>>, vector<16x8xf32>,
    %c16 = arith.constant 16 : index
    %c0_47 = arith.constant 0 : index
    %40 = vector.load %arg3[%c16, %c0_47] : memref<128x8xbf16, #tpu.memory_space<vmem>>, vector<16x8xbf16>
    %c6 = arith.constant 6 : index
    %c0_48 = arith.constant 0 : index
    %c0_49 = arith.constant 0 : index
    %41 = vector.load %arg4[%c6, %c0_48, %c0_49] : memref<9x8x8xbf16, #tpu.memory_space<vmem>>, vector<1x8x8xbf16>
    %42 = vector.shape_cast %41 : vector<1x8x8xbf16> to vector<8x8xbf16>
    %cst_50 = arith.constant dense<0.000000e+00> : vector<16x8xf32>
    %43 = tpu.matmul %40, %42, %cst_50 {dimension_numbers = #tpu.dot_dimension_numbers<[1], [0], [0], [1], [0, 0, 1, 1], [], []>} : vector<16x8xbf16>, vector<8x8xbf16>, vector<16x8xf32> -> vector<16x8xf32>
    %c0_51 = arith.constant 0 : index
    %c0_52 = arith.constant 0 : index
    %44 = vector.load %arg7[%c0_51, %c0_52] : memref<16x8xf32, #tpu.memory_space<vmem>>, vector<16x8xf32>
    %45 = arith.addf %44, %43 : vector<16x8xf32>
    %c0_53 = arith.constant 0 : index
    %c0_54 = arith.constant 0 : index
    %46 = vector.load %arg7[%c0_53, %c0_54] : memref<16x8xf32, #tpu.memory_space<vmem>>, vector<16x8xf32>
    tpu.vector_store %arg7[%c0_53, %c0_54], %45 {strides = array<i32>} : memref<16x8xf32, #tpu.memory_space<vmem>>, vector<16x8xf32>,
    %c48 = arith.constant 48 : index
    %c0_55 = arith.constant 0 : index
    %47 = vector.load %arg3[%c48, %c0_55] : memref<128x8xbf16, #tpu.memory_space<vmem>>, vector<16x8xbf16>
    %c7 = arith.constant 7 : index
    %c0_56 = arith.constant 0 : index
    %c0_57 = arith.constant 0 : index
    %48 = vector.load %arg4[%c7, %c0_56, %c0_57] : memref<9x8x8xbf16, #tpu.memory_space<vmem>>, vector<1x8x8xbf16>
    %49 = vector.shape_cast %48 : vector<1x8x8xbf16> to vector<8x8xbf16>
    %cst_58 = arith.constant dense<0.000000e+00> : vector<16x8xf32>
    %50 = tpu.matmul %47, %49, %cst_58 {dimension_numbers = #tpu.dot_dimension_numbers<[1], [0], [0], [1], [0, 0, 1, 1], [], []>} : vector<16x8xbf16>, vector<8x8xbf16>, vector<16x8xf32> -> vector<16x8xf32>
    %c0_59 = arith.constant 0 : index
    %c0_60 = arith.constant 0 : index
    %51 = vector.load %arg7[%c0_59, %c0_60] : memref<16x8xf32, #tpu.memory_space<vmem>>, vector<16x8xf32>
    %52 = arith.addf %51, %50 : vector<16x8xf32>
    %c0_61 = arith.constant 0 : index
    %c0_62 = arith.constant 0 : index
    %53 = vector.load %arg7[%c0_61, %c0_62] : memref<16x8xf32, #tpu.memory_space<vmem>>, vector<16x8xf32>
    tpu.vector_store %arg7[%c0_61, %c0_62], %52 {strides = array<i32>} : memref<16x8xf32, #tpu.memory_space<vmem>>, vector<16x8xf32>,
    %c18 = arith.constant 18 : index
    %c0_63 = arith.constant 0 : index
    %54 = vector.load %arg3[%c18, %c0_63] : memref<128x8xbf16, #tpu.memory_space<vmem>>, vector<16x8xbf16>
    %c8 = arith.constant 8 : index
    %c0_64 = arith.constant 0 : index
    %c0_65 = arith.constant 0 : index
    %55 = vector.load %arg4[%c8, %c0_64, %c0_65] : memref<9x8x8xbf16, #tpu.memory_space<vmem>>, vector<1x8x8xbf16>
    %56 = vector.shape_cast %55 : vector<1x8x8xbf16> to vector<8x8xbf16>
    %cst_66 = arith.constant dense<0.000000e+00> : vector<16x8xf32>
    %57 = tpu.matmul %54, %56, %cst_66 {dimension_numbers = #tpu.dot_dimension_numbers<[1], [0], [0], [1], [0, 0, 1, 1], [], []>} : vector<16x8xbf16>, vector<8x8xbf16>, vector<16x8xf32> -> vector<16x8xf32>
    %c0_67 = arith.constant 0 : index
    %c0_68 = arith.constant 0 : index
    %58 = vector.load %arg7[%c0_67, %c0_68] : memref<16x8xf32, #tpu.memory_space<vmem>>, vector<16x8xf32>
    %59 = arith.addf %58, %57 : vector<16x8xf32>
    %c0_69 = arith.constant 0 : index
    %c0_70 = arith.constant 0 : index
    %60 = vector.load %arg7[%c0_69, %c0_70] : memref<16x8xf32, #tpu.memory_space<vmem>>, vector<16x8xf32>
    tpu.vector_store %arg7[%c0_69, %c0_70], %59 {strides = array<i32>} : memref<16x8xf32, #tpu.memory_space<vmem>>, vector<16x8xf32>,
    %c0_71 = arith.constant 0 : index
    %c0_72 = arith.constant 0 : index
    %61 = vector.load %arg7[%c0_71, %c0_72] : memref<16x8xf32, #tpu.memory_space<vmem>>, vector<16x8xf32>
    %c0_73 = arith.constant 0 : index
    %c0_74 = arith.constant 0 : index
    %62 = vector.load %arg5[%c0_73, %c0_74] : memref<1x8xf32, #tpu.memory_space<vmem>>, vector<1x8xf32>
    %63 = vector.broadcast %62 : vector<1x8xf32> to vector<16x8xf32>
    %64 = arith.addf %61, %63 : vector<16x8xf32>
    %cst_75 = arith.constant 0.000000e+00 : f32
    %65 = vector.broadcast %cst_75 : f32 to vector<16x8xf32>
    %66 = arith.cmpf oge, %64, %65 : vector<16x8xf32>
    %cst_76 = arith.constant 0.00999999977 : f32
    %67 = vector.broadcast %cst_76 : f32 to vector<16x8xf32>
    %68 = arith.mulf %67, %64 : vector<16x8xf32>
    %69 = arith.select %66, %64, %68 : vector<16x8xi1>, vector<16x8xf32>
    %70 = arith.truncf %69 : vector<16x8xf32> to vector<16x8xbf16>
    %c0_77 = arith.constant 0 : index
    %c0_78 = arith.constant 0 : index
    %71 = vector.load %arg6[%c0_77, %c0_78] : memref<16x8xbf16, #tpu.memory_space<vmem>>, vector<16x8xbf16>
    tpu.vector_store %arg6[%c0_77, %c0_78], %70 {strides = array<i32>} : memref<16x8xbf16, #tpu.memory_space<vmem>>, vector<16x8xbf16>,
    return
  }
  func.func @transform_0(%arg0: i32, %arg1: i32, %arg2: i32) -> (i32, i32) {
    %c0_i32 = arith.constant 0 : i32
    %c0_i32_0 = arith.constant 0 : i32
    return %c0_i32, %arg2 : i32, i32
  }
  func.func @transform_1(%arg0: i32, %arg1: i32, %arg2: i32) -> (i32, i32, i32) {
    %c0_i32 = arith.constant 0 : i32
    %c0_i32_0 = arith.constant 0 : i32
    return %c0_i32, %arg2, %arg1 : i32, i32, i32
  }
  func.func @transform_2(%arg0: i32, %arg1: i32, %arg2: i32) -> (i32, i32) {
    %c0_i32 = arith.constant 0 : i32
    %c0_i32_0 = arith.constant 0 : i32
    return %c0_i32, %arg1 : i32, i32
  }
  func.func @transform_3(%arg0: i32, %arg1: i32, %arg2: i32) -> (i32, i32) {
    %c0_i32 = arith.constant 0 : i32
    %c0_i32_0 = arith.constant 0 : i32
    return %c0_i32, %arg1 : i32, i32
  }
}

module attributes {stable_mosaic.version = 11 : i64} {
  func.func @_linear_kernel(%arg0: i32, %arg1: i32, %arg2: memref<2x8xbf16, #tpu.memory_space<vmem>>, %arg3: memref<8x8xbf16, #tpu.memory_space<vmem>>, %arg4: memref<1x8xf32, #tpu.memory_space<vmem>>, %arg5: memref<2x8xf32, #tpu.memory_space<vmem>>) attributes {dimension_semantics = [#tpu.dimension_semantics<parallel>, #tpu.dimension_semantics<parallel>], iteration_bounds = array<i64: 1, 1>, scalar_prefetch = 0 : i64, scratch_operands = 0 : i64, tpu.core_type = #tpu.core_type<tc>, window_params = [{pipeline_mode = #tpu.pipeline_mode<synchronous>, transform_indices = @transform_0, window_bounds = array<i64: 2, 8>}, {transform_indices = @transform_1, window_bounds = array<i64: 8, 8>}, {transform_indices = @transform_2, window_bounds = array<i64: 1, 8>}, {transform_indices = @transform_3, window_bounds = array<i64: 2, 8>}]} {
    %c0 = arith.constant 0 : index
    %c0_0 = arith.constant 0 : index
    %0 = vector.load %arg2[%c0, %c0_0] : memref<2x8xbf16, #tpu.memory_space<vmem>>, vector<2x8xbf16>
    %c0_1 = arith.constant 0 : index
    %c0_2 = arith.constant 0 : index
    %1 = vector.load %arg3[%c0_1, %c0_2] : memref<8x8xbf16, #tpu.memory_space<vmem>>, vector<8x8xbf16>
    %cst = arith.constant dense<0.000000e+00> : vector<2x8xf32>
    %2 = tpu.matmul %0, %1, %cst {dimension_numbers = #tpu.dot_dimension_numbers<[1], [0], [0], [1], [0, 0, 1, 1], [], []>} : vector<2x8xbf16>, vector<8x8xbf16>, vector<2x8xf32> -> vector<2x8xf32>
    %c0_3 = arith.constant 0 : index
    %c0_4 = arith.constant 0 : index
    %3 = vector.load %arg4[%c0_3, %c0_4] : memref<1x8xf32, #tpu.memory_space<vmem>>, vector<1x8xf32>
    %4 = vector.broadcast %3 : vector<1x8xf32> to vector<2x8xf32>
    %5 = arith.addf %2, %4 : vector<2x8xf32>
    %c0_5 = arith.constant 0 : index
    %c0_6 = arith.constant 0 : index
    %6 = vector.load %arg5[%c0_5, %c0_6] : memref<2x8xf32, #tpu.memory_space<vmem>>, vector<2x8xf32>
    tpu.vector_store %arg5[%c0_5, %c0_6], %5 {strides = array<i32>} : memref<2x8xf32, #tpu.memory_space<vmem>>, vector<2x8xf32>,
    return
  }
  func.func @transform_0(%arg0: i32, %arg1: i32) -> (i32, i32) {
    %c0_i32 = arith.constant 0 : i32
    %c0_i32_0 = arith.constant 0 : i32
    %c0_i32_1 = arith.constant 0 : i32
    return %c0_i32, %c0_i32_0 : i32, i32
  }
  func.func @transform_1(%arg0: i32, %arg1: i32) -> (i32, i32) {
    %c0_i32 = arith.constant 0 : i32
    %c0_i32_0 = arith.constant 0 : i32
    return %c0_i32, %arg1 : i32, i32
  }
  func.func @transform_2(%arg0: i32, %arg1: i32) -> (i32, i32) {
    %c0_i32 = arith.constant 0 : i32
    %c0_i32_0 = arith.constant 0 : i32
    return %c0_i32, %arg1 : i32, i32
  }
  func.func @transform_3(%arg0: i32, %arg1: i32) -> (i32, i32) {
    %c0_i32 = arith.constant 0 : i32
    %c0_i32_0 = arith.constant 0 : i32
    return %c0_i32, %arg1 : i32, i32
  }
}

</mosaic_0001>

<llo_original>
// kernel: map2style_forward.6
$region0: #{map2style_forward.6}
  #allocation0 [shape = 'u32[]', space=smem, size = 0x4, offset = 0x4, fixed_abs, tag = 'smem constant byte address 0x4 - core index']
  #allocation1 [shape = 'u32[144,128]{1,0:T(1,128)}', space=vmem, size = 0x12000, scoped, tag = 'internal scratch']
  #allocation2 [shape = 'f32[64,8]{1,0:T(8,128)}', space=vmem, size = 0x8000, scoped, tag = 'scratch operand']
  %s0 = inlined_call_operand.vmem [shape: bf16[320,8], index: 0, kind: input, shape index: {}]
  %s1 = inlined_call_operand.vmem [shape: bf16[9,8,8], index: 1, kind: input, shape index: {}]
  %s2 = inlined_call_operand.vmem [shape: f32[1,8], index: 2, kind: input, shape index: {}]
  %s3 = inlined_call_operand.vmem [shape: bf16[64,8], index: 3, kind: output, shape index: {}]
  %s4 = sld [smem:[#allocation0]]
  $region22: #{map2style_forward.6} parent=0
    _
  %s6 = ssub.s32 1, %s4
  %s7 = scalar_select 0, %s6, %s4
  // Predicated region
  $region2: #{map2style_forward.6} parent=0 // pred_check
    _
  $region3: #{map2style_forward.6} parent=0 // pred_check_branch
    %9 = sbr.rel (0) target = $region5
  $region4: #{map2style_forward.6} parent=0 // pred_region
    _
  $region5: #{map2style_forward.6} parent=0 // pred_fallthru
    _
  // Predicated region
  $region6: #{map2style_forward.6} parent=0 // pred_check
    _
  $region7: #{map2style_forward.6} parent=0 // pred_check_branch
    %11 = sbr.rel (0) target = $region9
  $region8: #{map2style_forward.6} parent=0 // pred_region
    _
  $region9: #{map2style_forward.6} parent=0 // pred_fallthru
    _
  // Predicated region
  $region10: #{map2style_forward.6} parent=0 // pred_check
    _
  $region11: #{map2style_forward.6} parent=0 // pred_check_branch
    %13 = sbr.rel (0) target = $region13
  $region12: #{map2style_forward.6} parent=0 // pred_region
    _
  $region13: #{map2style_forward.6} parent=0 // pred_fallthru
    _
  %v15 = vld [vmem:[%s0] sm:$0xf]
  %v16 = vld [vmem:[%s0 + $0x4] sm:$0xf]
  %v17 = vld [vmem:[%s0 + $0x8] sm:$0xf]
  %v18 = vld [vmem:[%s0 + $0xc] sm:$0xf]
  %v19 = vld [vmem:[%s0 + $0x10] sm:$0xf]
  %v20 = vld [vmem:[%s0 + $0x14] sm:$0xf]
  %v21 = vld [vmem:[%s0 + $0x18] sm:$0xf]
  %v22 = vld [vmem:[%s0 + $0x1c] sm:$0xf]
  %v23 = vld [vmem:[%s1] sm:$0xf]
  %v32 = vunpack.c.l.b16 %v15
  %v33 = vunpack.c.l.b16 %v16
  %v34 = vunpack.c.l.b16 %v17
  %v35 = vunpack.c.l.b16 %v18
  %v36 = vunpack.c.l.b16 %v19
  %v37 = vunpack.c.l.b16 %v20
  %v38 = vunpack.c.l.b16 %v21
  %v39 = vunpack.c.l.b16 %v22
  %v40 = vpack.c.b16 %v33, %v32
  %v41 = vpack.c.b16 %v35, %v34
  %v42 = vpack.c.b16 %v37, %v36
  %v43 = vpack.c.b16 %v39, %v38
  %vm44 = vcmask 64512
  %v46 = vsel %vm44, %v40, 0
  %v49 = vsel %vm44, %v41, 0
  %v52 = vsel %vm44, %v42, 0
  %v55 = vsel %vm44, %v43, 0
  %vm57 = vcmask 1043456
  %v59 = vsel %vm57, %v23, 0
  %61 = vmatprep.subr.bf16.mxu0 0
  %62 = vmatpush1.bf16.msra.mxu0 0
  %63 = vmatprep.subr.bf16.mxu0 0
  %64 = vmatpush1.bf16.msra.mxu0 0
  %65 = vmatprep.subr.bf16.mxu0 0
  %66 = vmatpush1.bf16.msra.mxu0 0
  %67 = vmatprep.subr.bf16.mxu0 0
  %68 = vmatpush1.bf16.msra.mxu0 0
  %69 = vmatprep.subr.bf16.mxu0 0
  %70 = vmatpush1.bf16.msra.mxu0 0
  %71 = vmatprep.subr.bf16.mxu0 0
  %72 = vmatpush1.bf16.msra.mxu0 0
  %73 = vmatprep.subr.bf16.mxu0 0
  %74 = vmatpush1.bf16.msra.mxu0 0
  %75 = vmatprep.subr.bf16.mxu0 0
  %76 = vmatpush1.bf16.msra.mxu0 %v59
  %77 = vmatprep.subr.bf16.mxu0 0
  %78 = vmatpush2.bf16.msra.mxu0 0
  %79 = vmatprep.subr.bf16.mxu0 0
  %80 = vmatpush2.bf16.msra.mxu0 0
  %81 = vmatprep.subr.bf16.mxu0 0
  %82 = vmatpush2.bf16.msra.mxu0 0
  %83 = vmatprep.subr.bf16.mxu0 0
  %84 = vmatpush2.bf16.msra.mxu0 0
  %85 = vmatprep.subr.bf16.mxu0 0
  %86 = vmatpush2.bf16.msra.mxu0 0
  %87 = vmatprep.subr.bf16.mxu0 0
  %88 = vmatpush2.bf16.msra.mxu0 0
  %89 = vmatprep.subr.bf16.mxu0 0
  %90 = vmatpush2.bf16.msra.mxu0 0
  %91 = vmatprep.subr.bf16.mxu0 0
  %92 = vmatpush2.bf16.msra.mxu0 0
  %93 = vmatprep.mubr.bf16.mxu0 0
  %94 = vmatmul.mubr.bf16.gmra.mxu0 %v46
  %v95 = vpop.f32.mrf.mxu0
  %v96 = vadd.f32 0.0, %v95
  %v97 = vpop.f32.mrf.mxu0
  %v98 = vpop.f32.mrf.mxu0
  %v99 = vadd.f32 0.0, %v98
  %v100 = vpop.f32.mrf.mxu0
  %101 = vmatprep.mubr.bf16.mxu0 0
  %102 = vmatmul.mubr.bf16.gmra.mxu0 %v49
  %v103 = vpop.f32.mrf.mxu0
  %v104 = vadd.f32 0.0, %v103
  %v105 = vpop.f32.mrf.mxu0
  %v106 = vpop.f32.mrf.mxu0
  %v107 = vadd.f32 0.0, %v106
  %v108 = vpop.f32.mrf.mxu0
  %109 = vmatprep.mubr.bf16.mxu0 0
  %110 = vmatmul.mubr.bf16.gmra.mxu0 %v52
  %v111 = vpop.f32.mrf.mxu0
  %v112 = vadd.f32 0.0, %v111
  %v113 = vpop.f32.mrf.mxu0
  %v114 = vpop.f32.mrf.mxu0
  %v115 = vadd.f32 0.0, %v114
  %v116 = vpop.f32.mrf.mxu0
  %117 = vmatprep.mubr.bf16.mxu0 0
  %118 = vmatmul.mubr.bf16.gmra.mxu0 %v55
  %v119 = vpop.f32.mrf.mxu0
  %v120 = vadd.f32 0.0, %v119
  %v121 = vpop.f32.mrf.mxu0
  %v122 = vpop.f32.mrf.mxu0
  %v123 = vadd.f32 0.0, %v122
  %v124 = vpop.f32.mrf.mxu0
  %125 = vdwg.mxu0
  %126 = vst.msk [vmem:[#allocation2] sm:$0xff] %vm44, %v96
  %127 = vst.msk [vmem:[#allocation2 + $0x8] sm:$0xff] %vm44, %v99
  %128 = vst.msk [vmem:[#allocation2 + $0x10] sm:$0xff] %vm44, %v104
  %129 = vst.msk [vmem:[#allocation2 + $0x18] sm:$0xff] %vm44, %v107
  %130 = vst.msk [vmem:[#allocation2 + $0x20] sm:$0xff] %vm44, %v112
  %131 = vst.msk [vmem:[#allocation2 + $0x28] sm:$0xff] %vm44, %v115
  %132 = vst.msk [vmem:[#allocation2 + $0x30] sm:$0xff] %vm44, %v120
  %133 = vst.msk [vmem:[#allocation2 + $0x38] sm:$0xff] %vm44, %v123
  %v134 = vld [vmem:[%s0 + $0x28] sm:$0xf]
  %v135 = vld [vmem:[%s0 + $0x2c] sm:$0xf]
  %v136 = vld [vmem:[%s0 + $0x30] sm:$0xf]
  %v137 = vld [vmem:[%s0 + $0x34] sm:$0xf]
  %v138 = vld [vmem:[%s0 + $0x38] sm:$0xf]
  %v139 = vld [vmem:[%s0 + $0x3c] sm:$0xf]
  %v140 = vld [vmem:[%s0 + $0x40] sm:$0xf]
  %v141 = vld [vmem:[%s0 + $0x44] sm:$0xf]
  %s142 = scalar_lea.vmem %s1, 4
  %v143 = vld [vmem:[%s142] sm:$0xf]
  %v152 = vunpack.c.l.b16 %v134
  %v153 = vunpack.c.l.b16 %v135
  %v154 = vunpack.c.l.b16 %v136
  %v155 = vunpack.c.l.b16 %v137
  %v156 = vunpack.c.l.b16 %v138
  %v157 = vunpack.c.l.b16 %v139
  %v158 = vunpack.c.l.b16 %v140
  %v159 = vunpack.c.l.b16 %v141
  %v160 = vpack.c.b16 %v153, %v152
  %v161 = vpack.c.b16 %v155, %v154
  %v162 = vpack.c.b16 %v157, %v156
  %v163 = vpack.c.b16 %v159, %v158
  %v165 = vsel %vm44, %v160, 0
  %v168 = vsel %vm44, %v161, 0
  %v171 = vsel %vm44, %v162, 0
  %v174 = vsel %vm44, %v163, 0
  %v177 = vsel %vm57, %v143, 0
  %179 = vmatprep.subr.bf16.mxu0 0
  %180 = vmatpush1.bf16.msra.mxu0 0
  %181 = vmatprep.subr.bf16.mxu0 0
  %182 = vmatpush1.bf16.msra.mxu0 0
  %183 = vmatprep.subr.bf16.mxu0 0
  %184 = vmatpush1.bf16.msra.mxu0 0
  %185 = vmatprep.subr.bf16.mxu0 0
  %186 = vmatpush1.bf16.msra.mxu0 0
  %187 = vmatprep.subr.bf16.mxu0 0
  %188 = vmatpush1.bf16.msra.mxu0 0
  %189 = vmatprep.subr.bf16.mxu0 0
  %190 = vmatpush1.bf16.msra.mxu0 0
  %191 = vmatprep.subr.bf16.mxu0 0
  %192 = vmatpush1.bf16.msra.mxu0 0
  %193 = vmatprep.subr.bf16.mxu0 0
  %194 = vmatpush1.bf16.msra.mxu0 %v177
  %195 = vmatprep.subr.bf16.mxu0 0
  %196 = vmatpush2.bf16.msra.mxu0 0
  %197 = vmatprep.subr.bf16.mxu0 0
  %198 = vmatpush2.bf16.msra.mxu0 0
  %199 = vmatprep.subr.bf16.mxu0 0
  %200 = vmatpush2.bf16.msra.mxu0 0
  %201 = vmatprep.subr.bf16.mxu0 0
  %202 = vmatpush2.bf16.msra.mxu0 0
  %203 = vmatprep.subr.bf16.mxu0 0
  %204 = vmatpush2.bf16.msra.mxu0 0
  %205 = vmatprep.subr.bf16.mxu0 0
  %206 = vmatpush2.bf16.msra.mxu0 0
  %207 = vmatprep.subr.bf16.mxu0 0
  %208 = vmatpush2.bf16.msra.mxu0 0
  %209 = vmatprep.subr.bf16.mxu0 0
  %210 = vmatpush2.bf16.msra.mxu0 0
  %211 = vmatprep.mubr.bf16.mxu0 0
  %212 = vmatmul.mubr.bf16.gmra.mxu0 %v165
  %v213 = vpop.f32.mrf.mxu0
  %v214 = vadd.f32 0.0, %v213
  %v215 = vpop.f32.mrf.mxu0
  %v216 = vpop.f32.mrf.mxu0
  %v217 = vadd.f32 0.0, %v216
  %v218 = vpop.f32.mrf.mxu0
  %219 = vmatprep.mubr.bf16.mxu0 0
  %220 = vmatmul.mubr.bf16.gmra.mxu0 %v168
  %v221 = vpop.f32.mrf.mxu0
  %v222 = vadd.f32 0.0, %v221
  %v223 = vpop.f32.mrf.mxu0
  %v224 = vpop.f32.mrf.mxu0
  %v225 = vadd.f32 0.0, %v224
  %v226 = vpop.f32.mrf.mxu0
  %227 = vmatprep.mubr.bf16.mxu0 0
  %228 = vmatmul.mubr.bf16.gmra.mxu0 %v171
  %v229 = vpop.f32.mrf.mxu0
  %v230 = vadd.f32 0.0, %v229
  %v231 = vpop.f32.mrf.mxu0
  %v232 = vpop.f32.mrf.mxu0
  %v233 = vadd.f32 0.0, %v232
  %v234 = vpop.f32.mrf.mxu0
  %235 = vmatprep.mubr.bf16.mxu0 0
  %236 = vmatmul.mubr.bf16.gmra.mxu0 %v174
  %v237 = vpop.f32.mrf.mxu0
  %v238 = vadd.f32 0.0, %v237
  %v239 = vpop.f32.mrf.mxu0
  %v240 = vpop.f32.mrf.mxu0
  %v241 = vadd.f32 0.0, %v240
  %v242 = vpop.f32.mrf.mxu0
  %243 = vdwg.mxu0
  %v244 = vld [vmem:[#allocation2] sm:$0xff]
  %v245 = vld [vmem:[#allocation2 + $0x8] sm:$0xff]
  %v246 = vld [vmem:[#allocation2 + $0x10] sm:$0xff]
  %v247 = vld [vmem:[#allocation2 + $0x18] sm:$0xff]
  %v248 = vld [vmem:[#allocation2 + $0x20] sm:$0xff]
  %v249 = vld [vmem:[#allocation2 + $0x28] sm:$0xff]
  %v250 = vld [vmem:[#allocation2 + $0x30] sm:$0xff]
  %v251 = vld [vmem:[#allocation2 + $0x38] sm:$0xff]
  %v252 = vadd.f32 %v244, %v214
  %v253 = vadd.f32 %v245, %v217
  %v254 = vadd.f32 %v246, %v222
  %v255 = vadd.f32 %v247, %v225
  %v256 = vadd.f32 %v248, %v230
  %v257 = vadd.f32 %v249, %v233
  %v258 = vadd.f32 %v250, %v238
  %v259 = vadd.f32 %v251, %v241
  %260 = vst.msk [vmem:[#allocation2] sm:$0xff] %vm44, %v252
  %261 = vst.msk [vmem:[#allocation2 + $0x8] sm:$0xff] %vm44, %v253
  %262 = vst.msk [vmem:[#allocation2 + $0x10] sm:$0xff] %vm44, %v254
  %263 = vst.msk [vmem:[#allocation2 + $0x18] sm:$0xff] %vm44, %v255
  %264 = vst.msk [vmem:[#allocation2 + $0x20] sm:$0xff] %vm44, %v256
  %265 = vst.msk [vmem:[#allocation2 + $0x28] sm:$0xff] %vm44, %v257
  %266 = vst.msk [vmem:[#allocation2 + $0x30] sm:$0xff] %vm44, %v258
  %267 = vst.msk [vmem:[#allocation2 + $0x38] sm:$0xff] %vm44, %v259
  %v268 = vld [vmem:[%s0] sm:$0xe]
  %v269 = vld [vmem:[%s0 + $0x4] sm:$0xf]
  %v270 = vld [vmem:[%s0 + $0x8] sm:$0xf]
  %v271 = vld [vmem:[%s0 + $0xc] sm:$0xf]
  %v272 = vld [vmem:[%s0 + $0x10] sm:$0xf]
  %v273 = vld [vmem:[%s0 + $0x14] sm:$0xf]
  %v274 = vld [vmem:[%s0 + $0x18] sm:$0xf]
  %v275 = vld [vmem:[%s0 + $0x1c] sm:$0xf]
  %v276 = vld [vmem:[%s0 + $0x20] sm:$0x1]
  %s277 = scalar_lea.vmem %s1, 8
  %v278 = vld [vmem:[%s277] sm:$0xf]
  %v288 = vunpack.c.l.b16 %v268
  %v289 = vunpack.c.l.b16 %v269
  %v290 = vunpack.c.l.b16 %v270
  %v291 = vunpack.c.l.b16 %v271
  %v292 = vunpack.c.l.b16 %v272
  %v293 = vunpack.c.l.b16 %v273
  %v294 = vunpack.c.l.b16 %v274
  %v295 = vunpack.c.l.b16 %v275
  %v296 = vunpack.c.l.b16 %v276
  %v297 = vpack.c.b16 %v289, %v288
  %v298 = vpack.c.b16 %v291, %v290
  %v299 = vpack.c.b16 %v293, %v292
  %v300 = vpack.c.b16 %v295, %v294
  %v301 = vpack.c.b16 %v296, %v296
  %vm302 = vcmask 1046528
  %v303 = vrot.slane %v297, 1
  %v304 = vrot.slane %v298, 1
  %v305 = vsel %vm302, %v303, %v304
  %v306 = vrot.slane %v299, 1
  %v307 = vsel %vm302, %v304, %v306
  %v308 = vrot.slane %v300, 1
  %v309 = vsel %vm302, %v306, %v308
  %v310 = vrot.slane %v301, 1
  %v311 = vsel %vm302, %v308, %v310
  %v313 = vsel %vm44, %v305, 0
  %v316 = vsel %vm44, %v307, 0
  %v319 = vsel %vm44, %v309, 0
  %v322 = vsel %vm44, %v311, 0
  %v325 = vsel %vm57, %v278, 0
  %327 = vmatprep.subr.bf16.mxu0 0
  %328 = vmatpush1.bf16.msra.mxu0 0
  %329 = vmatprep.subr.bf16.mxu0 0
  %330 = vmatpush1.bf16.msra.mxu0 0
  %331 = vmatprep.subr.bf16.mxu0 0
  %332 = vmatpush1.bf16.msra.mxu0 0
  %333 = vmatprep.subr.bf16.mxu0 0
  %334 = vmatpush1.bf16.msra.mxu0 0
  %335 = vmatprep.subr.bf16.mxu0 0
  %336 = vmatpush1.bf16.msra.mxu0 0
  %337 = vmatprep.subr.bf16.mxu0 0
  %338 = vmatpush1.bf16.msra.mxu0 0
  %339 = vmatprep.subr.bf16.mxu0 0
  %340 = vmatpush1.bf16.msra.mxu0 0
  %341 = vmatprep.subr.bf16.mxu0 0
  %342 = vmatpush1.bf16.msra.mxu0 %v325
  %343 = vmatprep.subr.bf16.mxu0 0
  %344 = vmatpush2.bf16.msra.mxu0 0
  %345 = vmatprep.subr.bf16.mxu0 0
  %346 = vmatpush2.bf16.msra.mxu0 0
  %347 = vmatprep.subr.bf16.mxu0 0
  %348 = vmatpush2.bf16.msra.mxu0 0
  %349 = vmatprep.subr.bf16.mxu0 0
  %350 = vmatpush2.bf16.msra.mxu0 0
  %351 = vmatprep.subr.bf16.mxu0 0
  %352 = vmatpush2.bf16.msra.mxu0 0
  %353 = vmatprep.subr.bf16.mxu0 0
  %354 = vmatpush2.bf16.msra.mxu0 0
  %355 = vmatprep.subr.bf16.mxu0 0
  %356 = vmatpush2.bf16.msra.mxu0 0
  %357 = vmatprep.subr.bf16.mxu0 0
  %358 = vmatpush2.bf16.msra.mxu0 0
  %359 = vmatprep.mubr.bf16.mxu0 0
  %360 = vmatmul.mubr.bf16.gmra.mxu0 %v313
  %v361 = vpop.f32.mrf.mxu0
  %v362 = vadd.f32 0.0, %v361
  %v363 = vpop.f32.mrf.mxu0
  %v364 = vpop.f32.mrf.mxu0
  %v365 = vadd.f32 0.0, %v364
  %v366 = vpop.f32.mrf.mxu0
  %367 = vmatprep.mubr.bf16.mxu0 0
  %368 = vmatmul.mubr.bf16.gmra.mxu0 %v316
  %v369 = vpop.f32.mrf.mxu0
  %v370 = vadd.f32 0.0, %v369
  %v371 = vpop.f32.mrf.mxu0
  %v372 = vpop.f32.mrf.mxu0
  %v373 = vadd.f32 0.0, %v372
  %v374 = vpop.f32.mrf.mxu0
  %375 = vmatprep.mubr.bf16.mxu0 0
  %376 = vmatmul.mubr.bf16.gmra.mxu0 %v319
  %v377 = vpop.f32.mrf.mxu0
  %v378 = vadd.f32 0.0, %v377
  %v379 = vpop.f32.mrf.mxu0
  %v380 = vpop.f32.mrf.mxu0
  %v381 = vadd.f32 0.0, %v380
  %v382 = vpop.f32.mrf.mxu0
  %383 = vmatprep.mubr.bf16.mxu0 0
  %384 = vmatmul.mubr.bf16.gmra.mxu0 %v322
  %v385 = vpop.f32.mrf.mxu0
  %v386 = vadd.f32 0.0, %v385
  %v387 = vpop.f32.mrf.mxu0
  %v388 = vpop.f32.mrf.mxu0
  %v389 = vadd.f32 0.0, %v388
  %v390 = vpop.f32.mrf.mxu0
  %391 = vdwg.mxu0
  %v392 = vld [vmem:[#allocation2] sm:$0xff]
  %v393 = vld [vmem:[#allocation2 + $0x8] sm:$0xff]
  %v394 = vld [vmem:[#allocation2 + $0x10] sm:$0xff]
  %v395 = vld [vmem:[#allocation2 + $0x18] sm:$0xff]
  %v396 = vld [vmem:[#allocation2 + $0x20] sm:$0xff]
  %v397 = vld [vmem:[#allocation2 + $0x28] sm:$0xff]
  %v398 = vld [vmem:[#allocation2 + $0x30] sm:$0xff]
  %v399 = vld [vmem:[#allocation2 + $0x38] sm:$0xff]
  %v400 = vadd.f32 %v392, %v362
  %v401 = vadd.f32 %v393, %v365
  %v402 = vadd.f32 %v394, %v370
  %v403 = vadd.f32 %v395, %v373
  %v404 = vadd.f32 %v396, %v378
  %v405 = vadd.f32 %v397, %v381
  %v406 = vadd.f32 %v398, %v386
  %v407 = vadd.f32 %v399, %v389
  %408 = vst.msk [vmem:[#allocation2] sm:$0xff] %vm44, %v400
  %409 = vst.msk [vmem:[#allocation2 + $0x8] sm:$0xff] %vm44, %v401
  %410 = vst.msk [vmem:[#allocation2 + $0x10] sm:$0xff] %vm44, %v402
  %411 = vst.msk [vmem:[#allocation2 + $0x18] sm:$0xff] %vm44, %v403
  %412 = vst.msk [vmem:[#allocation2 + $0x20] sm:$0xff] %vm44, %v404
  %413 = vst.msk [vmem:[#allocation2 + $0x28] sm:$0xff] %vm44, %v405
  %414 = vst.msk [vmem:[#allocation2 + $0x30] sm:$0xff] %vm44, %v406
  %415 = vst.msk [vmem:[#allocation2 + $0x38] sm:$0xff] %vm44, %v407
  %v416 = vld [vmem:[%s0 + $0x50] sm:$0xf]
  %v417 = vld [vmem:[%s0 + $0x54] sm:$0xf]
  %v418 = vld [vmem:[%s0 + $0x58] sm:$0xf]
  %v419 = vld [vmem:[%s0 + $0x5c] sm:$0xf]
  %v420 = vld [vmem:[%s0 + $0x60] sm:$0xf]
  %v421 = vld [vmem:[%s0 + $0x64] sm:$0xf]
  %v422 = vld [vmem:[%s0 + $0x68] sm:$0xf]
  %v423 = vld [vmem:[%s0 + $0x6c] sm:$0xf]
  %s424 = scalar_lea.vmem %s1, 12
  %v425 = vld [vmem:[%s424] sm:$0xf]
  %v434 = vunpack.c.l.b16 %v416
  %v435 = vunpack.c.l.b16 %v417
  %v436 = vunpack.c.l.b16 %v418
  %v437 = vunpack.c.l.b16 %v419
  %v438 = vunpack.c.l.b16 %v420
  %v439 = vunpack.c.l.b16 %v421
  %v440 = vunpack.c.l.b16 %v422
  %v441 = vunpack.c.l.b16 %v423
  %v442 = vpack.c.b16 %v435, %v434
  %v443 = vpack.c.b16 %v437, %v436
  %v444 = vpack.c.b16 %v439, %v438
  %v445 = vpack.c.b16 %v441, %v440
  %v447 = vsel %vm44, %v442, 0
  %v450 = vsel %vm44, %v443, 0
  %v453 = vsel %vm44, %v444, 0
  %v456 = vsel %vm44, %v445, 0
  %v459 = vsel %vm57, %v425, 0
  %461 = vmatprep.subr.bf16.mxu0 0
  %462 = vmatpush1.bf16.msra.mxu0 0
  %463 = vmatprep.subr.bf16.mxu0 0
  %464 = vmatpush1.bf16.msra.mxu0 0
  %465 = vmatprep.subr.bf16.mxu0 0
  %466 = vmatpush1.bf16.msra.mxu0 0
  %467 = vmatprep.subr.bf16.mxu0 0
  %468 = vmatpush1.bf16.msra.mxu0 0
  %469 = vmatprep.subr.bf16.mxu0 0
  %470 = vmatpush1.bf16.msra.mxu0 0
  %471 = vmatprep.subr.bf16.mxu0 0
  %472 = vmatpush1.bf16.msra.mxu0 0
  %473 = vmatprep.subr.bf16.mxu0 0
  %474 = vmatpush1.bf16.msra.mxu0 0
  %475 = vmatprep.subr.bf16.mxu0 0
  %476 = vmatpush1.bf16.msra.mxu0 %v459
  %477 = vmatprep.subr.bf16.mxu0 0
  %478 = vmatpush2.bf16.msra.mxu0 0
  %479 = vmatprep.subr.bf16.mxu0 0
  %480 = vmatpush2.bf16.msra.mxu0 0
  %481 = vmatprep.subr.bf16.mxu0 0
  %482 = vmatpush2.bf16.msra.mxu0 0
  %483 = vmatprep.subr.bf16.mxu0 0
  %484 = vmatpush2.bf16.msra.mxu0 0
  %485 = vmatprep.subr.bf16.mxu0 0
  %486 = vmatpush2.bf16.msra.mxu0 0
  %487 = vmatprep.subr.bf16.mxu0 0
  %488 = vmatpush2.bf16.msra.mxu0 0
  %489 = vmatprep.subr.bf16.mxu0 0
  %490 = vmatpush2.bf16.msra.mxu0 0
  %491 = vmatprep.subr.bf16.mxu0 0
  %492 = vmatpush2.bf16.msra.mxu0 0
  %493 = vmatprep.mubr.bf16.mxu0 0
  %494 = vmatmul.mubr.bf16.gmra.mxu0 %v447
  %v495 = vpop.f32.mrf.mxu0
  %v496 = vadd.f32 0.0, %v495
  %v497 = vpop.f32.mrf.mxu0
  %v498 = vpop.f32.mrf.mxu0
  %v499 = vadd.f32 0.0, %v498
  %v500 = vpop.f32.mrf.mxu0
  %501 = vmatprep.mubr.bf16.mxu0 0
  %502 = vmatmul.mubr.bf16.gmra.mxu0 %v450
  %v503 = vpop.f32.mrf.mxu0
  %v504 = vadd.f32 0.0, %v503
  %v505 = vpop.f32.mrf.mxu0
  %v506 = vpop.f32.mrf.mxu0
  %v507 = vadd.f32 0.0, %v506
  %v508 = vpop.f32.mrf.mxu0
  %509 = vmatprep.mubr.bf16.mxu0 0
  %510 = vmatmul.mubr.bf16.gmra.mxu0 %v453
  %v511 = vpop.f32.mrf.mxu0
  %v512 = vadd.f32 0.0, %v511
  %v513 = vpop.f32.mrf.mxu0
  %v514 = vpop.f32.mrf.mxu0
  %v515 = vadd.f32 0.0, %v514
  %v516 = vpop.f32.mrf.mxu0
  %517 = vmatprep.mubr.bf16.mxu0 0
  %518 = vmatmul.mubr.bf16.gmra.mxu0 %v456
  %v519 = vpop.f32.mrf.mxu0
  %v520 = vadd.f32 0.0, %v519
  %v521 = vpop.f32.mrf.mxu0
  %v522 = vpop.f32.mrf.mxu0
  %v523 = vadd.f32 0.0, %v522
  %v524 = vpop.f32.mrf.mxu0
  %525 = vdwg.mxu0
  %v526 = vld [vmem:[#allocation2] sm:$0xff]
  %v527 = vld [vmem:[#allocation2 + $0x8] sm:$0xff]
  %v528 = vld [vmem:[#allocation2 + $0x10] sm:$0xff]
  %v529 = vld [vmem:[#allocation2 + $0x18] sm:$0xff]
  %v530 = vld [vmem:[#allocation2 + $0x20] sm:$0xff]
  %v531 = vld [vmem:[#allocation2 + $0x28] sm:$0xff]
  %v532 = vld [vmem:[#allocation2 + $0x30] sm:$0xff]
  %v533 = vld [vmem:[#allocation2 + $0x38] sm:$0xff]
  %v534 = vadd.f32 %v526, %v496
  %v535 = vadd.f32 %v527, %v499
  %v536 = vadd.f32 %v528, %v504
  %v537 = vadd.f32 %v529, %v507
  %v538 = vadd.f32 %v530, %v512
  %v539 = vadd.f32 %v531, %v515
  %v540 = vadd.f32 %v532, %v520
  %v541 = vadd.f32 %v533, %v523
  %542 = vst.msk [vmem:[#allocation2] sm:$0xff] %vm44, %v534
  %543 = vst.msk [vmem:[#allocation2 + $0x8] sm:$0xff] %vm44, %v535
  %544 = vst.msk [vmem:[#allocation2 + $0x10] sm:$0xff] %vm44, %v536
  %545 = vst.msk [vmem:[#allocation2 + $0x18] sm:$0xff] %vm44, %v537
  %546 = vst.msk [vmem:[#allocation2 + $0x20] sm:$0xff] %vm44, %v538
  %547 = vst.msk [vmem:[#allocation2 + $0x28] sm:$0xff] %vm44, %v539
  %548 = vst.msk [vmem:[#allocation2 + $0x30] sm:$0xff] %vm44, %v540
  %549 = vst.msk [vmem:[#allocation2 + $0x38] sm:$0xff] %vm44, %v541
  %v550 = vld [vmem:[%s0 + $0x78] sm:$0xf]
  %v551 = vld [vmem:[%s0 + $0x7c] sm:$0xf]
  %v552 = vld [vmem:[%s0 + $0x80] sm:$0xf]
  %v553 = vld [vmem:[%s0 + $0x84] sm:$0xf]
  %v554 = vld [vmem:[%s0 + $0x88] sm:$0xf]
  %v555 = vld [vmem:[%s0 + $0x8c] sm:$0xf]
  %v556 = vld [vmem:[%s0 + $0x90] sm:$0xf]
  %v557 = vld [vmem:[%s0 + $0x94] sm:$0xf]
  %s558 = scalar_lea.vmem %s1, 16
  %v559 = vld [vmem:[%s558] sm:$0xf]
  %v568 = vunpack.c.l.b16 %v550
  %v569 = vunpack.c.l.b16 %v551
  %v570 = vunpack.c.l.b16 %v552
  %v571 = vunpack.c.l.b16 %v553
  %v572 = vunpack.c.l.b16 %v554
  %v573 = vunpack.c.l.b16 %v555
  %v574 = vunpack.c.l.b16 %v556
  %v575 = vunpack.c.l.b16 %v557
  %v576 = vpack.c.b16 %v569, %v568
  %v577 = vpack.c.b16 %v571, %v570
  %v578 = vpack.c.b16 %v573, %v572
  %v579 = vpack.c.b16 %v575, %v574
  %v581 = vsel %vm44, %v576, 0
  %v584 = vsel %vm44, %v577, 0
  %v587 = vsel %vm44, %v578, 0
  %v590 = vsel %vm44, %v579, 0
  %v593 = vsel %vm57, %v559, 0
  %595 = vmatprep.subr.bf16.mxu0 0
  %596 = vmatpush1.bf16.msra.mxu0 0
  %597 = vmatprep.subr.bf16.mxu0 0
  %598 = vmatpush1.bf16.msra.mxu0 0
  %599 = vmatprep.subr.bf16.mxu0 0
  %600 = vmatpush1.bf16.msra.mxu0 0
  %601 = vmatprep.subr.bf16.mxu0 0
  %602 = vmatpush1.bf16.msra.mxu0 0
  %603 = vmatprep.subr.bf16.mxu0 0
  %604 = vmatpush1.bf16.msra.mxu0 0
  %605 = vmatprep.subr.bf16.mxu0 0
  %606 = vmatpush1.bf16.msra.mxu0 0
  %607 = vmatprep.subr.bf16.mxu0 0
  %608 = vmatpush1.bf16.msra.mxu0 0
  %609 = vmatprep.subr.bf16.mxu0 0
  %610 = vmatpush1.bf16.msra.mxu0 %v593
  %611 = vmatprep.subr.bf16.mxu0 0
  %612 = vmatpush2.bf16.msra.mxu0 0
  %613 = vmatprep.subr.bf16.mxu0 0
  %614 = vmatpush2.bf16.msra.mxu0 0
  %615 = vmatprep.subr.bf16.mxu0 0
  %616 = vmatpush2.bf16.msra.mxu0 0
  %617 = vmatprep.subr.bf16.mxu0 0
  %618 = vmatpush2.bf16.msra.mxu0 0
  %619 = vmatprep.subr.bf16.mxu0 0
  %620 = vmatpush2.bf16.msra.mxu0 0
  %621 = vmatprep.subr.bf16.mxu0 0
  %622 = vmatpush2.bf16.msra.mxu0 0
  %623 = vmatprep.subr.bf16.mxu0 0
  %624 = vmatpush2.bf16.msra.mxu0 0
  %625 = vmatprep.subr.bf16.mxu0 0
  %626 = vmatpush2.bf16.msra.mxu0 0
  %627 = vmatprep.mubr.bf16.mxu0 0
  %628 = vmatmul.mubr.bf16.gmra.mxu0 %v581
  %v629 = vpop.f32.mrf.mxu0
  %v630 = vadd.f32 0.0, %v629
  %v631 = vpop.f32.mrf.mxu0
  %v632 = vpop.f32.mrf.mxu0
  %v633 = vadd.f32 0.0, %v632
  %v634 = vpop.f32.mrf.mxu0
  %635 = vmatprep.mubr.bf16.mxu0 0
  %636 = vmatmul.mubr.bf16.gmra.mxu0 %v584
  %v637 = vpop.f32.mrf.mxu0
  %v638 = vadd.f32 0.0, %v637
  %v639 = vpop.f32.mrf.mxu0
  %v640 = vpop.f32.mrf.mxu0
  %v641 = vadd.f32 0.0, %v640
  %v642 = vpop.f32.mrf.mxu0
  %643 = vmatprep.mubr.bf16.mxu0 0
  %644 = vmatmul.mubr.bf16.gmra.mxu0 %v587
  %v645 = vpop.f32.mrf.mxu0
  %v646 = vadd.f32 0.0, %v645
  %v647 = vpop.f32.mrf.mxu0
  %v648 = vpop.f32.mrf.mxu0
  %v649 = vadd.f32 0.0, %v648
  %v650 = vpop.f32.mrf.mxu0
  %651 = vmatprep.mubr.bf16.mxu0 0
  %652 = vmatmul.mubr.bf16.gmra.mxu0 %v590
  %v653 = vpop.f32.mrf.mxu0
  %v654 = vadd.f32 0.0, %v653
  %v655 = vpop.f32.mrf.mxu0
  %v656 = vpop.f32.mrf.mxu0
  %v657 = vadd.f32 0.0, %v656
  %v658 = vpop.f32.mrf.mxu0
  %659 = vdwg.mxu0
  %v660 = vld [vmem:[#allocation2] sm:$0xff]
  %v661 = vld [vmem:[#allocation2 + $0x8] sm:$0xff]
  %v662 = vld [vmem:[#allocation2 + $0x10] sm:$0xff]
  %v663 = vld [vmem:[#allocation2 + $0x18] sm:$0xff]
  %v664 = vld [vmem:[#allocation2 + $0x20] sm:$0xff]
  %v665 = vld [vmem:[#allocation2 + $0x28] sm:$0xff]
  %v666 = vld [vmem:[#allocation2 + $0x30] sm:$0xff]
  %v667 = vld [vmem:[#allocation2 + $0x38] sm:$0xff]
  %v668 = vadd.f32 %v660, %v630
  %v669 = vadd.f32 %v661, %v633
  %v670 = vadd.f32 %v662, %v638
  %v671 = vadd.f32 %v663, %v641
  %v672 = vadd.f32 %v664, %v646
  %v673 = vadd.f32 %v665, %v649
  %v674 = vadd.f32 %v666, %v654
  %v675 = vadd.f32 %v667, %v657
  %676 = vst.msk [vmem:[#allocation2] sm:$0xff] %vm44, %v668
  %677 = vst.msk [vmem:[#allocation2 + $0x8] sm:$0xff] %vm44, %v669
  %678 = vst.msk [vmem:[#allocation2 + $0x10] sm:$0xff] %vm44, %v670
  %679 = vst.msk [vmem:[#allocation2 + $0x18] sm:$0xff] %vm44, %v671
  %680 = vst.msk [vmem:[#allocation2 + $0x20] sm:$0xff] %vm44, %v672
  %681 = vst.msk [vmem:[#allocation2 + $0x28] sm:$0xff] %vm44, %v673
  %682 = vst.msk [vmem:[#allocation2 + $0x30] sm:$0xff] %vm44, %v674
  %683 = vst.msk [vmem:[#allocation2 + $0x38] sm:$0xff] %vm44, %v675
  %v684 = vld [vmem:[%s0 + $0x50] sm:$0xe]
  %v685 = vld [vmem:[%s0 + $0x54] sm:$0xf]
  %v686 = vld [vmem:[%s0 + $0x58] sm:$0xf]
  %v687 = vld [vmem:[%s0 + $0x5c] sm:$0xf]
  %v688 = vld [vmem:[%s0 + $0x60] sm:$0xf]
  %v689 = vld [vmem:[%s0 + $0x64] sm:$0xf]
  %v690 = vld [vmem:[%s0 + $0x68] sm:$0xf]
  %v691 = vld [vmem:[%s0 + $0x6c] sm:$0xf]
  %v692 = vld [vmem:[%s0 + $0x70] sm:$0x1]
  %s693 = scalar_lea.vmem %s1, 20
  %v694 = vld [vmem:[%s693] sm:$0xf]
  %v704 = vunpack.c.l.b16 %v684
  %v705 = vunpack.c.l.b16 %v685
  %v706 = vunpack.c.l.b16 %v686
  %v707 = vunpack.c.l.b16 %v687
  %v708 = vunpack.c.l.b16 %v688
  %v709 = vunpack.c.l.b16 %v689
  %v710 = vunpack.c.l.b16 %v690
  %v711 = vunpack.c.l.b16 %v691
  %v712 = vunpack.c.l.b16 %v692
  %v713 = vpack.c.b16 %v705, %v704
  %v714 = vpack.c.b16 %v707, %v706
  %v715 = vpack.c.b16 %v709, %v708
  %v716 = vpack.c.b16 %v711, %v710
  %v717 = vpack.c.b16 %v712, %v712
  %v718 = vrot.slane %v713, 1
  %v719 = vrot.slane %v714, 1
  %v720 = vsel %vm302, %v718, %v719
  %v721 = vrot.slane %v715, 1
  %v722 = vsel %vm302, %v719, %v721
  %v723 = vrot.slane %v716, 1
  %v724 = vsel %vm302, %v721, %v723
  %v725 = vrot.slane %v717, 1
  %v726 = vsel %vm302, %v723, %v725
  %v728 = vsel %vm44, %v720, 0
  %v731 = vsel %vm44, %v722, 0
  %v734 = vsel %vm44, %v724, 0
  %v737 = vsel %vm44, %v726, 0
  %v740 = vsel %vm57, %v694, 0
  %742 = vmatprep.subr.bf16.mxu0 0
  %743 = vmatpush1.bf16.msra.mxu0 0
  %744 = vmatprep.subr.bf16.mxu0 0
  %745 = vmatpush1.bf16.msra.mxu0 0
  %746 = vmatprep.subr.bf16.mxu0 0
  %747 = vmatpush1.bf16.msra.mxu0 0
  %748 = vmatprep.subr.bf16.mxu0 0
  %749 = vmatpush1.bf16.msra.mxu0 0
  %750 = vmatprep.subr.bf16.mxu0 0
  %751 = vmatpush1.bf16.msra.mxu0 0
  %752 = vmatprep.subr.bf16.mxu0 0
  %753 = vmatpush1.bf16.msra.mxu0 0
  %754 = vmatprep.subr.bf16.mxu0 0
  %755 = vmatpush1.bf16.msra.mxu0 0
  %756 = vmatprep.subr.bf16.mxu0 0
  %757 = vmatpush1.bf16.msra.mxu0 %v740
  %758 = vmatprep.subr.bf16.mxu0 0
  %759 = vmatpush2.bf16.msra.mxu0 0
  %760 = vmatprep.subr.bf16.mxu0 0
  %761 = vmatpush2.bf16.msra.mxu0 0
  %762 = vmatprep.subr.bf16.mxu0 0
  %763 = vmatpush2.bf16.msra.mxu0 0
  %764 = vmatprep.subr.bf16.mxu0 0
  %765 = vmatpush2.bf16.msra.mxu0 0
  %766 = vmatprep.subr.bf16.mxu0 0
  %767 = vmatpush2.bf16.msra.mxu0 0
  %768 = vmatprep.subr.bf16.mxu0 0
  %769 = vmatpush2.bf16.msra.mxu0 0
  %770 = vmatprep.subr.bf16.mxu0 0
  %771 = vmatpush2.bf16.msra.mxu0 0
  %772 = vmatprep.subr.bf16.mxu0 0
  %773 = vmatpush2.bf16.msra.mxu0 0
  %774 = vmatprep.mubr.bf16.mxu0 0
  %775 = vmatmul.mubr.bf16.gmra.mxu0 %v728
  %v776 = vpop.f32.mrf.mxu0
  %v777 = vadd.f32 0.0, %v776
  %v778 = vpop.f32.mrf.mxu0
  %v779 = vpop.f32.mrf.mxu0
  %v780 = vadd.f32 0.0, %v779
  %v781 = vpop.f32.mrf.mxu0
  %782 = vmatprep.mubr.bf16.mxu0 0
  %783 = vmatmul.mubr.bf16.gmra.mxu0 %v731
  %v784 = vpop.f32.mrf.mxu0
  %v785 = vadd.f32 0.0, %v784
  %v786 = vpop.f32.mrf.mxu0
  %v787 = vpop.f32.mrf.mxu0
  %v788 = vadd.f32 0.0, %v787
  %v789 = vpop.f32.mrf.mxu0
  %790 = vmatprep.mubr.bf16.mxu0 0
  %791 = vmatmul.mubr.bf16.gmra.mxu0 %v734
  %v792 = vpop.f32.mrf.mxu0
  %v793 = vadd.f32 0.0, %v792
  %v794 = vpop.f32.mrf.mxu0
  %v795 = vpop.f32.mrf.mxu0
  %v796 = vadd.f32 0.0, %v795
  %v797 = vpop.f32.mrf.mxu0
  %798 = vmatprep.mubr.bf16.mxu0 0
  %799 = vmatmul.mubr.bf16.gmra.mxu0 %v737
  %v800 = vpop.f32.mrf.mxu0
  %v801 = vadd.f32 0.0, %v800
  %v802 = vpop.f32.mrf.mxu0
  %v803 = vpop.f32.mrf.mxu0
  %v804 = vadd.f32 0.0, %v803
  %v805 = vpop.f32.mrf.mxu0
  %806 = vdwg.mxu0
  %v807 = vld [vmem:[#allocation2] sm:$0xff]
  %v808 = vld [vmem:[#allocation2 + $0x8] sm:$0xff]
  %v809 = vld [vmem:[#allocation2 + $0x10] sm:$0xff]
  %v810 = vld [vmem:[#allocation2 + $0x18] sm:$0xff]
  %v811 = vld [vmem:[#allocation2 + $0x20] sm:$0xff]
  %v812 = vld [vmem:[#allocation2 + $0x28] sm:$0xff]
  %v813 = vld [vmem:[#allocation2 + $0x30] sm:$0xff]
  %v814 = vld [vmem:[#allocation2 + $0x38] sm:$0xff]
  %v815 = vadd.f32 %v807, %v777
  %v816 = vadd.f32 %v808, %v780
  %v817 = vadd.f32 %v809, %v785
  %v818 = vadd.f32 %v810, %v788
  %v819 = vadd.f32 %v811, %v793
  %v820 = vadd.f32 %v812, %v796
  %v821 = vadd.f32 %v813, %v801
  %v822 = vadd.f32 %v814, %v804
  %823 = vst.msk [vmem:[#allocation2] sm:$0xff] %vm44, %v815
  %824 = vst.msk [vmem:[#allocation2 + $0x8] sm:$0xff] %vm44, %v816
  %825 = vst.msk [vmem:[#allocation2 + $0x10] sm:$0xff] %vm44, %v817
  %826 = vst.msk [vmem:[#allocation2 + $0x18] sm:$0xff] %vm44, %v818
  %827 = vst.msk [vmem:[#allocation2 + $0x20] sm:$0xff] %vm44, %v819
  %828 = vst.msk [vmem:[#allocation2 + $0x28] sm:$0xff] %vm44, %v820
  %829 = vst.msk [vmem:[#allocation2 + $0x30] sm:$0xff] %vm44, %v821
  %830 = vst.msk [vmem:[#allocation2 + $0x38] sm:$0xff] %vm44, %v822
  %v831 = vld [vmem:[%s0 + $0x8] sm:$0xf]
  %v832 = vld [vmem:[%s0 + $0xc] sm:$0xf]
  %v833 = vld [vmem:[%s0 + $0x10] sm:$0xf]
  %v834 = vld [vmem:[%s0 + $0x14] sm:$0xf]
  %v835 = vld [vmem:[%s0 + $0x18] sm:$0xf]
  %v836 = vld [vmem:[%s0 + $0x1c] sm:$0xf]
  %v837 = vld [vmem:[%s0 + $0x20] sm:$0xf]
  %v838 = vld [vmem:[%s0 + $0x24] sm:$0xf]
  %s839 = scalar_lea.vmem %s1, 24
  %v840 = vld [vmem:[%s839] sm:$0xf]
  %v849 = vunpack.c.l.b16 %v831
  %v850 = vunpack.c.l.b16 %v832
  %v851 = vunpack.c.l.b16 %v833
  %v852 = vunpack.c.l.b16 %v834
  %v853 = vunpack.c.l.b16 %v835
  %v854 = vunpack.c.l.b16 %v836
  %v855 = vunpack.c.l.b16 %v837
  %v856 = vunpack.c.l.b16 %v838
  %v857 = vpack.c.b16 %v850, %v849
  %v858 = vpack.c.b16 %v852, %v851
  %v859 = vpack.c.b16 %v854, %v853
  %v860 = vpack.c.b16 %v856, %v855
  %v862 = vsel %vm44, %v857, 0
  %v865 = vsel %vm44, %v858, 0
  %v868 = vsel %vm44, %v859, 0
  %v871 = vsel %vm44, %v860, 0
  %v874 = vsel %vm57, %v840, 0
  %876 = vmatprep.subr.bf16.mxu0 0
  %877 = vmatpush1.bf16.msra.mxu0 0
  %878 = vmatprep.subr.bf16.mxu0 0
  %879 = vmatpush1.bf16.msra.mxu0 0
  %880 = vmatprep.subr.bf16.mxu0 0
  %881 = vmatpush1.bf16.msra.mxu0 0
  %882 = vmatprep.subr.bf16.mxu0 0
  %883 = vmatpush1.bf16.msra.mxu0 0
  %884 = vmatprep.subr.bf16.mxu0 0
  %885 = vmatpush1.bf16.msra.mxu0 0
  %886 = vmatprep.subr.bf16.mxu0 0
  %887 = vmatpush1.bf16.msra.mxu0 0
  %888 = vmatprep.subr.bf16.mxu0 0
  %889 = vmatpush1.bf16.msra.mxu0 0
  %890 = vmatprep.subr.bf16.mxu0 0
  %891 = vmatpush1.bf16.msra.mxu0 %v874
  %892 = vmatprep.subr.bf16.mxu0 0
  %893 = vmatpush2.bf16.msra.mxu0 0
  %894 = vmatprep.subr.bf16.mxu0 0
  %895 = vmatpush2.bf16.msra.mxu0 0
  %896 = vmatprep.subr.bf16.mxu0 0
  %897 = vmatpush2.bf16.msra.mxu0 0
  %898 = vmatprep.subr.bf16.mxu0 0
  %899 = vmatpush2.bf16.msra.mxu0 0
  %900 = vmatprep.subr.bf16.mxu0 0
  %901 = vmatpush2.bf16.msra.mxu0 0
  %902 = vmatprep.subr.bf16.mxu0 0
  %903 = vmatpush2.bf16.msra.mxu0 0
  %904 = vmatprep.subr.bf16.mxu0 0
  %905 = vmatpush2.bf16.msra.mxu0 0
  %906 = vmatprep.subr.bf16.mxu0 0
  %907 = vmatpush2.bf16.msra.mxu0 0
  %908 = vmatprep.mubr.bf16.mxu0 0
  %909 = vmatmul.mubr.bf16.gmra.mxu0 %v862
  %v910 = vpop.f32.mrf.mxu0
  %v911 = vadd.f32 0.0, %v910
  %v912 = vpop.f32.mrf.mxu0
  %v913 = vpop.f32.mrf.mxu0
  %v914 = vadd.f32 0.0, %v913
  %v915 = vpop.f32.mrf.mxu0
  %916 = vmatprep.mubr.bf16.mxu0 0
  %917 = vmatmul.mubr.bf16.gmra.mxu0 %v865
  %v918 = vpop.f32.mrf.mxu0
  %v919 = vadd.f32 0.0, %v918
  %v920 = vpop.f32.mrf.mxu0
  %v921 = vpop.f32.mrf.mxu0
  %v922 = vadd.f32 0.0, %v921
  %v923 = vpop.f32.mrf.mxu0
  %924 = vmatprep.mubr.bf16.mxu0 0
  %925 = vmatmul.mubr.bf16.gmra.mxu0 %v868
  %v926 = vpop.f32.mrf.mxu0
  %v927 = vadd.f32 0.0, %v926
  %v928 = vpop.f32.mrf.mxu0
  %v929 = vpop.f32.mrf.mxu0
  %v930 = vadd.f32 0.0, %v929
  %v931 = vpop.f32.mrf.mxu0
  %932 = vmatprep.mubr.bf16.mxu0 0
  %933 = vmatmul.mubr.bf16.gmra.mxu0 %v871
  %v934 = vpop.f32.mrf.mxu0
  %v935 = vadd.f32 0.0, %v934
  %v936 = vpop.f32.mrf.mxu0
  %v937 = vpop.f32.mrf.mxu0
  %v938 = vadd.f32 0.0, %v937
  %v939 = vpop.f32.mrf.mxu0
  %940 = vdwg.mxu0
  %v941 = vld [vmem:[#allocation2] sm:$0xff]
  %v942 = vld [vmem:[#allocation2 + $0x8] sm:$0xff]
  %v943 = vld [vmem:[#allocation2 + $0x10] sm:$0xff]
  %v944 = vld [vmem:[#allocation2 + $0x18] sm:$0xff]
  %v945 = vld [vmem:[#allocation2 + $0x20] sm:$0xff]
  %v946 = vld [vmem:[#allocation2 + $0x28] sm:$0xff]
  %v947 = vld [vmem:[#allocation2 + $0x30] sm:$0xff]
  %v948 = vld [vmem:[#allocation2 + $0x38] sm:$0xff]
  %v949 = vadd.f32 %v941, %v911
  %v950 = vadd.f32 %v942, %v914
  %v951 = vadd.f32 %v943, %v919
  %v952 = vadd.f32 %v944, %v922
  %v953 = vadd.f32 %v945, %v927
  %v954 = vadd.f32 %v946, %v930
  %v955 = vadd.f32 %v947, %v935
  %v956 = vadd.f32 %v948, %v938
  %957 = vst.msk [vmem:[#allocation2] sm:$0xff] %vm44, %v949
  %958 = vst.msk [vmem:[#allocation2 + $0x8] sm:$0xff] %vm44, %v950
  %959 = vst.msk [vmem:[#allocation2 + $0x10] sm:$0xff] %vm44, %v951
  %960 = vst.msk [vmem:[#allocation2 + $0x18] sm:$0xff] %vm44, %v952
  %961 = vst.msk [vmem:[#allocation2 + $0x20] sm:$0xff] %vm44, %v953
  %962 = vst.msk [vmem:[#allocation2 + $0x28] sm:$0xff] %vm44, %v954
  %963 = vst.msk [vmem:[#allocation2 + $0x30] sm:$0xff] %vm44, %v955
  %964 = vst.msk [vmem:[#allocation2 + $0x38] sm:$0xff] %vm44, %v956
  %v965 = vld [vmem:[%s0 + $0x30] sm:$0xf]
  %v966 = vld [vmem:[%s0 + $0x34] sm:$0xf]
  %v967 = vld [vmem:[%s0 + $0x38] sm:$0xf]
  %v968 = vld [vmem:[%s0 + $0x3c] sm:$0xf]
  %v969 = vld [vmem:[%s0 + $0x40] sm:$0xf]
  %v970 = vld [vmem:[%s0 + $0x44] sm:$0xf]
  %v971 = vld [vmem:[%s0 + $0x48] sm:$0xf]
  %v972 = vld [vmem:[%s0 + $0x4c] sm:$0xf]
  %s973 = scalar_lea.vmem %s1, 28
  %v974 = vld [vmem:[%s973] sm:$0xf]
  %v983 = vunpack.c.l.b16 %v965
  %v984 = vunpack.c.l.b16 %v966
  %v985 = vunpack.c.l.b16 %v967
  %v986 = vunpack.c.l.b16 %v968
  %v987 = vunpack.c.l.b16 %v969
  %v988 = vunpack.c.l.b16 %v970
  %v989 = vunpack.c.l.b16 %v971
  %v990 = vunpack.c.l.b16 %v972
  %v991 = vpack.c.b16 %v984, %v983
  %v992 = vpack.c.b16 %v986, %v985
  %v993 = vpack.c.b16 %v988, %v987
  %v994 = vpack.c.b16 %v990, %v989
  %v996 = vsel %vm44, %v991, 0
  %v999 = vsel %vm44, %v992, 0
  %v1002 = vsel %vm44, %v993, 0
  %v1005 = vsel %vm44, %v994, 0
  %v1008 = vsel %vm57, %v974, 0
  %1010 = vmatprep.subr.bf16.mxu0 0
  %1011 = vmatpush1.bf16.msra.mxu0 0
  %1012 = vmatprep.subr.bf16.mxu0 0
  %1013 = vmatpush1.bf16.msra.mxu0 0
  %1014 = vmatprep.subr.bf16.mxu0 0
  %1015 = vmatpush1.bf16.msra.mxu0 0
  %1016 = vmatprep.subr.bf16.mxu0 0
  %1017 = vmatpush1.bf16.msra.mxu0 0
  %1018 = vmatprep.subr.bf16.mxu0 0
  %1019 = vmatpush1.bf16.msra.mxu0 0
  %1020 = vmatprep.subr.bf16.mxu0 0
  %1021 = vmatpush1.bf16.msra.mxu0 0
  %1022 = vmatprep.subr.bf16.mxu0 0
  %1023 = vmatpush1.bf16.msra.mxu0 0
  %1024 = vmatprep.subr.bf16.mxu0 0
  %1025 = vmatpush1.bf16.msra.mxu0 %v1008
  %1026 = vmatprep.subr.bf16.mxu0 0
  %1027 = vmatpush2.bf16.msra.mxu0 0
  %1028 = vmatprep.subr.bf16.mxu0 0
  %1029 = vmatpush2.bf16.msra.mxu0 0
  %1030 = vmatprep.subr.bf16.mxu0 0
  %1031 = vmatpush2.bf16.msra.mxu0 0
  %1032 = vmatprep.subr.bf16.mxu0 0
  %1033 = vmatpush2.bf16.msra.mxu0 0
  %1034 = vmatprep.subr.bf16.mxu0 0
  %1035 = vmatpush2.bf16.msra.mxu0 0
  %1036 = vmatprep.subr.bf16.mxu0 0
  %1037 = vmatpush2.bf16.msra.mxu0 0
  %1038 = vmatprep.subr.bf16.mxu0 0
  %1039 = vmatpush2.bf16.msra.mxu0 0
  %1040 = vmatprep.subr.bf16.mxu0 0
  %1041 = vmatpush2.bf16.msra.mxu0 0
  %1042 = vmatprep.mubr.bf16.mxu0 0
  %1043 = vmatmul.mubr.bf16.gmra.mxu0 %v996
  %v1044 = vpop.f32.mrf.mxu0
  %v1045 = vadd.f32 0.0, %v1044
  %v1046 = vpop.f32.mrf.mxu0
  %v1047 = vpop.f32.mrf.mxu0
  %v1048 = vadd.f32 0.0, %v1047
  %v1049 = vpop.f32.mrf.mxu0
  %1050 = vmatprep.mubr.bf16.mxu0 0
  %1051 = vmatmul.mubr.bf16.gmra.mxu0 %v999
  %v1052 = vpop.f32.mrf.mxu0
  %v1053 = vadd.f32 0.0, %v1052
  %v1054 = vpop.f32.mrf.mxu0
  %v1055 = vpop.f32.mrf.mxu0
  %v1056 = vadd.f32 0.0, %v1055
  %v1057 = vpop.f32.mrf.mxu0
  %1058 = vmatprep.mubr.bf16.mxu0 0
  %1059 = vmatmul.mubr.bf16.gmra.mxu0 %v1002
  %v1060 = vpop.f32.mrf.mxu0
  %v1061 = vadd.f32 0.0, %v1060
  %v1062 = vpop.f32.mrf.mxu0
  %v1063 = vpop.f32.mrf.mxu0
  %v1064 = vadd.f32 0.0, %v1063
  %v1065 = vpop.f32.mrf.mxu0
  %1066 = vmatprep.mubr.bf16.mxu0 0
  %1067 = vmatmul.mubr.bf16.gmra.mxu0 %v1005
  %v1068 = vpop.f32.mrf.mxu0
  %v1069 = vadd.f32 0.0, %v1068
  %v1070 = vpop.f32.mrf.mxu0
  %v1071 = vpop.f32.mrf.mxu0
  %v1072 = vadd.f32 0.0, %v1071
  %v1073 = vpop.f32.mrf.mxu0
  %1074 = vdwg.mxu0
  %v1075 = vld [vmem:[#allocation2] sm:$0xff]
  %v1076 = vld [vmem:[#allocation2 + $0x8] sm:$0xff]
  %v1077 = vld [vmem:[#allocation2 + $0x10] sm:$0xff]
  %v1078 = vld [vmem:[#allocation2 + $0x18] sm:$0xff]
  %v1079 = vld [vmem:[#allocation2 + $0x20] sm:$0xff]
  %v1080 = vld [vmem:[#allocation2 + $0x28] sm:$0xff]
  %v1081 = vld [vmem:[#allocation2 + $0x30] sm:$0xff]
  %v1082 = vld [vmem:[#allocation2 + $0x38] sm:$0xff]
  %v1083 = vadd.f32 %v1075, %v1045
  %v1084 = vadd.f32 %v1076, %v1048
  %v1085 = vadd.f32 %v1077, %v1053
  %v1086 = vadd.f32 %v1078, %v1056
  %v1087 = vadd.f32 %v1079, %v1061
  %v1088 = vadd.f32 %v1080, %v1064
  %v1089 = vadd.f32 %v1081, %v1069
  %v1090 = vadd.f32 %v1082, %v1072
  %1091 = vst.msk [vmem:[#allocation2] sm:$0xff] %vm44, %v1083
  %1092 = vst.msk [vmem:[#allocation2 + $0x8] sm:$0xff] %vm44, %v1084
  %1093 = vst.msk [vmem:[#allocation2 + $0x10] sm:$0xff] %vm44, %v1085
  %1094 = vst.msk [vmem:[#allocation2 + $0x18] sm:$0xff] %vm44, %v1086
  %1095 = vst.msk [vmem:[#allocation2 + $0x20] sm:$0xff] %vm44, %v1087
  %1096 = vst.msk [vmem:[#allocation2 + $0x28] sm:$0xff] %vm44, %v1088
  %1097 = vst.msk [vmem:[#allocation2 + $0x30] sm:$0xff] %vm44, %v1089
  %1098 = vst.msk [vmem:[#allocation2 + $0x38] sm:$0xff] %vm44, %v1090
  %v1099 = vld [vmem:[%s0 + $0x8] sm:$0xe]
  %v1100 = vld [vmem:[%s0 + $0xc] sm:$0xf]
  %v1101 = vld [vmem:[%s0 + $0x10] sm:$0xf]
  %v1102 = vld [vmem:[%s0 + $0x14] sm:$0xf]
  %v1103 = vld [vmem:[%s0 + $0x18] sm:$0xf]
  %v1104 = vld [vmem:[%s0 + $0x1c] sm:$0xf]
  %v1105 = vld [vmem:[%s0 + $0x20] sm:$0xf]
  %v1106 = vld [vmem:[%s0 + $0x24] sm:$0xf]
  %v1107 = vld [vmem:[%s0 + $0x28] sm:$0x1]
  %s1108 = scalar_lea.vmem %s1, 32
  %v1109 = vld [vmem:[%s1108] sm:$0xf]
  %v1119 = vunpack.c.l.b16 %v1099
  %v1120 = vunpack.c.l.b16 %v1100
  %v1121 = vunpack.c.l.b16 %v1101
  %v1122 = vunpack.c.l.b16 %v1102
  %v1123 = vunpack.c.l.b16 %v1103
  %v1124 = vunpack.c.l.b16 %v1104
  %v1125 = vunpack.c.l.b16 %v1105
  %v1126 = vunpack.c.l.b16 %v1106
  %v1127 = vunpack.c.l.b16 %v1107
  %v1128 = vpack.c.b16 %v1120, %v1119
  %v1129 = vpack.c.b16 %v1122, %v1121
  %v1130 = vpack.c.b16 %v1124, %v1123
  %v1131 = vpack.c.b16 %v1126, %v1125
  %v1132 = vpack.c.b16 %v1127, %v1127
  %v1133 = vrot.slane %v1128, 1
  %v1134 = vrot.slane %v1129, 1
  %v1135 = vsel %vm302, %v1133, %v1134
  %v1136 = vrot.slane %v1130, 1
  %v1137 = vsel %vm302, %v1134, %v1136
  %v1138 = vrot.slane %v1131, 1
  %v1139 = vsel %vm302, %v1136, %v1138
  %v1140 = vrot.slane %v1132, 1
  %v1141 = vsel %vm302, %v1138, %v1140
  %v1143 = vsel %vm44, %v1135, 0
  %v1146 = vsel %vm44, %v1137, 0
  %v1149 = vsel %vm44, %v1139, 0
  %v1152 = vsel %vm44, %v1141, 0
  %v1155 = vsel %vm57, %v1109, 0
  %1157 = vmatprep.subr.bf16.mxu0 0
  %1158 = vmatpush1.bf16.msra.mxu0 0
  %1159 = vmatprep.subr.bf16.mxu0 0
  %1160 = vmatpush1.bf16.msra.mxu0 0
  %1161 = vmatprep.subr.bf16.mxu0 0
  %1162 = vmatpush1.bf16.msra.mxu0 0
  %1163 = vmatprep.subr.bf16.mxu0 0
  %1164 = vmatpush1.bf16.msra.mxu0 0
  %1165 = vmatprep.subr.bf16.mxu0 0
  %1166 = vmatpush1.bf16.msra.mxu0 0
  %1167 = vmatprep.subr.bf16.mxu0 0
  %1168 = vmatpush1.bf16.msra.mxu0 0
  %1169 = vmatprep.subr.bf16.mxu0 0
  %1170 = vmatpush1.bf16.msra.mxu0 0
  %1171 = vmatprep.subr.bf16.mxu0 0
  %1172 = vmatpush1.bf16.msra.mxu0 %v1155
  %1173 = vmatprep.subr.bf16.mxu0 0
  %1174 = vmatpush2.bf16.msra.mxu0 0
  %1175 = vmatprep.subr.bf16.mxu0 0
  %1176 = vmatpush2.bf16.msra.mxu0 0
  %1177 = vmatprep.subr.bf16.mxu0 0
  %1178 = vmatpush2.bf16.msra.mxu0 0
  %1179 = vmatprep.subr.bf16.mxu0 0
  %1180 = vmatpush2.bf16.msra.mxu0 0
  %1181 = vmatprep.subr.bf16.mxu0 0
  %1182 = vmatpush2.bf16.msra.mxu0 0
  %1183 = vmatprep.subr.bf16.mxu0 0
  %1184 = vmatpush2.bf16.msra.mxu0 0
  %1185 = vmatprep.subr.bf16.mxu0 0
  %1186 = vmatpush2.bf16.msra.mxu0 0
  %1187 = vmatprep.subr.bf16.mxu0 0
  %1188 = vmatpush2.bf16.msra.mxu0 0
  %1189 = vmatprep.mubr.bf16.mxu0 0
  %1190 = vmatmul.mubr.bf16.gmra.mxu0 %v1143
  %v1191 = vpop.f32.mrf.mxu0
  %v1192 = vadd.f32 0.0, %v1191
  %v1193 = vpop.f32.mrf.mxu0
  %v1194 = vpop.f32.mrf.mxu0
  %v1195 = vadd.f32 0.0, %v1194
  %v1196 = vpop.f32.mrf.mxu0
  %1197 = vmatprep.mubr.bf16.mxu0 0
  %1198 = vmatmul.mubr.bf16.gmra.mxu0 %v1146
  %v1199 = vpop.f32.mrf.mxu0
  %v1200 = vadd.f32 0.0, %v1199
  %v1201 = vpop.f32.mrf.mxu0
  %v1202 = vpop.f32.mrf.mxu0
  %v1203 = vadd.f32 0.0, %v1202
  %v1204 = vpop.f32.mrf.mxu0
  %1205 = vmatprep.mubr.bf16.mxu0 0
  %1206 = vmatmul.mubr.bf16.gmra.mxu0 %v1149
  %v1207 = vpop.f32.mrf.mxu0
  %v1208 = vadd.f32 0.0, %v1207
  %v1209 = vpop.f32.mrf.mxu0
  %v1210 = vpop.f32.mrf.mxu0
  %v1211 = vadd.f32 0.0, %v1210
  %v1212 = vpop.f32.mrf.mxu0
  %1213 = vmatprep.mubr.bf16.mxu0 0
  %1214 = vmatmul.mubr.bf16.gmra.mxu0 %v1152
  %v1215 = vpop.f32.mrf.mxu0
  %v1216 = vadd.f32 0.0, %v1215
  %v1217 = vpop.f32.mrf.mxu0
  %v1218 = vpop.f32.mrf.mxu0
  %v1219 = vadd.f32 0.0, %v1218
  %v1220 = vpop.f32.mrf.mxu0
  %1221 = vdwg.mxu0
  %v1222 = vld [vmem:[#allocation2] sm:$0xff]
  %v1223 = vld [vmem:[#allocation2 + $0x8] sm:$0xff]
  %v1224 = vld [vmem:[#allocation2 + $0x10] sm:$0xff]
  %v1225 = vld [vmem:[#allocation2 + $0x18] sm:$0xff]
  %v1226 = vld [vmem:[#allocation2 + $0x20] sm:$0xff]
  %v1227 = vld [vmem:[#allocation2 + $0x28] sm:$0xff]
  %v1228 = vld [vmem:[#allocation2 + $0x30] sm:$0xff]
  %v1229 = vld [vmem:[#allocation2 + $0x38] sm:$0xff]
  %v1230 = vadd.f32 %v1222, %v1192
  %v1231 = vadd.f32 %v1223, %v1195
  %v1232 = vadd.f32 %v1224, %v1200
  %v1233 = vadd.f32 %v1225, %v1203
  %v1234 = vadd.f32 %v1226, %v1208
  %v1235 = vadd.f32 %v1227, %v1211
  %v1236 = vadd.f32 %v1228, %v1216
  %v1237 = vadd.f32 %v1229, %v1219
  %1238 = vst.msk [vmem:[#allocation2] sm:$0xff] %vm44, %v1230
  %1239 = vst.msk [vmem:[#allocation2 + $0x8] sm:$0xff] %vm44, %v1231
  %1240 = vst.msk [vmem:[#allocation2 + $0x10] sm:$0xff] %vm44, %v1232
  %1241 = vst.msk [vmem:[#allocation2 + $0x18] sm:$0xff] %vm44, %v1233
  %1242 = vst.msk [vmem:[#allocation2 + $0x20] sm:$0xff] %vm44, %v1234
  %1243 = vst.msk [vmem:[#allocation2 + $0x28] sm:$0xff] %vm44, %v1235
  %1244 = vst.msk [vmem:[#allocation2 + $0x30] sm:$0xff] %vm44, %v1236
  %1245 = vst.msk [vmem:[#allocation2 + $0x38] sm:$0xff] %vm44, %v1237
  %v1246 = vld [vmem:[#allocation2] sm:$0xff]
  %v1247 = vld [vmem:[#allocation2 + $0x8] sm:$0xff]
  %v1248 = vld [vmem:[#allocation2 + $0x10] sm:$0xff]
  %v1249 = vld [vmem:[#allocation2 + $0x18] sm:$0xff]
  %v1250 = vld [vmem:[#allocation2 + $0x20] sm:$0xff]
  %v1251 = vld [vmem:[#allocation2 + $0x28] sm:$0xff]
  %v1252 = vld [vmem:[#allocation2 + $0x30] sm:$0xff]
  %v1253 = vld [vmem:[#allocation2 + $0x38] sm:$0xff]
  %v1254 = vld [vmem:[%s2] sm:$0x1]
  %v1256 = vlaneseq
  %v1257 = vshrl.u32 %v1256, 7
  %v1258 = vsub.s32 0, %v1257
  %v1259 = vrot.slane %v1254, %v1258
  %v1261 = vadd.f32 %v1246, %v1259
  %v1262 = vadd.f32 %v1247, %v1259
  %v1263 = vadd.f32 %v1248, %v1259
  %v1264 = vadd.f32 %v1249, %v1259
  %v1265 = vadd.f32 %v1250, %v1259
  %v1266 = vadd.f32 %v1251, %v1259
  %v1267 = vadd.f32 %v1252, %v1259
  %v1268 = vadd.f32 %v1253, %v1259
  %vm1269 = vcmp.ge.f32.partialorder %v1261, 0.0
  %vm1270 = vcmp.ge.f32.partialorder %v1262, 0.0
  %vm1271 = vcmp.ge.f32.partialorder %v1263, 0.0
  %vm1272 = vcmp.ge.f32.partialorder %v1264, 0.0
  %vm1273 = vcmp.ge.f32.partialorder %v1265, 0.0
  %vm1274 = vcmp.ge.f32.partialorder %v1266, 0.0
  %vm1275 = vcmp.ge.f32.partialorder %v1267, 0.0
  %vm1276 = vcmp.ge.f32.partialorder %v1268, 0.0
  %v1277 = vmul.f32 %v1261, 0.01
  %v1278 = vmul.f32 %v1262, 0.01
  %v1279 = vmul.f32 %v1263, 0.01
  %v1280 = vmul.f32 %v1264, 0.01
  %v1281 = vmul.f32 %v1265, 0.01
  %v1282 = vmul.f32 %v1266, 0.01
  %v1283 = vmul.f32 %v1267, 0.01
  %v1284 = vmul.f32 %v1268, 0.01
  %v1285 = vsel %vm1269, %v1261, %v1277
  %v1286 = vsel %vm1270, %v1262, %v1278
  %v1287 = vsel %vm1271, %v1263, %v1279
  %v1288 = vsel %vm1272, %v1264, %v1280
  %v1289 = vsel %vm1273, %v1265, %v1281
  %v1290 = vsel %vm1274, %v1266, %v1282
  %v1291 = vsel %vm1275, %v1267, %v1283
  %v1292 = vsel %vm1276, %v1268, %v1284
  %v1293 = vpack.c.bf16 %v1286, %v1285
  %v1294 = vpack.c.bf16 %v1288, %v1287
  %v1295 = vpack.c.bf16 %v1290, %v1289
  %v1296 = vpack.c.bf16 %v1292, %v1291
  %v1301 = vunpack.c.l.b16 %v1293
  %v1302 = vunpack.c.h.b16 %v1293
  %v1303 = vunpack.c.l.b16 %v1294
  %v1304 = vunpack.c.h.b16 %v1294
  %v1305 = vunpack.c.l.b16 %v1295
  %v1306 = vunpack.c.h.b16 %v1295
  %v1307 = vunpack.c.l.b16 %v1296
  %v1308 = vunpack.c.h.b16 %v1296
  %v1309 = vpack.c.b16 %v1301, %v1301
  %v1310 = vpack.c.b16 %v1302, %v1302
  %v1311 = vpack.c.b16 %v1303, %v1303
  %v1312 = vpack.c.b16 %v1304, %v1304
  %v1313 = vpack.c.b16 %v1305, %v1305
  %v1314 = vpack.c.b16 %v1306, %v1306
  %v1315 = vpack.c.b16 %v1307, %v1307
  %v1316 = vpack.c.b16 %v1308, %v1308
  %vm1325 = vcmask 60416
  %1326 = vst.msk [vmem:[%s3] sm:$0xf] %vm1325, %v1309
  %1327 = vst.msk [vmem:[%s3 + $0x4] sm:$0xf] %vm1325, %v1310
  %1328 = vst.msk [vmem:[%s3 + $0x8] sm:$0xf] %vm1325, %v1311
  %1329 = vst.msk [vmem:[%s3 + $0xc] sm:$0xf] %vm1325, %v1312
  %1330 = vst.msk [vmem:[%s3 + $0x10] sm:$0xf] %vm1325, %v1313
  %1331 = vst.msk [vmem:[%s3 + $0x14] sm:$0xf] %vm1325, %v1314
  %1332 = vst.msk [vmem:[%s3 + $0x18] sm:$0xf] %vm1325, %v1315
  %1333 = vst.msk [vmem:[%s3 + $0x1c] sm:$0xf] %vm1325, %v1316
  // Predicated region
  $region14: #{map2style_forward.6} parent=0 // pred_check
    _
  $region15: #{map2style_forward.6} parent=0 // pred_check_branch
    %1335 = sbr.rel (0) target = $region17
  $region16: #{map2style_forward.6} parent=0 // pred_region
    _
  $region17: #{map2style_forward.6} parent=0 // pred_fallthru
    _
  // Predicated region
  $region18: #{map2style_forward.6} parent=0 // pred_check
    _
  $region19: #{map2style_forward.6} parent=0 // pred_check_branch
    %1337 = sbr.rel (0) target = $region21
  $region20: #{map2style_forward.6} parent=0 // pred_region
    _
  $region21: #{map2style_forward.6} parent=0 // pred_fallthru
    _

// kernel: map2style_forward.7
$region0: #{map2style_forward.7}
  #allocation0 [shape = 'u32[]', space=smem, size = 0x4, offset = 0x4, fixed_abs, tag = 'smem constant byte address 0x4 - core index']
  #allocation1 [shape = 'u32[144,128]{1,0:T(1,128)}', space=vmem, size = 0x12000, scoped, tag = 'internal scratch']
  #allocation2 [shape = 'f32[32,8]{1,0:T(8,128)}', space=vmem, size = 0x4000, scoped, tag = 'scratch operand']
  %s0 = inlined_call_operand.vmem [shape: bf16[192,8], index: 0, kind: input, shape index: {}]
  %s1 = inlined_call_operand.vmem [shape: bf16[9,8,8], index: 1, kind: input, shape index: {}]
  %s2 = inlined_call_operand.vmem [shape: f32[1,8], index: 2, kind: input, shape index: {}]
  %s3 = inlined_call_operand.vmem [shape: bf16[32,8], index: 3, kind: output, shape index: {}]
  %s4 = sld [smem:[#allocation0]]
  $region22: #{map2style_forward.7} parent=0
    _
  %s6 = ssub.s32 1, %s4
  %s7 = scalar_select 0, %s6, %s4
  // Predicated region
  $region2: #{map2style_forward.7} parent=0 // pred_check
    _
  $region3: #{map2style_forward.7} parent=0 // pred_check_branch
    %9 = sbr.rel (0) target = $region5
  $region4: #{map2style_forward.7} parent=0 // pred_region
    _
  $region5: #{map2style_forward.7} parent=0 // pred_fallthru
    _
  // Predicated region
  $region6: #{map2style_forward.7} parent=0 // pred_check
    _
  $region7: #{map2style_forward.7} parent=0 // pred_check_branch
    %11 = sbr.rel (0) target = $region9
  $region8: #{map2style_forward.7} parent=0 // pred_region
    _
  $region9: #{map2style_forward.7} parent=0 // pred_fallthru
    _
  // Predicated region
  $region10: #{map2style_forward.7} parent=0 // pred_check
    _
  $region11: #{map2style_forward.7} parent=0 // pred_check_branch
    %13 = sbr.rel (0) target = $region13
  $region12: #{map2style_forward.7} parent=0 // pred_region
    _
  $region13: #{map2style_forward.7} parent=0 // pred_fallthru
    _
  %v15 = vld [vmem:[%s0] sm:$0xf]
  %v16 = vld [vmem:[%s0 + $0x4] sm:$0xf]
  %v17 = vld [vmem:[%s0 + $0x8] sm:$0xf]
  %v18 = vld [vmem:[%s0 + $0xc] sm:$0xf]
  %v19 = vld [vmem:[%s1] sm:$0xf]
  %v24 = vunpack.c.l.b16 %v15
  %v25 = vunpack.c.l.b16 %v16
  %v26 = vunpack.c.l.b16 %v17
  %v27 = vunpack.c.l.b16 %v18
  %v28 = vpack.c.b16 %v25, %v24
  %v29 = vpack.c.b16 %v27, %v26
  %vm30 = vcmask 64512
  %v32 = vsel %vm30, %v28, 0
  %v35 = vsel %vm30, %v29, 0
  %vm37 = vcmask 1043456
  %v39 = vsel %vm37, %v19, 0
  %41 = vmatprep.subr.bf16.mxu0 0
  %42 = vmatpush1.bf16.msra.mxu0 0
  %43 = vmatprep.subr.bf16.mxu0 0
  %44 = vmatpush1.bf16.msra.mxu0 0
  %45 = vmatprep.subr.bf16.mxu0 0
  %46 = vmatpush1.bf16.msra.mxu0 0
  %47 = vmatprep.subr.bf16.mxu0 0
  %48 = vmatpush1.bf16.msra.mxu0 0
  %49 = vmatprep.subr.bf16.mxu0 0
  %50 = vmatpush1.bf16.msra.mxu0 0
  %51 = vmatprep.subr.bf16.mxu0 0
  %52 = vmatpush1.bf16.msra.mxu0 0
  %53 = vmatprep.subr.bf16.mxu0 0
  %54 = vmatpush1.bf16.msra.mxu0 0
  %55 = vmatprep.subr.bf16.mxu0 0
  %56 = vmatpush1.bf16.msra.mxu0 %v39
  %57 = vmatprep.subr.bf16.mxu0 0
  %58 = vmatpush2.bf16.msra.mxu0 0
  %59 = vmatprep.subr.bf16.mxu0 0
  %60 = vmatpush2.bf16.msra.mxu0 0
  %61 = vmatprep.subr.bf16.mxu0 0
  %62 = vmatpush2.bf16.msra.mxu0 0
  %63 = vmatprep.subr.bf16.mxu0 0
  %64 = vmatpush2.bf16.msra.mxu0 0
  %65 = vmatprep.subr.bf16.mxu0 0
  %66 = vmatpush2.bf16.msra.mxu0 0
  %67 = vmatprep.subr.bf16.mxu0 0
  %68 = vmatpush2.bf16.msra.mxu0 0
  %69 = vmatprep.subr.bf16.mxu0 0
  %70 = vmatpush2.bf16.msra.mxu0 0
  %71 = vmatprep.subr.bf16.mxu0 0
  %72 = vmatpush2.bf16.msra.mxu0 0
  %73 = vmatprep.mubr.bf16.mxu0 0
  %74 = vmatmul.mubr.bf16.gmra.mxu0 %v32
  %v75 = vpop.f32.mrf.mxu0
  %v76 = vadd.f32 0.0, %v75
  %v77 = vpop.f32.mrf.mxu0
  %v78 = vpop.f32.mrf.mxu0
  %v79 = vadd.f32 0.0, %v78
  %v80 = vpop.f32.mrf.mxu0
  %81 = vmatprep.mubr.bf16.mxu0 0
  %82 = vmatmul.mubr.bf16.gmra.mxu0 %v35
  %v83 = vpop.f32.mrf.mxu0
  %v84 = vadd.f32 0.0, %v83
  %v85 = vpop.f32.mrf.mxu0
  %v86 = vpop.f32.mrf.mxu0
  %v87 = vadd.f32 0.0, %v86
  %v88 = vpop.f32.mrf.mxu0
  %89 = vdwg.mxu0
  %90 = vst.msk [vmem:[#allocation2] sm:$0xff] %vm30, %v76
  %91 = vst.msk [vmem:[#allocation2 + $0x8] sm:$0xff] %vm30, %v79
  %92 = vst.msk [vmem:[#allocation2 + $0x10] sm:$0xff] %vm30, %v84
  %93 = vst.msk [vmem:[#allocation2 + $0x18] sm:$0xff] %vm30, %v87
  %v94 = vld [vmem:[%s0 + $0x18] sm:$0xf]
  %v95 = vld [vmem:[%s0 + $0x1c] sm:$0xf]
  %v96 = vld [vmem:[%s0 + $0x20] sm:$0xf]
  %v97 = vld [vmem:[%s0 + $0x24] sm:$0xf]
  %s98 = scalar_lea.vmem %s1, 4
  %v99 = vld [vmem:[%s98] sm:$0xf]
  %v104 = vunpack.c.l.b16 %v94
  %v105 = vunpack.c.l.b16 %v95
  %v106 = vunpack.c.l.b16 %v96
  %v107 = vunpack.c.l.b16 %v97
  %v108 = vpack.c.b16 %v105, %v104
  %v109 = vpack.c.b16 %v107, %v106
  %v111 = vsel %vm30, %v108, 0
  %v114 = vsel %vm30, %v109, 0
  %v117 = vsel %vm37, %v99, 0
  %119 = vmatprep.subr.bf16.mxu0 0
  %120 = vmatpush1.bf16.msra.mxu0 0
  %121 = vmatprep.subr.bf16.mxu0 0
  %122 = vmatpush1.bf16.msra.mxu0 0
  %123 = vmatprep.subr.bf16.mxu0 0
  %124 = vmatpush1.bf16.msra.mxu0 0
  %125 = vmatprep.subr.bf16.mxu0 0
  %126 = vmatpush1.bf16.msra.mxu0 0
  %127 = vmatprep.subr.bf16.mxu0 0
  %128 = vmatpush1.bf16.msra.mxu0 0
  %129 = vmatprep.subr.bf16.mxu0 0
  %130 = vmatpush1.bf16.msra.mxu0 0
  %131 = vmatprep.subr.bf16.mxu0 0
  %132 = vmatpush1.bf16.msra.mxu0 0
  %133 = vmatprep.subr.bf16.mxu0 0
  %134 = vmatpush1.bf16.msra.mxu0 %v117
  %135 = vmatprep.subr.bf16.mxu0 0
  %136 = vmatpush2.bf16.msra.mxu0 0
  %137 = vmatprep.subr.bf16.mxu0 0
  %138 = vmatpush2.bf16.msra.mxu0 0
  %139 = vmatprep.subr.bf16.mxu0 0
  %140 = vmatpush2.bf16.msra.mxu0 0
  %141 = vmatprep.subr.bf16.mxu0 0
  %142 = vmatpush2.bf16.msra.mxu0 0
  %143 = vmatprep.subr.bf16.mxu0 0
  %144 = vmatpush2.bf16.msra.mxu0 0
  %145 = vmatprep.subr.bf16.mxu0 0
  %146 = vmatpush2.bf16.msra.mxu0 0
  %147 = vmatprep.subr.bf16.mxu0 0
  %148 = vmatpush2.bf16.msra.mxu0 0
  %149 = vmatprep.subr.bf16.mxu0 0
  %150 = vmatpush2.bf16.msra.mxu0 0
  %151 = vmatprep.mubr.bf16.mxu0 0
  %152 = vmatmul.mubr.bf16.gmra.mxu0 %v111
  %v153 = vpop.f32.mrf.mxu0
  %v154 = vadd.f32 0.0, %v153
  %v155 = vpop.f32.mrf.mxu0
  %v156 = vpop.f32.mrf.mxu0
  %v157 = vadd.f32 0.0, %v156
  %v158 = vpop.f32.mrf.mxu0
  %159 = vmatprep.mubr.bf16.mxu0 0
  %160 = vmatmul.mubr.bf16.gmra.mxu0 %v114
  %v161 = vpop.f32.mrf.mxu0
  %v162 = vadd.f32 0.0, %v161
  %v163 = vpop.f32.mrf.mxu0
  %v164 = vpop.f32.mrf.mxu0
  %v165 = vadd.f32 0.0, %v164
  %v166 = vpop.f32.mrf.mxu0
  %167 = vdwg.mxu0
  %v168 = vld [vmem:[#allocation2] sm:$0xff]
  %v169 = vld [vmem:[#allocation2 + $0x8] sm:$0xff]
  %v170 = vld [vmem:[#allocation2 + $0x10] sm:$0xff]
  %v171 = vld [vmem:[#allocation2 + $0x18] sm:$0xff]
  %v172 = vadd.f32 %v168, %v154
  %v173 = vadd.f32 %v169, %v157
  %v174 = vadd.f32 %v170, %v162
  %v175 = vadd.f32 %v171, %v165
  %176 = vst.msk [vmem:[#allocation2] sm:$0xff] %vm30, %v172
  %177 = vst.msk [vmem:[#allocation2 + $0x8] sm:$0xff] %vm30, %v173
  %178 = vst.msk [vmem:[#allocation2 + $0x10] sm:$0xff] %vm30, %v174
  %179 = vst.msk [vmem:[#allocation2 + $0x18] sm:$0xff] %vm30, %v175
  %v180 = vld [vmem:[%s0] sm:$0xe]
  %v181 = vld [vmem:[%s0 + $0x4] sm:$0xf]
  %v182 = vld [vmem:[%s0 + $0x8] sm:$0xf]
  %v183 = vld [vmem:[%s0 + $0xc] sm:$0xf]
  %v184 = vld [vmem:[%s0 + $0x10] sm:$0x1]
  %s185 = scalar_lea.vmem %s1, 8
  %v186 = vld [vmem:[%s185] sm:$0xf]
  %v192 = vunpack.c.l.b16 %v180
  %v193 = vunpack.c.l.b16 %v181
  %v194 = vunpack.c.l.b16 %v182
  %v195 = vunpack.c.l.b16 %v183
  %v196 = vunpack.c.l.b16 %v184
  %v197 = vpack.c.b16 %v193, %v192
  %v198 = vpack.c.b16 %v195, %v194
  %v199 = vpack.c.b16 %v196, %v196
  %vm200 = vcmask 1046528
  %v201 = vrot.slane %v197, 1
  %v202 = vrot.slane %v198, 1
  %v203 = vsel %vm200, %v201, %v202
  %v204 = vrot.slane %v199, 1
  %v205 = vsel %vm200, %v202, %v204
  %v207 = vsel %vm30, %v203, 0
  %v210 = vsel %vm30, %v205, 0
  %v213 = vsel %vm37, %v186, 0
  %215 = vmatprep.subr.bf16.mxu0 0
  %216 = vmatpush1.bf16.msra.mxu0 0
  %217 = vmatprep.subr.bf16.mxu0 0
  %218 = vmatpush1.bf16.msra.mxu0 0
  %219 = vmatprep.subr.bf16.mxu0 0
  %220 = vmatpush1.bf16.msra.mxu0 0
  %221 = vmatprep.subr.bf16.mxu0 0
  %222 = vmatpush1.bf16.msra.mxu0 0
  %223 = vmatprep.subr.bf16.mxu0 0
  %224 = vmatpush1.bf16.msra.mxu0 0
  %225 = vmatprep.subr.bf16.mxu0 0
  %226 = vmatpush1.bf16.msra.mxu0 0
  %227 = vmatprep.subr.bf16.mxu0 0
  %228 = vmatpush1.bf16.msra.mxu0 0
  %229 = vmatprep.subr.bf16.mxu0 0
  %230 = vmatpush1.bf16.msra.mxu0 %v213
  %231 = vmatprep.subr.bf16.mxu0 0
  %232 = vmatpush2.bf16.msra.mxu0 0
  %233 = vmatprep.subr.bf16.mxu0 0
  %234 = vmatpush2.bf16.msra.mxu0 0
  %235 = vmatprep.subr.bf16.mxu0 0
  %236 = vmatpush2.bf16.msra.mxu0 0
  %237 = vmatprep.subr.bf16.mxu0 0
  %238 = vmatpush2.bf16.msra.mxu0 0
  %239 = vmatprep.subr.bf16.mxu0 0
  %240 = vmatpush2.bf16.msra.mxu0 0
  %241 = vmatprep.subr.bf16.mxu0 0
  %242 = vmatpush2.bf16.msra.mxu0 0
  %243 = vmatprep.subr.bf16.mxu0 0
  %244 = vmatpush2.bf16.msra.mxu0 0
  %245 = vmatprep.subr.bf16.mxu0 0
  %246 = vmatpush2.bf16.msra.mxu0 0
  %247 = vmatprep.mubr.bf16.mxu0 0
  %248 = vmatmul.mubr.bf16.gmra.mxu0 %v207
  %v249 = vpop.f32.mrf.mxu0
  %v250 = vadd.f32 0.0, %v249
  %v251 = vpop.f32.mrf.mxu0
  %v252 = vpop.f32.mrf.mxu0
  %v253 = vadd.f32 0.0, %v252
  %v254 = vpop.f32.mrf.mxu0
  %255 = vmatprep.mubr.bf16.mxu0 0
  %256 = vmatmul.mubr.bf16.gmra.mxu0 %v210
  %v257 = vpop.f32.mrf.mxu0
  %v258 = vadd.f32 0.0, %v257
  %v259 = vpop.f32.mrf.mxu0
  %v260 = vpop.f32.mrf.mxu0
  %v261 = vadd.f32 0.0, %v260
  %v262 = vpop.f32.mrf.mxu0
  %263 = vdwg.mxu0
  %v264 = vld [vmem:[#allocation2] sm:$0xff]
  %v265 = vld [vmem:[#allocation2 + $0x8] sm:$0xff]
  %v266 = vld [vmem:[#allocation2 + $0x10] sm:$0xff]
  %v267 = vld [vmem:[#allocation2 + $0x18] sm:$0xff]
  %v268 = vadd.f32 %v264, %v250
  %v269 = vadd.f32 %v265, %v253
  %v270 = vadd.f32 %v266, %v258
  %v271 = vadd.f32 %v267, %v261
  %272 = vst.msk [vmem:[#allocation2] sm:$0xff] %vm30, %v268
  %273 = vst.msk [vmem:[#allocation2 + $0x8] sm:$0xff] %vm30, %v269
  %274 = vst.msk [vmem:[#allocation2 + $0x10] sm:$0xff] %vm30, %v270
  %275 = vst.msk [vmem:[#allocation2 + $0x18] sm:$0xff] %vm30, %v271
  %v276 = vld [vmem:[%s0 + $0x30] sm:$0xf]
  %v277 = vld [vmem:[%s0 + $0x34] sm:$0xf]
  %v278 = vld [vmem:[%s0 + $0x38] sm:$0xf]
  %v279 = vld [vmem:[%s0 + $0x3c] sm:$0xf]
  %s280 = scalar_lea.vmem %s1, 12
  %v281 = vld [vmem:[%s280] sm:$0xf]
  %v286 = vunpack.c.l.b16 %v276
  %v287 = vunpack.c.l.b16 %v277
  %v288 = vunpack.c.l.b16 %v278
  %v289 = vunpack.c.l.b16 %v279
  %v290 = vpack.c.b16 %v287, %v286
  %v291 = vpack.c.b16 %v289, %v288
  %v293 = vsel %vm30, %v290, 0
  %v296 = vsel %vm30, %v291, 0
  %v299 = vsel %vm37, %v281, 0
  %301 = vmatprep.subr.bf16.mxu0 0
  %302 = vmatpush1.bf16.msra.mxu0 0
  %303 = vmatprep.subr.bf16.mxu0 0
  %304 = vmatpush1.bf16.msra.mxu0 0
  %305 = vmatprep.subr.bf16.mxu0 0
  %306 = vmatpush1.bf16.msra.mxu0 0
  %307 = vmatprep.subr.bf16.mxu0 0
  %308 = vmatpush1.bf16.msra.mxu0 0
  %309 = vmatprep.subr.bf16.mxu0 0
  %310 = vmatpush1.bf16.msra.mxu0 0
  %311 = vmatprep.subr.bf16.mxu0 0
  %312 = vmatpush1.bf16.msra.mxu0 0
  %313 = vmatprep.subr.bf16.mxu0 0
  %314 = vmatpush1.bf16.msra.mxu0 0
  %315 = vmatprep.subr.bf16.mxu0 0
  %316 = vmatpush1.bf16.msra.mxu0 %v299
  %317 = vmatprep.subr.bf16.mxu0 0
  %318 = vmatpush2.bf16.msra.mxu0 0
  %319 = vmatprep.subr.bf16.mxu0 0
  %320 = vmatpush2.bf16.msra.mxu0 0
  %321 = vmatprep.subr.bf16.mxu0 0
  %322 = vmatpush2.bf16.msra.mxu0 0
  %323 = vmatprep.subr.bf16.mxu0 0
  %324 = vmatpush2.bf16.msra.mxu0 0
  %325 = vmatprep.subr.bf16.mxu0 0
  %326 = vmatpush2.bf16.msra.mxu0 0
  %327 = vmatprep.subr.bf16.mxu0 0
  %328 = vmatpush2.bf16.msra.mxu0 0
  %329 = vmatprep.subr.bf16.mxu0 0
  %330 = vmatpush2.bf16.msra.mxu0 0
  %331 = vmatprep.subr.bf16.mxu0 0
  %332 = vmatpush2.bf16.msra.mxu0 0
  %333 = vmatprep.mubr.bf16.mxu0 0
  %334 = vmatmul.mubr.bf16.gmra.mxu0 %v293
  %v335 = vpop.f32.mrf.mxu0
  %v336 = vadd.f32 0.0, %v335
  %v337 = vpop.f32.mrf.mxu0
  %v338 = vpop.f32.mrf.mxu0
  %v339 = vadd.f32 0.0, %v338
  %v340 = vpop.f32.mrf.mxu0
  %341 = vmatprep.mubr.bf16.mxu0 0
  %342 = vmatmul.mubr.bf16.gmra.mxu0 %v296
  %v343 = vpop.f32.mrf.mxu0
  %v344 = vadd.f32 0.0, %v343
  %v345 = vpop.f32.mrf.mxu0
  %v346 = vpop.f32.mrf.mxu0
  %v347 = vadd.f32 0.0, %v346
  %v348 = vpop.f32.mrf.mxu0
  %349 = vdwg.mxu0
  %v350 = vld [vmem:[#allocation2] sm:$0xff]
  %v351 = vld [vmem:[#allocation2 + $0x8] sm:$0xff]
  %v352 = vld [vmem:[#allocation2 + $0x10] sm:$0xff]
  %v353 = vld [vmem:[#allocation2 + $0x18] sm:$0xff]
  %v354 = vadd.f32 %v350, %v336
  %v355 = vadd.f32 %v351, %v339
  %v356 = vadd.f32 %v352, %v344
  %v357 = vadd.f32 %v353, %v347
  %358 = vst.msk [vmem:[#allocation2] sm:$0xff] %vm30, %v354
  %359 = vst.msk [vmem:[#allocation2 + $0x8] sm:$0xff] %vm30, %v355
  %360 = vst.msk [vmem:[#allocation2 + $0x10] sm:$0xff] %vm30, %v356
  %361 = vst.msk [vmem:[#allocation2 + $0x18] sm:$0xff] %vm30, %v357
  %v362 = vld [vmem:[%s0 + $0x48] sm:$0xf]
  %v363 = vld [vmem:[%s0 + $0x4c] sm:$0xf]
  %v364 = vld [vmem:[%s0 + $0x50] sm:$0xf]
  %v365 = vld [vmem:[%s0 + $0x54] sm:$0xf]
  %s366 = scalar_lea.vmem %s1, 16
  %v367 = vld [vmem:[%s366] sm:$0xf]
  %v372 = vunpack.c.l.b16 %v362
  %v373 = vunpack.c.l.b16 %v363
  %v374 = vunpack.c.l.b16 %v364
  %v375 = vunpack.c.l.b16 %v365
  %v376 = vpack.c.b16 %v373, %v372
  %v377 = vpack.c.b16 %v375, %v374
  %v379 = vsel %vm30, %v376, 0
  %v382 = vsel %vm30, %v377, 0
  %v385 = vsel %vm37, %v367, 0
  %387 = vmatprep.subr.bf16.mxu0 0
  %388 = vmatpush1.bf16.msra.mxu0 0
  %389 = vmatprep.subr.bf16.mxu0 0
  %390 = vmatpush1.bf16.msra.mxu0 0
  %391 = vmatprep.subr.bf16.mxu0 0
  %392 = vmatpush1.bf16.msra.mxu0 0
  %393 = vmatprep.subr.bf16.mxu0 0
  %394 = vmatpush1.bf16.msra.mxu0 0
  %395 = vmatprep.subr.bf16.mxu0 0
  %396 = vmatpush1.bf16.msra.mxu0 0
  %397 = vmatprep.subr.bf16.mxu0 0
  %398 = vmatpush1.bf16.msra.mxu0 0
  %399 = vmatprep.subr.bf16.mxu0 0
  %400 = vmatpush1.bf16.msra.mxu0 0
  %401 = vmatprep.subr.bf16.mxu0 0
  %402 = vmatpush1.bf16.msra.mxu0 %v385
  %403 = vmatprep.subr.bf16.mxu0 0
  %404 = vmatpush2.bf16.msra.mxu0 0
  %405 = vmatprep.subr.bf16.mxu0 0
  %406 = vmatpush2.bf16.msra.mxu0 0
  %407 = vmatprep.subr.bf16.mxu0 0
  %408 = vmatpush2.bf16.msra.mxu0 0
  %409 = vmatprep.subr.bf16.mxu0 0
  %410 = vmatpush2.bf16.msra.mxu0 0
  %411 = vmatprep.subr.bf16.mxu0 0
  %412 = vmatpush2.bf16.msra.mxu0 0
  %413 = vmatprep.subr.bf16.mxu0 0
  %414 = vmatpush2.bf16.msra.mxu0 0
  %415 = vmatprep.subr.bf16.mxu0 0
  %416 = vmatpush2.bf16.msra.mxu0 0
  %417 = vmatprep.subr.bf16.mxu0 0
  %418 = vmatpush2.bf16.msra.mxu0 0
  %419 = vmatprep.mubr.bf16.mxu0 0
  %420 = vmatmul.mubr.bf16.gmra.mxu0 %v379
  %v421 = vpop.f32.mrf.mxu0
  %v422 = vadd.f32 0.0, %v421
  %v423 = vpop.f32.mrf.mxu0
  %v424 = vpop.f32.mrf.mxu0
  %v425 = vadd.f32 0.0, %v424
  %v426 = vpop.f32.mrf.mxu0
  %427 = vmatprep.mubr.bf16.mxu0 0
  %428 = vmatmul.mubr.bf16.gmra.mxu0 %v382
  %v429 = vpop.f32.mrf.mxu0
  %v430 = vadd.f32 0.0, %v429
  %v431 = vpop.f32.mrf.mxu0
  %v432 = vpop.f32.mrf.mxu0
  %v433 = vadd.f32 0.0, %v432
  %v434 = vpop.f32.mrf.mxu0
  %435 = vdwg.mxu0
  %v436 = vld [vmem:[#allocation2] sm:$0xff]
  %v437 = vld [vmem:[#allocation2 + $0x8] sm:$0xff]
  %v438 = vld [vmem:[#allocation2 + $0x10] sm:$0xff]
  %v439 = vld [vmem:[#allocation2 + $0x18] sm:$0xff]
  %v440 = vadd.f32 %v436, %v422
  %v441 = vadd.f32 %v437, %v425
  %v442 = vadd.f32 %v438, %v430
  %v443 = vadd.f32 %v439, %v433
  %444 = vst.msk [vmem:[#allocation2] sm:$0xff] %vm30, %v440
  %445 = vst.msk [vmem:[#allocation2 + $0x8] sm:$0xff] %vm30, %v441
  %446 = vst.msk [vmem:[#allocation2 + $0x10] sm:$0xff] %vm30, %v442
  %447 = vst.msk [vmem:[#allocation2 + $0x18] sm:$0xff] %vm30, %v443
  %v448 = vld [vmem:[%s0 + $0x30] sm:$0xe]
  %v449 = vld [vmem:[%s0 + $0x34] sm:$0xf]
  %v450 = vld [vmem:[%s0 + $0x38] sm:$0xf]
  %v451 = vld [vmem:[%s0 + $0x3c] sm:$0xf]
  %v452 = vld [vmem:[%s0 + $0x40] sm:$0x1]
  %s453 = scalar_lea.vmem %s1, 20
  %v454 = vld [vmem:[%s453] sm:$0xf]
  %v460 = vunpack.c.l.b16 %v448
  %v461 = vunpack.c.l.b16 %v449
  %v462 = vunpack.c.l.b16 %v450
  %v463 = vunpack.c.l.b16 %v451
  %v464 = vunpack.c.l.b16 %v452
  %v465 = vpack.c.b16 %v461, %v460
  %v466 = vpack.c.b16 %v463, %v462
  %v467 = vpack.c.b16 %v464, %v464
  %v468 = vrot.slane %v465, 1
  %v469 = vrot.slane %v466, 1
  %v470 = vsel %vm200, %v468, %v469
  %v471 = vrot.slane %v467, 1
  %v472 = vsel %vm200, %v469, %v471
  %v474 = vsel %vm30, %v470, 0
  %v477 = vsel %vm30, %v472, 0
  %v480 = vsel %vm37, %v454, 0
  %482 = vmatprep.subr.bf16.mxu0 0
  %483 = vmatpush1.bf16.msra.mxu0 0
  %484 = vmatprep.subr.bf16.mxu0 0
  %485 = vmatpush1.bf16.msra.mxu0 0
  %486 = vmatprep.subr.bf16.mxu0 0
  %487 = vmatpush1.bf16.msra.mxu0 0
  %488 = vmatprep.subr.bf16.mxu0 0
  %489 = vmatpush1.bf16.msra.mxu0 0
  %490 = vmatprep.subr.bf16.mxu0 0
  %491 = vmatpush1.bf16.msra.mxu0 0
  %492 = vmatprep.subr.bf16.mxu0 0
  %493 = vmatpush1.bf16.msra.mxu0 0
  %494 = vmatprep.subr.bf16.mxu0 0
  %495 = vmatpush1.bf16.msra.mxu0 0
  %496 = vmatprep.subr.bf16.mxu0 0
  %497 = vmatpush1.bf16.msra.mxu0 %v480
  %498 = vmatprep.subr.bf16.mxu0 0
  %499 = vmatpush2.bf16.msra.mxu0 0
  %500 = vmatprep.subr.bf16.mxu0 0
  %501 = vmatpush2.bf16.msra.mxu0 0
  %502 = vmatprep.subr.bf16.mxu0 0
  %503 = vmatpush2.bf16.msra.mxu0 0
  %504 = vmatprep.subr.bf16.mxu0 0
  %505 = vmatpush2.bf16.msra.mxu0 0
  %506 = vmatprep.subr.bf16.mxu0 0
  %507 = vmatpush2.bf16.msra.mxu0 0
  %508 = vmatprep.subr.bf16.mxu0 0
  %509 = vmatpush2.bf16.msra.mxu0 0
  %510 = vmatprep.subr.bf16.mxu0 0
  %511 = vmatpush2.bf16.msra.mxu0 0
  %512 = vmatprep.subr.bf16.mxu0 0
  %513 = vmatpush2.bf16.msra.mxu0 0
  %514 = vmatprep.mubr.bf16.mxu0 0
  %515 = vmatmul.mubr.bf16.gmra.mxu0 %v474
  %v516 = vpop.f32.mrf.mxu0
  %v517 = vadd.f32 0.0, %v516
  %v518 = vpop.f32.mrf.mxu0
  %v519 = vpop.f32.mrf.mxu0
  %v520 = vadd.f32 0.0, %v519
  %v521 = vpop.f32.mrf.mxu0
  %522 = vmatprep.mubr.bf16.mxu0 0
  %523 = vmatmul.mubr.bf16.gmra.mxu0 %v477
  %v524 = vpop.f32.mrf.mxu0
  %v525 = vadd.f32 0.0, %v524
  %v526 = vpop.f32.mrf.mxu0
  %v527 = vpop.f32.mrf.mxu0
  %v528 = vadd.f32 0.0, %v527
  %v529 = vpop.f32.mrf.mxu0
  %530 = vdwg.mxu0
  %v531 = vld [vmem:[#allocation2] sm:$0xff]
  %v532 = vld [vmem:[#allocation2 + $0x8] sm:$0xff]
  %v533 = vld [vmem:[#allocation2 + $0x10] sm:$0xff]
  %v534 = vld [vmem:[#allocation2 + $0x18] sm:$0xff]
  %v535 = vadd.f32 %v531, %v517
  %v536 = vadd.f32 %v532, %v520
  %v537 = vadd.f32 %v533, %v525
  %v538 = vadd.f32 %v534, %v528
  %539 = vst.msk [vmem:[#allocation2] sm:$0xff] %vm30, %v535
  %540 = vst.msk [vmem:[#allocation2 + $0x8] sm:$0xff] %vm30, %v536
  %541 = vst.msk [vmem:[#allocation2 + $0x10] sm:$0xff] %vm30, %v537
  %542 = vst.msk [vmem:[#allocation2 + $0x18] sm:$0xff] %vm30, %v538
  %v543 = vld [vmem:[%s0 + $0x8] sm:$0xf]
  %v544 = vld [vmem:[%s0 + $0xc] sm:$0xf]
  %v545 = vld [vmem:[%s0 + $0x10] sm:$0xf]
  %v546 = vld [vmem:[%s0 + $0x14] sm:$0xf]
  %s547 = scalar_lea.vmem %s1, 24
  %v548 = vld [vmem:[%s547] sm:$0xf]
  %v553 = vunpack.c.l.b16 %v543
  %v554 = vunpack.c.l.b16 %v544
  %v555 = vunpack.c.l.b16 %v545
  %v556 = vunpack.c.l.b16 %v546
  %v557 = vpack.c.b16 %v554, %v553
  %v558 = vpack.c.b16 %v556, %v555
  %v560 = vsel %vm30, %v557, 0
  %v563 = vsel %vm30, %v558, 0
  %v566 = vsel %vm37, %v548, 0
  %568 = vmatprep.subr.bf16.mxu0 0
  %569 = vmatpush1.bf16.msra.mxu0 0
  %570 = vmatprep.subr.bf16.mxu0 0
  %571 = vmatpush1.bf16.msra.mxu0 0
  %572 = vmatprep.subr.bf16.mxu0 0
  %573 = vmatpush1.bf16.msra.mxu0 0
  %574 = vmatprep.subr.bf16.mxu0 0
  %575 = vmatpush1.bf16.msra.mxu0 0
  %576 = vmatprep.subr.bf16.mxu0 0
  %577 = vmatpush1.bf16.msra.mxu0 0
  %578 = vmatprep.subr.bf16.mxu0 0
  %579 = vmatpush1.bf16.msra.mxu0 0
  %580 = vmatprep.subr.bf16.mxu0 0
  %581 = vmatpush1.bf16.msra.mxu0 0
  %582 = vmatprep.subr.bf16.mxu0 0
  %583 = vmatpush1.bf16.msra.mxu0 %v566
  %584 = vmatprep.subr.bf16.mxu0 0
  %585 = vmatpush2.bf16.msra.mxu0 0
  %586 = vmatprep.subr.bf16.mxu0 0
  %587 = vmatpush2.bf16.msra.mxu0 0
  %588 = vmatprep.subr.bf16.mxu0 0
  %589 = vmatpush2.bf16.msra.mxu0 0
  %590 = vmatprep.subr.bf16.mxu0 0
  %591 = vmatpush2.bf16.msra.mxu0 0
  %592 = vmatprep.subr.bf16.mxu0 0
  %593 = vmatpush2.bf16.msra.mxu0 0
  %594 = vmatprep.subr.bf16.mxu0 0
  %595 = vmatpush2.bf16.msra.mxu0 0
  %596 = vmatprep.subr.bf16.mxu0 0
  %597 = vmatpush2.bf16.msra.mxu0 0
  %598 = vmatprep.subr.bf16.mxu0 0
  %599 = vmatpush2.bf16.msra.mxu0 0
  %600 = vmatprep.mubr.bf16.mxu0 0
  %601 = vmatmul.mubr.bf16.gmra.mxu0 %v560
  %v602 = vpop.f32.mrf.mxu0
  %v603 = vadd.f32 0.0, %v602
  %v604 = vpop.f32.mrf.mxu0
  %v605 = vpop.f32.mrf.mxu0
  %v606 = vadd.f32 0.0, %v605
  %v607 = vpop.f32.mrf.mxu0
  %608 = vmatprep.mubr.bf16.mxu0 0
  %609 = vmatmul.mubr.bf16.gmra.mxu0 %v563
  %v610 = vpop.f32.mrf.mxu0
  %v611 = vadd.f32 0.0, %v610
  %v612 = vpop.f32.mrf.mxu0
  %v613 = vpop.f32.mrf.mxu0
  %v614 = vadd.f32 0.0, %v613
  %v615 = vpop.f32.mrf.mxu0
  %616 = vdwg.mxu0
  %v617 = vld [vmem:[#allocation2] sm:$0xff]
  %v618 = vld [vmem:[#allocation2 + $0x8] sm:$0xff]
  %v619 = vld [vmem:[#allocation2 + $0x10] sm:$0xff]
  %v620 = vld [vmem:[#allocation2 + $0x18] sm:$0xff]
  %v621 = vadd.f32 %v617, %v603
  %v622 = vadd.f32 %v618, %v606
  %v623 = vadd.f32 %v619, %v611
  %v624 = vadd.f32 %v620, %v614
  %625 = vst.msk [vmem:[#allocation2] sm:$0xff] %vm30, %v621
  %626 = vst.msk [vmem:[#allocation2 + $0x8] sm:$0xff] %vm30, %v622
  %627 = vst.msk [vmem:[#allocation2 + $0x10] sm:$0xff] %vm30, %v623
  %628 = vst.msk [vmem:[#allocation2 + $0x18] sm:$0xff] %vm30, %v624
  %v629 = vld [vmem:[%s0 + $0x20] sm:$0xf]
  %v630 = vld [vmem:[%s0 + $0x24] sm:$0xf]
  %v631 = vld [vmem:[%s0 + $0x28] sm:$0xf]
  %v632 = vld [vmem:[%s0 + $0x2c] sm:$0xf]
  %s633 = scalar_lea.vmem %s1, 28
  %v634 = vld [vmem:[%s633] sm:$0xf]
  %v639 = vunpack.c.l.b16 %v629
  %v640 = vunpack.c.l.b16 %v630
  %v641 = vunpack.c.l.b16 %v631
  %v642 = vunpack.c.l.b16 %v632
  %v643 = vpack.c.b16 %v640, %v639
  %v644 = vpack.c.b16 %v642, %v641
  %v646 = vsel %vm30, %v643, 0
  %v649 = vsel %vm30, %v644, 0
  %v652 = vsel %vm37, %v634, 0
  %654 = vmatprep.subr.bf16.mxu0 0
  %655 = vmatpush1.bf16.msra.mxu0 0
  %656 = vmatprep.subr.bf16.mxu0 0
  %657 = vmatpush1.bf16.msra.mxu0 0
  %658 = vmatprep.subr.bf16.mxu0 0
  %659 = vmatpush1.bf16.msra.mxu0 0
  %660 = vmatprep.subr.bf16.mxu0 0
  %661 = vmatpush1.bf16.msra.mxu0 0
  %662 = vmatprep.subr.bf16.mxu0 0
  %663 = vmatpush1.bf16.msra.mxu0 0
  %664 = vmatprep.subr.bf16.mxu0 0
  %665 = vmatpush1.bf16.msra.mxu0 0
  %666 = vmatprep.subr.bf16.mxu0 0
  %667 = vmatpush1.bf16.msra.mxu0 0
  %668 = vmatprep.subr.bf16.mxu0 0
  %669 = vmatpush1.bf16.msra.mxu0 %v652
  %670 = vmatprep.subr.bf16.mxu0 0
  %671 = vmatpush2.bf16.msra.mxu0 0
  %672 = vmatprep.subr.bf16.mxu0 0
  %673 = vmatpush2.bf16.msra.mxu0 0
  %674 = vmatprep.subr.bf16.mxu0 0
  %675 = vmatpush2.bf16.msra.mxu0 0
  %676 = vmatprep.subr.bf16.mxu0 0
  %677 = vmatpush2.bf16.msra.mxu0 0
  %678 = vmatprep.subr.bf16.mxu0 0
  %679 = vmatpush2.bf16.msra.mxu0 0
  %680 = vmatprep.subr.bf16.mxu0 0
  %681 = vmatpush2.bf16.msra.mxu0 0
  %682 = vmatprep.subr.bf16.mxu0 0
  %683 = vmatpush2.bf16.msra.mxu0 0
  %684 = vmatprep.subr.bf16.mxu0 0
  %685 = vmatpush2.bf16.msra.mxu0 0
  %686 = vmatprep.mubr.bf16.mxu0 0
  %687 = vmatmul.mubr.bf16.gmra.mxu0 %v646
  %v688 = vpop.f32.mrf.mxu0
  %v689 = vadd.f32 0.0, %v688
  %v690 = vpop.f32.mrf.mxu0
  %v691 = vpop.f32.mrf.mxu0
  %v692 = vadd.f32 0.0, %v691
  %v693 = vpop.f32.mrf.mxu0
  %694 = vmatprep.mubr.bf16.mxu0 0
  %695 = vmatmul.mubr.bf16.gmra.mxu0 %v649
  %v696 = vpop.f32.mrf.mxu0
  %v697 = vadd.f32 0.0, %v696
  %v698 = vpop.f32.mrf.mxu0
  %v699 = vpop.f32.mrf.mxu0
  %v700 = vadd.f32 0.0, %v699
  %v701 = vpop.f32.mrf.mxu0
  %702 = vdwg.mxu0
  %v703 = vld [vmem:[#allocation2] sm:$0xff]
  %v704 = vld [vmem:[#allocation2 + $0x8] sm:$0xff]
  %v705 = vld [vmem:[#allocation2 + $0x10] sm:$0xff]
  %v706 = vld [vmem:[#allocation2 + $0x18] sm:$0xff]
  %v707 = vadd.f32 %v703, %v689
  %v708 = vadd.f32 %v704, %v692
  %v709 = vadd.f32 %v705, %v697
  %v710 = vadd.f32 %v706, %v700
  %711 = vst.msk [vmem:[#allocation2] sm:$0xff] %vm30, %v707
  %712 = vst.msk [vmem:[#allocation2 + $0x8] sm:$0xff] %vm30, %v708
  %713 = vst.msk [vmem:[#allocation2 + $0x10] sm:$0xff] %vm30, %v709
  %714 = vst.msk [vmem:[#allocation2 + $0x18] sm:$0xff] %vm30, %v710
  %v715 = vld [vmem:[%s0 + $0x8] sm:$0xe]
  %v716 = vld [vmem:[%s0 + $0xc] sm:$0xf]
  %v717 = vld [vmem:[%s0 + $0x10] sm:$0xf]
  %v718 = vld [vmem:[%s0 + $0x14] sm:$0xf]
  %v719 = vld [vmem:[%s0 + $0x18] sm:$0x1]
  %s720 = scalar_lea.vmem %s1, 32
  %v721 = vld [vmem:[%s720] sm:$0xf]
  %v727 = vunpack.c.l.b16 %v715
  %v728 = vunpack.c.l.b16 %v716
  %v729 = vunpack.c.l.b16 %v717
  %v730 = vunpack.c.l.b16 %v718
  %v731 = vunpack.c.l.b16 %v719
  %v732 = vpack.c.b16 %v728, %v727
  %v733 = vpack.c.b16 %v730, %v729
  %v734 = vpack.c.b16 %v731, %v731
  %v735 = vrot.slane %v732, 1
  %v736 = vrot.slane %v733, 1
  %v737 = vsel %vm200, %v735, %v736
  %v738 = vrot.slane %v734, 1
  %v739 = vsel %vm200, %v736, %v738
  %v741 = vsel %vm30, %v737, 0
  %v744 = vsel %vm30, %v739, 0
  %v747 = vsel %vm37, %v721, 0
  %749 = vmatprep.subr.bf16.mxu0 0
  %750 = vmatpush1.bf16.msra.mxu0 0
  %751 = vmatprep.subr.bf16.mxu0 0
  %752 = vmatpush1.bf16.msra.mxu0 0
  %753 = vmatprep.subr.bf16.mxu0 0
  %754 = vmatpush1.bf16.msra.mxu0 0
  %755 = vmatprep.subr.bf16.mxu0 0
  %756 = vmatpush1.bf16.msra.mxu0 0
  %757 = vmatprep.subr.bf16.mxu0 0
  %758 = vmatpush1.bf16.msra.mxu0 0
  %759 = vmatprep.subr.bf16.mxu0 0
  %760 = vmatpush1.bf16.msra.mxu0 0
  %761 = vmatprep.subr.bf16.mxu0 0
  %762 = vmatpush1.bf16.msra.mxu0 0
  %763 = vmatprep.subr.bf16.mxu0 0
  %764 = vmatpush1.bf16.msra.mxu0 %v747
  %765 = vmatprep.subr.bf16.mxu0 0
  %766 = vmatpush2.bf16.msra.mxu0 0
  %767 = vmatprep.subr.bf16.mxu0 0
  %768 = vmatpush2.bf16.msra.mxu0 0
  %769 = vmatprep.subr.bf16.mxu0 0
  %770 = vmatpush2.bf16.msra.mxu0 0
  %771 = vmatprep.subr.bf16.mxu0 0
  %772 = vmatpush2.bf16.msra.mxu0 0
  %773 = vmatprep.subr.bf16.mxu0 0
  %774 = vmatpush2.bf16.msra.mxu0 0
  %775 = vmatprep.subr.bf16.mxu0 0
  %776 = vmatpush2.bf16.msra.mxu0 0
  %777 = vmatprep.subr.bf16.mxu0 0
  %778 = vmatpush2.bf16.msra.mxu0 0
  %779 = vmatprep.subr.bf16.mxu0 0
  %780 = vmatpush2.bf16.msra.mxu0 0
  %781 = vmatprep.mubr.bf16.mxu0 0
  %782 = vmatmul.mubr.bf16.gmra.mxu0 %v741
  %v783 = vpop.f32.mrf.mxu0
  %v784 = vadd.f32 0.0, %v783
  %v785 = vpop.f32.mrf.mxu0
  %v786 = vpop.f32.mrf.mxu0
  %v787 = vadd.f32 0.0, %v786
  %v788 = vpop.f32.mrf.mxu0
  %789 = vmatprep.mubr.bf16.mxu0 0
  %790 = vmatmul.mubr.bf16.gmra.mxu0 %v744
  %v791 = vpop.f32.mrf.mxu0
  %v792 = vadd.f32 0.0, %v791
  %v793 = vpop.f32.mrf.mxu0
  %v794 = vpop.f32.mrf.mxu0
  %v795 = vadd.f32 0.0, %v794
  %v796 = vpop.f32.mrf.mxu0
  %797 = vdwg.mxu0
  %v798 = vld [vmem:[#allocation2] sm:$0xff]
  %v799 = vld [vmem:[#allocation2 + $0x8] sm:$0xff]
  %v800 = vld [vmem:[#allocation2 + $0x10] sm:$0xff]
  %v801 = vld [vmem:[#allocation2 + $0x18] sm:$0xff]
  %v802 = vadd.f32 %v798, %v784
  %v803 = vadd.f32 %v799, %v787
  %v804 = vadd.f32 %v800, %v792
  %v805 = vadd.f32 %v801, %v795
  %806 = vst.msk [vmem:[#allocation2] sm:$0xff] %vm30, %v802
  %807 = vst.msk [vmem:[#allocation2 + $0x8] sm:$0xff] %vm30, %v803
  %808 = vst.msk [vmem:[#allocation2 + $0x10] sm:$0xff] %vm30, %v804
  %809 = vst.msk [vmem:[#allocation2 + $0x18] sm:$0xff] %vm30, %v805
  %v810 = vld [vmem:[#allocation2] sm:$0xff]
  %v811 = vld [vmem:[#allocation2 + $0x8] sm:$0xff]
  %v812 = vld [vmem:[#allocation2 + $0x10] sm:$0xff]
  %v813 = vld [vmem:[#allocation2 + $0x18] sm:$0xff]
  %v814 = vld [vmem:[%s2] sm:$0x1]
  %v816 = vlaneseq
  %v817 = vshrl.u32 %v816, 7
  %v818 = vsub.s32 0, %v817
  %v819 = vrot.slane %v814, %v818
  %v821 = vadd.f32 %v810, %v819
  %v822 = vadd.f32 %v811, %v819
  %v823 = vadd.f32 %v812, %v819
  %v824 = vadd.f32 %v813, %v819
  %vm825 = vcmp.ge.f32.partialorder %v821, 0.0
  %vm826 = vcmp.ge.f32.partialorder %v822, 0.0
  %vm827 = vcmp.ge.f32.partialorder %v823, 0.0
  %vm828 = vcmp.ge.f32.partialorder %v824, 0.0
  %v829 = vmul.f32 %v821, 0.01
  %v830 = vmul.f32 %v822, 0.01
  %v831 = vmul.f32 %v823, 0.01
  %v832 = vmul.f32 %v824, 0.01
  %v833 = vsel %vm825, %v821, %v829
  %v834 = vsel %vm826, %v822, %v830
  %v835 = vsel %vm827, %v823, %v831
  %v836 = vsel %vm828, %v824, %v832
  %v837 = vpack.c.bf16 %v834, %v833
  %v838 = vpack.c.bf16 %v836, %v835
  %v841 = vunpack.c.l.b16 %v837
  %v842 = vunpack.c.h.b16 %v837
  %v843 = vunpack.c.l.b16 %v838
  %v844 = vunpack.c.h.b16 %v838
  %v845 = vpack.c.b16 %v841, %v841
  %v846 = vpack.c.b16 %v842, %v842
  %v847 = vpack.c.b16 %v843, %v843
  %v848 = vpack.c.b16 %v844, %v844
  %vm853 = vcmask 60416
  %854 = vst.msk [vmem:[%s3] sm:$0xf] %vm853, %v845
  %855 = vst.msk [vmem:[%s3 + $0x4] sm:$0xf] %vm853, %v846
  %856 = vst.msk [vmem:[%s3 + $0x8] sm:$0xf] %vm853, %v847
  %857 = vst.msk [vmem:[%s3 + $0xc] sm:$0xf] %vm853, %v848
  // Predicated region
  $region14: #{map2style_forward.7} parent=0 // pred_check
    _
  $region15: #{map2style_forward.7} parent=0 // pred_check_branch
    %859 = sbr.rel (0) target = $region17
  $region16: #{map2style_forward.7} parent=0 // pred_region
    _
  $region17: #{map2style_forward.7} parent=0 // pred_fallthru
    _
  // Predicated region
  $region18: #{map2style_forward.7} parent=0 // pred_check
    _
  $region19: #{map2style_forward.7} parent=0 // pred_check_branch
    %861 = sbr.rel (0) target = $region21
  $region20: #{map2style_forward.7} parent=0 // pred_region
    _
  $region21: #{map2style_forward.7} parent=0 // pred_fallthru
    _

// kernel: map2style_forward.8
$region0: #{map2style_forward.8}
  #allocation0 [shape = 'u32[]', space=smem, size = 0x4, offset = 0x4, fixed_abs, tag = 'smem constant byte address 0x4 - core index']
  #allocation1 [shape = 'u32[144,128]{1,0:T(1,128)}', space=vmem, size = 0x12000, scoped, tag = 'internal scratch']
  #allocation2 [shape = 'f32[16,8]{1,0:T(8,128)}', space=vmem, size = 0x2000, scoped, tag = 'scratch operand']
  %s0 = inlined_call_operand.vmem [shape: bf16[128,8], index: 0, kind: input, shape index: {}]
  %s1 = inlined_call_operand.vmem [shape: bf16[9,8,8], index: 1, kind: input, shape index: {}]
  %s2 = inlined_call_operand.vmem [shape: f32[1,8], index: 2, kind: input, shape index: {}]
  %s3 = inlined_call_operand.vmem [shape: bf16[16,8], index: 3, kind: output, shape index: {}]
  %s4 = sld [smem:[#allocation0]]
  $region22: #{map2style_forward.8} parent=0
    _
  %s6 = ssub.s32 1, %s4
  %s7 = scalar_select 0, %s6, %s4
  // Predicated region
  $region2: #{map2style_forward.8} parent=0 // pred_check
    _
  $region3: #{map2style_forward.8} parent=0 // pred_check_branch
    %9 = sbr.rel (0) target = $region5
  $region4: #{map2style_forward.8} parent=0 // pred_region
    _
  $region5: #{map2style_forward.8} parent=0 // pred_fallthru
    _
  // Predicated region
  $region6: #{map2style_forward.8} parent=0 // pred_check
    _
  $region7: #{map2style_forward.8} parent=0 // pred_check_branch
    %11 = sbr.rel (0) target = $region9
  $region8: #{map2style_forward.8} parent=0 // pred_region
    _
  $region9: #{map2style_forward.8} parent=0 // pred_fallthru
    _
  // Predicated region
  $region10: #{map2style_forward.8} parent=0 // pred_check
    _
  $region11: #{map2style_forward.8} parent=0 // pred_check_branch
    %13 = sbr.rel (0) target = $region13
  $region12: #{map2style_forward.8} parent=0 // pred_region
    _
  $region13: #{map2style_forward.8} parent=0 // pred_fallthru
    _
  %v15 = vld [vmem:[%s0] sm:$0xf]
  %v16 = vld [vmem:[%s0 + $0x4] sm:$0xf]
  %v17 = vld [vmem:[%s1] sm:$0xf]
  %v20 = vunpack.c.l.b16 %v15
  %v21 = vunpack.c.l.b16 %v16
  %v22 = vpack.c.b16 %v21, %v20
  %vm23 = vcmask 64512
  %v25 = vsel %vm23, %v22, 0
  %vm27 = vcmask 1043456
  %v29 = vsel %vm27, %v17, 0
  %31 = vmatprep.subr.bf16.mxu0 0
  %32 = vmatpush1.bf16.msra.mxu0 0
  %33 = vmatprep.subr.bf16.mxu0 0
  %34 = vmatpush1.bf16.msra.mxu0 0
  %35 = vmatprep.subr.bf16.mxu0 0
  %36 = vmatpush1.bf16.msra.mxu0 0
  %37 = vmatprep.subr.bf16.mxu0 0
  %38 = vmatpush1.bf16.msra.mxu0 0
  %39 = vmatprep.subr.bf16.mxu0 0
  %40 = vmatpush1.bf16.msra.mxu0 0
  %41 = vmatprep.subr.bf16.mxu0 0
  %42 = vmatpush1.bf16.msra.mxu0 0
  %43 = vmatprep.subr.bf16.mxu0 0
  %44 = vmatpush1.bf16.msra.mxu0 0
  %45 = vmatprep.subr.bf16.mxu0 0
  %46 = vmatpush1.bf16.msra.mxu0 %v29
  %47 = vmatprep.subr.bf16.mxu0 0
  %48 = vmatpush2.bf16.msra.mxu0 0
  %49 = vmatprep.subr.bf16.mxu0 0
  %50 = vmatpush2.bf16.msra.mxu0 0
  %51 = vmatprep.subr.bf16.mxu0 0
  %52 = vmatpush2.bf16.msra.mxu0 0
  %53 = vmatprep.subr.bf16.mxu0 0
  %54 = vmatpush2.bf16.msra.mxu0 0
  %55 = vmatprep.subr.bf16.mxu0 0
  %56 = vmatpush2.bf16.msra.mxu0 0
  %57 = vmatprep.subr.bf16.mxu0 0
  %58 = vmatpush2.bf16.msra.mxu0 0
  %59 = vmatprep.subr.bf16.mxu0 0
  %60 = vmatpush2.bf16.msra.mxu0 0
  %61 = vmatprep.subr.bf16.mxu0 0
  %62 = vmatpush2.bf16.msra.mxu0 0
  %63 = vmatprep.mubr.bf16.mxu0 0
  %64 = vmatmul.mubr.bf16.gmra.mxu0 %v25
  %v65 = vpop.f32.mrf.mxu0
  %v66 = vadd.f32 0.0, %v65
  %v67 = vpop.f32.mrf.mxu0
  %v68 = vpop.f32.mrf.mxu0
  %v69 = vadd.f32 0.0, %v68
  %v70 = vpop.f32.mrf.mxu0
  %71 = vdwg.mxu0
  %72 = vst.msk [vmem:[#allocation2] sm:$0xff] %vm23, %v66
  %73 = vst.msk [vmem:[#allocation2 + $0x8] sm:$0xff] %vm23, %v69
  %v74 = vld [vmem:[%s0 + $0x10] sm:$0xf]
  %v75 = vld [vmem:[%s0 + $0x14] sm:$0xf]
  %s76 = scalar_lea.vmem %s1, 4
  %v77 = vld [vmem:[%s76] sm:$0xf]
  %v80 = vunpack.c.l.b16 %v74
  %v81 = vunpack.c.l.b16 %v75
  %v82 = vpack.c.b16 %v81, %v80
  %v84 = vsel %vm23, %v82, 0
  %v87 = vsel %vm27, %v77, 0
  %89 = vmatprep.subr.bf16.mxu0 0
  %90 = vmatpush1.bf16.msra.mxu0 0
  %91 = vmatprep.subr.bf16.mxu0 0
  %92 = vmatpush1.bf16.msra.mxu0 0
  %93 = vmatprep.subr.bf16.mxu0 0
  %94 = vmatpush1.bf16.msra.mxu0 0
  %95 = vmatprep.subr.bf16.mxu0 0
  %96 = vmatpush1.bf16.msra.mxu0 0
  %97 = vmatprep.subr.bf16.mxu0 0
  %98 = vmatpush1.bf16.msra.mxu0 0
  %99 = vmatprep.subr.bf16.mxu0 0
  %100 = vmatpush1.bf16.msra.mxu0 0
  %101 = vmatprep.subr.bf16.mxu0 0
  %102 = vmatpush1.bf16.msra.mxu0 0
  %103 = vmatprep.subr.bf16.mxu0 0
  %104 = vmatpush1.bf16.msra.mxu0 %v87
  %105 = vmatprep.subr.bf16.mxu0 0
  %106 = vmatpush2.bf16.msra.mxu0 0
  %107 = vmatprep.subr.bf16.mxu0 0
  %108 = vmatpush2.bf16.msra.mxu0 0
  %109 = vmatprep.subr.bf16.mxu0 0
  %110 = vmatpush2.bf16.msra.mxu0 0
  %111 = vmatprep.subr.bf16.mxu0 0
  %112 = vmatpush2.bf16.msra.mxu0 0
  %113 = vmatprep.subr.bf16.mxu0 0
  %114 = vmatpush2.bf16.msra.mxu0 0
  %115 = vmatprep.subr.bf16.mxu0 0
  %116 = vmatpush2.bf16.msra.mxu0 0
  %117 = vmatprep.subr.bf16.mxu0 0
  %118 = vmatpush2.bf16.msra.mxu0 0
  %119 = vmatprep.subr.bf16.mxu0 0
  %120 = vmatpush2.bf16.msra.mxu0 0
  %121 = vmatprep.mubr.bf16.mxu0 0
  %122 = vmatmul.mubr.bf16.gmra.mxu0 %v84
  %v123 = vpop.f32.mrf.mxu0
  %v124 = vadd.f32 0.0, %v123
  %v125 = vpop.f32.mrf.mxu0
  %v126 = vpop.f32.mrf.mxu0
  %v127 = vadd.f32 0.0, %v126
  %v128 = vpop.f32.mrf.mxu0
  %129 = vdwg.mxu0
  %v130 = vld [vmem:[#allocation2] sm:$0xff]
  %v131 = vld [vmem:[#allocation2 + $0x8] sm:$0xff]
  %v132 = vadd.f32 %v130, %v124
  %v133 = vadd.f32 %v131, %v127
  %134 = vst.msk [vmem:[#allocation2] sm:$0xff] %vm23, %v132
  %135 = vst.msk [vmem:[#allocation2 + $0x8] sm:$0xff] %vm23, %v133
  %v136 = vld [vmem:[%s0] sm:$0xe]
  %v137 = vld [vmem:[%s0 + $0x4] sm:$0xf]
  %v138 = vld [vmem:[%s0 + $0x8] sm:$0x1]
  %s139 = scalar_lea.vmem %s1, 8
  %v140 = vld [vmem:[%s139] sm:$0xf]
  %v144 = vunpack.c.l.b16 %v136
  %v145 = vunpack.c.l.b16 %v137
  %v146 = vunpack.c.l.b16 %v138
  %v147 = vpack.c.b16 %v145, %v144
  %v148 = vpack.c.b16 %v146, %v146
  %vm149 = vcmask 1046528
  %v150 = vrot.slane %v147, 1
  %v151 = vrot.slane %v148, 1
  %v152 = vsel %vm149, %v150, %v151
  %v154 = vsel %vm23, %v152, 0
  %v157 = vsel %vm27, %v140, 0
  %159 = vmatprep.subr.bf16.mxu0 0
  %160 = vmatpush1.bf16.msra.mxu0 0
  %161 = vmatprep.subr.bf16.mxu0 0
  %162 = vmatpush1.bf16.msra.mxu0 0
  %163 = vmatprep.subr.bf16.mxu0 0
  %164 = vmatpush1.bf16.msra.mxu0 0
  %165 = vmatprep.subr.bf16.mxu0 0
  %166 = vmatpush1.bf16.msra.mxu0 0
  %167 = vmatprep.subr.bf16.mxu0 0
  %168 = vmatpush1.bf16.msra.mxu0 0
  %169 = vmatprep.subr.bf16.mxu0 0
  %170 = vmatpush1.bf16.msra.mxu0 0
  %171 = vmatprep.subr.bf16.mxu0 0
  %172 = vmatpush1.bf16.msra.mxu0 0
  %173 = vmatprep.subr.bf16.mxu0 0
  %174 = vmatpush1.bf16.msra.mxu0 %v157
  %175 = vmatprep.subr.bf16.mxu0 0
  %176 = vmatpush2.bf16.msra.mxu0 0
  %177 = vmatprep.subr.bf16.mxu0 0
  %178 = vmatpush2.bf16.msra.mxu0 0
  %179 = vmatprep.subr.bf16.mxu0 0
  %180 = vmatpush2.bf16.msra.mxu0 0
  %181 = vmatprep.subr.bf16.mxu0 0
  %182 = vmatpush2.bf16.msra.mxu0 0
  %183 = vmatprep.subr.bf16.mxu0 0
  %184 = vmatpush2.bf16.msra.mxu0 0
  %185 = vmatprep.subr.bf16.mxu0 0
  %186 = vmatpush2.bf16.msra.mxu0 0
  %187 = vmatprep.subr.bf16.mxu0 0
  %188 = vmatpush2.bf16.msra.mxu0 0
  %189 = vmatprep.subr.bf16.mxu0 0
  %190 = vmatpush2.bf16.msra.mxu0 0
  %191 = vmatprep.mubr.bf16.mxu0 0
  %192 = vmatmul.mubr.bf16.gmra.mxu0 %v154
  %v193 = vpop.f32.mrf.mxu0
  %v194 = vadd.f32 0.0, %v193
  %v195 = vpop.f32.mrf.mxu0
  %v196 = vpop.f32.mrf.mxu0
  %v197 = vadd.f32 0.0, %v196
  %v198 = vpop.f32.mrf.mxu0
  %199 = vdwg.mxu0
  %v200 = vld [vmem:[#allocation2] sm:$0xff]
  %v201 = vld [vmem:[#allocation2 + $0x8] sm:$0xff]
  %v202 = vadd.f32 %v200, %v194
  %v203 = vadd.f32 %v201, %v197
  %204 = vst.msk [vmem:[#allocation2] sm:$0xff] %vm23, %v202
  %205 = vst.msk [vmem:[#allocation2 + $0x8] sm:$0xff] %vm23, %v203
  %v206 = vld [vmem:[%s0 + $0x20] sm:$0xf]
  %v207 = vld [vmem:[%s0 + $0x24] sm:$0xf]
  %s208 = scalar_lea.vmem %s1, 12
  %v209 = vld [vmem:[%s208] sm:$0xf]
  %v212 = vunpack.c.l.b16 %v206
  %v213 = vunpack.c.l.b16 %v207
  %v214 = vpack.c.b16 %v213, %v212
  %v216 = vsel %vm23, %v214, 0
  %v219 = vsel %vm27, %v209, 0
  %221 = vmatprep.subr.bf16.mxu0 0
  %222 = vmatpush1.bf16.msra.mxu0 0
  %223 = vmatprep.subr.bf16.mxu0 0
  %224 = vmatpush1.bf16.msra.mxu0 0
  %225 = vmatprep.subr.bf16.mxu0 0
  %226 = vmatpush1.bf16.msra.mxu0 0
  %227 = vmatprep.subr.bf16.mxu0 0
  %228 = vmatpush1.bf16.msra.mxu0 0
  %229 = vmatprep.subr.bf16.mxu0 0
  %230 = vmatpush1.bf16.msra.mxu0 0
  %231 = vmatprep.subr.bf16.mxu0 0
  %232 = vmatpush1.bf16.msra.mxu0 0
  %233 = vmatprep.subr.bf16.mxu0 0
  %234 = vmatpush1.bf16.msra.mxu0 0
  %235 = vmatprep.subr.bf16.mxu0 0
  %236 = vmatpush1.bf16.msra.mxu0 %v219
  %237 = vmatprep.subr.bf16.mxu0 0
  %238 = vmatpush2.bf16.msra.mxu0 0
  %239 = vmatprep.subr.bf16.mxu0 0
  %240 = vmatpush2.bf16.msra.mxu0 0
  %241 = vmatprep.subr.bf16.mxu0 0
  %242 = vmatpush2.bf16.msra.mxu0 0
  %243 = vmatprep.subr.bf16.mxu0 0
  %244 = vmatpush2.bf16.msra.mxu0 0
  %245 = vmatprep.subr.bf16.mxu0 0
  %246 = vmatpush2.bf16.msra.mxu0 0
  %247 = vmatprep.subr.bf16.mxu0 0
  %248 = vmatpush2.bf16.msra.mxu0 0
  %249 = vmatprep.subr.bf16.mxu0 0
  %250 = vmatpush2.bf16.msra.mxu0 0
  %251 = vmatprep.subr.bf16.mxu0 0
  %252 = vmatpush2.bf16.msra.mxu0 0
  %253 = vmatprep.mubr.bf16.mxu0 0
  %254 = vmatmul.mubr.bf16.gmra.mxu0 %v216
  %v255 = vpop.f32.mrf.mxu0
  %v256 = vadd.f32 0.0, %v255
  %v257 = vpop.f32.mrf.mxu0
  %v258 = vpop.f32.mrf.mxu0
  %v259 = vadd.f32 0.0, %v258
  %v260 = vpop.f32.mrf.mxu0
  %261 = vdwg.mxu0
  %v262 = vld [vmem:[#allocation2] sm:$0xff]
  %v263 = vld [vmem:[#allocation2 + $0x8] sm:$0xff]
  %v264 = vadd.f32 %v262, %v256
  %v265 = vadd.f32 %v263, %v259
  %266 = vst.msk [vmem:[#allocation2] sm:$0xff] %vm23, %v264
  %267 = vst.msk [vmem:[#allocation2 + $0x8] sm:$0xff] %vm23, %v265
  %v268 = vld [vmem:[%s0 + $0x30] sm:$0xf]
  %v269 = vld [vmem:[%s0 + $0x34] sm:$0xf]
  %s270 = scalar_lea.vmem %s1, 16
  %v271 = vld [vmem:[%s270] sm:$0xf]
  %v274 = vunpack.c.l.b16 %v268
  %v275 = vunpack.c.l.b16 %v269
  %v276 = vpack.c.b16 %v275, %v274
  %v278 = vsel %vm23, %v276, 0
  %v281 = vsel %vm27, %v271, 0
  %283 = vmatprep.subr.bf16.mxu0 0
  %284 = vmatpush1.bf16.msra.mxu0 0
  %285 = vmatprep.subr.bf16.mxu0 0
  %286 = vmatpush1.bf16.msra.mxu0 0
  %287 = vmatprep.subr.bf16.mxu0 0
  %288 = vmatpush1.bf16.msra.mxu0 0
  %289 = vmatprep.subr.bf16.mxu0 0
  %290 = vmatpush1.bf16.msra.mxu0 0
  %291 = vmatprep.subr.bf16.mxu0 0
  %292 = vmatpush1.bf16.msra.mxu0 0
  %293 = vmatprep.subr.bf16.mxu0 0
  %294 = vmatpush1.bf16.msra.mxu0 0
  %295 = vmatprep.subr.bf16.mxu0 0
  %296 = vmatpush1.bf16.msra.mxu0 0
  %297 = vmatprep.subr.bf16.mxu0 0
  %298 = vmatpush1.bf16.msra.mxu0 %v281
  %299 = vmatprep.subr.bf16.mxu0 0
  %300 = vmatpush2.bf16.msra.mxu0 0
  %301 = vmatprep.subr.bf16.mxu0 0
  %302 = vmatpush2.bf16.msra.mxu0 0
  %303 = vmatprep.subr.bf16.mxu0 0
  %304 = vmatpush2.bf16.msra.mxu0 0
  %305 = vmatprep.subr.bf16.mxu0 0
  %306 = vmatpush2.bf16.msra.mxu0 0
  %307 = vmatprep.subr.bf16.mxu0 0
  %308 = vmatpush2.bf16.msra.mxu0 0
  %309 = vmatprep.subr.bf16.mxu0 0
  %310 = vmatpush2.bf16.msra.mxu0 0
  %311 = vmatprep.subr.bf16.mxu0 0
  %312 = vmatpush2.bf16.msra.mxu0 0
  %313 = vmatprep.subr.bf16.mxu0 0
  %314 = vmatpush2.bf16.msra.mxu0 0
  %315 = vmatprep.mubr.bf16.mxu0 0
  %316 = vmatmul.mubr.bf16.gmra.mxu0 %v278
  %v317 = vpop.f32.mrf.mxu0
  %v318 = vadd.f32 0.0, %v317
  %v319 = vpop.f32.mrf.mxu0
  %v320 = vpop.f32.mrf.mxu0
  %v321 = vadd.f32 0.0, %v320
  %v322 = vpop.f32.mrf.mxu0
  %323 = vdwg.mxu0
  %v324 = vld [vmem:[#allocation2] sm:$0xff]
  %v325 = vld [vmem:[#allocation2 + $0x8] sm:$0xff]
  %v326 = vadd.f32 %v324, %v318
  %v327 = vadd.f32 %v325, %v321
  %328 = vst.msk [vmem:[#allocation2] sm:$0xff] %vm23, %v326
  %329 = vst.msk [vmem:[#allocation2 + $0x8] sm:$0xff] %vm23, %v327
  %v330 = vld [vmem:[%s0 + $0x20] sm:$0xe]
  %v331 = vld [vmem:[%s0 + $0x24] sm:$0xf]
  %v332 = vld [vmem:[%s0 + $0x28] sm:$0x1]
  %s333 = scalar_lea.vmem %s1, 20
  %v334 = vld [vmem:[%s333] sm:$0xf]
  %v338 = vunpack.c.l.b16 %v330
  %v339 = vunpack.c.l.b16 %v331
  %v340 = vunpack.c.l.b16 %v332
  %v341 = vpack.c.b16 %v339, %v338
  %v342 = vpack.c.b16 %v340, %v340
  %v343 = vrot.slane %v341, 1
  %v344 = vrot.slane %v342, 1
  %v345 = vsel %vm149, %v343, %v344
  %v347 = vsel %vm23, %v345, 0
  %v350 = vsel %vm27, %v334, 0
  %352 = vmatprep.subr.bf16.mxu0 0
  %353 = vmatpush1.bf16.msra.mxu0 0
  %354 = vmatprep.subr.bf16.mxu0 0
  %355 = vmatpush1.bf16.msra.mxu0 0
  %356 = vmatprep.subr.bf16.mxu0 0
  %357 = vmatpush1.bf16.msra.mxu0 0
  %358 = vmatprep.subr.bf16.mxu0 0
  %359 = vmatpush1.bf16.msra.mxu0 0
  %360 = vmatprep.subr.bf16.mxu0 0
  %361 = vmatpush1.bf16.msra.mxu0 0
  %362 = vmatprep.subr.bf16.mxu0 0
  %363 = vmatpush1.bf16.msra.mxu0 0
  %364 = vmatprep.subr.bf16.mxu0 0
  %365 = vmatpush1.bf16.msra.mxu0 0
  %366 = vmatprep.subr.bf16.mxu0 0
  %367 = vmatpush1.bf16.msra.mxu0 %v350
  %368 = vmatprep.subr.bf16.mxu0 0
  %369 = vmatpush2.bf16.msra.mxu0 0
  %370 = vmatprep.subr.bf16.mxu0 0
  %371 = vmatpush2.bf16.msra.mxu0 0
  %372 = vmatprep.subr.bf16.mxu0 0
  %373 = vmatpush2.bf16.msra.mxu0 0
  %374 = vmatprep.subr.bf16.mxu0 0
  %375 = vmatpush2.bf16.msra.mxu0 0
  %376 = vmatprep.subr.bf16.mxu0 0
  %377 = vmatpush2.bf16.msra.mxu0 0
  %378 = vmatprep.subr.bf16.mxu0 0
  %379 = vmatpush2.bf16.msra.mxu0 0
  %380 = vmatprep.subr.bf16.mxu0 0
  %381 = vmatpush2.bf16.msra.mxu0 0
  %382 = vmatprep.subr.bf16.mxu0 0
  %383 = vmatpush2.bf16.msra.mxu0 0
  %384 = vmatprep.mubr.bf16.mxu0 0
  %385 = vmatmul.mubr.bf16.gmra.mxu0 %v347
  %v386 = vpop.f32.mrf.mxu0
  %v387 = vadd.f32 0.0, %v386
  %v388 = vpop.f32.mrf.mxu0
  %v389 = vpop.f32.mrf.mxu0
  %v390 = vadd.f32 0.0, %v389
  %v391 = vpop.f32.mrf.mxu0
  %392 = vdwg.mxu0
  %v393 = vld [vmem:[#allocation2] sm:$0xff]
  %v394 = vld [vmem:[#allocation2 + $0x8] sm:$0xff]
  %v395 = vadd.f32 %v393, %v387
  %v396 = vadd.f32 %v394, %v390
  %397 = vst.msk [vmem:[#allocation2] sm:$0xff] %vm23, %v395
  %398 = vst.msk [vmem:[#allocation2 + $0x8] sm:$0xff] %vm23, %v396
  %v399 = vld [vmem:[%s0 + $0x8] sm:$0xf]
  %v400 = vld [vmem:[%s0 + $0xc] sm:$0xf]
  %s401 = scalar_lea.vmem %s1, 24
  %v402 = vld [vmem:[%s401] sm:$0xf]
  %v405 = vunpack.c.l.b16 %v399
  %v406 = vunpack.c.l.b16 %v400
  %v407 = vpack.c.b16 %v406, %v405
  %v409 = vsel %vm23, %v407, 0
  %v412 = vsel %vm27, %v402, 0
  %414 = vmatprep.subr.bf16.mxu0 0
  %415 = vmatpush1.bf16.msra.mxu0 0
  %416 = vmatprep.subr.bf16.mxu0 0
  %417 = vmatpush1.bf16.msra.mxu0 0
  %418 = vmatprep.subr.bf16.mxu0 0
  %419 = vmatpush1.bf16.msra.mxu0 0
  %420 = vmatprep.subr.bf16.mxu0 0
  %421 = vmatpush1.bf16.msra.mxu0 0
  %422 = vmatprep.subr.bf16.mxu0 0
  %423 = vmatpush1.bf16.msra.mxu0 0
  %424 = vmatprep.subr.bf16.mxu0 0
  %425 = vmatpush1.bf16.msra.mxu0 0
  %426 = vmatprep.subr.bf16.mxu0 0
  %427 = vmatpush1.bf16.msra.mxu0 0
  %428 = vmatprep.subr.bf16.mxu0 0
  %429 = vmatpush1.bf16.msra.mxu0 %v412
  %430 = vmatprep.subr.bf16.mxu0 0
  %431 = vmatpush2.bf16.msra.mxu0 0
  %432 = vmatprep.subr.bf16.mxu0 0
  %433 = vmatpush2.bf16.msra.mxu0 0
  %434 = vmatprep.subr.bf16.mxu0 0
  %435 = vmatpush2.bf16.msra.mxu0 0
  %436 = vmatprep.subr.bf16.mxu0 0
  %437 = vmatpush2.bf16.msra.mxu0 0
  %438 = vmatprep.subr.bf16.mxu0 0
  %439 = vmatpush2.bf16.msra.mxu0 0
  %440 = vmatprep.subr.bf16.mxu0 0
  %441 = vmatpush2.bf16.msra.mxu0 0
  %442 = vmatprep.subr.bf16.mxu0 0
  %443 = vmatpush2.bf16.msra.mxu0 0
  %444 = vmatprep.subr.bf16.mxu0 0
  %445 = vmatpush2.bf16.msra.mxu0 0
  %446 = vmatprep.mubr.bf16.mxu0 0
  %447 = vmatmul.mubr.bf16.gmra.mxu0 %v409
  %v448 = vpop.f32.mrf.mxu0
  %v449 = vadd.f32 0.0, %v448
  %v450 = vpop.f32.mrf.mxu0
  %v451 = vpop.f32.mrf.mxu0
  %v452 = vadd.f32 0.0, %v451
  %v453 = vpop.f32.mrf.mxu0
  %454 = vdwg.mxu0
  %v455 = vld [vmem:[#allocation2] sm:$0xff]
  %v456 = vld [vmem:[#allocation2 + $0x8] sm:$0xff]
  %v457 = vadd.f32 %v455, %v449
  %v458 = vadd.f32 %v456, %v452
  %459 = vst.msk [vmem:[#allocation2] sm:$0xff] %vm23, %v457
  %460 = vst.msk [vmem:[#allocation2 + $0x8] sm:$0xff] %vm23, %v458
  %v461 = vld [vmem:[%s0 + $0x18] sm:$0xf]
  %v462 = vld [vmem:[%s0 + $0x1c] sm:$0xf]
  %s463 = scalar_lea.vmem %s1, 28
  %v464 = vld [vmem:[%s463] sm:$0xf]
  %v467 = vunpack.c.l.b16 %v461
  %v468 = vunpack.c.l.b16 %v462
  %v469 = vpack.c.b16 %v468, %v467
  %v471 = vsel %vm23, %v469, 0
  %v474 = vsel %vm27, %v464, 0
  %476 = vmatprep.subr.bf16.mxu0 0
  %477 = vmatpush1.bf16.msra.mxu0 0
  %478 = vmatprep.subr.bf16.mxu0 0
  %479 = vmatpush1.bf16.msra.mxu0 0
  %480 = vmatprep.subr.bf16.mxu0 0
  %481 = vmatpush1.bf16.msra.mxu0 0
  %482 = vmatprep.subr.bf16.mxu0 0
  %483 = vmatpush1.bf16.msra.mxu0 0
  %484 = vmatprep.subr.bf16.mxu0 0
  %485 = vmatpush1.bf16.msra.mxu0 0
  %486 = vmatprep.subr.bf16.mxu0 0
  %487 = vmatpush1.bf16.msra.mxu0 0
  %488 = vmatprep.subr.bf16.mxu0 0
  %489 = vmatpush1.bf16.msra.mxu0 0
  %490 = vmatprep.subr.bf16.mxu0 0
  %491 = vmatpush1.bf16.msra.mxu0 %v474
  %492 = vmatprep.subr.bf16.mxu0 0
  %493 = vmatpush2.bf16.msra.mxu0 0
  %494 = vmatprep.subr.bf16.mxu0 0
  %495 = vmatpush2.bf16.msra.mxu0 0
  %496 = vmatprep.subr.bf16.mxu0 0
  %497 = vmatpush2.bf16.msra.mxu0 0
  %498 = vmatprep.subr.bf16.mxu0 0
  %499 = vmatpush2.bf16.msra.mxu0 0
  %500 = vmatprep.subr.bf16.mxu0 0
  %501 = vmatpush2.bf16.msra.mxu0 0
  %502 = vmatprep.subr.bf16.mxu0 0
  %503 = vmatpush2.bf16.msra.mxu0 0
  %504 = vmatprep.subr.bf16.mxu0 0
  %505 = vmatpush2.bf16.msra.mxu0 0
  %506 = vmatprep.subr.bf16.mxu0 0
  %507 = vmatpush2.bf16.msra.mxu0 0
  %508 = vmatprep.mubr.bf16.mxu0 0
  %509 = vmatmul.mubr.bf16.gmra.mxu0 %v471
  %v510 = vpop.f32.mrf.mxu0
  %v511 = vadd.f32 0.0, %v510
  %v512 = vpop.f32.mrf.mxu0
  %v513 = vpop.f32.mrf.mxu0
  %v514 = vadd.f32 0.0, %v513
  %v515 = vpop.f32.mrf.mxu0
  %516 = vdwg.mxu0
  %v517 = vld [vmem:[#allocation2] sm:$0xff]
  %v518 = vld [vmem:[#allocation2 + $0x8] sm:$0xff]
  %v519 = vadd.f32 %v517, %v511
  %v520 = vadd.f32 %v518, %v514
  %521 = vst.msk [vmem:[#allocation2] sm:$0xff] %vm23, %v519
  %522 = vst.msk [vmem:[#allocation2 + $0x8] sm:$0xff] %vm23, %v520
  %v523 = vld [vmem:[%s0 + $0x8] sm:$0xe]
  %v524 = vld [vmem:[%s0 + $0xc] sm:$0xf]
  %v525 = vld [vmem:[%s0 + $0x10] sm:$0x1]
  %s526 = scalar_lea.vmem %s1, 32
  %v527 = vld [vmem:[%s526] sm:$0xf]
  %v531 = vunpack.c.l.b16 %v523
  %v532 = vunpack.c.l.b16 %v524
  %v533 = vunpack.c.l.b16 %v525
  %v534 = vpack.c.b16 %v532, %v531
  %v535 = vpack.c.b16 %v533, %v533
  %v536 = vrot.slane %v534, 1
  %v537 = vrot.slane %v535, 1
  %v538 = vsel %vm149, %v536, %v537
  %v540 = vsel %vm23, %v538, 0
  %v543 = vsel %vm27, %v527, 0
  %545 = vmatprep.subr.bf16.mxu0 0
  %546 = vmatpush1.bf16.msra.mxu0 0
  %547 = vmatprep.subr.bf16.mxu0 0
  %548 = vmatpush1.bf16.msra.mxu0 0
  %549 = vmatprep.subr.bf16.mxu0 0
  %550 = vmatpush1.bf16.msra.mxu0 0
  %551 = vmatprep.subr.bf16.mxu0 0
  %552 = vmatpush1.bf16.msra.mxu0 0
  %553 = vmatprep.subr.bf16.mxu0 0
  %554 = vmatpush1.bf16.msra.mxu0 0
  %555 = vmatprep.subr.bf16.mxu0 0
  %556 = vmatpush1.bf16.msra.mxu0 0
  %557 = vmatprep.subr.bf16.mxu0 0
  %558 = vmatpush1.bf16.msra.mxu0 0
  %559 = vmatprep.subr.bf16.mxu0 0
  %560 = vmatpush1.bf16.msra.mxu0 %v543
  %561 = vmatprep.subr.bf16.mxu0 0
  %562 = vmatpush2.bf16.msra.mxu0 0
  %563 = vmatprep.subr.bf16.mxu0 0
  %564 = vmatpush2.bf16.msra.mxu0 0
  %565 = vmatprep.subr.bf16.mxu0 0
  %566 = vmatpush2.bf16.msra.mxu0 0
  %567 = vmatprep.subr.bf16.mxu0 0
  %568 = vmatpush2.bf16.msra.mxu0 0
  %569 = vmatprep.subr.bf16.mxu0 0
  %570 = vmatpush2.bf16.msra.mxu0 0
  %571 = vmatprep.subr.bf16.mxu0 0
  %572 = vmatpush2.bf16.msra.mxu0 0
  %573 = vmatprep.subr.bf16.mxu0 0
  %574 = vmatpush2.bf16.msra.mxu0 0
  %575 = vmatprep.subr.bf16.mxu0 0
  %576 = vmatpush2.bf16.msra.mxu0 0
  %577 = vmatprep.mubr.bf16.mxu0 0
  %578 = vmatmul.mubr.bf16.gmra.mxu0 %v540
  %v579 = vpop.f32.mrf.mxu0
  %v580 = vadd.f32 0.0, %v579
  %v581 = vpop.f32.mrf.mxu0
  %v582 = vpop.f32.mrf.mxu0
  %v583 = vadd.f32 0.0, %v582
  %v584 = vpop.f32.mrf.mxu0
  %585 = vdwg.mxu0
  %v586 = vld [vmem:[#allocation2] sm:$0xff]
  %v587 = vld [vmem:[#allocation2 + $0x8] sm:$0xff]
  %v588 = vadd.f32 %v586, %v580
  %v589 = vadd.f32 %v587, %v583
  %590 = vst.msk [vmem:[#allocation2] sm:$0xff] %vm23, %v588
  %591 = vst.msk [vmem:[#allocation2 + $0x8] sm:$0xff] %vm23, %v589
  %v592 = vld [vmem:[#allocation2] sm:$0xff]
  %v593 = vld [vmem:[#allocation2 + $0x8] sm:$0xff]
  %v594 = vld [vmem:[%s2] sm:$0x1]
  %v596 = vlaneseq
  %v597 = vshrl.u32 %v596, 7
  %v598 = vsub.s32 0, %v597
  %v599 = vrot.slane %v594, %v598
  %v601 = vadd.f32 %v592, %v599
  %v602 = vadd.f32 %v593, %v599
  %vm603 = vcmp.ge.f32.partialorder %v601, 0.0
  %vm604 = vcmp.ge.f32.partialorder %v602, 0.0
  %v605 = vmul.f32 %v601, 0.01
  %v606 = vmul.f32 %v602, 0.01
  %v607 = vsel %vm603, %v601, %v605
  %v608 = vsel %vm604, %v602, %v606
  %v609 = vpack.c.bf16 %v608, %v607
  %v611 = vunpack.c.l.b16 %v609
  %v612 = vunpack.c.h.b16 %v609
  %v613 = vpack.c.b16 %v611, %v611
  %v614 = vpack.c.b16 %v612, %v612
  %vm617 = vcmask 60416
  %618 = vst.msk [vmem:[%s3] sm:$0xf] %vm617, %v613
  %619 = vst.msk [vmem:[%s3 + $0x4] sm:$0xf] %vm617, %v614
  // Predicated region
  $region14: #{map2style_forward.8} parent=0 // pred_check
    _
  $region15: #{map2style_forward.8} parent=0 // pred_check_branch
    %621 = sbr.rel (0) target = $region17
  $region16: #{map2style_forward.8} parent=0 // pred_region
    _
  $region17: #{map2style_forward.8} parent=0 // pred_fallthru
    _
  // Predicated region
  $region18: #{map2style_forward.8} parent=0 // pred_check
    _
  $region19: #{map2style_forward.8} parent=0 // pred_check_branch
    %623 = sbr.rel (0) target = $region21
  $region20: #{map2style_forward.8} parent=0 // pred_region
    _
  $region21: #{map2style_forward.8} parent=0 // pred_fallthru
    _

// kernel: map2style_forward.9
$region0: #{map2style_forward.9}
  #allocation0 [shape = 'u32[]', space=smem, size = 0x4, offset = 0x4, fixed_abs, tag = 'smem constant byte address 0x4 - core index']
  #allocation1 [shape = 'u32[144,128]{1,0:T(1,128)}', space=vmem, size = 0x12000, scoped, tag = 'internal scratch']
  %s0 = inlined_call_operand.vmem [shape: bf16[2,8], index: 0, kind: input, shape index: {}]
  %s1 = inlined_call_operand.vmem [shape: bf16[8,8], index: 1, kind: input, shape index: {}]
  %s2 = inlined_call_operand.vmem [shape: f32[1,8], index: 2, kind: input, shape index: {}]
  %s3 = inlined_call_operand.hbm [shape: f32[2,8], index: 3, kind: output, shape index: {}]
  %s4 = sld [smem:[#allocation0]]
  $region22: #{map2style_forward.9} parent=0
    _
  %s6 = ssub.s32 1, %s4
  %s7 = scalar_select 0, %s6, %s4
  $region1: #{map2style_forward.9} parent=0
    #allocation2 [shape = 'u8[1024]{0}', space=vmem, size = 0x400, scoped, tag = 'output window, operand 0, single buffered']
    #allocation3 [shape = 's32[1]{0}', space=sflag, size = 0x4, scoped, tag = 'scoped memory for map2style_forward.9']
    %8 = vsyncpa [#allocation3], 0
    // Predicated region
    $region2: #{map2style_forward.9} parent=1 // pred_check
      _
    $region3: #{map2style_forward.9} parent=1 // pred_check_branch
      %10 = sbr.rel (0) target = $region5
    $region4: #{map2style_forward.9} parent=1 // pred_region
      _
    $region5: #{map2style_forward.9} parent=1 // pred_fallthru
      _
    // Predicated region
    $region6: #{map2style_forward.9} parent=1 // pred_check
      _
    $region7: #{map2style_forward.9} parent=1 // pred_check_branch
      %12 = sbr.rel (0) target = $region9
    $region8: #{map2style_forward.9} parent=1 // pred_region
      _
    $region9: #{map2style_forward.9} parent=1 // pred_fallthru
      _
    // Predicated region
    $region10: #{map2style_forward.9} parent=1 // pred_check
      _
    $region11: #{map2style_forward.9} parent=1 // pred_check_branch
      %14 = sbr.rel (0) target = $region13
    $region12: #{map2style_forward.9} parent=1 // pred_region
      _
    $region13: #{map2style_forward.9} parent=1 // pred_fallthru
      _
    %v16 = vld [vmem:[%s0] sm:$0x1]
    %v17 = vld [vmem:[%s1] sm:$0xf]
    %v18 = vld [vmem:[%s2] sm:$0x1]
    %v20 = vlaneseq
    %v21 = vshrl.u32 %v20, 7
    %v22 = vsub.s32 0, %v21
    %v23 = vrot.slane %v18, %v22
    %vm25 = vcmask 64512
    %v27 = vsel %vm25, %v16, 0
    %vm29 = vcmask 1043456
    %v31 = vsel %vm29, %v17, 0
    %33 = vmatprep.subr.bf16.mxu0 0
    %34 = vmatpush1.bf16.msra.mxu0 0
    %35 = vmatprep.subr.bf16.mxu0 0
    %36 = vmatpush1.bf16.msra.mxu0 0
    %37 = vmatprep.subr.bf16.mxu0 0
    %38 = vmatpush1.bf16.msra.mxu0 0
    %39 = vmatprep.subr.bf16.mxu0 0
    %40 = vmatpush1.bf16.msra.mxu0 0
    %41 = vmatprep.subr.bf16.mxu0 0
    %42 = vmatpush1.bf16.msra.mxu0 0
    %43 = vmatprep.subr.bf16.mxu0 0
    %44 = vmatpush1.bf16.msra.mxu0 0
    %45 = vmatprep.subr.bf16.mxu0 0
    %46 = vmatpush1.bf16.msra.mxu0 0
    %47 = vmatprep.subr.bf16.mxu0 0
    %48 = vmatpush1.bf16.msra.mxu0 %v31
    %49 = vmatprep.subr.bf16.mxu0 0
    %50 = vmatpush2.bf16.msra.mxu0 0
    %51 = vmatprep.subr.bf16.mxu0 0
    %52 = vmatpush2.bf16.msra.mxu0 0
    %53 = vmatprep.subr.bf16.mxu0 0
    %54 = vmatpush2.bf16.msra.mxu0 0
    %55 = vmatprep.subr.bf16.mxu0 0
    %56 = vmatpush2.bf16.msra.mxu0 0
    %57 = vmatprep.subr.bf16.mxu0 0
    %58 = vmatpush2.bf16.msra.mxu0 0
    %59 = vmatprep.subr.bf16.mxu0 0
    %60 = vmatpush2.bf16.msra.mxu0 0
    %61 = vmatprep.subr.bf16.mxu0 0
    %62 = vmatpush2.bf16.msra.mxu0 0
    %63 = vmatprep.subr.bf16.mxu0 0
    %64 = vmatpush2.bf16.msra.mxu0 0
    %65 = vmatprep.mubr.bf16.mxu0 0
    %66 = vmatmul.mubr.bf16.gmra.mxu0 %v27
    %v67 = vpop.f32.mrf.mxu0
    %v68 = vadd.f32 %v23, %v67
    %v69 = vpop.f32.mrf.mxu0
    %v70 = vpop.f32.mrf.mxu0
    %v71 = vpop.f32.mrf.mxu0
    %72 = vdwg.mxu0
    %vm73 = vcmask 58368
    %74 = vst.msk [vmem:[#allocation2] sm:$0x3] %vm73, %v68
    // Predicated region
    $region14: #{map2style_forward.9} parent=1 // pred_check
      _
    $region15: #{map2style_forward.9} parent=1 // pred_check_branch
      %76 = sbr.rel (0) target = $region17
    $region16: #{map2style_forward.9} parent=1 // pred_region
      %s78 = ssub.s32 32, 32
      %79 = vsyncadd [#allocation3], %s78
      %s81 = sshll.u32 [#allocation2], 4
      %s82 = int_to_ptr.vmem [resolvable:$true] %s81
      %84 = dma.vmem_to_hbm [thread:$0]  %s82, 32, %s3, [#allocation3]
    $region17: #{map2style_forward.9} parent=1 // pred_fallthru
      _
    // Predicated region
    $region18: #{map2style_forward.9} parent=1 // pred_check
      _
    $region19: #{map2style_forward.9} parent=1 // pred_check_branch
      %86 = sbr.rel (0) target = $region21
    $region20: #{map2style_forward.9} parent=1 // pred_region
      %87 = dma.done [#allocation3], 32
    $region21: #{map2style_forward.9} parent=1 // pred_fallthru
      _
    %88 = vsyncpa [#allocation3], 1

// kernel: map2style_forward.5
$region0: #{map2style_forward.5}
  #allocation0 [shape = 'u32[]', space=smem, size = 0x4, offset = 0x4, fixed_abs, tag = 'smem constant byte address 0x4 - core index']
  #allocation1 [shape = 'u32[144,128]{1,0:T(1,128)}', space=vmem, size = 0x12000, scoped, tag = 'internal scratch']
  #allocation2 [shape = 'f32[256,8]{1,0:T(8,128)}', space=vmem, size = 0x20000, scoped, tag = 'scratch operand']
  %s0 = inlined_call_operand.vmem [shape: bf16[1152,4], index: 0, kind: input, shape index: {}]
  %s1 = inlined_call_operand.vmem [shape: bf16[9,4,8], index: 1, kind: input, shape index: {}]
  %s2 = inlined_call_operand.vmem [shape: f32[1,8], index: 2, kind: input, shape index: {}]
  %s3 = inlined_call_operand.vmem [shape: bf16[256,8], index: 3, kind: output, shape index: {}]
  %s4 = sld [smem:[#allocation0]]
  $region22: #{map2style_forward.5} parent=0
    _
  %s6 = ssub.s32 1, %s4
  %s7 = scalar_select 0, %s6, %s4
  // Predicated region
  $region2: #{map2style_forward.5} parent=0 // pred_check
    _
  $region3: #{map2style_forward.5} parent=0 // pred_check_branch
    %9 = sbr.rel (0) target = $region5
  $region4: #{map2style_forward.5} parent=0 // pred_region
    _
  $region5: #{map2style_forward.5} parent=0 // pred_fallthru
    _
  // Predicated region
  $region6: #{map2style_forward.5} parent=0 // pred_check
    _
  $region7: #{map2style_forward.5} parent=0 // pred_check_branch
    %11 = sbr.rel (0) target = $region9
  $region8: #{map2style_forward.5} parent=0 // pred_region
    _
  $region9: #{map2style_forward.5} parent=0 // pred_fallthru
    _
  // Predicated region
  $region10: #{map2style_forward.5} parent=0 // pred_check
    _
  $region11: #{map2style_forward.5} parent=0 // pred_check_branch
    %13 = sbr.rel (0) target = $region13
  $region12: #{map2style_forward.5} parent=0 // pred_region
    _
  $region13: #{map2style_forward.5} parent=0 // pred_fallthru
    _
  %v15 = vld [vmem:[%s0] sm:$0xf]
  %v16 = vld [vmem:[%s0 + $0x4] sm:$0xf]
  %v17 = vld [vmem:[%s0 + $0x8] sm:$0xf]
  %v18 = vld [vmem:[%s0 + $0xc] sm:$0xf]
  %v19 = vld [vmem:[%s0 + $0x10] sm:$0xf]
  %v20 = vld [vmem:[%s0 + $0x14] sm:$0xf]
  %v21 = vld [vmem:[%s0 + $0x18] sm:$0xf]
  %v22 = vld [vmem:[%s0 + $0x1c] sm:$0xf]
  %v23 = vld [vmem:[%s0 + $0x20] sm:$0xf]
  %v24 = vld [vmem:[%s0 + $0x24] sm:$0xf]
  %v25 = vld [vmem:[%s0 + $0x28] sm:$0xf]
  %v26 = vld [vmem:[%s0 + $0x2c] sm:$0xf]
  %v27 = vld [vmem:[%s0 + $0x30] sm:$0xf]
  %v28 = vld [vmem:[%s0 + $0x34] sm:$0xf]
  %v29 = vld [vmem:[%s0 + $0x38] sm:$0xf]
  %v30 = vld [vmem:[%s0 + $0x3c] sm:$0xf]
  %v31 = vld [vmem:[%s0 + $0x40] sm:$0xf]
  %v32 = vld [vmem:[%s0 + $0x44] sm:$0xf]
  %v33 = vld [vmem:[%s0 + $0x48] sm:$0xf]
  %v34 = vld [vmem:[%s0 + $0x4c] sm:$0xf]
  %v35 = vld [vmem:[%s0 + $0x50] sm:$0xf]
  %v36 = vld [vmem:[%s0 + $0x54] sm:$0xf]
  %v37 = vld [vmem:[%s0 + $0x58] sm:$0xf]
  %v38 = vld [vmem:[%s0 + $0x5c] sm:$0xf]
  %v39 = vld [vmem:[%s0 + $0x60] sm:$0xf]
  %v40 = vld [vmem:[%s0 + $0x64] sm:$0xf]
  %v41 = vld [vmem:[%s0 + $0x68] sm:$0xf]
  %v42 = vld [vmem:[%s0 + $0x6c] sm:$0xf]
  %v43 = vld [vmem:[%s0 + $0x70] sm:$0xf]
  %v44 = vld [vmem:[%s0 + $0x74] sm:$0xf]
  %v45 = vld [vmem:[%s0 + $0x78] sm:$0xf]
  %v46 = vld [vmem:[%s0 + $0x7c] sm:$0xf]
  %v47 = vld [vmem:[%s1] sm:$0x3]
  %v80 = vunpack.c.l.b16 %v15
  %v81 = vunpack.c.l.b16 %v16
  %v82 = vunpack.c.l.b16 %v17
  %v83 = vunpack.c.l.b16 %v18
  %v84 = vunpack.c.l.b16 %v19
  %v85 = vunpack.c.l.b16 %v20
  %v86 = vunpack.c.l.b16 %v21
  %v87 = vunpack.c.l.b16 %v22
  %v88 = vunpack.c.l.b16 %v23
  %v89 = vunpack.c.l.b16 %v24
  %v90 = vunpack.c.l.b16 %v25
  %v91 = vunpack.c.l.b16 %v26
  %v92 = vunpack.c.l.b16 %v27
  %v93 = vunpack.c.l.b16 %v28
  %v94 = vunpack.c.l.b16 %v29
  %v95 = vunpack.c.l.b16 %v30
  %v96 = vunpack.c.l.b16 %v31
  %v97 = vunpack.c.l.b16 %v32
  %v98 = vunpack.c.l.b16 %v33
  %v99 = vunpack.c.l.b16 %v34
  %v100 = vunpack.c.l.b16 %v35
  %v101 = vunpack.c.l.b16 %v36
  %v102 = vunpack.c.l.b16 %v37
  %v103 = vunpack.c.l.b16 %v38
  %v104 = vunpack.c.l.b16 %v39
  %v105 = vunpack.c.l.b16 %v40
  %v106 = vunpack.c.l.b16 %v41
  %v107 = vunpack.c.l.b16 %v42
  %v108 = vunpack.c.l.b16 %v43
  %v109 = vunpack.c.l.b16 %v44
  %v110 = vunpack.c.l.b16 %v45
  %v111 = vunpack.c.l.b16 %v46
  %v112 = vpack.c.b16 %v81, %v80
  %v113 = vpack.c.b16 %v83, %v82
  %v114 = vpack.c.b16 %v85, %v84
  %v115 = vpack.c.b16 %v87, %v86
  %v116 = vpack.c.b16 %v89, %v88
  %v117 = vpack.c.b16 %v91, %v90
  %v118 = vpack.c.b16 %v93, %v92
  %v119 = vpack.c.b16 %v95, %v94
  %v120 = vpack.c.b16 %v97, %v96
  %v121 = vpack.c.b16 %v99, %v98
  %v122 = vpack.c.b16 %v101, %v100
  %v123 = vpack.c.b16 %v103, %v102
  %v124 = vpack.c.b16 %v105, %v104
  %v125 = vpack.c.b16 %v107, %v106
  %v126 = vpack.c.b16 %v109, %v108
  %v127 = vpack.c.b16 %v111, %v110
  %vm128 = vcmask 31744
  %v130 = vsel %vm128, %v112, 0
  %v133 = vsel %vm128, %v113, 0
  %v136 = vsel %vm128, %v114, 0
  %v139 = vsel %vm128, %v115, 0
  %v142 = vsel %vm128, %v116, 0
  %v145 = vsel %vm128, %v117, 0
  %v148 = vsel %vm128, %v118, 0
  %v151 = vsel %vm128, %v119, 0
  %v154 = vsel %vm128, %v120, 0
  %v157 = vsel %vm128, %v121, 0
  %v160 = vsel %vm128, %v122, 0
  %v163 = vsel %vm128, %v123, 0
  %v166 = vsel %vm128, %v124, 0
  %v169 = vsel %vm128, %v125, 0
  %v172 = vsel %vm128, %v126, 0
  %v175 = vsel %vm128, %v127, 0
  %vm177 = vcmask 1041408
  %v179 = vsel %vm177, %v47, 0
  %181 = vmatprep.subr.bf16.mxu0 0
  %182 = vmatpush1.bf16.msra.mxu0 0
  %183 = vmatprep.subr.bf16.mxu0 0
  %184 = vmatpush1.bf16.msra.mxu0 0
  %185 = vmatprep.subr.bf16.mxu0 0
  %186 = vmatpush1.bf16.msra.mxu0 0
  %187 = vmatprep.subr.bf16.mxu0 0
  %188 = vmatpush1.bf16.msra.mxu0 0
  %189 = vmatprep.subr.bf16.mxu0 0
  %190 = vmatpush1.bf16.msra.mxu0 0
  %191 = vmatprep.subr.bf16.mxu0 0
  %192 = vmatpush1.bf16.msra.mxu0 0
  %193 = vmatprep.subr.bf16.mxu0 0
  %194 = vmatpush1.bf16.msra.mxu0 0
  %195 = vmatprep.subr.bf16.mxu0 0
  %196 = vmatpush1.bf16.msra.mxu0 %v179
  %197 = vmatprep.subr.bf16.mxu0 0
  %198 = vmatpush2.bf16.msra.mxu0 0
  %199 = vmatprep.subr.bf16.mxu0 0
  %200 = vmatpush2.bf16.msra.mxu0 0
  %201 = vmatprep.subr.bf16.mxu0 0
  %202 = vmatpush2.bf16.msra.mxu0 0
  %203 = vmatprep.subr.bf16.mxu0 0
  %204 = vmatpush2.bf16.msra.mxu0 0
  %205 = vmatprep.subr.bf16.mxu0 0
  %206 = vmatpush2.bf16.msra.mxu0 0
  %207 = vmatprep.subr.bf16.mxu0 0
  %208 = vmatpush2.bf16.msra.mxu0 0
  %209 = vmatprep.subr.bf16.mxu0 0
  %210 = vmatpush2.bf16.msra.mxu0 0
  %211 = vmatprep.subr.bf16.mxu0 0
  %212 = vmatpush2.bf16.msra.mxu0 0
  %213 = vmatprep.mubr.bf16.mxu0 0
  %214 = vmatmul.mubr.bf16.gmra.mxu0 %v130
  %v215 = vpop.f32.mrf.mxu0
  %v216 = vadd.f32 0.0, %v215
  %v217 = vpop.f32.mrf.mxu0
  %v218 = vpop.f32.mrf.mxu0
  %v219 = vadd.f32 0.0, %v218
  %v220 = vpop.f32.mrf.mxu0
  %221 = vmatprep.mubr.bf16.mxu0 0
  %222 = vmatmul.mubr.bf16.gmra.mxu0 %v133
  %v223 = vpop.f32.mrf.mxu0
  %v224 = vadd.f32 0.0, %v223
  %v225 = vpop.f32.mrf.mxu0
  %v226 = vpop.f32.mrf.mxu0
  %v227 = vadd.f32 0.0, %v226
  %v228 = vpop.f32.mrf.mxu0
  %229 = vmatprep.mubr.bf16.mxu0 0
  %230 = vmatmul.mubr.bf16.gmra.mxu0 %v136
  %v231 = vpop.f32.mrf.mxu0
  %v232 = vadd.f32 0.0, %v231
  %v233 = vpop.f32.mrf.mxu0
  %v234 = vpop.f32.mrf.mxu0
  %v235 = vadd.f32 0.0, %v234
  %v236 = vpop.f32.mrf.mxu0
  %237 = vmatprep.mubr.bf16.mxu0 0
  %238 = vmatmul.mubr.bf16.gmra.mxu0 %v139
  %v239 = vpop.f32.mrf.mxu0
  %v240 = vadd.f32 0.0, %v239
  %v241 = vpop.f32.mrf.mxu0
  %v242 = vpop.f32.mrf.mxu0
  %v243 = vadd.f32 0.0, %v242
  %v244 = vpop.f32.mrf.mxu0
  %245 = vmatprep.mubr.bf16.mxu0 0
  %246 = vmatmul.mubr.bf16.gmra.mxu0 %v142
  %v247 = vpop.f32.mrf.mxu0
  %v248 = vadd.f32 0.0, %v247
  %v249 = vpop.f32.mrf.mxu0
  %v250 = vpop.f32.mrf.mxu0
  %v251 = vadd.f32 0.0, %v250
  %v252 = vpop.f32.mrf.mxu0
  %253 = vmatprep.mubr.bf16.mxu0 0
  %254 = vmatmul.mubr.bf16.gmra.mxu0 %v145
  %v255 = vpop.f32.mrf.mxu0
  %v256 = vadd.f32 0.0, %v255
  %v257 = vpop.f32.mrf.mxu0
  %v258 = vpop.f32.mrf.mxu0
  %v259 = vadd.f32 0.0, %v258
  %v260 = vpop.f32.mrf.mxu0
  %261 = vmatprep.mubr.bf16.mxu0 0
  %262 = vmatmul.mubr.bf16.gmra.mxu0 %v148
  %v263 = vpop.f32.mrf.mxu0
  %v264 = vadd.f32 0.0, %v263
  %v265 = vpop.f32.mrf.mxu0
  %v266 = vpop.f32.mrf.mxu0
  %v267 = vadd.f32 0.0, %v266
  %v268 = vpop.f32.mrf.mxu0
  %269 = vmatprep.mubr.bf16.mxu0 0
  %270 = vmatmul.mubr.bf16.gmra.mxu0 %v151
  %v271 = vpop.f32.mrf.mxu0
  %v272 = vadd.f32 0.0, %v271
  %v273 = vpop.f32.mrf.mxu0
  %v274 = vpop.f32.mrf.mxu0
  %v275 = vadd.f32 0.0, %v274
  %v276 = vpop.f32.mrf.mxu0
  %277 = vmatprep.mubr.bf16.mxu0 0
  %278 = vmatmul.mubr.bf16.gmra.mxu0 %v154
  %v279 = vpop.f32.mrf.mxu0
  %v280 = vadd.f32 0.0, %v279
  %v281 = vpop.f32.mrf.mxu0
  %v282 = vpop.f32.mrf.mxu0
  %v283 = vadd.f32 0.0, %v282
  %v284 = vpop.f32.mrf.mxu0
  %285 = vmatprep.mubr.bf16.mxu0 0
  %286 = vmatmul.mubr.bf16.gmra.mxu0 %v157
  %v287 = vpop.f32.mrf.mxu0
  %v288 = vadd.f32 0.0, %v287
  %v289 = vpop.f32.mrf.mxu0
  %v290 = vpop.f32.mrf.mxu0
  %v291 = vadd.f32 0.0, %v290
  %v292 = vpop.f32.mrf.mxu0
  %293 = vmatprep.mubr.bf16.mxu0 0
  %294 = vmatmul.mubr.bf16.gmra.mxu0 %v160
  %v295 = vpop.f32.mrf.mxu0
  %v296 = vadd.f32 0.0, %v295
  %v297 = vpop.f32.mrf.mxu0
  %v298 = vpop.f32.mrf.mxu0
  %v299 = vadd.f32 0.0, %v298
  %v300 = vpop.f32.mrf.mxu0
  %301 = vmatprep.mubr.bf16.mxu0 0
  %302 = vmatmul.mubr.bf16.gmra.mxu0 %v163
  %v303 = vpop.f32.mrf.mxu0
  %v304 = vadd.f32 0.0, %v303
  %v305 = vpop.f32.mrf.mxu0
  %v306 = vpop.f32.mrf.mxu0
  %v307 = vadd.f32 0.0, %v306
  %v308 = vpop.f32.mrf.mxu0
  %309 = vmatprep.mubr.bf16.mxu0 0
  %310 = vmatmul.mubr.bf16.gmra.mxu0 %v166
  %v311 = vpop.f32.mrf.mxu0
  %v312 = vadd.f32 0.0, %v311
  %v313 = vpop.f32.mrf.mxu0
  %v314 = vpop.f32.mrf.mxu0
  %v315 = vadd.f32 0.0, %v314
  %v316 = vpop.f32.mrf.mxu0
  %317 = vmatprep.mubr.bf16.mxu0 0
  %318 = vmatmul.mubr.bf16.gmra.mxu0 %v169
  %v319 = vpop.f32.mrf.mxu0
  %v320 = vadd.f32 0.0, %v319
  %v321 = vpop.f32.mrf.mxu0
  %v322 = vpop.f32.mrf.mxu0
  %v323 = vadd.f32 0.0, %v322
  %v324 = vpop.f32.mrf.mxu0
  %325 = vmatprep.mubr.bf16.mxu0 0
  %326 = vmatmul.mubr.bf16.gmra.mxu0 %v172
  %v327 = vpop.f32.mrf.mxu0
  %v328 = vadd.f32 0.0, %v327
  %v329 = vpop.f32.mrf.mxu0
  %v330 = vpop.f32.mrf.mxu0
  %v331 = vadd.f32 0.0, %v330
  %v332 = vpop.f32.mrf.mxu0
  %333 = vmatprep.mubr.bf16.mxu0 0
  %334 = vmatmul.mubr.bf16.gmra.mxu0 %v175
  %v335 = vpop.f32.mrf.mxu0
  %v336 = vadd.f32 0.0, %v335
  %v337 = vpop.f32.mrf.mxu0
  %v338 = vpop.f32.mrf.mxu0
  %v339 = vadd.f32 0.0, %v338
  %v340 = vpop.f32.mrf.mxu0
  %341 = vdwg.mxu0
  %vm342 = vcmask 64512
  %343 = vst.msk [vmem:[#allocation2] sm:$0xff] %vm342, %v216
  %344 = vst.msk [vmem:[#allocation2 + $0x8] sm:$0xff] %vm342, %v219
  %345 = vst.msk [vmem:[#allocation2 + $0x10] sm:$0xff] %vm342, %v224
  %346 = vst.msk [vmem:[#allocation2 + $0x18] sm:$0xff] %vm342, %v227
  %347 = vst.msk [vmem:[#allocation2 + $0x20] sm:$0xff] %vm342, %v232
  %348 = vst.msk [vmem:[#allocation2 + $0x28] sm:$0xff] %vm342, %v235
  %349 = vst.msk [vmem:[#allocation2 + $0x30] sm:$0xff] %vm342, %v240
  %350 = vst.msk [vmem:[#allocation2 + $0x38] sm:$0xff] %vm342, %v243
  %351 = vst.msk [vmem:[#allocation2 + $0x40] sm:$0xff] %vm342, %v248
  %352 = vst.msk [vmem:[#allocation2 + $0x48] sm:$0xff] %vm342, %v251
  %353 = vst.msk [vmem:[#allocation2 + $0x50] sm:$0xff] %vm342, %v256
  %354 = vst.msk [vmem:[#allocation2 + $0x58] sm:$0xff] %vm342, %v259
  %355 = vst.msk [vmem:[#allocation2 + $0x60] sm:$0xff] %vm342, %v264
  %356 = vst.msk [vmem:[#allocation2 + $0x68] sm:$0xff] %vm342, %v267
  %357 = vst.msk [vmem:[#allocation2 + $0x70] sm:$0xff] %vm342, %v272
  %358 = vst.msk [vmem:[#allocation2 + $0x78] sm:$0xff] %vm342, %v275
  %359 = vst.msk [vmem:[#allocation2 + $0x80] sm:$0xff] %vm342, %v280
  %360 = vst.msk [vmem:[#allocation2 + $0x88] sm:$0xff] %vm342, %v283
  %361 = vst.msk [vmem:[#allocation2 + $0x90] sm:$0xff] %vm342, %v288
  %362 = vst.msk [vmem:[#allocation2 + $0x98] sm:$0xff] %vm342, %v291
  %363 = vst.msk [vmem:[#allocation2 + $0xa0] sm:$0xff] %vm342, %v296
  %364 = vst.msk [vmem:[#allocation2 + $0xa8] sm:$0xff] %vm342, %v299
  %365 = vst.msk [vmem:[#allocation2 + $0xb0] sm:$0xff] %vm342, %v304
  %366 = vst.msk [vmem:[#allocation2 + $0xb8] sm:$0xff] %vm342, %v307
  %367 = vst.msk [vmem:[#allocation2 + $0xc0] sm:$0xff] %vm342, %v312
  %368 = vst.msk [vmem:[#allocation2 + $0xc8] sm:$0xff] %vm342, %v315
  %369 = vst.msk [vmem:[#allocation2 + $0xd0] sm:$0xff] %vm342, %v320
  %370 = vst.msk [vmem:[#allocation2 + $0xd8] sm:$0xff] %vm342, %v323
  %371 = vst.msk [vmem:[#allocation2 + $0xe0] sm:$0xff] %vm342, %v328
  %372 = vst.msk [vmem:[#allocation2 + $0xe8] sm:$0xff] %vm342, %v331
  %373 = vst.msk [vmem:[#allocation2 + $0xf0] sm:$0xff] %vm342, %v336
  %374 = vst.msk [vmem:[#allocation2 + $0xf8] sm:$0xff] %vm342, %v339
  %v375 = vld [vmem:[%s0 + $0x90] sm:$0xf]
  %v376 = vld [vmem:[%s0 + $0x94] sm:$0xf]
  %v377 = vld [vmem:[%s0 + $0x98] sm:$0xf]
  %v378 = vld [vmem:[%s0 + $0x9c] sm:$0xf]
  %v379 = vld [vmem:[%s0 + $0xa0] sm:$0xf]
  %v380 = vld [vmem:[%s0 + $0xa4] sm:$0xf]
  %v381 = vld [vmem:[%s0 + $0xa8] sm:$0xf]
  %v382 = vld [vmem:[%s0 + $0xac] sm:$0xf]
  %v383 = vld [vmem:[%s0 + $0xb0] sm:$0xf]
  %v384 = vld [vmem:[%s0 + $0xb4] sm:$0xf]
  %v385 = vld [vmem:[%s0 + $0xb8] sm:$0xf]
  %v386 = vld [vmem:[%s0 + $0xbc] sm:$0xf]
  %v387 = vld [vmem:[%s0 + $0xc0] sm:$0xf]
  %v388 = vld [vmem:[%s0 + $0xc4] sm:$0xf]
  %v389 = vld [vmem:[%s0 + $0xc8] sm:$0xf]
  %v390 = vld [vmem:[%s0 + $0xcc] sm:$0xf]
  %v391 = vld [vmem:[%s0 + $0xd0] sm:$0xf]
  %v392 = vld [vmem:[%s0 + $0xd4] sm:$0xf]
  %v393 = vld [vmem:[%s0 + $0xd8] sm:$0xf]
  %v394 = vld [vmem:[%s0 + $0xdc] sm:$0xf]
  %v395 = vld [vmem:[%s0 + $0xe0] sm:$0xf]
  %v396 = vld [vmem:[%s0 + $0xe4] sm:$0xf]
  %v397 = vld [vmem:[%s0 + $0xe8] sm:$0xf]
  %v398 = vld [vmem:[%s0 + $0xec] sm:$0xf]
  %v399 = vld [vmem:[%s0 + $0xf0] sm:$0xf]
  %v400 = vld [vmem:[%s0 + $0xf4] sm:$0xf]
  %v401 = vld [vmem:[%s0 + $0xf8] sm:$0xf]
  %v402 = vld [vmem:[%s0 + $0xfc] sm:$0xf]
  %v403 = vld [vmem:[%s0 + $0x100] sm:$0xf]
  %v404 = vld [vmem:[%s0 + $0x104] sm:$0xf]
  %v405 = vld [vmem:[%s0 + $0x108] sm:$0xf]
  %v406 = vld [vmem:[%s0 + $0x10c] sm:$0xf]
  %s407 = scalar_lea.vmem %s1, 2
  %v408 = vld [vmem:[%s407] sm:$0x3]
  %v441 = vunpack.c.l.b16 %v375
  %v442 = vunpack.c.l.b16 %v376
  %v443 = vunpack.c.l.b16 %v377
  %v444 = vunpack.c.l.b16 %v378
  %v445 = vunpack.c.l.b16 %v379
  %v446 = vunpack.c.l.b16 %v380
  %v447 = vunpack.c.l.b16 %v381
  %v448 = vunpack.c.l.b16 %v382
  %v449 = vunpack.c.l.b16 %v383
  %v450 = vunpack.c.l.b16 %v384
  %v451 = vunpack.c.l.b16 %v385
  %v452 = vunpack.c.l.b16 %v386
  %v453 = vunpack.c.l.b16 %v387
  %v454 = vunpack.c.l.b16 %v388
  %v455 = vunpack.c.l.b16 %v389
  %v456 = vunpack.c.l.b16 %v390
  %v457 = vunpack.c.l.b16 %v391
  %v458 = vunpack.c.l.b16 %v392
  %v459 = vunpack.c.l.b16 %v393
  %v460 = vunpack.c.l.b16 %v394
  %v461 = vunpack.c.l.b16 %v395
  %v462 = vunpack.c.l.b16 %v396
  %v463 = vunpack.c.l.b16 %v397
  %v464 = vunpack.c.l.b16 %v398
  %v465 = vunpack.c.l.b16 %v399
  %v466 = vunpack.c.l.b16 %v400
  %v467 = vunpack.c.l.b16 %v401
  %v468 = vunpack.c.l.b16 %v402
  %v469 = vunpack.c.l.b16 %v403
  %v470 = vunpack.c.l.b16 %v404
  %v471 = vunpack.c.l.b16 %v405
  %v472 = vunpack.c.l.b16 %v406
  %v473 = vpack.c.b16 %v442, %v441
  %v474 = vpack.c.b16 %v444, %v443
  %v475 = vpack.c.b16 %v446, %v445
  %v476 = vpack.c.b16 %v448, %v447
  %v477 = vpack.c.b16 %v450, %v449
  %v478 = vpack.c.b16 %v452, %v451
  %v479 = vpack.c.b16 %v454, %v453
  %v480 = vpack.c.b16 %v456, %v455
  %v481 = vpack.c.b16 %v458, %v457
  %v482 = vpack.c.b16 %v460, %v459
  %v483 = vpack.c.b16 %v462, %v461
  %v484 = vpack.c.b16 %v464, %v463
  %v485 = vpack.c.b16 %v466, %v465
  %v486 = vpack.c.b16 %v468, %v467
  %v487 = vpack.c.b16 %v470, %v469
  %v488 = vpack.c.b16 %v472, %v471
  %v490 = vsel %vm128, %v473, 0
  %v493 = vsel %vm128, %v474, 0
  %v496 = vsel %vm128, %v475, 0
  %v499 = vsel %vm128, %v476, 0
  %v502 = vsel %vm128, %v477, 0
  %v505 = vsel %vm128, %v478, 0
  %v508 = vsel %vm128, %v479, 0
  %v511 = vsel %vm128, %v480, 0
  %v514 = vsel %vm128, %v481, 0
  %v517 = vsel %vm128, %v482, 0
  %v520 = vsel %vm128, %v483, 0
  %v523 = vsel %vm128, %v484, 0
  %v526 = vsel %vm128, %v485, 0
  %v529 = vsel %vm128, %v486, 0
  %v532 = vsel %vm128, %v487, 0
  %v535 = vsel %vm128, %v488, 0
  %v538 = vsel %vm177, %v408, 0
  %540 = vmatprep.subr.bf16.mxu0 0
  %541 = vmatpush1.bf16.msra.mxu0 0
  %542 = vmatprep.subr.bf16.mxu0 0
  %543 = vmatpush1.bf16.msra.mxu0 0
  %544 = vmatprep.subr.bf16.mxu0 0
  %545 = vmatpush1.bf16.msra.mxu0 0
  %546 = vmatprep.subr.bf16.mxu0 0
  %547 = vmatpush1.bf16.msra.mxu0 0
  %548 = vmatprep.subr.bf16.mxu0 0
  %549 = vmatpush1.bf16.msra.mxu0 0
  %550 = vmatprep.subr.bf16.mxu0 0
  %551 = vmatpush1.bf16.msra.mxu0 0
  %552 = vmatprep.subr.bf16.mxu0 0
  %553 = vmatpush1.bf16.msra.mxu0 0
  %554 = vmatprep.subr.bf16.mxu0 0
  %555 = vmatpush1.bf16.msra.mxu0 %v538
  %556 = vmatprep.subr.bf16.mxu0 0
  %557 = vmatpush2.bf16.msra.mxu0 0
  %558 = vmatprep.subr.bf16.mxu0 0
  %559 = vmatpush2.bf16.msra.mxu0 0
  %560 = vmatprep.subr.bf16.mxu0 0
  %561 = vmatpush2.bf16.msra.mxu0 0
  %562 = vmatprep.subr.bf16.mxu0 0
  %563 = vmatpush2.bf16.msra.mxu0 0
  %564 = vmatprep.subr.bf16.mxu0 0
  %565 = vmatpush2.bf16.msra.mxu0 0
  %566 = vmatprep.subr.bf16.mxu0 0
  %567 = vmatpush2.bf16.msra.mxu0 0
  %568 = vmatprep.subr.bf16.mxu0 0
  %569 = vmatpush2.bf16.msra.mxu0 0
  %570 = vmatprep.subr.bf16.mxu0 0
  %571 = vmatpush2.bf16.msra.mxu0 0
  %572 = vmatprep.mubr.bf16.mxu0 0
  %573 = vmatmul.mubr.bf16.gmra.mxu0 %v490
  %v574 = vpop.f32.mrf.mxu0
  %v575 = vadd.f32 0.0, %v574
  %v576 = vpop.f32.mrf.mxu0
  %v577 = vpop.f32.mrf.mxu0
  %v578 = vadd.f32 0.0, %v577
  %v579 = vpop.f32.mrf.mxu0
  %580 = vmatprep.mubr.bf16.mxu0 0
  %581 = vmatmul.mubr.bf16.gmra.mxu0 %v493
  %v582 = vpop.f32.mrf.mxu0
  %v583 = vadd.f32 0.0, %v582
  %v584 = vpop.f32.mrf.mxu0
  %v585 = vpop.f32.mrf.mxu0
  %v586 = vadd.f32 0.0, %v585
  %v587 = vpop.f32.mrf.mxu0
  %588 = vmatprep.mubr.bf16.mxu0 0
  %589 = vmatmul.mubr.bf16.gmra.mxu0 %v496
  %v590 = vpop.f32.mrf.mxu0
  %v591 = vadd.f32 0.0, %v590
  %v592 = vpop.f32.mrf.mxu0
  %v593 = vpop.f32.mrf.mxu0
  %v594 = vadd.f32 0.0, %v593
  %v595 = vpop.f32.mrf.mxu0
  %596 = vmatprep.mubr.bf16.mxu0 0
  %597 = vmatmul.mubr.bf16.gmra.mxu0 %v499
  %v598 = vpop.f32.mrf.mxu0
  %v599 = vadd.f32 0.0, %v598
  %v600 = vpop.f32.mrf.mxu0
  %v601 = vpop.f32.mrf.mxu0
  %v602 = vadd.f32 0.0, %v601
  %v603 = vpop.f32.mrf.mxu0
  %604 = vmatprep.mubr.bf16.mxu0 0
  %605 = vmatmul.mubr.bf16.gmra.mxu0 %v502
  %v606 = vpop.f32.mrf.mxu0
  %v607 = vadd.f32 0.0, %v606
  %v608 = vpop.f32.mrf.mxu0
  %v609 = vpop.f32.mrf.mxu0
  %v610 = vadd.f32 0.0, %v609
  %v611 = vpop.f32.mrf.mxu0
  %612 = vmatprep.mubr.bf16.mxu0 0
  %613 = vmatmul.mubr.bf16.gmra.mxu0 %v505
  %v614 = vpop.f32.mrf.mxu0
  %v615 = vadd.f32 0.0, %v614
  %v616 = vpop.f32.mrf.mxu0
  %v617 = vpop.f32.mrf.mxu0
  %v618 = vadd.f32 0.0, %v617
  %v619 = vpop.f32.mrf.mxu0
  %620 = vmatprep.mubr.bf16.mxu0 0
  %621 = vmatmul.mubr.bf16.gmra.mxu0 %v508
  %v622 = vpop.f32.mrf.mxu0
  %v623 = vadd.f32 0.0, %v622
  %v624 = vpop.f32.mrf.mxu0
  %v625 = vpop.f32.mrf.mxu0
  %v626 = vadd.f32 0.0, %v625
  %v627 = vpop.f32.mrf.mxu0
  %628 = vmatprep.mubr.bf16.mxu0 0
  %629 = vmatmul.mubr.bf16.gmra.mxu0 %v511
  %v630 = vpop.f32.mrf.mxu0
  %v631 = vadd.f32 0.0, %v630
  %v632 = vpop.f32.mrf.mxu0
  %v633 = vpop.f32.mrf.mxu0
  %v634 = vadd.f32 0.0, %v633
  %v635 = vpop.f32.mrf.mxu0
  %636 = vmatprep.mubr.bf16.mxu0 0
  %637 = vmatmul.mubr.bf16.gmra.mxu0 %v514
  %v638 = vpop.f32.mrf.mxu0
  %v639 = vadd.f32 0.0, %v638
  %v640 = vpop.f32.mrf.mxu0
  %v641 = vpop.f32.mrf.mxu0
  %v642 = vadd.f32 0.0, %v641
  %v643 = vpop.f32.mrf.mxu0
  %644 = vmatprep.mubr.bf16.mxu0 0
  %645 = vmatmul.mubr.bf16.gmra.mxu0 %v517
  %v646 = vpop.f32.mrf.mxu0
  %v647 = vadd.f32 0.0, %v646
  %v648 = vpop.f32.mrf.mxu0
  %v649 = vpop.f32.mrf.mxu0
  %v650 = vadd.f32 0.0, %v649
  %v651 = vpop.f32.mrf.mxu0
  %652 = vmatprep.mubr.bf16.mxu0 0
  %653 = vmatmul.mubr.bf16.gmra.mxu0 %v520
  %v654 = vpop.f32.mrf.mxu0
  %v655 = vadd.f32 0.0, %v654
  %v656 = vpop.f32.mrf.mxu0
  %v657 = vpop.f32.mrf.mxu0
  %v658 = vadd.f32 0.0, %v657
  %v659 = vpop.f32.mrf.mxu0
  %660 = vmatprep.mubr.bf16.mxu0 0
  %661 = vmatmul.mubr.bf16.gmra.mxu0 %v523
  %v662 = vpop.f32.mrf.mxu0
  %v663 = vadd.f32 0.0, %v662
  %v664 = vpop.f32.mrf.mxu0
  %v665 = vpop.f32.mrf.mxu0
  %v666 = vadd.f32 0.0, %v665
  %v667 = vpop.f32.mrf.mxu0
  %668 = vmatprep.mubr.bf16.mxu0 0
  %669 = vmatmul.mubr.bf16.gmra.mxu0 %v526
  %v670 = vpop.f32.mrf.mxu0
  %v671 = vadd.f32 0.0, %v670
  %v672 = vpop.f32.mrf.mxu0
  %v673 = vpop.f32.mrf.mxu0
  %v674 = vadd.f32 0.0, %v673
  %v675 = vpop.f32.mrf.mxu0
  %676 = vmatprep.mubr.bf16.mxu0 0
  %677 = vmatmul.mubr.bf16.gmra.mxu0 %v529
  %v678 = vpop.f32.mrf.mxu0
  %v679 = vadd.f32 0.0, %v678
  %v680 = vpop.f32.mrf.mxu0
  %v681 = vpop.f32.mrf.mxu0
  %v682 = vadd.f32 0.0, %v681
  %v683 = vpop.f32.mrf.mxu0
  %684 = vmatprep.mubr.bf16.mxu0 0
  %685 = vmatmul.mubr.bf16.gmra.mxu0 %v532
  %v686 = vpop.f32.mrf.mxu0
  %v687 = vadd.f32 0.0, %v686
  %v688 = vpop.f32.mrf.mxu0
  %v689 = vpop.f32.mrf.mxu0
  %v690 = vadd.f32 0.0, %v689
  %v691 = vpop.f32.mrf.mxu0
  %692 = vmatprep.mubr.bf16.mxu0 0
  %693 = vmatmul.mubr.bf16.gmra.mxu0 %v535
  %v694 = vpop.f32.mrf.mxu0
  %v695 = vadd.f32 0.0, %v694
  %v696 = vpop.f32.mrf.mxu0
  %v697 = vpop.f32.mrf.mxu0
  %v698 = vadd.f32 0.0, %v697
  %v699 = vpop.f32.mrf.mxu0
  %700 = vdwg.mxu0
  %v701 = vld [vmem:[#allocation2] sm:$0xff]
  %v702 = vld [vmem:[#allocation2 + $0x8] sm:$0xff]
  %v703 = vld [vmem:[#allocation2 + $0x10] sm:$0xff]
  %v704 = vld [vmem:[#allocation2 + $0x18] sm:$0xff]
  %v705 = vld [vmem:[#allocation2 + $0x20] sm:$0xff]
  %v706 = vld [vmem:[#allocation2 + $0x28] sm:$0xff]
  %v707 = vld [vmem:[#allocation2 + $0x30] sm:$0xff]
  %v708 = vld [vmem:[#allocation2 + $0x38] sm:$0xff]
  %v709 = vld [vmem:[#allocation2 + $0x40] sm:$0xff]
  %v710 = vld [vmem:[#allocation2 + $0x48] sm:$0xff]
  %v711 = vld [vmem:[#allocation2 + $0x50] sm:$0xff]
  %v712 = vld [vmem:[#allocation2 + $0x58] sm:$0xff]
  %v713 = vld [vmem:[#allocation2 + $0x60] sm:$0xff]
  %v714 = vld [vmem:[#allocation2 + $0x68] sm:$0xff]
  %v715 = vld [vmem:[#allocation2 + $0x70] sm:$0xff]
  %v716 = vld [vmem:[#allocation2 + $0x78] sm:$0xff]
  %v717 = vld [vmem:[#allocation2 + $0x80] sm:$0xff]
  %v718 = vld [vmem:[#allocation2 + $0x88] sm:$0xff]
  %v719 = vld [vmem:[#allocation2 + $0x90] sm:$0xff]
  %v720 = vld [vmem:[#allocation2 + $0x98] sm:$0xff]
  %v721 = vld [vmem:[#allocation2 + $0xa0] sm:$0xff]
  %v722 = vld [vmem:[#allocation2 + $0xa8] sm:$0xff]
  %v723 = vld [vmem:[#allocation2 + $0xb0] sm:$0xff]
  %v724 = vld [vmem:[#allocation2 + $0xb8] sm:$0xff]
  %v725 = vld [vmem:[#allocation2 + $0xc0] sm:$0xff]
  %v726 = vld [vmem:[#allocation2 + $0xc8] sm:$0xff]
  %v727 = vld [vmem:[#allocation2 + $0xd0] sm:$0xff]
  %v728 = vld [vmem:[#allocation2 + $0xd8] sm:$0xff]
  %v729 = vld [vmem:[#allocation2 + $0xe0] sm:$0xff]
  %v730 = vld [vmem:[#allocation2 + $0xe8] sm:$0xff]
  %v731 = vld [vmem:[#allocation2 + $0xf0] sm:$0xff]
  %v732 = vld [vmem:[#allocation2 + $0xf8] sm:$0xff]
  %v733 = vadd.f32 %v701, %v575
  %v734 = vadd.f32 %v702, %v578
  %v735 = vadd.f32 %v703, %v583
  %v736 = vadd.f32 %v704, %v586
  %v737 = vadd.f32 %v705, %v591
  %v738 = vadd.f32 %v706, %v594
  %v739 = vadd.f32 %v707, %v599
  %v740 = vadd.f32 %v708, %v602
  %v741 = vadd.f32 %v709, %v607
  %v742 = vadd.f32 %v710, %v610
  %v743 = vadd.f32 %v711, %v615
  %v744 = vadd.f32 %v712, %v618
  %v745 = vadd.f32 %v713, %v623
  %v746 = vadd.f32 %v714, %v626
  %v747 = vadd.f32 %v715, %v631
  %v748 = vadd.f32 %v716, %v634
  %v749 = vadd.f32 %v717, %v639
  %v750 = vadd.f32 %v718, %v642
  %v751 = vadd.f32 %v719, %v647
  %v752 = vadd.f32 %v720, %v650
  %v753 = vadd.f32 %v721, %v655
  %v754 = vadd.f32 %v722, %v658
  %v755 = vadd.f32 %v723, %v663
  %v756 = vadd.f32 %v724, %v666
  %v757 = vadd.f32 %v725, %v671
  %v758 = vadd.f32 %v726, %v674
  %v759 = vadd.f32 %v727, %v679
  %v760 = vadd.f32 %v728, %v682
  %v761 = vadd.f32 %v729, %v687
  %v762 = vadd.f32 %v730, %v690
  %v763 = vadd.f32 %v731, %v695
  %v764 = vadd.f32 %v732, %v698
  %765 = vst.msk [vmem:[#allocation2] sm:$0xff] %vm342, %v733
  %766 = vst.msk [vmem:[#allocation2 + $0x8] sm:$0xff] %vm342, %v734
  %767 = vst.msk [vmem:[#allocation2 + $0x10] sm:$0xff] %vm342, %v735
  %768 = vst.msk [vmem:[#allocation2 + $0x18] sm:$0xff] %vm342, %v736
  %769 = vst.msk [vmem:[#allocation2 + $0x20] sm:$0xff] %vm342, %v737
  %770 = vst.msk [vmem:[#allocation2 + $0x28] sm:$0xff] %vm342, %v738
  %771 = vst.msk [vmem:[#allocation2 + $0x30] sm:$0xff] %vm342, %v739
  %772 = vst.msk [vmem:[#allocation2 + $0x38] sm:$0xff] %vm342, %v740
  %773 = vst.msk [vmem:[#allocation2 + $0x40] sm:$0xff] %vm342, %v741
  %774 = vst.msk [vmem:[#allocation2 + $0x48] sm:$0xff] %vm342, %v742
  %775 = vst.msk [vmem:[#allocation2 + $0x50] sm:$0xff] %vm342, %v743
  %776 = vst.msk [vmem:[#allocation2 + $0x58] sm:$0xff] %vm342, %v744
  %777 = vst.msk [vmem:[#allocation2 + $0x60] sm:$0xff] %vm342, %v745
  %778 = vst.msk [vmem:[#allocation2 + $0x68] sm:$0xff] %vm342, %v746
  %779 = vst.msk [vmem:[#allocation2 + $0x70] sm:$0xff] %vm342, %v747
  %780 = vst.msk [vmem:[#allocation2 + $0x78] sm:$0xff] %vm342, %v748
  %781 = vst.msk [vmem:[#allocation2 + $0x80] sm:$0xff] %vm342, %v749
  %782 = vst.msk [vmem:[#allocation2 + $0x88] sm:$0xff] %vm342, %v750
  %783 = vst.msk [vmem:[#allocation2 + $0x90] sm:$0xff] %vm342, %v751
  %784 = vst.msk [vmem:[#allocation2 + $0x98] sm:$0xff] %vm342, %v752
  %785 = vst.msk [vmem:[#allocation2 + $0xa0] sm:$0xff] %vm342, %v753
  %786 = vst.msk [vmem:[#allocation2 + $0xa8] sm:$0xff] %vm342, %v754
  %787 = vst.msk [vmem:[#allocation2 + $0xb0] sm:$0xff] %vm342, %v755
  %788 = vst.msk [vmem:[#allocation2 + $0xb8] sm:$0xff] %vm342, %v756
  %789 = vst.msk [vmem:[#allocation2 + $0xc0] sm:$0xff] %vm342, %v757
  %790 = vst.msk [vmem:[#allocation2 + $0xc8] sm:$0xff] %vm342, %v758
  %791 = vst.msk [vmem:[#allocation2 + $0xd0] sm:$0xff] %vm342, %v759
  %792 = vst.msk [vmem:[#allocation2 + $0xd8] sm:$0xff] %vm342, %v760
  %793 = vst.msk [vmem:[#allocation2 + $0xe0] sm:$0xff] %vm342, %v761
  %794 = vst.msk [vmem:[#allocation2 + $0xe8] sm:$0xff] %vm342, %v762
  %795 = vst.msk [vmem:[#allocation2 + $0xf0] sm:$0xff] %vm342, %v763
  %796 = vst.msk [vmem:[#allocation2 + $0xf8] sm:$0xff] %vm342, %v764
  %v797 = vld [vmem:[%s0] sm:$0xe]
  %v798 = vld [vmem:[%s0 + $0x4] sm:$0xf]
  %v799 = vld [vmem:[%s0 + $0x8] sm:$0xf]
  %v800 = vld [vmem:[%s0 + $0xc] sm:$0xf]
  %v801 = vld [vmem:[%s0 + $0x10] sm:$0xf]
  %v802 = vld [vmem:[%s0 + $0x14] sm:$0xf]
  %v803 = vld [vmem:[%s0 + $0x18] sm:$0xf]
  %v804 = vld [vmem:[%s0 + $0x1c] sm:$0xf]
  %v805 = vld [vmem:[%s0 + $0x20] sm:$0xf]
  %v806 = vld [vmem:[%s0 + $0x24] sm:$0xf]
  %v807 = vld [vmem:[%s0 + $0x28] sm:$0xf]
  %v808 = vld [vmem:[%s0 + $0x2c] sm:$0xf]
  %v809 = vld [vmem:[%s0 + $0x30] sm:$0xf]
  %v810 = vld [vmem:[%s0 + $0x34] sm:$0xf]
  %v811 = vld [vmem:[%s0 + $0x38] sm:$0xf]
  %v812 = vld [vmem:[%s0 + $0x3c] sm:$0xf]
  %v813 = vld [vmem:[%s0 + $0x40] sm:$0xf]
  %v814 = vld [vmem:[%s0 + $0x44] sm:$0xf]
  %v815 = vld [vmem:[%s0 + $0x48] sm:$0xf]
  %v816 = vld [vmem:[%s0 + $0x4c] sm:$0xf]
  %v817 = vld [vmem:[%s0 + $0x50] sm:$0xf]
  %v818 = vld [vmem:[%s0 + $0x54] sm:$0xf]
  %v819 = vld [vmem:[%s0 + $0x58] sm:$0xf]
  %v820 = vld [vmem:[%s0 + $0x5c] sm:$0xf]
  %v821 = vld [vmem:[%s0 + $0x60] sm:$0xf]
  %v822 = vld [vmem:[%s0 + $0x64] sm:$0xf]
  %v823 = vld [vmem:[%s0 + $0x68] sm:$0xf]
  %v824 = vld [vmem:[%s0 + $0x6c] sm:$0xf]
  %v825 = vld [vmem:[%s0 + $0x70] sm:$0xf]
  %v826 = vld [vmem:[%s0 + $0x74] sm:$0xf]
  %v827 = vld [vmem:[%s0 + $0x78] sm:$0xf]
  %v828 = vld [vmem:[%s0 + $0x7c] sm:$0xf]
  %v829 = vld [vmem:[%s0 + $0x80] sm:$0x1]
  %s830 = scalar_lea.vmem %s1, 4
  %v831 = vld [vmem:[%s830] sm:$0x3]
  %v865 = vunpack.c.l.b16 %v797
  %v866 = vunpack.c.l.b16 %v798
  %v867 = vunpack.c.l.b16 %v799
  %v868 = vunpack.c.l.b16 %v800
  %v869 = vunpack.c.l.b16 %v801
  %v870 = vunpack.c.l.b16 %v802
  %v871 = vunpack.c.l.b16 %v803
  %v872 = vunpack.c.l.b16 %v804
  %v873 = vunpack.c.l.b16 %v805
  %v874 = vunpack.c.l.b16 %v806
  %v875 = vunpack.c.l.b16 %v807
  %v876 = vunpack.c.l.b16 %v808
  %v877 = vunpack.c.l.b16 %v809
  %v878 = vunpack.c.l.b16 %v810
  %v879 = vunpack.c.l.b16 %v811
  %v880 = vunpack.c.l.b16 %v812
  %v881 = vunpack.c.l.b16 %v813
  %v882 = vunpack.c.l.b16 %v814
  %v883 = vunpack.c.l.b16 %v815
  %v884 = vunpack.c.l.b16 %v816
  %v885 = vunpack.c.l.b16 %v817
  %v886 = vunpack.c.l.b16 %v818
  %v887 = vunpack.c.l.b16 %v819
  %v888 = vunpack.c.l.b16 %v820
  %v889 = vunpack.c.l.b16 %v821
  %v890 = vunpack.c.l.b16 %v822
  %v891 = vunpack.c.l.b16 %v823
  %v892 = vunpack.c.l.b16 %v824
  %v893 = vunpack.c.l.b16 %v825
  %v894 = vunpack.c.l.b16 %v826
  %v895 = vunpack.c.l.b16 %v827
  %v896 = vunpack.c.l.b16 %v828
  %v897 = vunpack.c.l.b16 %v829
  %v898 = vpack.c.b16 %v866, %v865
  %v899 = vpack.c.b16 %v868, %v867
  %v900 = vpack.c.b16 %v870, %v869
  %v901 = vpack.c.b16 %v872, %v871
  %v902 = vpack.c.b16 %v874, %v873
  %v903 = vpack.c.b16 %v876, %v875
  %v904 = vpack.c.b16 %v878, %v877
  %v905 = vpack.c.b16 %v880, %v879
  %v906 = vpack.c.b16 %v882, %v881
  %v907 = vpack.c.b16 %v884, %v883
  %v908 = vpack.c.b16 %v886, %v885
  %v909 = vpack.c.b16 %v888, %v887
  %v910 = vpack.c.b16 %v890, %v889
  %v911 = vpack.c.b16 %v892, %v891
  %v912 = vpack.c.b16 %v894, %v893
  %v913 = vpack.c.b16 %v896, %v895
  %v914 = vpack.c.b16 %v897, %v897
  %vm915 = vcmask 1046528
  %v916 = vrot.slane %v898, 1
  %v917 = vrot.slane %v899, 1
  %v918 = vsel %vm915, %v916, %v917
  %v919 = vrot.slane %v900, 1
  %v920 = vsel %vm915, %v917, %v919
  %v921 = vrot.slane %v901, 1
  %v922 = vsel %vm915, %v919, %v921
  %v923 = vrot.slane %v902, 1
  %v924 = vsel %vm915, %v921, %v923
  %v925 = vrot.slane %v903, 1
  %v926 = vsel %vm915, %v923, %v925
  %v927 = vrot.slane %v904, 1
  %v928 = vsel %vm915, %v925, %v927
  %v929 = vrot.slane %v905, 1
  %v930 = vsel %vm915, %v927, %v929
  %v931 = vrot.slane %v906, 1
  %v932 = vsel %vm915, %v929, %v931
  %v933 = vrot.slane %v907, 1
  %v934 = vsel %vm915, %v931, %v933
  %v935 = vrot.slane %v908, 1
  %v936 = vsel %vm915, %v933, %v935
  %v937 = vrot.slane %v909, 1
  %v938 = vsel %vm915, %v935, %v937
  %v939 = vrot.slane %v910, 1
  %v940 = vsel %vm915, %v937, %v939
  %v941 = vrot.slane %v911, 1
  %v942 = vsel %vm915, %v939, %v941
  %v943 = vrot.slane %v912, 1
  %v944 = vsel %vm915, %v941, %v943
  %v945 = vrot.slane %v913, 1
  %v946 = vsel %vm915, %v943, %v945
  %v947 = vrot.slane %v914, 1
  %v948 = vsel %vm915, %v945, %v947
  %v950 = vsel %vm128, %v918, 0
  %v953 = vsel %vm128, %v920, 0
  %v956 = vsel %vm128, %v922, 0
  %v959 = vsel %vm128, %v924, 0
  %v962 = vsel %vm128, %v926, 0
  %v965 = vsel %vm128, %v928, 0
  %v968 = vsel %vm128, %v930, 0
  %v971 = vsel %vm128, %v932, 0
  %v974 = vsel %vm128, %v934, 0
  %v977 = vsel %vm128, %v936, 0
  %v980 = vsel %vm128, %v938, 0
  %v983 = vsel %vm128, %v940, 0
  %v986 = vsel %vm128, %v942, 0
  %v989 = vsel %vm128, %v944, 0
  %v992 = vsel %vm128, %v946, 0
  %v995 = vsel %vm128, %v948, 0
  %v998 = vsel %vm177, %v831, 0
  %1000 = vmatprep.subr.bf16.mxu0 0
  %1001 = vmatpush1.bf16.msra.mxu0 0
  %1002 = vmatprep.subr.bf16.mxu0 0
  %1003 = vmatpush1.bf16.msra.mxu0 0
  %1004 = vmatprep.subr.bf16.mxu0 0
  %1005 = vmatpush1.bf16.msra.mxu0 0
  %1006 = vmatprep.subr.bf16.mxu0 0
  %1007 = vmatpush1.bf16.msra.mxu0 0
  %1008 = vmatprep.subr.bf16.mxu0 0
  %1009 = vmatpush1.bf16.msra.mxu0 0
  %1010 = vmatprep.subr.bf16.mxu0 0
  %1011 = vmatpush1.bf16.msra.mxu0 0
  %1012 = vmatprep.subr.bf16.mxu0 0
  %1013 = vmatpush1.bf16.msra.mxu0 0
  %1014 = vmatprep.subr.bf16.mxu0 0
  %1015 = vmatpush1.bf16.msra.mxu0 %v998
  %1016 = vmatprep.subr.bf16.mxu0 0
  %1017 = vmatpush2.bf16.msra.mxu0 0
  %1018 = vmatprep.subr.bf16.mxu0 0
  %1019 = vmatpush2.bf16.msra.mxu0 0
  %1020 = vmatprep.subr.bf16.mxu0 0
  %1021 = vmatpush2.bf16.msra.mxu0 0
  %1022 = vmatprep.subr.bf16.mxu0 0
  %1023 = vmatpush2.bf16.msra.mxu0 0
  %1024 = vmatprep.subr.bf16.mxu0 0
  %1025 = vmatpush2.bf16.msra.mxu0 0
  %1026 = vmatprep.subr.bf16.mxu0 0
  %1027 = vmatpush2.bf16.msra.mxu0 0
  %1028 = vmatprep.subr.bf16.mxu0 0
  %1029 = vmatpush2.bf16.msra.mxu0 0
  %1030 = vmatprep.subr.bf16.mxu0 0
  %1031 = vmatpush2.bf16.msra.mxu0 0
  %1032 = vmatprep.mubr.bf16.mxu0 0
  %1033 = vmatmul.mubr.bf16.gmra.mxu0 %v950
  %v1034 = vpop.f32.mrf.mxu0
  %v1035 = vadd.f32 0.0, %v1034
  %v1036 = vpop.f32.mrf.mxu0
  %v1037 = vpop.f32.mrf.mxu0
  %v1038 = vadd.f32 0.0, %v1037
  %v1039 = vpop.f32.mrf.mxu0
  %1040 = vmatprep.mubr.bf16.mxu0 0
  %1041 = vmatmul.mubr.bf16.gmra.mxu0 %v953
  %v1042 = vpop.f32.mrf.mxu0
  %v1043 = vadd.f32 0.0, %v1042
  %v1044 = vpop.f32.mrf.mxu0
  %v1045 = vpop.f32.mrf.mxu0
  %v1046 = vadd.f32 0.0, %v1045
  %v1047 = vpop.f32.mrf.mxu0
  %1048 = vmatprep.mubr.bf16.mxu0 0
  %1049 = vmatmul.mubr.bf16.gmra.mxu0 %v956
  %v1050 = vpop.f32.mrf.mxu0
  %v1051 = vadd.f32 0.0, %v1050
  %v1052 = vpop.f32.mrf.mxu0
  %v1053 = vpop.f32.mrf.mxu0
  %v1054 = vadd.f32 0.0, %v1053
  %v1055 = vpop.f32.mrf.mxu0
  %1056 = vmatprep.mubr.bf16.mxu0 0
  %1057 = vmatmul.mubr.bf16.gmra.mxu0 %v959
  %v1058 = vpop.f32.mrf.mxu0
  %v1059 = vadd.f32 0.0, %v1058
  %v1060 = vpop.f32.mrf.mxu0
  %v1061 = vpop.f32.mrf.mxu0
  %v1062 = vadd.f32 0.0, %v1061
  %v1063 = vpop.f32.mrf.mxu0
  %1064 = vmatprep.mubr.bf16.mxu0 0
  %1065 = vmatmul.mubr.bf16.gmra.mxu0 %v962
  %v1066 = vpop.f32.mrf.mxu0
  %v1067 = vadd.f32 0.0, %v1066
  %v1068 = vpop.f32.mrf.mxu0
  %v1069 = vpop.f32.mrf.mxu0
  %v1070 = vadd.f32 0.0, %v1069
  %v1071 = vpop.f32.mrf.mxu0
  %1072 = vmatprep.mubr.bf16.mxu0 0
  %1073 = vmatmul.mubr.bf16.gmra.mxu0 %v965
  %v1074 = vpop.f32.mrf.mxu0
  %v1075 = vadd.f32 0.0, %v1074
  %v1076 = vpop.f32.mrf.mxu0
  %v1077 = vpop.f32.mrf.mxu0
  %v1078 = vadd.f32 0.0, %v1077
  %v1079 = vpop.f32.mrf.mxu0
  %1080 = vmatprep.mubr.bf16.mxu0 0
  %1081 = vmatmul.mubr.bf16.gmra.mxu0 %v968
  %v1082 = vpop.f32.mrf.mxu0
  %v1083 = vadd.f32 0.0, %v1082
  %v1084 = vpop.f32.mrf.mxu0
  %v1085 = vpop.f32.mrf.mxu0
  %v1086 = vadd.f32 0.0, %v1085
  %v1087 = vpop.f32.mrf.mxu0
  %1088 = vmatprep.mubr.bf16.mxu0 0
  %1089 = vmatmul.mubr.bf16.gmra.mxu0 %v971
  %v1090 = vpop.f32.mrf.mxu0
  %v1091 = vadd.f32 0.0, %v1090
  %v1092 = vpop.f32.mrf.mxu0
  %v1093 = vpop.f32.mrf.mxu0
  %v1094 = vadd.f32 0.0, %v1093
  %v1095 = vpop.f32.mrf.mxu0
  %1096 = vmatprep.mubr.bf16.mxu0 0
  %1097 = vmatmul.mubr.bf16.gmra.mxu0 %v974
  %v1098 = vpop.f32.mrf.mxu0
  %v1099 = vadd.f32 0.0, %v1098
  %v1100 = vpop.f32.mrf.mxu0
  %v1101 = vpop.f32.mrf.mxu0
  %v1102 = vadd.f32 0.0, %v1101
  %v1103 = vpop.f32.mrf.mxu0
  %1104 = vmatprep.mubr.bf16.mxu0 0
  %1105 = vmatmul.mubr.bf16.gmra.mxu0 %v977
  %v1106 = vpop.f32.mrf.mxu0
  %v1107 = vadd.f32 0.0, %v1106
  %v1108 = vpop.f32.mrf.mxu0
  %v1109 = vpop.f32.mrf.mxu0
  %v1110 = vadd.f32 0.0, %v1109
  %v1111 = vpop.f32.mrf.mxu0
  %1112 = vmatprep.mubr.bf16.mxu0 0
  %1113 = vmatmul.mubr.bf16.gmra.mxu0 %v980
  %v1114 = vpop.f32.mrf.mxu0
  %v1115 = vadd.f32 0.0, %v1114
  %v1116 = vpop.f32.mrf.mxu0
  %v1117 = vpop.f32.mrf.mxu0
  %v1118 = vadd.f32 0.0, %v1117
  %v1119 = vpop.f32.mrf.mxu0
  %1120 = vmatprep.mubr.bf16.mxu0 0
  %1121 = vmatmul.mubr.bf16.gmra.mxu0 %v983
  %v1122 = vpop.f32.mrf.mxu0
  %v1123 = vadd.f32 0.0, %v1122
  %v1124 = vpop.f32.mrf.mxu0
  %v1125 = vpop.f32.mrf.mxu0
  %v1126 = vadd.f32 0.0, %v1125
  %v1127 = vpop.f32.mrf.mxu0
  %1128 = vmatprep.mubr.bf16.mxu0 0
  %1129 = vmatmul.mubr.bf16.gmra.mxu0 %v986
  %v1130 = vpop.f32.mrf.mxu0
  %v1131 = vadd.f32 0.0, %v1130
  %v1132 = vpop.f32.mrf.mxu0
  %v1133 = vpop.f32.mrf.mxu0
  %v1134 = vadd.f32 0.0, %v1133
  %v1135 = vpop.f32.mrf.mxu0
  %1136 = vmatprep.mubr.bf16.mxu0 0
  %1137 = vmatmul.mubr.bf16.gmra.mxu0 %v989
  %v1138 = vpop.f32.mrf.mxu0
  %v1139 = vadd.f32 0.0, %v1138
  %v1140 = vpop.f32.mrf.mxu0
  %v1141 = vpop.f32.mrf.mxu0
  %v1142 = vadd.f32 0.0, %v1141
  %v1143 = vpop.f32.mrf.mxu0
  %1144 = vmatprep.mubr.bf16.mxu0 0
  %1145 = vmatmul.mubr.bf16.gmra.mxu0 %v992
  %v1146 = vpop.f32.mrf.mxu0
  %v1147 = vadd.f32 0.0, %v1146
  %v1148 = vpop.f32.mrf.mxu0
  %v1149 = vpop.f32.mrf.mxu0
  %v1150 = vadd.f32 0.0, %v1149
  %v1151 = vpop.f32.mrf.mxu0
  %1152 = vmatprep.mubr.bf16.mxu0 0
  %1153 = vmatmul.mubr.bf16.gmra.mxu0 %v995
  %v1154 = vpop.f32.mrf.mxu0
  %v1155 = vadd.f32 0.0, %v1154
  %v1156 = vpop.f32.mrf.mxu0
  %v1157 = vpop.f32.mrf.mxu0
  %v1158 = vadd.f32 0.0, %v1157
  %v1159 = vpop.f32.mrf.mxu0
  %1160 = vdwg.mxu0
  %v1161 = vld [vmem:[#allocation2] sm:$0xff]
  %v1162 = vld [vmem:[#allocation2 + $0x8] sm:$0xff]
  %v1163 = vld [vmem:[#allocation2 + $0x10] sm:$0xff]
  %v1164 = vld [vmem:[#allocation2 + $0x18] sm:$0xff]
  %v1165 = vld [vmem:[#allocation2 + $0x20] sm:$0xff]
  %v1166 = vld [vmem:[#allocation2 + $0x28] sm:$0xff]
  %v1167 = vld [vmem:[#allocation2 + $0x30] sm:$0xff]
  %v1168 = vld [vmem:[#allocation2 + $0x38] sm:$0xff]
  %v1169 = vld [vmem:[#allocation2 + $0x40] sm:$0xff]
  %v1170 = vld [vmem:[#allocation2 + $0x48] sm:$0xff]
  %v1171 = vld [vmem:[#allocation2 + $0x50] sm:$0xff]
  %v1172 = vld [vmem:[#allocation2 + $0x58] sm:$0xff]
  %v1173 = vld [vmem:[#allocation2 + $0x60] sm:$0xff]
  %v1174 = vld [vmem:[#allocation2 + $0x68] sm:$0xff]
  %v1175 = vld [vmem:[#allocation2 + $0x70] sm:$0xff]
  %v1176 = vld [vmem:[#allocation2 + $0x78] sm:$0xff]
  %v1177 = vld [vmem:[#allocation2 + $0x80] sm:$0xff]
  %v1178 = vld [vmem:[#allocation2 + $0x88] sm:$0xff]
  %v1179 = vld [vmem:[#allocation2 + $0x90] sm:$0xff]
  %v1180 = vld [vmem:[#allocation2 + $0x98] sm:$0xff]
  %v1181 = vld [vmem:[#allocation2 + $0xa0] sm:$0xff]
  %v1182 = vld [vmem:[#allocation2 + $0xa8] sm:$0xff]
  %v1183 = vld [vmem:[#allocation2 + $0xb0] sm:$0xff]
  %v1184 = vld [vmem:[#allocation2 + $0xb8] sm:$0xff]
  %v1185 = vld [vmem:[#allocation2 + $0xc0] sm:$0xff]
  %v1186 = vld [vmem:[#allocation2 + $0xc8] sm:$0xff]
  %v1187 = vld [vmem:[#allocation2 + $0xd0] sm:$0xff]
  %v1188 = vld [vmem:[#allocation2 + $0xd8] sm:$0xff]
  %v1189 = vld [vmem:[#allocation2 + $0xe0] sm:$0xff]
  %v1190 = vld [vmem:[#allocation2 + $0xe8] sm:$0xff]
  %v1191 = vld [vmem:[#allocation2 + $0xf0] sm:$0xff]
  %v1192 = vld [vmem:[#allocation2 + $0xf8] sm:$0xff]
  %v1193 = vadd.f32 %v1161, %v1035
  %v1194 = vadd.f32 %v1162, %v1038
  %v1195 = vadd.f32 %v1163, %v1043
  %v1196 = vadd.f32 %v1164, %v1046
  %v1197 = vadd.f32 %v1165, %v1051
  %v1198 = vadd.f32 %v1166, %v1054
  %v1199 = vadd.f32 %v1167, %v1059
  %v1200 = vadd.f32 %v1168, %v1062
  %v1201 = vadd.f32 %v1169, %v1067
  %v1202 = vadd.f32 %v1170, %v1070
  %v1203 = vadd.f32 %v1171, %v1075
  %v1204 = vadd.f32 %v1172, %v1078
  %v1205 = vadd.f32 %v1173, %v1083
  %v1206 = vadd.f32 %v1174, %v1086
  %v1207 = vadd.f32 %v1175, %v1091
  %v1208 = vadd.f32 %v1176, %v1094
  %v1209 = vadd.f32 %v1177, %v1099
  %v1210 = vadd.f32 %v1178, %v1102
  %v1211 = vadd.f32 %v1179, %v1107
  %v1212 = vadd.f32 %v1180, %v1110
  %v1213 = vadd.f32 %v1181, %v1115
  %v1214 = vadd.f32 %v1182, %v1118
  %v1215 = vadd.f32 %v1183, %v1123
  %v1216 = vadd.f32 %v1184, %v1126
  %v1217 = vadd.f32 %v1185, %v1131
  %v1218 = vadd.f32 %v1186, %v1134
  %v1219 = vadd.f32 %v1187, %v1139
  %v1220 = vadd.f32 %v1188, %v1142
  %v1221 = vadd.f32 %v1189, %v1147
  %v1222 = vadd.f32 %v1190, %v1150
  %v1223 = vadd.f32 %v1191, %v1155
  %v1224 = vadd.f32 %v1192, %v1158
  %1225 = vst.msk [vmem:[#allocation2] sm:$0xff] %vm342, %v1193
  %1226 = vst.msk [vmem:[#allocation2 + $0x8] sm:$0xff] %vm342, %v1194
  %1227 = vst.msk [vmem:[#allocation2 + $0x10] sm:$0xff] %vm342, %v1195
  %1228 = vst.msk [vmem:[#allocation2 + $0x18] sm:$0xff] %vm342, %v1196
  %1229 = vst.msk [vmem:[#allocation2 + $0x20] sm:$0xff] %vm342, %v1197
  %1230 = vst.msk [vmem:[#allocation2 + $0x28] sm:$0xff] %vm342, %v1198
  %1231 = vst.msk [vmem:[#allocation2 + $0x30] sm:$0xff] %vm342, %v1199
  %1232 = vst.msk [vmem:[#allocation2 + $0x38] sm:$0xff] %vm342, %v1200
  %1233 = vst.msk [vmem:[#allocation2 + $0x40] sm:$0xff] %vm342, %v1201
  %1234 = vst.msk [vmem:[#allocation2 + $0x48] sm:$0xff] %vm342, %v1202
  %1235 = vst.msk [vmem:[#allocation2 + $0x50] sm:$0xff] %vm342, %v1203
  %1236 = vst.msk [vmem:[#allocation2 + $0x58] sm:$0xff] %vm342, %v1204
  %1237 = vst.msk [vmem:[#allocation2 + $0x60] sm:$0xff] %vm342, %v1205
  %1238 = vst.msk [vmem:[#allocation2 + $0x68] sm:$0xff] %vm342, %v1206
  %1239 = vst.msk [vmem:[#allocation2 + $0x70] sm:$0xff] %vm342, %v1207
  %1240 = vst.msk [vmem:[#allocation2 + $0x78] sm:$0xff] %vm342, %v1208
  %1241 = vst.msk [vmem:[#allocation2 + $0x80] sm:$0xff] %vm342, %v1209
  %1242 = vst.msk [vmem:[#allocation2 + $0x88] sm:$0xff] %vm342, %v1210
  %1243 = vst.msk [vmem:[#allocation2 + $0x90] sm:$0xff] %vm342, %v1211
  %1244 = vst.msk [vmem:[#allocation2 + $0x98] sm:$0xff] %vm342, %v1212
  %1245 = vst.msk [vmem:[#allocation2 + $0xa0] sm:$0xff] %vm342, %v1213
  %1246 = vst.msk [vmem:[#allocation2 + $0xa8] sm:$0xff] %vm342, %v1214
  %1247 = vst.msk [vmem:[#allocation2 + $0xb0] sm:$0xff] %vm342, %v1215
  %1248 = vst.msk [vmem:[#allocation2 + $0xb8] sm:$0xff] %vm342, %v1216
  %1249 = vst.msk [vmem:[#allocation2 + $0xc0] sm:$0xff] %vm342, %v1217
  %1250 = vst.msk [vmem:[#allocation2 + $0xc8] sm:$0xff] %vm342, %v1218
  %1251 = vst.msk [vmem:[#allocation2 + $0xd0] sm:$0xff] %vm342, %v1219
  %1252 = vst.msk [vmem:[#allocation2 + $0xd8] sm:$0xff] %vm342, %v1220
  %1253 = vst.msk [vmem:[#allocation2 + $0xe0] sm:$0xff] %vm342, %v1221
  %1254 = vst.msk [vmem:[#allocation2 + $0xe8] sm:$0xff] %vm342, %v1222
  %1255 = vst.msk [vmem:[#allocation2 + $0xf0] sm:$0xff] %vm342, %v1223
  %1256 = vst.msk [vmem:[#allocation2 + $0xf8] sm:$0xff] %vm342, %v1224
  %v1257 = vld [vmem:[%s0 + $0x120] sm:$0xf]
  %v1258 = vld [vmem:[%s0 + $0x124] sm:$0xf]
  %v1259 = vld [vmem:[%s0 + $0x128] sm:$0xf]
  %v1260 = vld [vmem:[%s0 + $0x12c] sm:$0xf]
  %v1261 = vld [vmem:[%s0 + $0x130] sm:$0xf]
  %v1262 = vld [vmem:[%s0 + $0x134] sm:$0xf]
  %v1263 = vld [vmem:[%s0 + $0x138] sm:$0xf]
  %v1264 = vld [vmem:[%s0 + $0x13c] sm:$0xf]
  %v1265 = vld [vmem:[%s0 + $0x140] sm:$0xf]
  %v1266 = vld [vmem:[%s0 + $0x144] sm:$0xf]
  %v1267 = vld [vmem:[%s0 + $0x148] sm:$0xf]
  %v1268 = vld [vmem:[%s0 + $0x14c] sm:$0xf]
  %v1269 = vld [vmem:[%s0 + $0x150] sm:$0xf]
  %v1270 = vld [vmem:[%s0 + $0x154] sm:$0xf]
  %v1271 = vld [vmem:[%s0 + $0x158] sm:$0xf]
  %v1272 = vld [vmem:[%s0 + $0x15c] sm:$0xf]
  %v1273 = vld [vmem:[%s0 + $0x160] sm:$0xf]
  %v1274 = vld [vmem:[%s0 + $0x164] sm:$0xf]
  %v1275 = vld [vmem:[%s0 + $0x168] sm:$0xf]
  %v1276 = vld [vmem:[%s0 + $0x16c] sm:$0xf]
  %v1277 = vld [vmem:[%s0 + $0x170] sm:$0xf]
  %v1278 = vld [vmem:[%s0 + $0x174] sm:$0xf]
  %v1279 = vld [vmem:[%s0 + $0x178] sm:$0xf]
  %v1280 = vld [vmem:[%s0 + $0x17c] sm:$0xf]
  %v1281 = vld [vmem:[%s0 + $0x180] sm:$0xf]
  %v1282 = vld [vmem:[%s0 + $0x184] sm:$0xf]
  %v1283 = vld [vmem:[%s0 + $0x188] sm:$0xf]
  %v1284 = vld [vmem:[%s0 + $0x18c] sm:$0xf]
  %v1285 = vld [vmem:[%s0 + $0x190] sm:$0xf]
  %v1286 = vld [vmem:[%s0 + $0x194] sm:$0xf]
  %v1287 = vld [vmem:[%s0 + $0x198] sm:$0xf]
  %v1288 = vld [vmem:[%s0 + $0x19c] sm:$0xf]
  %s1289 = scalar_lea.vmem %s1, 6
  %v1290 = vld [vmem:[%s1289] sm:$0x3]
  %v1323 = vunpack.c.l.b16 %v1257
  %v1324 = vunpack.c.l.b16 %v1258
  %v1325 = vunpack.c.l.b16 %v1259
  %v1326 = vunpack.c.l.b16 %v1260
  %v1327 = vunpack.c.l.b16 %v1261
  %v1328 = vunpack.c.l.b16 %v1262
  %v1329 = vunpack.c.l.b16 %v1263
  %v1330 = vunpack.c.l.b16 %v1264
  %v1331 = vunpack.c.l.b16 %v1265
  %v1332 = vunpack.c.l.b16 %v1266
  %v1333 = vunpack.c.l.b16 %v1267
  %v1334 = vunpack.c.l.b16 %v1268
  %v1335 = vunpack.c.l.b16 %v1269
  %v1336 = vunpack.c.l.b16 %v1270
  %v1337 = vunpack.c.l.b16 %v1271
  %v1338 = vunpack.c.l.b16 %v1272
  %v1339 = vunpack.c.l.b16 %v1273
  %v1340 = vunpack.c.l.b16 %v1274
  %v1341 = vunpack.c.l.b16 %v1275
  %v1342 = vunpack.c.l.b16 %v1276
  %v1343 = vunpack.c.l.b16 %v1277
  %v1344 = vunpack.c.l.b16 %v1278
  %v1345 = vunpack.c.l.b16 %v1279
  %v1346 = vunpack.c.l.b16 %v1280
  %v1347 = vunpack.c.l.b16 %v1281
  %v1348 = vunpack.c.l.b16 %v1282
  %v1349 = vunpack.c.l.b16 %v1283
  %v1350 = vunpack.c.l.b16 %v1284
  %v1351 = vunpack.c.l.b16 %v1285
  %v1352 = vunpack.c.l.b16 %v1286
  %v1353 = vunpack.c.l.b16 %v1287
  %v1354 = vunpack.c.l.b16 %v1288
  %v1355 = vpack.c.b16 %v1324, %v1323
  %v1356 = vpack.c.b16 %v1326, %v1325
  %v1357 = vpack.c.b16 %v1328, %v1327
  %v1358 = vpack.c.b16 %v1330, %v1329
  %v1359 = vpack.c.b16 %v1332, %v1331
  %v1360 = vpack.c.b16 %v1334, %v1333
  %v1361 = vpack.c.b16 %v1336, %v1335
  %v1362 = vpack.c.b16 %v1338, %v1337
  %v1363 = vpack.c.b16 %v1340, %v1339
  %v1364 = vpack.c.b16 %v1342, %v1341
  %v1365 = vpack.c.b16 %v1344, %v1343
  %v1366 = vpack.c.b16 %v1346, %v1345
  %v1367 = vpack.c.b16 %v1348, %v1347
  %v1368 = vpack.c.b16 %v1350, %v1349
  %v1369 = vpack.c.b16 %v1352, %v1351
  %v1370 = vpack.c.b16 %v1354, %v1353
  %v1372 = vsel %vm128, %v1355, 0
  %v1375 = vsel %vm128, %v1356, 0
  %v1378 = vsel %vm128, %v1357, 0
  %v1381 = vsel %vm128, %v1358, 0
  %v1384 = vsel %vm128, %v1359, 0
  %v1387 = vsel %vm128, %v1360, 0
  %v1390 = vsel %vm128, %v1361, 0
  %v1393 = vsel %vm128, %v1362, 0
  %v1396 = vsel %vm128, %v1363, 0
  %v1399 = vsel %vm128, %v1364, 0
  %v1402 = vsel %vm128, %v1365, 0
  %v1405 = vsel %vm128, %v1366, 0
  %v1408 = vsel %vm128, %v1367, 0
  %v1411 = vsel %vm128, %v1368, 0
  %v1414 = vsel %vm128, %v1369, 0
  %v1417 = vsel %vm128, %v1370, 0
  %v1420 = vsel %vm177, %v1290, 0
  %1422 = vmatprep.subr.bf16.mxu0 0
  %1423 = vmatpush1.bf16.msra.mxu0 0
  %1424 = vmatprep.subr.bf16.mxu0 0
  %1425 = vmatpush1.bf16.msra.mxu0 0
  %1426 = vmatprep.subr.bf16.mxu0 0
  %1427 = vmatpush1.bf16.msra.mxu0 0
  %1428 = vmatprep.subr.bf16.mxu0 0
  %1429 = vmatpush1.bf16.msra.mxu0 0
  %1430 = vmatprep.subr.bf16.mxu0 0
  %1431 = vmatpush1.bf16.msra.mxu0 0
  %1432 = vmatprep.subr.bf16.mxu0 0
  %1433 = vmatpush1.bf16.msra.mxu0 0
  %1434 = vmatprep.subr.bf16.mxu0 0
  %1435 = vmatpush1.bf16.msra.mxu0 0
  %1436 = vmatprep.subr.bf16.mxu0 0
  %1437 = vmatpush1.bf16.msra.mxu0 %v1420
  %1438 = vmatprep.subr.bf16.mxu0 0
  %1439 = vmatpush2.bf16.msra.mxu0 0
  %1440 = vmatprep.subr.bf16.mxu0 0
  %1441 = vmatpush2.bf16.msra.mxu0 0
  %1442 = vmatprep.subr.bf16.mxu0 0
  %1443 = vmatpush2.bf16.msra.mxu0 0
  %1444 = vmatprep.subr.bf16.mxu0 0
  %1445 = vmatpush2.bf16.msra.mxu0 0
  %1446 = vmatprep.subr.bf16.mxu0 0
  %1447 = vmatpush2.bf16.msra.mxu0 0
  %1448 = vmatprep.subr.bf16.mxu0 0
  %1449 = vmatpush2.bf16.msra.mxu0 0
  %1450 = vmatprep.subr.bf16.mxu0 0
  %1451 = vmatpush2.bf16.msra.mxu0 0
  %1452 = vmatprep.subr.bf16.mxu0 0
  %1453 = vmatpush2.bf16.msra.mxu0 0
  %1454 = vmatprep.mubr.bf16.mxu0 0
  %1455 = vmatmul.mubr.bf16.gmra.mxu0 %v1372
  %v1456 = vpop.f32.mrf.mxu0
  %v1457 = vadd.f32 0.0, %v1456
  %v1458 = vpop.f32.mrf.mxu0
  %v1459 = vpop.f32.mrf.mxu0
  %v1460 = vadd.f32 0.0, %v1459
  %v1461 = vpop.f32.mrf.mxu0
  %1462 = vmatprep.mubr.bf16.mxu0 0
  %1463 = vmatmul.mubr.bf16.gmra.mxu0 %v1375
  %v1464 = vpop.f32.mrf.mxu0
  %v1465 = vadd.f32 0.0, %v1464
  %v1466 = vpop.f32.mrf.mxu0
  %v1467 = vpop.f32.mrf.mxu0
  %v1468 = vadd.f32 0.0, %v1467
  %v1469 = vpop.f32.mrf.mxu0
  %1470 = vmatprep.mubr.bf16.mxu0 0
  %1471 = vmatmul.mubr.bf16.gmra.mxu0 %v1378
  %v1472 = vpop.f32.mrf.mxu0
  %v1473 = vadd.f32 0.0, %v1472
  %v1474 = vpop.f32.mrf.mxu0
  %v1475 = vpop.f32.mrf.mxu0
  %v1476 = vadd.f32 0.0, %v1475
  %v1477 = vpop.f32.mrf.mxu0
  %1478 = vmatprep.mubr.bf16.mxu0 0
  %1479 = vmatmul.mubr.bf16.gmra.mxu0 %v1381
  %v1480 = vpop.f32.mrf.mxu0
  %v1481 = vadd.f32 0.0, %v1480
  %v1482 = vpop.f32.mrf.mxu0
  %v1483 = vpop.f32.mrf.mxu0
  %v1484 = vadd.f32 0.0, %v1483
  %v1485 = vpop.f32.mrf.mxu0
  %1486 = vmatprep.mubr.bf16.mxu0 0
  %1487 = vmatmul.mubr.bf16.gmra.mxu0 %v1384
  %v1488 = vpop.f32.mrf.mxu0
  %v1489 = vadd.f32 0.0, %v1488
  %v1490 = vpop.f32.mrf.mxu0
  %v1491 = vpop.f32.mrf.mxu0
  %v1492 = vadd.f32 0.0, %v1491
  %v1493 = vpop.f32.mrf.mxu0
  %1494 = vmatprep.mubr.bf16.mxu0 0
  %1495 = vmatmul.mubr.bf16.gmra.mxu0 %v1387
  %v1496 = vpop.f32.mrf.mxu0
  %v1497 = vadd.f32 0.0, %v1496
  %v1498 = vpop.f32.mrf.mxu0
  %v1499 = vpop.f32.mrf.mxu0
  %v1500 = vadd.f32 0.0, %v1499
  %v1501 = vpop.f32.mrf.mxu0
  %1502 = vmatprep.mubr.bf16.mxu0 0
  %1503 = vmatmul.mubr.bf16.gmra.mxu0 %v1390
  %v1504 = vpop.f32.mrf.mxu0
  %v1505 = vadd.f32 0.0, %v1504
  %v1506 = vpop.f32.mrf.mxu0
  %v1507 = vpop.f32.mrf.mxu0
  %v1508 = vadd.f32 0.0, %v1507
  %v1509 = vpop.f32.mrf.mxu0
  %1510 = vmatprep.mubr.bf16.mxu0 0
  %1511 = vmatmul.mubr.bf16.gmra.mxu0 %v1393
  %v1512 = vpop.f32.mrf.mxu0
  %v1513 = vadd.f32 0.0, %v1512
  %v1514 = vpop.f32.mrf.mxu0
  %v1515 = vpop.f32.mrf.mxu0
  %v1516 = vadd.f32 0.0, %v1515
  %v1517 = vpop.f32.mrf.mxu0
  %1518 = vmatprep.mubr.bf16.mxu0 0
  %1519 = vmatmul.mubr.bf16.gmra.mxu0 %v1396
  %v1520 = vpop.f32.mrf.mxu0
  %v1521 = vadd.f32 0.0, %v1520
  %v1522 = vpop.f32.mrf.mxu0
  %v1523 = vpop.f32.mrf.mxu0
  %v1524 = vadd.f32 0.0, %v1523
  %v1525 = vpop.f32.mrf.mxu0
  %1526 = vmatprep.mubr.bf16.mxu0 0
  %1527 = vmatmul.mubr.bf16.gmra.mxu0 %v1399
  %v1528 = vpop.f32.mrf.mxu0
  %v1529 = vadd.f32 0.0, %v1528
  %v1530 = vpop.f32.mrf.mxu0
  %v1531 = vpop.f32.mrf.mxu0
  %v1532 = vadd.f32 0.0, %v1531
  %v1533 = vpop.f32.mrf.mxu0
  %1534 = vmatprep.mubr.bf16.mxu0 0
  %1535 = vmatmul.mubr.bf16.gmra.mxu0 %v1402
  %v1536 = vpop.f32.mrf.mxu0
  %v1537 = vadd.f32 0.0, %v1536
  %v1538 = vpop.f32.mrf.mxu0
  %v1539 = vpop.f32.mrf.mxu0
  %v1540 = vadd.f32 0.0, %v1539
  %v1541 = vpop.f32.mrf.mxu0
  %1542 = vmatprep.mubr.bf16.mxu0 0
  %1543 = vmatmul.mubr.bf16.gmra.mxu0 %v1405
  %v1544 = vpop.f32.mrf.mxu0
  %v1545 = vadd.f32 0.0, %v1544
  %v1546 = vpop.f32.mrf.mxu0
  %v1547 = vpop.f32.mrf.mxu0
  %v1548 = vadd.f32 0.0, %v1547
  %v1549 = vpop.f32.mrf.mxu0
  %1550 = vmatprep.mubr.bf16.mxu0 0
  %1551 = vmatmul.mubr.bf16.gmra.mxu0 %v1408
  %v1552 = vpop.f32.mrf.mxu0
  %v1553 = vadd.f32 0.0, %v1552
  %v1554 = vpop.f32.mrf.mxu0
  %v1555 = vpop.f32.mrf.mxu0
  %v1556 = vadd.f32 0.0, %v1555
  %v1557 = vpop.f32.mrf.mxu0
  %1558 = vmatprep.mubr.bf16.mxu0 0
  %1559 = vmatmul.mubr.bf16.gmra.mxu0 %v1411
  %v1560 = vpop.f32.mrf.mxu0
  %v1561 = vadd.f32 0.0, %v1560
  %v1562 = vpop.f32.mrf.mxu0
  %v1563 = vpop.f32.mrf.mxu0
  %v1564 = vadd.f32 0.0, %v1563
  %v1565 = vpop.f32.mrf.mxu0
  %1566 = vmatprep.mubr.bf16.mxu0 0
  %1567 = vmatmul.mubr.bf16.gmra.mxu0 %v1414
  %v1568 = vpop.f32.mrf.mxu0
  %v1569 = vadd.f32 0.0, %v1568
  %v1570 = vpop.f32.mrf.mxu0
  %v1571 = vpop.f32.mrf.mxu0
  %v1572 = vadd.f32 0.0, %v1571
  %v1573 = vpop.f32.mrf.mxu0
  %1574 = vmatprep.mubr.bf16.mxu0 0
  %1575 = vmatmul.mubr.bf16.gmra.mxu0 %v1417
  %v1576 = vpop.f32.mrf.mxu0
  %v1577 = vadd.f32 0.0, %v1576
  %v1578 = vpop.f32.mrf.mxu0
  %v1579 = vpop.f32.mrf.mxu0
  %v1580 = vadd.f32 0.0, %v1579
  %v1581 = vpop.f32.mrf.mxu0
  %1582 = vdwg.mxu0
  %v1583 = vld [vmem:[#allocation2] sm:$0xff]
  %v1584 = vld [vmem:[#allocation2 + $0x8] sm:$0xff]
  %v1585 = vld [vmem:[#allocation2 + $0x10] sm:$0xff]
  %v1586 = vld [vmem:[#allocation2 + $0x18] sm:$0xff]
  %v1587 = vld [vmem:[#allocation2 + $0x20] sm:$0xff]
  %v1588 = vld [vmem:[#allocation2 + $0x28] sm:$0xff]
  %v1589 = vld [vmem:[#allocation2 + $0x30] sm:$0xff]
  %v1590 = vld [vmem:[#allocation2 + $0x38] sm:$0xff]
  %v1591 = vld [vmem:[#allocation2 + $0x40] sm:$0xff]
  %v1592 = vld [vmem:[#allocation2 + $0x48] sm:$0xff]
  %v1593 = vld [vmem:[#allocation2 + $0x50] sm:$0xff]
  %v1594 = vld [vmem:[#allocation2 + $0x58] sm:$0xff]
  %v1595 = vld [vmem:[#allocation2 + $0x60] sm:$0xff]
  %v1596 = vld [vmem:[#allocation2 + $0x68] sm:$0xff]
  %v1597 = vld [vmem:[#allocation2 + $0x70] sm:$0xff]
  %v1598 = vld [vmem:[#allocation2 + $0x78] sm:$0xff]
  %v1599 = vld [vmem:[#allocation2 + $0x80] sm:$0xff]
  %v1600 = vld [vmem:[#allocation2 + $0x88] sm:$0xff]
  %v1601 = vld [vmem:[#allocation2 + $0x90] sm:$0xff]
  %v1602 = vld [vmem:[#allocation2 + $0x98] sm:$0xff]
  %v1603 = vld [vmem:[#allocation2 + $0xa0] sm:$0xff]
  %v1604 = vld [vmem:[#allocation2 + $0xa8] sm:$0xff]
  %v1605 = vld [vmem:[#allocation2 + $0xb0] sm:$0xff]
  %v1606 = vld [vmem:[#allocation2 + $0xb8] sm:$0xff]
  %v1607 = vld [vmem:[#allocation2 + $0xc0] sm:$0xff]
  %v1608 = vld [vmem:[#allocation2 + $0xc8] sm:$0xff]
  %v1609 = vld [vmem:[#allocation2 + $0xd0] sm:$0xff]
  %v1610 = vld [vmem:[#allocation2 + $0xd8] sm:$0xff]
  %v1611 = vld [vmem:[#allocation2 + $0xe0] sm:$0xff]
  %v1612 = vld [vmem:[#allocation2 + $0xe8] sm:$0xff]
  %v1613 = vld [vmem:[#allocation2 + $0xf0] sm:$0xff]
  %v1614 = vld [vmem:[#allocation2 + $0xf8] sm:$0xff]
  %v1615 = vadd.f32 %v1583, %v1457
  %v1616 = vadd.f32 %v1584, %v1460
  %v1617 = vadd.f32 %v1585, %v1465
  %v1618 = vadd.f32 %v1586, %v1468
  %v1619 = vadd.f32 %v1587, %v1473
  %v1620 = vadd.f32 %v1588, %v1476
  %v1621 = vadd.f32 %v1589, %v1481
  %v1622 = vadd.f32 %v1590, %v1484
  %v1623 = vadd.f32 %v1591, %v1489
  %v1624 = vadd.f32 %v1592, %v1492
  %v1625 = vadd.f32 %v1593, %v1497
  %v1626 = vadd.f32 %v1594, %v1500
  %v1627 = vadd.f32 %v1595, %v1505
  %v1628 = vadd.f32 %v1596, %v1508
  %v1629 = vadd.f32 %v1597, %v1513
  %v1630 = vadd.f32 %v1598, %v1516
  %v1631 = vadd.f32 %v1599, %v1521
  %v1632 = vadd.f32 %v1600, %v1524
  %v1633 = vadd.f32 %v1601, %v1529
  %v1634 = vadd.f32 %v1602, %v1532
  %v1635 = vadd.f32 %v1603, %v1537
  %v1636 = vadd.f32 %v1604, %v1540
  %v1637 = vadd.f32 %v1605, %v1545
  %v1638 = vadd.f32 %v1606, %v1548
  %v1639 = vadd.f32 %v1607, %v1553
  %v1640 = vadd.f32 %v1608, %v1556
  %v1641 = vadd.f32 %v1609, %v1561
  %v1642 = vadd.f32 %v1610, %v1564
  %v1643 = vadd.f32 %v1611, %v1569
  %v1644 = vadd.f32 %v1612, %v1572
  %v1645 = vadd.f32 %v1613, %v1577
  %v1646 = vadd.f32 %v1614, %v1580
  %1647 = vst.msk [vmem:[#allocation2] sm:$0xff] %vm342, %v1615
  %1648 = vst.msk [vmem:[#allocation2 + $0x8] sm:$0xff] %vm342, %v1616
  %1649 = vst.msk [vmem:[#allocation2 + $0x10] sm:$0xff] %vm342, %v1617
  %1650 = vst.msk [vmem:[#allocation2 + $0x18] sm:$0xff] %vm342, %v1618
  %1651 = vst.msk [vmem:[#allocation2 + $0x20] sm:$0xff] %vm342, %v1619
  %1652 = vst.msk [vmem:[#allocation2 + $0x28] sm:$0xff] %vm342, %v1620
  %1653 = vst.msk [vmem:[#allocation2 + $0x30] sm:$0xff] %vm342, %v1621
  %1654 = vst.msk [vmem:[#allocation2 + $0x38] sm:$0xff] %vm342, %v1622
  %1655 = vst.msk [vmem:[#allocation2 + $0x40] sm:$0xff] %vm342, %v1623
  %1656 = vst.msk [vmem:[#allocation2 + $0x48] sm:$0xff] %vm342, %v1624
  %1657 = vst.msk [vmem:[#allocation2 + $0x50] sm:$0xff] %vm342, %v1625
  %1658 = vst.msk [vmem:[#allocation2 + $0x58] sm:$0xff] %vm342, %v1626
  %1659 = vst.msk [vmem:[#allocation2 + $0x60] sm:$0xff] %vm342, %v1627
  %1660 = vst.msk [vmem:[#allocation2 + $0x68] sm:$0xff] %vm342, %v1628
  %1661 = vst.msk [vmem:[#allocation2 + $0x70] sm:$0xff] %vm342, %v1629
  %1662 = vst.msk [vmem:[#allocation2 + $0x78] sm:$0xff] %vm342, %v1630
  %1663 = vst.msk [vmem:[#allocation2 + $0x80] sm:$0xff] %vm342, %v1631
  %1664 = vst.msk [vmem:[#allocation2 + $0x88] sm:$0xff] %vm342, %v1632
  %1665 = vst.msk [vmem:[#allocation2 + $0x90] sm:$0xff] %vm342, %v1633
  %1666 = vst.msk [vmem:[#allocation2 + $0x98] sm:$0xff] %vm342, %v1634
  %1667 = vst.msk [vmem:[#allocation2 + $0xa0] sm:$0xff] %vm342, %v1635
  %1668 = vst.msk [vmem:[#allocation2 + $0xa8] sm:$0xff] %vm342, %v1636
  %1669 = vst.msk [vmem:[#allocation2 + $0xb0] sm:$0xff] %vm342, %v1637
  %1670 = vst.msk [vmem:[#allocation2 + $0xb8] sm:$0xff] %vm342, %v1638
  %1671 = vst.msk [vmem:[#allocation2 + $0xc0] sm:$0xff] %vm342, %v1639
  %1672 = vst.msk [vmem:[#allocation2 + $0xc8] sm:$0xff] %vm342, %v1640
  %1673 = vst.msk [vmem:[#allocation2 + $0xd0] sm:$0xff] %vm342, %v1641
  %1674 = vst.msk [vmem:[#allocation2 + $0xd8] sm:$0xff] %vm342, %v1642
  %1675 = vst.msk [vmem:[#allocation2 + $0xe0] sm:$0xff] %vm342, %v1643
  %1676 = vst.msk [vmem:[#allocation2 + $0xe8] sm:$0xff] %vm342, %v1644
  %1677 = vst.msk [vmem:[#allocation2 + $0xf0] sm:$0xff] %vm342, %v1645
  %1678 = vst.msk [vmem:[#allocation2 + $0xf8] sm:$0xff] %vm342, %v1646
  %v1679 = vld [vmem:[%s0 + $0x1b0] sm:$0xf]
  %v1680 = vld [vmem:[%s0 + $0x1b4] sm:$0xf]
  %v1681 = vld [vmem:[%s0 + $0x1b8] sm:$0xf]
  %v1682 = vld [vmem:[%s0 + $0x1bc] sm:$0xf]
  %v1683 = vld [vmem:[%s0 + $0x1c0] sm:$0xf]
  %v1684 = vld [vmem:[%s0 + $0x1c4] sm:$0xf]
  %v1685 = vld [vmem:[%s0 + $0x1c8] sm:$0xf]
  %v1686 = vld [vmem:[%s0 + $0x1cc] sm:$0xf]
  %v1687 = vld [vmem:[%s0 + $0x1d0] sm:$0xf]
  %v1688 = vld [vmem:[%s0 + $0x1d4] sm:$0xf]
  %v1689 = vld [vmem:[%s0 + $0x1d8] sm:$0xf]
  %v1690 = vld [vmem:[%s0 + $0x1dc] sm:$0xf]
  %v1691 = vld [vmem:[%s0 + $0x1e0] sm:$0xf]
  %v1692 = vld [vmem:[%s0 + $0x1e4] sm:$0xf]
  %v1693 = vld [vmem:[%s0 + $0x1e8] sm:$0xf]
  %v1694 = vld [vmem:[%s0 + $0x1ec] sm:$0xf]
  %v1695 = vld [vmem:[%s0 + $0x1f0] sm:$0xf]
  %v1696 = vld [vmem:[%s0 + $0x1f4] sm:$0xf]
  %v1697 = vld [vmem:[%s0 + $0x1f8] sm:$0xf]
  %v1698 = vld [vmem:[%s0 + $0x1fc] sm:$0xf]
  %v1699 = vld [vmem:[%s0 + $0x200] sm:$0xf]
  %v1700 = vld [vmem:[%s0 + $0x204] sm:$0xf]
  %v1701 = vld [vmem:[%s0 + $0x208] sm:$0xf]
  %v1702 = vld [vmem:[%s0 + $0x20c] sm:$0xf]
  %v1703 = vld [vmem:[%s0 + $0x210] sm:$0xf]
  %v1704 = vld [vmem:[%s0 + $0x214] sm:$0xf]
  %v1705 = vld [vmem:[%s0 + $0x218] sm:$0xf]
  %v1706 = vld [vmem:[%s0 + $0x21c] sm:$0xf]
  %v1707 = vld [vmem:[%s0 + $0x220] sm:$0xf]
  %v1708 = vld [vmem:[%s0 + $0x224] sm:$0xf]
  %v1709 = vld [vmem:[%s0 + $0x228] sm:$0xf]
  %v1710 = vld [vmem:[%s0 + $0x22c] sm:$0xf]
  %s1711 = scalar_lea.vmem %s1, 8
  %v1712 = vld [vmem:[%s1711] sm:$0x3]
  %v1745 = vunpack.c.l.b16 %v1679
  %v1746 = vunpack.c.l.b16 %v1680
  %v1747 = vunpack.c.l.b16 %v1681
  %v1748 = vunpack.c.l.b16 %v1682
  %v1749 = vunpack.c.l.b16 %v1683
  %v1750 = vunpack.c.l.b16 %v1684
  %v1751 = vunpack.c.l.b16 %v1685
  %v1752 = vunpack.c.l.b16 %v1686
  %v1753 = vunpack.c.l.b16 %v1687
  %v1754 = vunpack.c.l.b16 %v1688
  %v1755 = vunpack.c.l.b16 %v1689
  %v1756 = vunpack.c.l.b16 %v1690
  %v1757 = vunpack.c.l.b16 %v1691
  %v1758 = vunpack.c.l.b16 %v1692
  %v1759 = vunpack.c.l.b16 %v1693
  %v1760 = vunpack.c.l.b16 %v1694
  %v1761 = vunpack.c.l.b16 %v1695
  %v1762 = vunpack.c.l.b16 %v1696
  %v1763 = vunpack.c.l.b16 %v1697
  %v1764 = vunpack.c.l.b16 %v1698
  %v1765 = vunpack.c.l.b16 %v1699
  %v1766 = vunpack.c.l.b16 %v1700
  %v1767 = vunpack.c.l.b16 %v1701
  %v1768 = vunpack.c.l.b16 %v1702
  %v1769 = vunpack.c.l.b16 %v1703
  %v1770 = vunpack.c.l.b16 %v1704
  %v1771 = vunpack.c.l.b16 %v1705
  %v1772 = vunpack.c.l.b16 %v1706
  %v1773 = vunpack.c.l.b16 %v1707
  %v1774 = vunpack.c.l.b16 %v1708
  %v1775 = vunpack.c.l.b16 %v1709
  %v1776 = vunpack.c.l.b16 %v1710
  %v1777 = vpack.c.b16 %v1746, %v1745
  %v1778 = vpack.c.b16 %v1748, %v1747
  %v1779 = vpack.c.b16 %v1750, %v1749
  %v1780 = vpack.c.b16 %v1752, %v1751
  %v1781 = vpack.c.b16 %v1754, %v1753
  %v1782 = vpack.c.b16 %v1756, %v1755
  %v1783 = vpack.c.b16 %v1758, %v1757
  %v1784 = vpack.c.b16 %v1760, %v1759
  %v1785 = vpack.c.b16 %v1762, %v1761
  %v1786 = vpack.c.b16 %v1764, %v1763
  %v1787 = vpack.c.b16 %v1766, %v1765
  %v1788 = vpack.c.b16 %v1768, %v1767
  %v1789 = vpack.c.b16 %v1770, %v1769
  %v1790 = vpack.c.b16 %v1772, %v1771
  %v1791 = vpack.c.b16 %v1774, %v1773
  %v1792 = vpack.c.b16 %v1776, %v1775
  %v1794 = vsel %vm128, %v1777, 0
  %v1797 = vsel %vm128, %v1778, 0
  %v1800 = vsel %vm128, %v1779, 0
  %v1803 = vsel %vm128, %v1780, 0
  %v1806 = vsel %vm128, %v1781, 0
  %v1809 = vsel %vm128, %v1782, 0
  %v1812 = vsel %vm128, %v1783, 0
  %v1815 = vsel %vm128, %v1784, 0
  %v1818 = vsel %vm128, %v1785, 0
  %v1821 = vsel %vm128, %v1786, 0
  %v1824 = vsel %vm128, %v1787, 0
  %v1827 = vsel %vm128, %v1788, 0
  %v1830 = vsel %vm128, %v1789, 0
  %v1833 = vsel %vm128, %v1790, 0
  %v1836 = vsel %vm128, %v1791, 0
  %v1839 = vsel %vm128, %v1792, 0
  %v1842 = vsel %vm177, %v1712, 0
  %1844 = vmatprep.subr.bf16.mxu0 0
  %1845 = vmatpush1.bf16.msra.mxu0 0
  %1846 = vmatprep.subr.bf16.mxu0 0
  %1847 = vmatpush1.bf16.msra.mxu0 0
  %1848 = vmatprep.subr.bf16.mxu0 0
  %1849 = vmatpush1.bf16.msra.mxu0 0
  %1850 = vmatprep.subr.bf16.mxu0 0
  %1851 = vmatpush1.bf16.msra.mxu0 0
  %1852 = vmatprep.subr.bf16.mxu0 0
  %1853 = vmatpush1.bf16.msra.mxu0 0
  %1854 = vmatprep.subr.bf16.mxu0 0
  %1855 = vmatpush1.bf16.msra.mxu0 0
  %1856 = vmatprep.subr.bf16.mxu0 0
  %1857 = vmatpush1.bf16.msra.mxu0 0
  %1858 = vmatprep.subr.bf16.mxu0 0
  %1859 = vmatpush1.bf16.msra.mxu0 %v1842
  %1860 = vmatprep.subr.bf16.mxu0 0
  %1861 = vmatpush2.bf16.msra.mxu0 0
  %1862 = vmatprep.subr.bf16.mxu0 0
  %1863 = vmatpush2.bf16.msra.mxu0 0
  %1864 = vmatprep.subr.bf16.mxu0 0
  %1865 = vmatpush2.bf16.msra.mxu0 0
  %1866 = vmatprep.subr.bf16.mxu0 0
  %1867 = vmatpush2.bf16.msra.mxu0 0
  %1868 = vmatprep.subr.bf16.mxu0 0
  %1869 = vmatpush2.bf16.msra.mxu0 0
  %1870 = vmatprep.subr.bf16.mxu0 0
  %1871 = vmatpush2.bf16.msra.mxu0 0
  %1872 = vmatprep.subr.bf16.mxu0 0
  %1873 = vmatpush2.bf16.msra.mxu0 0
  %1874 = vmatprep.subr.bf16.mxu0 0
  %1875 = vmatpush2.bf16.msra.mxu0 0
  %1876 = vmatprep.mubr.bf16.mxu0 0
  %1877 = vmatmul.mubr.bf16.gmra.mxu0 %v1794
  %v1878 = vpop.f32.mrf.mxu0
  %v1879 = vadd.f32 0.0, %v1878
  %v1880 = vpop.f32.mrf.mxu0
  %v1881 = vpop.f32.mrf.mxu0
  %v1882 = vadd.f32 0.0, %v1881
  %v1883 = vpop.f32.mrf.mxu0
  %1884 = vmatprep.mubr.bf16.mxu0 0
  %1885 = vmatmul.mubr.bf16.gmra.mxu0 %v1797
  %v1886 = vpop.f32.mrf.mxu0
  %v1887 = vadd.f32 0.0, %v1886
  %v1888 = vpop.f32.mrf.mxu0
  %v1889 = vpop.f32.mrf.mxu0
  %v1890 = vadd.f32 0.0, %v1889
  %v1891 = vpop.f32.mrf.mxu0
  %1892 = vmatprep.mubr.bf16.mxu0 0
  %1893 = vmatmul.mubr.bf16.gmra.mxu0 %v1800
  %v1894 = vpop.f32.mrf.mxu0
  %v1895 = vadd.f32 0.0, %v1894
  %v1896 = vpop.f32.mrf.mxu0
  %v1897 = vpop.f32.mrf.mxu0
  %v1898 = vadd.f32 0.0, %v1897
  %v1899 = vpop.f32.mrf.mxu0
  %1900 = vmatprep.mubr.bf16.mxu0 0
  %1901 = vmatmul.mubr.bf16.gmra.mxu0 %v1803
  %v1902 = vpop.f32.mrf.mxu0
  %v1903 = vadd.f32 0.0, %v1902
  %v1904 = vpop.f32.mrf.mxu0
  %v1905 = vpop.f32.mrf.mxu0
  %v1906 = vadd.f32 0.0, %v1905
  %v1907 = vpop.f32.mrf.mxu0
  %1908 = vmatprep.mubr.bf16.mxu0 0
  %1909 = vmatmul.mubr.bf16.gmra.mxu0 %v1806
  %v1910 = vpop.f32.mrf.mxu0
  %v1911 = vadd.f32 0.0, %v1910
  %v1912 = vpop.f32.mrf.mxu0
  %v1913 = vpop.f32.mrf.mxu0
  %v1914 = vadd.f32 0.0, %v1913
  %v1915 = vpop.f32.mrf.mxu0
  %1916 = vmatprep.mubr.bf16.mxu0 0
  %1917 = vmatmul.mubr.bf16.gmra.mxu0 %v1809
  %v1918 = vpop.f32.mrf.mxu0
  %v1919 = vadd.f32 0.0, %v1918
  %v1920 = vpop.f32.mrf.mxu0
  %v1921 = vpop.f32.mrf.mxu0
  %v1922 = vadd.f32 0.0, %v1921
  %v1923 = vpop.f32.mrf.mxu0
  %1924 = vmatprep.mubr.bf16.mxu0 0
  %1925 = vmatmul.mubr.bf16.gmra.mxu0 %v1812
  %v1926 = vpop.f32.mrf.mxu0
  %v1927 = vadd.f32 0.0, %v1926
  %v1928 = vpop.f32.mrf.mxu0
  %v1929 = vpop.f32.mrf.mxu0
  %v1930 = vadd.f32 0.0, %v1929
  %v1931 = vpop.f32.mrf.mxu0
  %1932 = vmatprep.mubr.bf16.mxu0 0
  %1933 = vmatmul.mubr.bf16.gmra.mxu0 %v1815
  %v1934 = vpop.f32.mrf.mxu0
  %v1935 = vadd.f32 0.0, %v1934
  %v1936 = vpop.f32.mrf.mxu0
  %v1937 = vpop.f32.mrf.mxu0
  %v1938 = vadd.f32 0.0, %v1937
  %v1939 = vpop.f32.mrf.mxu0
  %1940 = vmatprep.mubr.bf16.mxu0 0
  %1941 = vmatmul.mubr.bf16.gmra.mxu0 %v1818
  %v1942 = vpop.f32.mrf.mxu0
  %v1943 = vadd.f32 0.0, %v1942
  %v1944 = vpop.f32.mrf.mxu0
  %v1945 = vpop.f32.mrf.mxu0
  %v1946 = vadd.f32 0.0, %v1945
  %v1947 = vpop.f32.mrf.mxu0
  %1948 = vmatprep.mubr.bf16.mxu0 0
  %1949 = vmatmul.mubr.bf16.gmra.mxu0 %v1821
  %v1950 = vpop.f32.mrf.mxu0
  %v1951 = vadd.f32 0.0, %v1950
  %v1952 = vpop.f32.mrf.mxu0
  %v1953 = vpop.f32.mrf.mxu0
  %v1954 = vadd.f32 0.0, %v1953
  %v1955 = vpop.f32.mrf.mxu0
  %1956 = vmatprep.mubr.bf16.mxu0 0
  %1957 = vmatmul.mubr.bf16.gmra.mxu0 %v1824
  %v1958 = vpop.f32.mrf.mxu0
  %v1959 = vadd.f32 0.0, %v1958
  %v1960 = vpop.f32.mrf.mxu0
  %v1961 = vpop.f32.mrf.mxu0
  %v1962 = vadd.f32 0.0, %v1961
  %v1963 = vpop.f32.mrf.mxu0
  %1964 = vmatprep.mubr.bf16.mxu0 0
  %1965 = vmatmul.mubr.bf16.gmra.mxu0 %v1827
  %v1966 = vpop.f32.mrf.mxu0
  %v1967 = vadd.f32 0.0, %v1966
  %v1968 = vpop.f32.mrf.mxu0
  %v1969 = vpop.f32.mrf.mxu0
  %v1970 = vadd.f32 0.0, %v1969
  %v1971 = vpop.f32.mrf.mxu0
  %1972 = vmatprep.mubr.bf16.mxu0 0
  %1973 = vmatmul.mubr.bf16.gmra.mxu0 %v1830
  %v1974 = vpop.f32.mrf.mxu0
  %v1975 = vadd.f32 0.0, %v1974
  %v1976 = vpop.f32.mrf.mxu0
  %v1977 = vpop.f32.mrf.mxu0
  %v1978 = vadd.f32 0.0, %v1977
  %v1979 = vpop.f32.mrf.mxu0
  %1980 = vmatprep.mubr.bf16.mxu0 0
  %1981 = vmatmul.mubr.bf16.gmra.mxu0 %v1833
  %v1982 = vpop.f32.mrf.mxu0
  %v1983 = vadd.f32 0.0, %v1982
  %v1984 = vpop.f32.mrf.mxu0
  %v1985 = vpop.f32.mrf.mxu0
  %v1986 = vadd.f32 0.0, %v1985
  %v1987 = vpop.f32.mrf.mxu0
  %1988 = vmatprep.mubr.bf16.mxu0 0
  %1989 = vmatmul.mubr.bf16.gmra.mxu0 %v1836
  %v1990 = vpop.f32.mrf.mxu0
  %v1991 = vadd.f32 0.0, %v1990
  %v1992 = vpop.f32.mrf.mxu0
  %v1993 = vpop.f32.mrf.mxu0
  %v1994 = vadd.f32 0.0, %v1993
  %v1995 = vpop.f32.mrf.mxu0
  %1996 = vmatprep.mubr.bf16.mxu0 0
  %1997 = vmatmul.mubr.bf16.gmra.mxu0 %v1839
  %v1998 = vpop.f32.mrf.mxu0
  %v1999 = vadd.f32 0.0, %v1998
  %v2000 = vpop.f32.mrf.mxu0
  %v2001 = vpop.f32.mrf.mxu0
  %v2002 = vadd.f32 0.0, %v2001
  %v2003 = vpop.f32.mrf.mxu0
  %2004 = vdwg.mxu0
  %v2005 = vld [vmem:[#allocation2] sm:$0xff]
  %v2006 = vld [vmem:[#allocation2 + $0x8] sm:$0xff]
  %v2007 = vld [vmem:[#allocation2 + $0x10] sm:$0xff]
  %v2008 = vld [vmem:[#allocation2 + $0x18] sm:$0xff]
  %v2009 = vld [vmem:[#allocation2 + $0x20] sm:$0xff]
  %v2010 = vld [vmem:[#allocation2 + $0x28] sm:$0xff]
  %v2011 = vld [vmem:[#allocation2 + $0x30] sm:$0xff]
  %v2012 = vld [vmem:[#allocation2 + $0x38] sm:$0xff]
  %v2013 = vld [vmem:[#allocation2 + $0x40] sm:$0xff]
  %v2014 = vld [vmem:[#allocation2 + $0x48] sm:$0xff]
  %v2015 = vld [vmem:[#allocation2 + $0x50] sm:$0xff]
  %v2016 = vld [vmem:[#allocation2 + $0x58] sm:$0xff]
  %v2017 = vld [vmem:[#allocation2 + $0x60] sm:$0xff]
  %v2018 = vld [vmem:[#allocation2 + $0x68] sm:$0xff]
  %v2019 = vld [vmem:[#allocation2 + $0x70] sm:$0xff]
  %v2020 = vld [vmem:[#allocation2 + $0x78] sm:$0xff]
  %v2021 = vld [vmem:[#allocation2 + $0x80] sm:$0xff]
  %v2022 = vld [vmem:[#allocation2 + $0x88] sm:$0xff]
  %v2023 = vld [vmem:[#allocation2 + $0x90] sm:$0xff]
  %v2024 = vld [vmem:[#allocation2 + $0x98] sm:$0xff]
  %v2025 = vld [vmem:[#allocation2 + $0xa0] sm:$0xff]
  %v2026 = vld [vmem:[#allocation2 + $0xa8] sm:$0xff]
  %v2027 = vld [vmem:[#allocation2 + $0xb0] sm:$0xff]
  %v2028 = vld [vmem:[#allocation2 + $0xb8] sm:$0xff]
  %v2029 = vld [vmem:[#allocation2 + $0xc0] sm:$0xff]
  %v2030 = vld [vmem:[#allocation2 + $0xc8] sm:$0xff]
  %v2031 = vld [vmem:[#allocation2 + $0xd0] sm:$0xff]
  %v2032 = vld [vmem:[#allocation2 + $0xd8] sm:$0xff]
  %v2033 = vld [vmem:[#allocation2 + $0xe0] sm:$0xff]
  %v2034 = vld [vmem:[#allocation2 + $0xe8] sm:$0xff]
  %v2035 = vld [vmem:[#allocation2 + $0xf0] sm:$0xff]
  %v2036 = vld [vmem:[#allocation2 + $0xf8] sm:$0xff]
  %v2037 = vadd.f32 %v2005, %v1879
  %v2038 = vadd.f32 %v2006, %v1882
  %v2039 = vadd.f32 %v2007, %v1887
  %v2040 = vadd.f32 %v2008, %v1890
  %v2041 = vadd.f32 %v2009, %v1895
  %v2042 = vadd.f32 %v2010, %v1898
  %v2043 = vadd.f32 %v2011, %v1903
  %v2044 = vadd.f32 %v2012, %v1906
  %v2045 = vadd.f32 %v2013, %v1911
  %v2046 = vadd.f32 %v2014, %v1914
  %v2047 = vadd.f32 %v2015, %v1919
  %v2048 = vadd.f32 %v2016, %v1922
  %v2049 = vadd.f32 %v2017, %v1927
  %v2050 = vadd.f32 %v2018, %v1930
  %v2051 = vadd.f32 %v2019, %v1935
  %v2052 = vadd.f32 %v2020, %v1938
  %v2053 = vadd.f32 %v2021, %v1943
  %v2054 = vadd.f32 %v2022, %v1946
  %v2055 = vadd.f32 %v2023, %v1951
  %v2056 = vadd.f32 %v2024, %v1954
  %v2057 = vadd.f32 %v2025, %v1959
  %v2058 = vadd.f32 %v2026, %v1962
  %v2059 = vadd.f32 %v2027, %v1967
  %v2060 = vadd.f32 %v2028, %v1970
  %v2061 = vadd.f32 %v2029, %v1975
  %v2062 = vadd.f32 %v2030, %v1978
  %v2063 = vadd.f32 %v2031, %v1983
  %v2064 = vadd.f32 %v2032, %v1986
  %v2065 = vadd.f32 %v2033, %v1991
  %v2066 = vadd.f32 %v2034, %v1994
  %v2067 = vadd.f32 %v2035, %v1999
  %v2068 = vadd.f32 %v2036, %v2002
  %2069 = vst.msk [vmem:[#allocation2] sm:$0xff] %vm342, %v2037
  %2070 = vst.msk [vmem:[#allocation2 + $0x8] sm:$0xff] %vm342, %v2038
  %2071 = vst.msk [vmem:[#allocation2 + $0x10] sm:$0xff] %vm342, %v2039
  %2072 = vst.msk [vmem:[#allocation2 + $0x18] sm:$0xff] %vm342, %v2040
  %2073 = vst.msk [vmem:[#allocation2 + $0x20] sm:$0xff] %vm342, %v2041
  %2074 = vst.msk [vmem:[#allocation2 + $0x28] sm:$0xff] %vm342, %v2042
  %2075 = vst.msk [vmem:[#allocation2 + $0x30] sm:$0xff] %vm342, %v2043
  %2076 = vst.msk [vmem:[#allocation2 + $0x38] sm:$0xff] %vm342, %v2044
  %2077 = vst.msk [vmem:[#allocation2 + $0x40] sm:$0xff] %vm342, %v2045
  %2078 = vst.msk [vmem:[#allocation2 + $0x48] sm:$0xff] %vm342, %v2046
  %2079 = vst.msk [vmem:[#allocation2 + $0x50] sm:$0xff] %vm342, %v2047
  %2080 = vst.msk [vmem:[#allocation2 + $0x58] sm:$0xff] %vm342, %v2048
  %2081 = vst.msk [vmem:[#allocation2 + $0x60] sm:$0xff] %vm342, %v2049
  %2082 = vst.msk [vmem:[#allocation2 + $0x68] sm:$0xff] %vm342, %v2050
  %2083 = vst.msk [vmem:[#allocation2 + $0x70] sm:$0xff] %vm342, %v2051
  %2084 = vst.msk [vmem:[#allocation2 + $0x78] sm:$0xff] %vm342, %v2052
  %2085 = vst.msk [vmem:[#allocation2 + $0x80] sm:$0xff] %vm342, %v2053
  %2086 = vst.msk [vmem:[#allocation2 + $0x88] sm:$0xff] %vm342, %v2054
  %2087 = vst.msk [vmem:[#allocation2 + $0x90] sm:$0xff] %vm342, %v2055
  %2088 = vst.msk [vmem:[#allocation2 + $0x98] sm:$0xff] %vm342, %v2056
  %2089 = vst.msk [vmem:[#allocation2 + $0xa0] sm:$0xff] %vm342, %v2057
  %2090 = vst.msk [vmem:[#allocation2 + $0xa8] sm:$0xff] %vm342, %v2058
  %2091 = vst.msk [vmem:[#allocation2 + $0xb0] sm:$0xff] %vm342, %v2059
  %2092 = vst.msk [vmem:[#allocation2 + $0xb8] sm:$0xff] %vm342, %v2060
  %2093 = vst.msk [vmem:[#allocation2 + $0xc0] sm:$0xff] %vm342, %v2061
  %2094 = vst.msk [vmem:[#allocation2 + $0xc8] sm:$0xff] %vm342, %v2062
  %2095 = vst.msk [vmem:[#allocation2 + $0xd0] sm:$0xff] %vm342, %v2063
  %2096 = vst.msk [vmem:[#allocation2 + $0xd8] sm:$0xff] %vm342, %v2064
  %2097 = vst.msk [vmem:[#allocation2 + $0xe0] sm:$0xff] %vm342, %v2065
  %2098 = vst.msk [vmem:[#allocation2 + $0xe8] sm:$0xff] %vm342, %v2066
  %2099 = vst.msk [vmem:[#allocation2 + $0xf0] sm:$0xff] %vm342, %v2067
  %2100 = vst.msk [vmem:[#allocation2 + $0xf8] sm:$0xff] %vm342, %v2068
  %v2101 = vld [vmem:[%s0 + $0x120] sm:$0xe]
  %v2102 = vld [vmem:[%s0 + $0x124] sm:$0xf]
  %v2103 = vld [vmem:[%s0 + $0x128] sm:$0xf]
  %v2104 = vld [vmem:[%s0 + $0x12c] sm:$0xf]
  %v2105 = vld [vmem:[%s0 + $0x130] sm:$0xf]
  %v2106 = vld [vmem:[%s0 + $0x134] sm:$0xf]
  %v2107 = vld [vmem:[%s0 + $0x138] sm:$0xf]
  %v2108 = vld [vmem:[%s0 + $0x13c] sm:$0xf]
  %v2109 = vld [vmem:[%s0 + $0x140] sm:$0xf]
  %v2110 = vld [vmem:[%s0 + $0x144] sm:$0xf]
  %v2111 = vld [vmem:[%s0 + $0x148] sm:$0xf]
  %v2112 = vld [vmem:[%s0 + $0x14c] sm:$0xf]
  %v2113 = vld [vmem:[%s0 + $0x150] sm:$0xf]
  %v2114 = vld [vmem:[%s0 + $0x154] sm:$0xf]
  %v2115 = vld [vmem:[%s0 + $0x158] sm:$0xf]
  %v2116 = vld [vmem:[%s0 + $0x15c] sm:$0xf]
  %v2117 = vld [vmem:[%s0 + $0x160] sm:$0xf]
  %v2118 = vld [vmem:[%s0 + $0x164] sm:$0xf]
  %v2119 = vld [vmem:[%s0 + $0x168] sm:$0xf]
  %v2120 = vld [vmem:[%s0 + $0x16c] sm:$0xf]
  %v2121 = vld [vmem:[%s0 + $0x170] sm:$0xf]
  %v2122 = vld [vmem:[%s0 + $0x174] sm:$0xf]
  %v2123 = vld [vmem:[%s0 + $0x178] sm:$0xf]
  %v2124 = vld [vmem:[%s0 + $0x17c] sm:$0xf]
  %v2125 = vld [vmem:[%s0 + $0x180] sm:$0xf]
  %v2126 = vld [vmem:[%s0 + $0x184] sm:$0xf]
  %v2127 = vld [vmem:[%s0 + $0x188] sm:$0xf]
  %v2128 = vld [vmem:[%s0 + $0x18c] sm:$0xf]
  %v2129 = vld [vmem:[%s0 + $0x190] sm:$0xf]
  %v2130 = vld [vmem:[%s0 + $0x194] sm:$0xf]
  %v2131 = vld [vmem:[%s0 + $0x198] sm:$0xf]
  %v2132 = vld [vmem:[%s0 + $0x19c] sm:$0xf]
  %v2133 = vld [vmem:[%s0 + $0x1a0] sm:$0x1]
  %s2134 = scalar_lea.vmem %s1, 10
  %v2135 = vld [vmem:[%s2134] sm:$0x3]
  %v2169 = vunpack.c.l.b16 %v2101
  %v2170 = vunpack.c.l.b16 %v2102
  %v2171 = vunpack.c.l.b16 %v2103
  %v2172 = vunpack.c.l.b16 %v2104
  %v2173 = vunpack.c.l.b16 %v2105
  %v2174 = vunpack.c.l.b16 %v2106
  %v2175 = vunpack.c.l.b16 %v2107
  %v2176 = vunpack.c.l.b16 %v2108
  %v2177 = vunpack.c.l.b16 %v2109
  %v2178 = vunpack.c.l.b16 %v2110
  %v2179 = vunpack.c.l.b16 %v2111
  %v2180 = vunpack.c.l.b16 %v2112
  %v2181 = vunpack.c.l.b16 %v2113
  %v2182 = vunpack.c.l.b16 %v2114
  %v2183 = vunpack.c.l.b16 %v2115
  %v2184 = vunpack.c.l.b16 %v2116
  %v2185 = vunpack.c.l.b16 %v2117
  %v2186 = vunpack.c.l.b16 %v2118
  %v2187 = vunpack.c.l.b16 %v2119
  %v2188 = vunpack.c.l.b16 %v2120
  %v2189 = vunpack.c.l.b16 %v2121
  %v2190 = vunpack.c.l.b16 %v2122
  %v2191 = vunpack.c.l.b16 %v2123
  %v2192 = vunpack.c.l.b16 %v2124
  %v2193 = vunpack.c.l.b16 %v2125
  %v2194 = vunpack.c.l.b16 %v2126
  %v2195 = vunpack.c.l.b16 %v2127
  %v2196 = vunpack.c.l.b16 %v2128
  %v2197 = vunpack.c.l.b16 %v2129
  %v2198 = vunpack.c.l.b16 %v2130
  %v2199 = vunpack.c.l.b16 %v2131
  %v2200 = vunpack.c.l.b16 %v2132
  %v2201 = vunpack.c.l.b16 %v2133
  %v2202 = vpack.c.b16 %v2170, %v2169
  %v2203 = vpack.c.b16 %v2172, %v2171
  %v2204 = vpack.c.b16 %v2174, %v2173
  %v2205 = vpack.c.b16 %v2176, %v2175
  %v2206 = vpack.c.b16 %v2178, %v2177
  %v2207 = vpack.c.b16 %v2180, %v2179
  %v2208 = vpack.c.b16 %v2182, %v2181
  %v2209 = vpack.c.b16 %v2184, %v2183
  %v2210 = vpack.c.b16 %v2186, %v2185
  %v2211 = vpack.c.b16 %v2188, %v2187
  %v2212 = vpack.c.b16 %v2190, %v2189
  %v2213 = vpack.c.b16 %v2192, %v2191
  %v2214 = vpack.c.b16 %v2194, %v2193
  %v2215 = vpack.c.b16 %v2196, %v2195
  %v2216 = vpack.c.b16 %v2198, %v2197
  %v2217 = vpack.c.b16 %v2200, %v2199
  %v2218 = vpack.c.b16 %v2201, %v2201
  %v2219 = vrot.slane %v2202, 1
  %v2220 = vrot.slane %v2203, 1
  %v2221 = vsel %vm915, %v2219, %v2220
  %v2222 = vrot.slane %v2204, 1
  %v2223 = vsel %vm915, %v2220, %v2222
  %v2224 = vrot.slane %v2205, 1
  %v2225 = vsel %vm915, %v2222, %v2224
  %v2226 = vrot.slane %v2206, 1
  %v2227 = vsel %vm915, %v2224, %v2226
  %v2228 = vrot.slane %v2207, 1
  %v2229 = vsel %vm915, %v2226, %v2228
  %v2230 = vrot.slane %v2208, 1
  %v2231 = vsel %vm915, %v2228, %v2230
  %v2232 = vrot.slane %v2209, 1
  %v2233 = vsel %vm915, %v2230, %v2232
  %v2234 = vrot.slane %v2210, 1
  %v2235 = vsel %vm915, %v2232, %v2234
  %v2236 = vrot.slane %v2211, 1
  %v2237 = vsel %vm915, %v2234, %v2236
  %v2238 = vrot.slane %v2212, 1
  %v2239 = vsel %vm915, %v2236, %v2238
  %v2240 = vrot.slane %v2213, 1
  %v2241 = vsel %vm915, %v2238, %v2240
  %v2242 = vrot.slane %v2214, 1
  %v2243 = vsel %vm915, %v2240, %v2242
  %v2244 = vrot.slane %v2215, 1
  %v2245 = vsel %vm915, %v2242, %v2244
  %v2246 = vrot.slane %v2216, 1
  %v2247 = vsel %vm915, %v2244, %v2246
  %v2248 = vrot.slane %v2217, 1
  %v2249 = vsel %vm915, %v2246, %v2248
  %v2250 = vrot.slane %v2218, 1
  %v2251 = vsel %vm915, %v2248, %v2250
  %v2253 = vsel %vm128, %v2221, 0
  %v2256 = vsel %vm128, %v2223, 0
  %v2259 = vsel %vm128, %v2225, 0
  %v2262 = vsel %vm128, %v2227, 0
  %v2265 = vsel %vm128, %v2229, 0
  %v2268 = vsel %vm128, %v2231, 0
  %v2271 = vsel %vm128, %v2233, 0
  %v2274 = vsel %vm128, %v2235, 0
  %v2277 = vsel %vm128, %v2237, 0
  %v2280 = vsel %vm128, %v2239, 0
  %v2283 = vsel %vm128, %v2241, 0
  %v2286 = vsel %vm128, %v2243, 0
  %v2289 = vsel %vm128, %v2245, 0
  %v2292 = vsel %vm128, %v2247, 0
  %v2295 = vsel %vm128, %v2249, 0
  %v2298 = vsel %vm128, %v2251, 0
  %v2301 = vsel %vm177, %v2135, 0
  %2303 = vmatprep.subr.bf16.mxu0 0
  %2304 = vmatpush1.bf16.msra.mxu0 0
  %2305 = vmatprep.subr.bf16.mxu0 0
  %2306 = vmatpush1.bf16.msra.mxu0 0
  %2307 = vmatprep.subr.bf16.mxu0 0
  %2308 = vmatpush1.bf16.msra.mxu0 0
  %2309 = vmatprep.subr.bf16.mxu0 0
  %2310 = vmatpush1.bf16.msra.mxu0 0
  %2311 = vmatprep.subr.bf16.mxu0 0
  %2312 = vmatpush1.bf16.msra.mxu0 0
  %2313 = vmatprep.subr.bf16.mxu0 0
  %2314 = vmatpush1.bf16.msra.mxu0 0
  %2315 = vmatprep.subr.bf16.mxu0 0
  %2316 = vmatpush1.bf16.msra.mxu0 0
  %2317 = vmatprep.subr.bf16.mxu0 0
  %2318 = vmatpush1.bf16.msra.mxu0 %v2301
  %2319 = vmatprep.subr.bf16.mxu0 0
  %2320 = vmatpush2.bf16.msra.mxu0 0
  %2321 = vmatprep.subr.bf16.mxu0 0
  %2322 = vmatpush2.bf16.msra.mxu0 0
  %2323 = vmatprep.subr.bf16.mxu0 0
  %2324 = vmatpush2.bf16.msra.mxu0 0
  %2325 = vmatprep.subr.bf16.mxu0 0
  %2326 = vmatpush2.bf16.msra.mxu0 0
  %2327 = vmatprep.subr.bf16.mxu0 0
  %2328 = vmatpush2.bf16.msra.mxu0 0
  %2329 = vmatprep.subr.bf16.mxu0 0
  %2330 = vmatpush2.bf16.msra.mxu0 0
  %2331 = vmatprep.subr.bf16.mxu0 0
  %2332 = vmatpush2.bf16.msra.mxu0 0
  %2333 = vmatprep.subr.bf16.mxu0 0
  %2334 = vmatpush2.bf16.msra.mxu0 0
  %2335 = vmatprep.mubr.bf16.mxu0 0
  %2336 = vmatmul.mubr.bf16.gmra.mxu0 %v2253
  %v2337 = vpop.f32.mrf.mxu0
  %v2338 = vadd.f32 0.0, %v2337
  %v2339 = vpop.f32.mrf.mxu0
  %v2340 = vpop.f32.mrf.mxu0
  %v2341 = vadd.f32 0.0, %v2340
  %v2342 = vpop.f32.mrf.mxu0
  %2343 = vmatprep.mubr.bf16.mxu0 0
  %2344 = vmatmul.mubr.bf16.gmra.mxu0 %v2256
  %v2345 = vpop.f32.mrf.mxu0
  %v2346 = vadd.f32 0.0, %v2345
  %v2347 = vpop.f32.mrf.mxu0
  %v2348 = vpop.f32.mrf.mxu0
  %v2349 = vadd.f32 0.0, %v2348
  %v2350 = vpop.f32.mrf.mxu0
  %2351 = vmatprep.mubr.bf16.mxu0 0
  %2352 = vmatmul.mubr.bf16.gmra.mxu0 %v2259
  %v2353 = vpop.f32.mrf.mxu0
  %v2354 = vadd.f32 0.0, %v2353
  %v2355 = vpop.f32.mrf.mxu0
  %v2356 = vpop.f32.mrf.mxu0
  %v2357 = vadd.f32 0.0, %v2356
  %v2358 = vpop.f32.mrf.mxu0
  %2359 = vmatprep.mubr.bf16.mxu0 0
  %2360 = vmatmul.mubr.bf16.gmra.mxu0 %v2262
  %v2361 = vpop.f32.mrf.mxu0
  %v2362 = vadd.f32 0.0, %v2361
  %v2363 = vpop.f32.mrf.mxu0
  %v2364 = vpop.f32.mrf.mxu0
  %v2365 = vadd.f32 0.0, %v2364
  %v2366 = vpop.f32.mrf.mxu0
  %2367 = vmatprep.mubr.bf16.mxu0 0
  %2368 = vmatmul.mubr.bf16.gmra.mxu0 %v2265
  %v2369 = vpop.f32.mrf.mxu0
  %v2370 = vadd.f32 0.0, %v2369
  %v2371 = vpop.f32.mrf.mxu0
  %v2372 = vpop.f32.mrf.mxu0
  %v2373 = vadd.f32 0.0, %v2372
  %v2374 = vpop.f32.mrf.mxu0
  %2375 = vmatprep.mubr.bf16.mxu0 0
  %2376 = vmatmul.mubr.bf16.gmra.mxu0 %v2268
  %v2377 = vpop.f32.mrf.mxu0
  %v2378 = vadd.f32 0.0, %v2377
  %v2379 = vpop.f32.mrf.mxu0
  %v2380 = vpop.f32.mrf.mxu0
  %v2381 = vadd.f32 0.0, %v2380
  %v2382 = vpop.f32.mrf.mxu0
  %2383 = vmatprep.mubr.bf16.mxu0 0
  %2384 = vmatmul.mubr.bf16.gmra.mxu0 %v2271
  %v2385 = vpop.f32.mrf.mxu0
  %v2386 = vadd.f32 0.0, %v2385
  %v2387 = vpop.f32.mrf.mxu0
  %v2388 = vpop.f32.mrf.mxu0
  %v2389 = vadd.f32 0.0, %v2388
  %v2390 = vpop.f32.mrf.mxu0
  %2391 = vmatprep.mubr.bf16.mxu0 0
  %2392 = vmatmul.mubr.bf16.gmra.mxu0 %v2274
  %v2393 = vpop.f32.mrf.mxu0
  %v2394 = vadd.f32 0.0, %v2393
  %v2395 = vpop.f32.mrf.mxu0
  %v2396 = vpop.f32.mrf.mxu0
  %v2397 = vadd.f32 0.0, %v2396
  %v2398 = vpop.f32.mrf.mxu0
  %2399 = vmatprep.mubr.bf16.mxu0 0
  %2400 = vmatmul.mubr.bf16.gmra.mxu0 %v2277
  %v2401 = vpop.f32.mrf.mxu0
  %v2402 = vadd.f32 0.0, %v2401
  %v2403 = vpop.f32.mrf.mxu0
  %v2404 = vpop.f32.mrf.mxu0
  %v2405 = vadd.f32 0.0, %v2404
  %v2406 = vpop.f32.mrf.mxu0
  %2407 = vmatprep.mubr.bf16.mxu0 0
  %2408 = vmatmul.mubr.bf16.gmra.mxu0 %v2280
  %v2409 = vpop.f32.mrf.mxu0
  %v2410 = vadd.f32 0.0, %v2409
  %v2411 = vpop.f32.mrf.mxu0
  %v2412 = vpop.f32.mrf.mxu0
  %v2413 = vadd.f32 0.0, %v2412
  %v2414 = vpop.f32.mrf.mxu0
  %2415 = vmatprep.mubr.bf16.mxu0 0
  %2416 = vmatmul.mubr.bf16.gmra.mxu0 %v2283
  %v2417 = vpop.f32.mrf.mxu0
  %v2418 = vadd.f32 0.0, %v2417
  %v2419 = vpop.f32.mrf.mxu0
  %v2420 = vpop.f32.mrf.mxu0
  %v2421 = vadd.f32 0.0, %v2420
  %v2422 = vpop.f32.mrf.mxu0
  %2423 = vmatprep.mubr.bf16.mxu0 0
  %2424 = vmatmul.mubr.bf16.gmra.mxu0 %v2286
  %v2425 = vpop.f32.mrf.mxu0
  %v2426 = vadd.f32 0.0, %v2425
  %v2427 = vpop.f32.mrf.mxu0
  %v2428 = vpop.f32.mrf.mxu0
  %v2429 = vadd.f32 0.0, %v2428
  %v2430 = vpop.f32.mrf.mxu0
  %2431 = vmatprep.mubr.bf16.mxu0 0
  %2432 = vmatmul.mubr.bf16.gmra.mxu0 %v2289
  %v2433 = vpop.f32.mrf.mxu0
  %v2434 = vadd.f32 0.0, %v2433
  %v2435 = vpop.f32.mrf.mxu0
  %v2436 = vpop.f32.mrf.mxu0
  %v2437 = vadd.f32 0.0, %v2436
  %v2438 = vpop.f32.mrf.mxu0
  %2439 = vmatprep.mubr.bf16.mxu0 0
  %2440 = vmatmul.mubr.bf16.gmra.mxu0 %v2292
  %v2441 = vpop.f32.mrf.mxu0
  %v2442 = vadd.f32 0.0, %v2441
  %v2443 = vpop.f32.mrf.mxu0
  %v2444 = vpop.f32.mrf.mxu0
  %v2445 = vadd.f32 0.0, %v2444
  %v2446 = vpop.f32.mrf.mxu0
  %2447 = vmatprep.mubr.bf16.mxu0 0
  %2448 = vmatmul.mubr.bf16.gmra.mxu0 %v2295
  %v2449 = vpop.f32.mrf.mxu0
  %v2450 = vadd.f32 0.0, %v2449
  %v2451 = vpop.f32.mrf.mxu0
  %v2452 = vpop.f32.mrf.mxu0
  %v2453 = vadd.f32 0.0, %v2452
  %v2454 = vpop.f32.mrf.mxu0
  %2455 = vmatprep.mubr.bf16.mxu0 0
  %2456 = vmatmul.mubr.bf16.gmra.mxu0 %v2298
  %v2457 = vpop.f32.mrf.mxu0
  %v2458 = vadd.f32 0.0, %v2457
  %v2459 = vpop.f32.mrf.mxu0
  %v2460 = vpop.f32.mrf.mxu0
  %v2461 = vadd.f32 0.0, %v2460
  %v2462 = vpop.f32.mrf.mxu0
  %2463 = vdwg.mxu0
  %v2464 = vld [vmem:[#allocation2] sm:$0xff]
  %v2465 = vld [vmem:[#allocation2 + $0x8] sm:$0xff]
  %v2466 = vld [vmem:[#allocation2 + $0x10] sm:$0xff]
  %v2467 = vld [vmem:[#allocation2 + $0x18] sm:$0xff]
  %v2468 = vld [vmem:[#allocation2 + $0x20] sm:$0xff]
  %v2469 = vld [vmem:[#allocation2 + $0x28] sm:$0xff]
  %v2470 = vld [vmem:[#allocation2 + $0x30] sm:$0xff]
  %v2471 = vld [vmem:[#allocation2 + $0x38] sm:$0xff]
  %v2472 = vld [vmem:[#allocation2 + $0x40] sm:$0xff]
  %v2473 = vld [vmem:[#allocation2 + $0x48] sm:$0xff]
  %v2474 = vld [vmem:[#allocation2 + $0x50] sm:$0xff]
  %v2475 = vld [vmem:[#allocation2 + $0x58] sm:$0xff]
  %v2476 = vld [vmem:[#allocation2 + $0x60] sm:$0xff]
  %v2477 = vld [vmem:[#allocation2 + $0x68] sm:$0xff]
  %v2478 = vld [vmem:[#allocation2 + $0x70] sm:$0xff]
  %v2479 = vld [vmem:[#allocation2 + $0x78] sm:$0xff]
  %v2480 = vld [vmem:[#allocation2 + $0x80] sm:$0xff]
  %v2481 = vld [vmem:[#allocation2 + $0x88] sm:$0xff]
  %v2482 = vld [vmem:[#allocation2 + $0x90] sm:$0xff]
  %v2483 = vld [vmem:[#allocation2 + $0x98] sm:$0xff]
  %v2484 = vld [vmem:[#allocation2 + $0xa0] sm:$0xff]
  %v2485 = vld [vmem:[#allocation2 + $0xa8] sm:$0xff]
  %v2486 = vld [vmem:[#allocation2 + $0xb0] sm:$0xff]
  %v2487 = vld [vmem:[#allocation2 + $0xb8] sm:$0xff]
  %v2488 = vld [vmem:[#allocation2 + $0xc0] sm:$0xff]
  %v2489 = vld [vmem:[#allocation2 + $0xc8] sm:$0xff]
  %v2490 = vld [vmem:[#allocation2 + $0xd0] sm:$0xff]
  %v2491 = vld [vmem:[#allocation2 + $0xd8] sm:$0xff]
  %v2492 = vld [vmem:[#allocation2 + $0xe0] sm:$0xff]
  %v2493 = vld [vmem:[#allocation2 + $0xe8] sm:$0xff]
  %v2494 = vld [vmem:[#allocation2 + $0xf0] sm:$0xff]
  %v2495 = vld [vmem:[#allocation2 + $0xf8] sm:$0xff]
  %v2496 = vadd.f32 %v2464, %v2338
  %v2497 = vadd.f32 %v2465, %v2341
  %v2498 = vadd.f32 %v2466, %v2346
  %v2499 = vadd.f32 %v2467, %v2349
  %v2500 = vadd.f32 %v2468, %v2354
  %v2501 = vadd.f32 %v2469, %v2357
  %v2502 = vadd.f32 %v2470, %v2362
  %v2503 = vadd.f32 %v2471, %v2365
  %v2504 = vadd.f32 %v2472, %v2370
  %v2505 = vadd.f32 %v2473, %v2373
  %v2506 = vadd.f32 %v2474, %v2378
  %v2507 = vadd.f32 %v2475, %v2381
  %v2508 = vadd.f32 %v2476, %v2386
  %v2509 = vadd.f32 %v2477, %v2389
  %v2510 = vadd.f32 %v2478, %v2394
  %v2511 = vadd.f32 %v2479, %v2397
  %v2512 = vadd.f32 %v2480, %v2402
  %v2513 = vadd.f32 %v2481, %v2405
  %v2514 = vadd.f32 %v2482, %v2410
  %v2515 = vadd.f32 %v2483, %v2413
  %v2516 = vadd.f32 %v2484, %v2418
  %v2517 = vadd.f32 %v2485, %v2421
  %v2518 = vadd.f32 %v2486, %v2426
  %v2519 = vadd.f32 %v2487, %v2429
  %v2520 = vadd.f32 %v2488, %v2434
  %v2521 = vadd.f32 %v2489, %v2437
  %v2522 = vadd.f32 %v2490, %v2442
  %v2523 = vadd.f32 %v2491, %v2445
  %v2524 = vadd.f32 %v2492, %v2450
  %v2525 = vadd.f32 %v2493, %v2453
  %v2526 = vadd.f32 %v2494, %v2458
  %v2527 = vadd.f32 %v2495, %v2461
  %2528 = vst.msk [vmem:[#allocation2] sm:$0xff] %vm342, %v2496
  %2529 = vst.msk [vmem:[#allocation2 + $0x8] sm:$0xff] %vm342, %v2497
  %2530 = vst.msk [vmem:[#allocation2 + $0x10] sm:$0xff] %vm342, %v2498
  %2531 = vst.msk [vmem:[#allocation2 + $0x18] sm:$0xff] %vm342, %v2499
  %2532 = vst.msk [vmem:[#allocation2 + $0x20] sm:$0xff] %vm342, %v2500
  %2533 = vst.msk [vmem:[#allocation2 + $0x28] sm:$0xff] %vm342, %v2501
  %2534 = vst.msk [vmem:[#allocation2 + $0x30] sm:$0xff] %vm342, %v2502
  %2535 = vst.msk [vmem:[#allocation2 + $0x38] sm:$0xff] %vm342, %v2503
  %2536 = vst.msk [vmem:[#allocation2 + $0x40] sm:$0xff] %vm342, %v2504
  %2537 = vst.msk [vmem:[#allocation2 + $0x48] sm:$0xff] %vm342, %v2505
  %2538 = vst.msk [vmem:[#allocation2 + $0x50] sm:$0xff] %vm342, %v2506
  %2539 = vst.msk [vmem:[#allocation2 + $0x58] sm:$0xff] %vm342, %v2507
  %2540 = vst.msk [vmem:[#allocation2 + $0x60] sm:$0xff] %vm342, %v2508
  %2541 = vst.msk [vmem:[#allocation2 + $0x68] sm:$0xff] %vm342, %v2509
  %2542 = vst.msk [vmem:[#allocation2 + $0x70] sm:$0xff] %vm342, %v2510
  %2543 = vst.msk [vmem:[#allocation2 + $0x78] sm:$0xff] %vm342, %v2511
  %2544 = vst.msk [vmem:[#allocation2 + $0x80] sm:$0xff] %vm342, %v2512
  %2545 = vst.msk [vmem:[#allocation2 + $0x88] sm:$0xff] %vm342, %v2513
  %2546 = vst.msk [vmem:[#allocation2 + $0x90] sm:$0xff] %vm342, %v2514
  %2547 = vst.msk [vmem:[#allocation2 + $0x98] sm:$0xff] %vm342, %v2515
  %2548 = vst.msk [vmem:[#allocation2 + $0xa0] sm:$0xff] %vm342, %v2516
  %2549 = vst.msk [vmem:[#allocation2 + $0xa8] sm:$0xff] %vm342, %v2517
  %2550 = vst.msk [vmem:[#allocation2 + $0xb0] sm:$0xff] %vm342, %v2518
  %2551 = vst.msk [vmem:[#allocation2 + $0xb8] sm:$0xff] %vm342, %v2519
  %2552 = vst.msk [vmem:[#allocation2 + $0xc0] sm:$0xff] %vm342, %v2520
  %2553 = vst.msk [vmem:[#allocation2 + $0xc8] sm:$0xff] %vm342, %v2521
  %2554 = vst.msk [vmem:[#allocation2 + $0xd0] sm:$0xff] %vm342, %v2522
  %2555 = vst.msk [vmem:[#allocation2 + $0xd8] sm:$0xff] %vm342, %v2523
  %2556 = vst.msk [vmem:[#allocation2 + $0xe0] sm:$0xff] %vm342, %v2524
  %2557 = vst.msk [vmem:[#allocation2 + $0xe8] sm:$0xff] %vm342, %v2525
  %2558 = vst.msk [vmem:[#allocation2 + $0xf0] sm:$0xff] %vm342, %v2526
  %2559 = vst.msk [vmem:[#allocation2 + $0xf8] sm:$0xff] %vm342, %v2527
  %v2560 = vld [vmem:[%s0 + $0x10] sm:$0xf]
  %v2561 = vld [vmem:[%s0 + $0x14] sm:$0xf]
  %v2562 = vld [vmem:[%s0 + $0x18] sm:$0xf]
  %v2563 = vld [vmem:[%s0 + $0x1c] sm:$0xf]
  %v2564 = vld [vmem:[%s0 + $0x20] sm:$0xf]
  %v2565 = vld [vmem:[%s0 + $0x24] sm:$0xf]
  %v2566 = vld [vmem:[%s0 + $0x28] sm:$0xf]
  %v2567 = vld [vmem:[%s0 + $0x2c] sm:$0xf]
  %v2568 = vld [vmem:[%s0 + $0x30] sm:$0xf]
  %v2569 = vld [vmem:[%s0 + $0x34] sm:$0xf]
  %v2570 = vld [vmem:[%s0 + $0x38] sm:$0xf]
  %v2571 = vld [vmem:[%s0 + $0x3c] sm:$0xf]
  %v2572 = vld [vmem:[%s0 + $0x40] sm:$0xf]
  %v2573 = vld [vmem:[%s0 + $0x44] sm:$0xf]
  %v2574 = vld [vmem:[%s0 + $0x48] sm:$0xf]
  %v2575 = vld [vmem:[%s0 + $0x4c] sm:$0xf]
  %v2576 = vld [vmem:[%s0 + $0x50] sm:$0xf]
  %v2577 = vld [vmem:[%s0 + $0x54] sm:$0xf]
  %v2578 = vld [vmem:[%s0 + $0x58] sm:$0xf]
  %v2579 = vld [vmem:[%s0 + $0x5c] sm:$0xf]
  %v2580 = vld [vmem:[%s0 + $0x60] sm:$0xf]
  %v2581 = vld [vmem:[%s0 + $0x64] sm:$0xf]
  %v2582 = vld [vmem:[%s0 + $0x68] sm:$0xf]
  %v2583 = vld [vmem:[%s0 + $0x6c] sm:$0xf]
  %v2584 = vld [vmem:[%s0 + $0x70] sm:$0xf]
  %v2585 = vld [vmem:[%s0 + $0x74] sm:$0xf]
  %v2586 = vld [vmem:[%s0 + $0x78] sm:$0xf]
  %v2587 = vld [vmem:[%s0 + $0x7c] sm:$0xf]
  %v2588 = vld [vmem:[%s0 + $0x80] sm:$0xf]
  %v2589 = vld [vmem:[%s0 + $0x84] sm:$0xf]
  %v2590 = vld [vmem:[%s0 + $0x88] sm:$0xf]
  %v2591 = vld [vmem:[%s0 + $0x8c] sm:$0xf]
  %s2592 = scalar_lea.vmem %s1, 12
  %v2593 = vld [vmem:[%s2592] sm:$0x3]
  %v2626 = vunpack.c.l.b16 %v2560
  %v2627 = vunpack.c.l.b16 %v2561
  %v2628 = vunpack.c.l.b16 %v2562
  %v2629 = vunpack.c.l.b16 %v2563
  %v2630 = vunpack.c.l.b16 %v2564
  %v2631 = vunpack.c.l.b16 %v2565
  %v2632 = vunpack.c.l.b16 %v2566
  %v2633 = vunpack.c.l.b16 %v2567
  %v2634 = vunpack.c.l.b16 %v2568
  %v2635 = vunpack.c.l.b16 %v2569
  %v2636 = vunpack.c.l.b16 %v2570
  %v2637 = vunpack.c.l.b16 %v2571
  %v2638 = vunpack.c.l.b16 %v2572
  %v2639 = vunpack.c.l.b16 %v2573
  %v2640 = vunpack.c.l.b16 %v2574
  %v2641 = vunpack.c.l.b16 %v2575
  %v2642 = vunpack.c.l.b16 %v2576
  %v2643 = vunpack.c.l.b16 %v2577
  %v2644 = vunpack.c.l.b16 %v2578
  %v2645 = vunpack.c.l.b16 %v2579
  %v2646 = vunpack.c.l.b16 %v2580
  %v2647 = vunpack.c.l.b16 %v2581
  %v2648 = vunpack.c.l.b16 %v2582
  %v2649 = vunpack.c.l.b16 %v2583
  %v2650 = vunpack.c.l.b16 %v2584
  %v2651 = vunpack.c.l.b16 %v2585
  %v2652 = vunpack.c.l.b16 %v2586
  %v2653 = vunpack.c.l.b16 %v2587
  %v2654 = vunpack.c.l.b16 %v2588
  %v2655 = vunpack.c.l.b16 %v2589
  %v2656 = vunpack.c.l.b16 %v2590
  %v2657 = vunpack.c.l.b16 %v2591
  %v2658 = vpack.c.b16 %v2627, %v2626
  %v2659 = vpack.c.b16 %v2629, %v2628
  %v2660 = vpack.c.b16 %v2631, %v2630
  %v2661 = vpack.c.b16 %v2633, %v2632
  %v2662 = vpack.c.b16 %v2635, %v2634
  %v2663 = vpack.c.b16 %v2637, %v2636
  %v2664 = vpack.c.b16 %v2639, %v2638
  %v2665 = vpack.c.b16 %v2641, %v2640
  %v2666 = vpack.c.b16 %v2643, %v2642
  %v2667 = vpack.c.b16 %v2645, %v2644
  %v2668 = vpack.c.b16 %v2647, %v2646
  %v2669 = vpack.c.b16 %v2649, %v2648
  %v2670 = vpack.c.b16 %v2651, %v2650
  %v2671 = vpack.c.b16 %v2653, %v2652
  %v2672 = vpack.c.b16 %v2655, %v2654
  %v2673 = vpack.c.b16 %v2657, %v2656
  %v2675 = vsel %vm128, %v2658, 0
  %v2678 = vsel %vm128, %v2659, 0
  %v2681 = vsel %vm128, %v2660, 0
  %v2684 = vsel %vm128, %v2661, 0
  %v2687 = vsel %vm128, %v2662, 0
  %v2690 = vsel %vm128, %v2663, 0
  %v2693 = vsel %vm128, %v2664, 0
  %v2696 = vsel %vm128, %v2665, 0
  %v2699 = vsel %vm128, %v2666, 0
  %v2702 = vsel %vm128, %v2667, 0
  %v2705 = vsel %vm128, %v2668, 0
  %v2708 = vsel %vm128, %v2669, 0
  %v2711 = vsel %vm128, %v2670, 0
  %v2714 = vsel %vm128, %v2671, 0
  %v2717 = vsel %vm128, %v2672, 0
  %v2720 = vsel %vm128, %v2673, 0
  %v2723 = vsel %vm177, %v2593, 0
  %2725 = vmatprep.subr.bf16.mxu0 0
  %2726 = vmatpush1.bf16.msra.mxu0 0
  %2727 = vmatprep.subr.bf16.mxu0 0
  %2728 = vmatpush1.bf16.msra.mxu0 0
  %2729 = vmatprep.subr.bf16.mxu0 0
  %2730 = vmatpush1.bf16.msra.mxu0 0
  %2731 = vmatprep.subr.bf16.mxu0 0
  %2732 = vmatpush1.bf16.msra.mxu0 0
  %2733 = vmatprep.subr.bf16.mxu0 0
  %2734 = vmatpush1.bf16.msra.mxu0 0
  %2735 = vmatprep.subr.bf16.mxu0 0
  %2736 = vmatpush1.bf16.msra.mxu0 0
  %2737 = vmatprep.subr.bf16.mxu0 0
  %2738 = vmatpush1.bf16.msra.mxu0 0
  %2739 = vmatprep.subr.bf16.mxu0 0
  %2740 = vmatpush1.bf16.msra.mxu0 %v2723
  %2741 = vmatprep.subr.bf16.mxu0 0
  %2742 = vmatpush2.bf16.msra.mxu0 0
  %2743 = vmatprep.subr.bf16.mxu0 0
  %2744 = vmatpush2.bf16.msra.mxu0 0
  %2745 = vmatprep.subr.bf16.mxu0 0
  %2746 = vmatpush2.bf16.msra.mxu0 0
  %2747 = vmatprep.subr.bf16.mxu0 0
  %2748 = vmatpush2.bf16.msra.mxu0 0
  %2749 = vmatprep.subr.bf16.mxu0 0
  %2750 = vmatpush2.bf16.msra.mxu0 0
  %2751 = vmatprep.subr.bf16.mxu0 0
  %2752 = vmatpush2.bf16.msra.mxu0 0
  %2753 = vmatprep.subr.bf16.mxu0 0
  %2754 = vmatpush2.bf16.msra.mxu0 0
  %2755 = vmatprep.subr.bf16.mxu0 0
  %2756 = vmatpush2.bf16.msra.mxu0 0
  %2757 = vmatprep.mubr.bf16.mxu0 0
  %2758 = vmatmul.mubr.bf16.gmra.mxu0 %v2675
  %v2759 = vpop.f32.mrf.mxu0
  %v2760 = vadd.f32 0.0, %v2759
  %v2761 = vpop.f32.mrf.mxu0
  %v2762 = vpop.f32.mrf.mxu0
  %v2763 = vadd.f32 0.0, %v2762
  %v2764 = vpop.f32.mrf.mxu0
  %2765 = vmatprep.mubr.bf16.mxu0 0
  %2766 = vmatmul.mubr.bf16.gmra.mxu0 %v2678
  %v2767 = vpop.f32.mrf.mxu0
  %v2768 = vadd.f32 0.0, %v2767
  %v2769 = vpop.f32.mrf.mxu0
  %v2770 = vpop.f32.mrf.mxu0
  %v2771 = vadd.f32 0.0, %v2770
  %v2772 = vpop.f32.mrf.mxu0
  %2773 = vmatprep.mubr.bf16.mxu0 0
  %2774 = vmatmul.mubr.bf16.gmra.mxu0 %v2681
  %v2775 = vpop.f32.mrf.mxu0
  %v2776 = vadd.f32 0.0, %v2775
  %v2777 = vpop.f32.mrf.mxu0
  %v2778 = vpop.f32.mrf.mxu0
  %v2779 = vadd.f32 0.0, %v2778
  %v2780 = vpop.f32.mrf.mxu0
  %2781 = vmatprep.mubr.bf16.mxu0 0
  %2782 = vmatmul.mubr.bf16.gmra.mxu0 %v2684
  %v2783 = vpop.f32.mrf.mxu0
  %v2784 = vadd.f32 0.0, %v2783
  %v2785 = vpop.f32.mrf.mxu0
  %v2786 = vpop.f32.mrf.mxu0
  %v2787 = vadd.f32 0.0, %v2786
  %v2788 = vpop.f32.mrf.mxu0
  %2789 = vmatprep.mubr.bf16.mxu0 0
  %2790 = vmatmul.mubr.bf16.gmra.mxu0 %v2687
  %v2791 = vpop.f32.mrf.mxu0
  %v2792 = vadd.f32 0.0, %v2791
  %v2793 = vpop.f32.mrf.mxu0
  %v2794 = vpop.f32.mrf.mxu0
  %v2795 = vadd.f32 0.0, %v2794
  %v2796 = vpop.f32.mrf.mxu0
  %2797 = vmatprep.mubr.bf16.mxu0 0
  %2798 = vmatmul.mubr.bf16.gmra.mxu0 %v2690
  %v2799 = vpop.f32.mrf.mxu0
  %v2800 = vadd.f32 0.0, %v2799
  %v2801 = vpop.f32.mrf.mxu0
  %v2802 = vpop.f32.mrf.mxu0
  %v2803 = vadd.f32 0.0, %v2802
  %v2804 = vpop.f32.mrf.mxu0
  %2805 = vmatprep.mubr.bf16.mxu0 0
  %2806 = vmatmul.mubr.bf16.gmra.mxu0 %v2693
  %v2807 = vpop.f32.mrf.mxu0
  %v2808 = vadd.f32 0.0, %v2807
  %v2809 = vpop.f32.mrf.mxu0
  %v2810 = vpop.f32.mrf.mxu0
  %v2811 = vadd.f32 0.0, %v2810
  %v2812 = vpop.f32.mrf.mxu0
  %2813 = vmatprep.mubr.bf16.mxu0 0
  %2814 = vmatmul.mubr.bf16.gmra.mxu0 %v2696
  %v2815 = vpop.f32.mrf.mxu0
  %v2816 = vadd.f32 0.0, %v2815
  %v2817 = vpop.f32.mrf.mxu0
  %v2818 = vpop.f32.mrf.mxu0
  %v2819 = vadd.f32 0.0, %v2818
  %v2820 = vpop.f32.mrf.mxu0
  %2821 = vmatprep.mubr.bf16.mxu0 0
  %2822 = vmatmul.mubr.bf16.gmra.mxu0 %v2699
  %v2823 = vpop.f32.mrf.mxu0
  %v2824 = vadd.f32 0.0, %v2823
  %v2825 = vpop.f32.mrf.mxu0
  %v2826 = vpop.f32.mrf.mxu0
  %v2827 = vadd.f32 0.0, %v2826
  %v2828 = vpop.f32.mrf.mxu0
  %2829 = vmatprep.mubr.bf16.mxu0 0
  %2830 = vmatmul.mubr.bf16.gmra.mxu0 %v2702
  %v2831 = vpop.f32.mrf.mxu0
  %v2832 = vadd.f32 0.0, %v2831
  %v2833 = vpop.f32.mrf.mxu0
  %v2834 = vpop.f32.mrf.mxu0
  %v2835 = vadd.f32 0.0, %v2834
  %v2836 = vpop.f32.mrf.mxu0
  %2837 = vmatprep.mubr.bf16.mxu0 0
  %2838 = vmatmul.mubr.bf16.gmra.mxu0 %v2705
  %v2839 = vpop.f32.mrf.mxu0
  %v2840 = vadd.f32 0.0, %v2839
  %v2841 = vpop.f32.mrf.mxu0
  %v2842 = vpop.f32.mrf.mxu0
  %v2843 = vadd.f32 0.0, %v2842
  %v2844 = vpop.f32.mrf.mxu0
  %2845 = vmatprep.mubr.bf16.mxu0 0
  %2846 = vmatmul.mubr.bf16.gmra.mxu0 %v2708
  %v2847 = vpop.f32.mrf.mxu0
  %v2848 = vadd.f32 0.0, %v2847
  %v2849 = vpop.f32.mrf.mxu0
  %v2850 = vpop.f32.mrf.mxu0
  %v2851 = vadd.f32 0.0, %v2850
  %v2852 = vpop.f32.mrf.mxu0
  %2853 = vmatprep.mubr.bf16.mxu0 0
  %2854 = vmatmul.mubr.bf16.gmra.mxu0 %v2711
  %v2855 = vpop.f32.mrf.mxu0
  %v2856 = vadd.f32 0.0, %v2855
  %v2857 = vpop.f32.mrf.mxu0
  %v2858 = vpop.f32.mrf.mxu0
  %v2859 = vadd.f32 0.0, %v2858
  %v2860 = vpop.f32.mrf.mxu0
  %2861 = vmatprep.mubr.bf16.mxu0 0
  %2862 = vmatmul.mubr.bf16.gmra.mxu0 %v2714
  %v2863 = vpop.f32.mrf.mxu0
  %v2864 = vadd.f32 0.0, %v2863
  %v2865 = vpop.f32.mrf.mxu0
  %v2866 = vpop.f32.mrf.mxu0
  %v2867 = vadd.f32 0.0, %v2866
  %v2868 = vpop.f32.mrf.mxu0
  %2869 = vmatprep.mubr.bf16.mxu0 0
  %2870 = vmatmul.mubr.bf16.gmra.mxu0 %v2717
  %v2871 = vpop.f32.mrf.mxu0
  %v2872 = vadd.f32 0.0, %v2871
  %v2873 = vpop.f32.mrf.mxu0
  %v2874 = vpop.f32.mrf.mxu0
  %v2875 = vadd.f32 0.0, %v2874
  %v2876 = vpop.f32.mrf.mxu0
  %2877 = vmatprep.mubr.bf16.mxu0 0
  %2878 = vmatmul.mubr.bf16.gmra.mxu0 %v2720
  %v2879 = vpop.f32.mrf.mxu0
  %v2880 = vadd.f32 0.0, %v2879
  %v2881 = vpop.f32.mrf.mxu0
  %v2882 = vpop.f32.mrf.mxu0
  %v2883 = vadd.f32 0.0, %v2882
  %v2884 = vpop.f32.mrf.mxu0
  %2885 = vdwg.mxu0
  %v2886 = vld [vmem:[#allocation2] sm:$0xff]
  %v2887 = vld [vmem:[#allocation2 + $0x8] sm:$0xff]
  %v2888 = vld [vmem:[#allocation2 + $0x10] sm:$0xff]
  %v2889 = vld [vmem:[#allocation2 + $0x18] sm:$0xff]
  %v2890 = vld [vmem:[#allocation2 + $0x20] sm:$0xff]
  %v2891 = vld [vmem:[#allocation2 + $0x28] sm:$0xff]
  %v2892 = vld [vmem:[#allocation2 + $0x30] sm:$0xff]
  %v2893 = vld [vmem:[#allocation2 + $0x38] sm:$0xff]
  %v2894 = vld [vmem:[#allocation2 + $0x40] sm:$0xff]
  %v2895 = vld [vmem:[#allocation2 + $0x48] sm:$0xff]
  %v2896 = vld [vmem:[#allocation2 + $0x50] sm:$0xff]
  %v2897 = vld [vmem:[#allocation2 + $0x58] sm:$0xff]
  %v2898 = vld [vmem:[#allocation2 + $0x60] sm:$0xff]
  %v2899 = vld [vmem:[#allocation2 + $0x68] sm:$0xff]
  %v2900 = vld [vmem:[#allocation2 + $0x70] sm:$0xff]
  %v2901 = vld [vmem:[#allocation2 + $0x78] sm:$0xff]
  %v2902 = vld [vmem:[#allocation2 + $0x80] sm:$0xff]
  %v2903 = vld [vmem:[#allocation2 + $0x88] sm:$0xff]
  %v2904 = vld [vmem:[#allocation2 + $0x90] sm:$0xff]
  %v2905 = vld [vmem:[#allocation2 + $0x98] sm:$0xff]
  %v2906 = vld [vmem:[#allocation2 + $0xa0] sm:$0xff]
  %v2907 = vld [vmem:[#allocation2 + $0xa8] sm:$0xff]
  %v2908 = vld [vmem:[#allocation2 + $0xb0] sm:$0xff]
  %v2909 = vld [vmem:[#allocation2 + $0xb8] sm:$0xff]
  %v2910 = vld [vmem:[#allocation2 + $0xc0] sm:$0xff]
  %v2911 = vld [vmem:[#allocation2 + $0xc8] sm:$0xff]
  %v2912 = vld [vmem:[#allocation2 + $0xd0] sm:$0xff]
  %v2913 = vld [vmem:[#allocation2 + $0xd8] sm:$0xff]
  %v2914 = vld [vmem:[#allocation2 + $0xe0] sm:$0xff]
  %v2915 = vld [vmem:[#allocation2 + $0xe8] sm:$0xff]
  %v2916 = vld [vmem:[#allocation2 + $0xf0] sm:$0xff]
  %v2917 = vld [vmem:[#allocation2 + $0xf8] sm:$0xff]
  %v2918 = vadd.f32 %v2886, %v2760
  %v2919 = vadd.f32 %v2887, %v2763
  %v2920 = vadd.f32 %v2888, %v2768
  %v2921 = vadd.f32 %v2889, %v2771
  %v2922 = vadd.f32 %v2890, %v2776
  %v2923 = vadd.f32 %v2891, %v2779
  %v2924 = vadd.f32 %v2892, %v2784
  %v2925 = vadd.f32 %v2893, %v2787
  %v2926 = vadd.f32 %v2894, %v2792
  %v2927 = vadd.f32 %v2895, %v2795
  %v2928 = vadd.f32 %v2896, %v2800
  %v2929 = vadd.f32 %v2897, %v2803
  %v2930 = vadd.f32 %v2898, %v2808
  %v2931 = vadd.f32 %v2899, %v2811
  %v2932 = vadd.f32 %v2900, %v2816
  %v2933 = vadd.f32 %v2901, %v2819
  %v2934 = vadd.f32 %v2902, %v2824
  %v2935 = vadd.f32 %v2903, %v2827
  %v2936 = vadd.f32 %v2904, %v2832
  %v2937 = vadd.f32 %v2905, %v2835
  %v2938 = vadd.f32 %v2906, %v2840
  %v2939 = vadd.f32 %v2907, %v2843
  %v2940 = vadd.f32 %v2908, %v2848
  %v2941 = vadd.f32 %v2909, %v2851
  %v2942 = vadd.f32 %v2910, %v2856
  %v2943 = vadd.f32 %v2911, %v2859
  %v2944 = vadd.f32 %v2912, %v2864
  %v2945 = vadd.f32 %v2913, %v2867
  %v2946 = vadd.f32 %v2914, %v2872
  %v2947 = vadd.f32 %v2915, %v2875
  %v2948 = vadd.f32 %v2916, %v2880
  %v2949 = vadd.f32 %v2917, %v2883
  %2950 = vst.msk [vmem:[#allocation2] sm:$0xff] %vm342, %v2918
  %2951 = vst.msk [vmem:[#allocation2 + $0x8] sm:$0xff] %vm342, %v2919
  %2952 = vst.msk [vmem:[#allocation2 + $0x10] sm:$0xff] %vm342, %v2920
  %2953 = vst.msk [vmem:[#allocation2 + $0x18] sm:$0xff] %vm342, %v2921
  %2954 = vst.msk [vmem:[#allocation2 + $0x20] sm:$0xff] %vm342, %v2922
  %2955 = vst.msk [vmem:[#allocation2 + $0x28] sm:$0xff] %vm342, %v2923
  %2956 = vst.msk [vmem:[#allocation2 + $0x30] sm:$0xff] %vm342, %v2924
  %2957 = vst.msk [vmem:[#allocation2 + $0x38] sm:$0xff] %vm342, %v2925
  %2958 = vst.msk [vmem:[#allocation2 + $0x40] sm:$0xff] %vm342, %v2926
  %2959 = vst.msk [vmem:[#allocation2 + $0x48] sm:$0xff] %vm342, %v2927
  %2960 = vst.msk [vmem:[#allocation2 + $0x50] sm:$0xff] %vm342, %v2928
  %2961 = vst.msk [vmem:[#allocation2 + $0x58] sm:$0xff] %vm342, %v2929
  %2962 = vst.msk [vmem:[#allocation2 + $0x60] sm:$0xff] %vm342, %v2930
  %2963 = vst.msk [vmem:[#allocation2 + $0x68] sm:$0xff] %vm342, %v2931
  %2964 = vst.msk [vmem:[#allocation2 + $0x70] sm:$0xff] %vm342, %v2932
  %2965 = vst.msk [vmem:[#allocation2 + $0x78] sm:$0xff] %vm342, %v2933
  %2966 = vst.msk [vmem:[#allocation2 + $0x80] sm:$0xff] %vm342, %v2934
  %2967 = vst.msk [vmem:[#allocation2 + $0x88] sm:$0xff] %vm342, %v2935
  %2968 = vst.msk [vmem:[#allocation2 + $0x90] sm:$0xff] %vm342, %v2936
  %2969 = vst.msk [vmem:[#allocation2 + $0x98] sm:$0xff] %vm342, %v2937
  %2970 = vst.msk [vmem:[#allocation2 + $0xa0] sm:$0xff] %vm342, %v2938
  %2971 = vst.msk [vmem:[#allocation2 + $0xa8] sm:$0xff] %vm342, %v2939
  %2972 = vst.msk [vmem:[#allocation2 + $0xb0] sm:$0xff] %vm342, %v2940
  %2973 = vst.msk [vmem:[#allocation2 + $0xb8] sm:$0xff] %vm342, %v2941
  %2974 = vst.msk [vmem:[#allocation2 + $0xc0] sm:$0xff] %vm342, %v2942
  %2975 = vst.msk [vmem:[#allocation2 + $0xc8] sm:$0xff] %vm342, %v2943
  %2976 = vst.msk [vmem:[#allocation2 + $0xd0] sm:$0xff] %vm342, %v2944
  %2977 = vst.msk [vmem:[#allocation2 + $0xd8] sm:$0xff] %vm342, %v2945
  %2978 = vst.msk [vmem:[#allocation2 + $0xe0] sm:$0xff] %vm342, %v2946
  %2979 = vst.msk [vmem:[#allocation2 + $0xe8] sm:$0xff] %vm342, %v2947
  %2980 = vst.msk [vmem:[#allocation2 + $0xf0] sm:$0xff] %vm342, %v2948
  %2981 = vst.msk [vmem:[#allocation2 + $0xf8] sm:$0xff] %vm342, %v2949
  %v2982 = vld [vmem:[%s0 + $0xa0] sm:$0xf]
  %v2983 = vld [vmem:[%s0 + $0xa4] sm:$0xf]
  %v2984 = vld [vmem:[%s0 + $0xa8] sm:$0xf]
  %v2985 = vld [vmem:[%s0 + $0xac] sm:$0xf]
  %v2986 = vld [vmem:[%s0 + $0xb0] sm:$0xf]
  %v2987 = vld [vmem:[%s0 + $0xb4] sm:$0xf]
  %v2988 = vld [vmem:[%s0 + $0xb8] sm:$0xf]
  %v2989 = vld [vmem:[%s0 + $0xbc] sm:$0xf]
  %v2990 = vld [vmem:[%s0 + $0xc0] sm:$0xf]
  %v2991 = vld [vmem:[%s0 + $0xc4] sm:$0xf]
  %v2992 = vld [vmem:[%s0 + $0xc8] sm:$0xf]
  %v2993 = vld [vmem:[%s0 + $0xcc] sm:$0xf]
  %v2994 = vld [vmem:[%s0 + $0xd0] sm:$0xf]
  %v2995 = vld [vmem:[%s0 + $0xd4] sm:$0xf]
  %v2996 = vld [vmem:[%s0 + $0xd8] sm:$0xf]
  %v2997 = vld [vmem:[%s0 + $0xdc] sm:$0xf]
  %v2998 = vld [vmem:[%s0 + $0xe0] sm:$0xf]
  %v2999 = vld [vmem:[%s0 + $0xe4] sm:$0xf]
  %v3000 = vld [vmem:[%s0 + $0xe8] sm:$0xf]
  %v3001 = vld [vmem:[%s0 + $0xec] sm:$0xf]
  %v3002 = vld [vmem:[%s0 + $0xf0] sm:$0xf]
  %v3003 = vld [vmem:[%s0 + $0xf4] sm:$0xf]
  %v3004 = vld [vmem:[%s0 + $0xf8] sm:$0xf]
  %v3005 = vld [vmem:[%s0 + $0xfc] sm:$0xf]
  %v3006 = vld [vmem:[%s0 + $0x100] sm:$0xf]
  %v3007 = vld [vmem:[%s0 + $0x104] sm:$0xf]
  %v3008 = vld [vmem:[%s0 + $0x108] sm:$0xf]
  %v3009 = vld [vmem:[%s0 + $0x10c] sm:$0xf]
  %v3010 = vld [vmem:[%s0 + $0x110] sm:$0xf]
  %v3011 = vld [vmem:[%s0 + $0x114] sm:$0xf]
  %v3012 = vld [vmem:[%s0 + $0x118] sm:$0xf]
  %v3013 = vld [vmem:[%s0 + $0x11c] sm:$0xf]
  %s3014 = scalar_lea.vmem %s1, 14
  %v3015 = vld [vmem:[%s3014] sm:$0x3]
  %v3048 = vunpack.c.l.b16 %v2982
  %v3049 = vunpack.c.l.b16 %v2983
  %v3050 = vunpack.c.l.b16 %v2984
  %v3051 = vunpack.c.l.b16 %v2985
  %v3052 = vunpack.c.l.b16 %v2986
  %v3053 = vunpack.c.l.b16 %v2987
  %v3054 = vunpack.c.l.b16 %v2988
  %v3055 = vunpack.c.l.b16 %v2989
  %v3056 = vunpack.c.l.b16 %v2990
  %v3057 = vunpack.c.l.b16 %v2991
  %v3058 = vunpack.c.l.b16 %v2992
  %v3059 = vunpack.c.l.b16 %v2993
  %v3060 = vunpack.c.l.b16 %v2994
  %v3061 = vunpack.c.l.b16 %v2995
  %v3062 = vunpack.c.l.b16 %v2996
  %v3063 = vunpack.c.l.b16 %v2997
  %v3064 = vunpack.c.l.b16 %v2998
  %v3065 = vunpack.c.l.b16 %v2999
  %v3066 = vunpack.c.l.b16 %v3000
  %v3067 = vunpack.c.l.b16 %v3001
  %v3068 = vunpack.c.l.b16 %v3002
  %v3069 = vunpack.c.l.b16 %v3003
  %v3070 = vunpack.c.l.b16 %v3004
  %v3071 = vunpack.c.l.b16 %v3005
  %v3072 = vunpack.c.l.b16 %v3006
  %v3073 = vunpack.c.l.b16 %v3007
  %v3074 = vunpack.c.l.b16 %v3008
  %v3075 = vunpack.c.l.b16 %v3009
  %v3076 = vunpack.c.l.b16 %v3010
  %v3077 = vunpack.c.l.b16 %v3011
  %v3078 = vunpack.c.l.b16 %v3012
  %v3079 = vunpack.c.l.b16 %v3013
  %v3080 = vpack.c.b16 %v3049, %v3048
  %v3081 = vpack.c.b16 %v3051, %v3050
  %v3082 = vpack.c.b16 %v3053, %v3052
  %v3083 = vpack.c.b16 %v3055, %v3054
  %v3084 = vpack.c.b16 %v3057, %v3056
  %v3085 = vpack.c.b16 %v3059, %v3058
  %v3086 = vpack.c.b16 %v3061, %v3060
  %v3087 = vpack.c.b16 %v3063, %v3062
  %v3088 = vpack.c.b16 %v3065, %v3064
  %v3089 = vpack.c.b16 %v3067, %v3066
  %v3090 = vpack.c.b16 %v3069, %v3068
  %v3091 = vpack.c.b16 %v3071, %v3070
  %v3092 = vpack.c.b16 %v3073, %v3072
  %v3093 = vpack.c.b16 %v3075, %v3074
  %v3094 = vpack.c.b16 %v3077, %v3076
  %v3095 = vpack.c.b16 %v3079, %v3078
  %v3097 = vsel %vm128, %v3080, 0
  %v3100 = vsel %vm128, %v3081, 0
  %v3103 = vsel %vm128, %v3082, 0
  %v3106 = vsel %vm128, %v3083, 0
  %v3109 = vsel %vm128, %v3084, 0
  %v3112 = vsel %vm128, %v3085, 0
  %v3115 = vsel %vm128, %v3086, 0
  %v3118 = vsel %vm128, %v3087, 0
  %v3121 = vsel %vm128, %v3088, 0
  %v3124 = vsel %vm128, %v3089, 0
  %v3127 = vsel %vm128, %v3090, 0
  %v3130 = vsel %vm128, %v3091, 0
  %v3133 = vsel %vm128, %v3092, 0
  %v3136 = vsel %vm128, %v3093, 0
  %v3139 = vsel %vm128, %v3094, 0
  %v3142 = vsel %vm128, %v3095, 0
  %v3145 = vsel %vm177, %v3015, 0
  %3147 = vmatprep.subr.bf16.mxu0 0
  %3148 = vmatpush1.bf16.msra.mxu0 0
  %3149 = vmatprep.subr.bf16.mxu0 0
  %3150 = vmatpush1.bf16.msra.mxu0 0
  %3151 = vmatprep.subr.bf16.mxu0 0
  %3152 = vmatpush1.bf16.msra.mxu0 0
  %3153 = vmatprep.subr.bf16.mxu0 0
  %3154 = vmatpush1.bf16.msra.mxu0 0
  %3155 = vmatprep.subr.bf16.mxu0 0
  %3156 = vmatpush1.bf16.msra.mxu0 0
  %3157 = vmatprep.subr.bf16.mxu0 0
  %3158 = vmatpush1.bf16.msra.mxu0 0
  %3159 = vmatprep.subr.bf16.mxu0 0
  %3160 = vmatpush1.bf16.msra.mxu0 0
  %3161 = vmatprep.subr.bf16.mxu0 0
  %3162 = vmatpush1.bf16.msra.mxu0 %v3145
  %3163 = vmatprep.subr.bf16.mxu0 0
  %3164 = vmatpush2.bf16.msra.mxu0 0
  %3165 = vmatprep.subr.bf16.mxu0 0
  %3166 = vmatpush2.bf16.msra.mxu0 0
  %3167 = vmatprep.subr.bf16.mxu0 0
  %3168 = vmatpush2.bf16.msra.mxu0 0
  %3169 = vmatprep.subr.bf16.mxu0 0
  %3170 = vmatpush2.bf16.msra.mxu0 0
  %3171 = vmatprep.subr.bf16.mxu0 0
  %3172 = vmatpush2.bf16.msra.mxu0 0
  %3173 = vmatprep.subr.bf16.mxu0 0
  %3174 = vmatpush2.bf16.msra.mxu0 0
  %3175 = vmatprep.subr.bf16.mxu0 0
  %3176 = vmatpush2.bf16.msra.mxu0 0
  %3177 = vmatprep.subr.bf16.mxu0 0
  %3178 = vmatpush2.bf16.msra.mxu0 0
  %3179 = vmatprep.mubr.bf16.mxu0 0
  %3180 = vmatmul.mubr.bf16.gmra.mxu0 %v3097
  %v3181 = vpop.f32.mrf.mxu0
  %v3182 = vadd.f32 0.0, %v3181
  %v3183 = vpop.f32.mrf.mxu0
  %v3184 = vpop.f32.mrf.mxu0
  %v3185 = vadd.f32 0.0, %v3184
  %v3186 = vpop.f32.mrf.mxu0
  %3187 = vmatprep.mubr.bf16.mxu0 0
  %3188 = vmatmul.mubr.bf16.gmra.mxu0 %v3100
  %v3189 = vpop.f32.mrf.mxu0
  %v3190 = vadd.f32 0.0, %v3189
  %v3191 = vpop.f32.mrf.mxu0
  %v3192 = vpop.f32.mrf.mxu0
  %v3193 = vadd.f32 0.0, %v3192
  %v3194 = vpop.f32.mrf.mxu0
  %3195 = vmatprep.mubr.bf16.mxu0 0
  %3196 = vmatmul.mubr.bf16.gmra.mxu0 %v3103
  %v3197 = vpop.f32.mrf.mxu0
  %v3198 = vadd.f32 0.0, %v3197
  %v3199 = vpop.f32.mrf.mxu0
  %v3200 = vpop.f32.mrf.mxu0
  %v3201 = vadd.f32 0.0, %v3200
  %v3202 = vpop.f32.mrf.mxu0
  %3203 = vmatprep.mubr.bf16.mxu0 0
  %3204 = vmatmul.mubr.bf16.gmra.mxu0 %v3106
  %v3205 = vpop.f32.mrf.mxu0
  %v3206 = vadd.f32 0.0, %v3205
  %v3207 = vpop.f32.mrf.mxu0
  %v3208 = vpop.f32.mrf.mxu0
  %v3209 = vadd.f32 0.0, %v3208
  %v3210 = vpop.f32.mrf.mxu0
  %3211 = vmatprep.mubr.bf16.mxu0 0
  %3212 = vmatmul.mubr.bf16.gmra.mxu0 %v3109
  %v3213 = vpop.f32.mrf.mxu0
  %v3214 = vadd.f32 0.0, %v3213
  %v3215 = vpop.f32.mrf.mxu0
  %v3216 = vpop.f32.mrf.mxu0
  %v3217 = vadd.f32 0.0, %v3216
  %v3218 = vpop.f32.mrf.mxu0
  %3219 = vmatprep.mubr.bf16.mxu0 0
  %3220 = vmatmul.mubr.bf16.gmra.mxu0 %v3112
  %v3221 = vpop.f32.mrf.mxu0
  %v3222 = vadd.f32 0.0, %v3221
  %v3223 = vpop.f32.mrf.mxu0
  %v3224 = vpop.f32.mrf.mxu0
  %v3225 = vadd.f32 0.0, %v3224
  %v3226 = vpop.f32.mrf.mxu0
  %3227 = vmatprep.mubr.bf16.mxu0 0
  %3228 = vmatmul.mubr.bf16.gmra.mxu0 %v3115
  %v3229 = vpop.f32.mrf.mxu0
  %v3230 = vadd.f32 0.0, %v3229
  %v3231 = vpop.f32.mrf.mxu0
  %v3232 = vpop.f32.mrf.mxu0
  %v3233 = vadd.f32 0.0, %v3232
  %v3234 = vpop.f32.mrf.mxu0
  %3235 = vmatprep.mubr.bf16.mxu0 0
  %3236 = vmatmul.mubr.bf16.gmra.mxu0 %v3118
  %v3237 = vpop.f32.mrf.mxu0
  %v3238 = vadd.f32 0.0, %v3237
  %v3239 = vpop.f32.mrf.mxu0
  %v3240 = vpop.f32.mrf.mxu0
  %v3241 = vadd.f32 0.0, %v3240
  %v3242 = vpop.f32.mrf.mxu0
  %3243 = vmatprep.mubr.bf16.mxu0 0
  %3244 = vmatmul.mubr.bf16.gmra.mxu0 %v3121
  %v3245 = vpop.f32.mrf.mxu0
  %v3246 = vadd.f32 0.0, %v3245
  %v3247 = vpop.f32.mrf.mxu0
  %v3248 = vpop.f32.mrf.mxu0
  %v3249 = vadd.f32 0.0, %v3248
  %v3250 = vpop.f32.mrf.mxu0
  %3251 = vmatprep.mubr.bf16.mxu0 0
  %3252 = vmatmul.mubr.bf16.gmra.mxu0 %v3124
  %v3253 = vpop.f32.mrf.mxu0
  %v3254 = vadd.f32 0.0, %v3253
  %v3255 = vpop.f32.mrf.mxu0
  %v3256 = vpop.f32.mrf.mxu0
  %v3257 = vadd.f32 0.0, %v3256
  %v3258 = vpop.f32.mrf.mxu0
  %3259 = vmatprep.mubr.bf16.mxu0 0
  %3260 = vmatmul.mubr.bf16.gmra.mxu0 %v3127
  %v3261 = vpop.f32.mrf.mxu0
  %v3262 = vadd.f32 0.0, %v3261
  %v3263 = vpop.f32.mrf.mxu0
  %v3264 = vpop.f32.mrf.mxu0
  %v3265 = vadd.f32 0.0, %v3264
  %v3266 = vpop.f32.mrf.mxu0
  %3267 = vmatprep.mubr.bf16.mxu0 0
  %3268 = vmatmul.mubr.bf16.gmra.mxu0 %v3130
  %v3269 = vpop.f32.mrf.mxu0
  %v3270 = vadd.f32 0.0, %v3269
  %v3271 = vpop.f32.mrf.mxu0
  %v3272 = vpop.f32.mrf.mxu0
  %v3273 = vadd.f32 0.0, %v3272
  %v3274 = vpop.f32.mrf.mxu0
  %3275 = vmatprep.mubr.bf16.mxu0 0
  %3276 = vmatmul.mubr.bf16.gmra.mxu0 %v3133
  %v3277 = vpop.f32.mrf.mxu0
  %v3278 = vadd.f32 0.0, %v3277
  %v3279 = vpop.f32.mrf.mxu0
  %v3280 = vpop.f32.mrf.mxu0
  %v3281 = vadd.f32 0.0, %v3280
  %v3282 = vpop.f32.mrf.mxu0
  %3283 = vmatprep.mubr.bf16.mxu0 0
  %3284 = vmatmul.mubr.bf16.gmra.mxu0 %v3136
  %v3285 = vpop.f32.mrf.mxu0
  %v3286 = vadd.f32 0.0, %v3285
  %v3287 = vpop.f32.mrf.mxu0
  %v3288 = vpop.f32.mrf.mxu0
  %v3289 = vadd.f32 0.0, %v3288
  %v3290 = vpop.f32.mrf.mxu0
  %3291 = vmatprep.mubr.bf16.mxu0 0
  %3292 = vmatmul.mubr.bf16.gmra.mxu0 %v3139
  %v3293 = vpop.f32.mrf.mxu0
  %v3294 = vadd.f32 0.0, %v3293
  %v3295 = vpop.f32.mrf.mxu0
  %v3296 = vpop.f32.mrf.mxu0
  %v3297 = vadd.f32 0.0, %v3296
  %v3298 = vpop.f32.mrf.mxu0
  %3299 = vmatprep.mubr.bf16.mxu0 0
  %3300 = vmatmul.mubr.bf16.gmra.mxu0 %v3142
  %v3301 = vpop.f32.mrf.mxu0
  %v3302 = vadd.f32 0.0, %v3301
  %v3303 = vpop.f32.mrf.mxu0
  %v3304 = vpop.f32.mrf.mxu0
  %v3305 = vadd.f32 0.0, %v3304
  %v3306 = vpop.f32.mrf.mxu0
  %3307 = vdwg.mxu0
  %v3308 = vld [vmem:[#allocation2] sm:$0xff]
  %v3309 = vld [vmem:[#allocation2 + $0x8] sm:$0xff]
  %v3310 = vld [vmem:[#allocation2 + $0x10] sm:$0xff]
  %v3311 = vld [vmem:[#allocation2 + $0x18] sm:$0xff]
  %v3312 = vld [vmem:[#allocation2 + $0x20] sm:$0xff]
  %v3313 = vld [vmem:[#allocation2 + $0x28] sm:$0xff]
  %v3314 = vld [vmem:[#allocation2 + $0x30] sm:$0xff]
  %v3315 = vld [vmem:[#allocation2 + $0x38] sm:$0xff]
  %v3316 = vld [vmem:[#allocation2 + $0x40] sm:$0xff]
  %v3317 = vld [vmem:[#allocation2 + $0x48] sm:$0xff]
  %v3318 = vld [vmem:[#allocation2 + $0x50] sm:$0xff]
  %v3319 = vld [vmem:[#allocation2 + $0x58] sm:$0xff]
  %v3320 = vld [vmem:[#allocation2 + $0x60] sm:$0xff]
  %v3321 = vld [vmem:[#allocation2 + $0x68] sm:$0xff]
  %v3322 = vld [vmem:[#allocation2 + $0x70] sm:$0xff]
  %v3323 = vld [vmem:[#allocation2 + $0x78] sm:$0xff]
  %v3324 = vld [vmem:[#allocation2 + $0x80] sm:$0xff]
  %v3325 = vld [vmem:[#allocation2 + $0x88] sm:$0xff]
  %v3326 = vld [vmem:[#allocation2 + $0x90] sm:$0xff]
  %v3327 = vld [vmem:[#allocation2 + $0x98] sm:$0xff]
  %v3328 = vld [vmem:[#allocation2 + $0xa0] sm:$0xff]
  %v3329 = vld [vmem:[#allocation2 + $0xa8] sm:$0xff]
  %v3330 = vld [vmem:[#allocation2 + $0xb0] sm:$0xff]
  %v3331 = vld [vmem:[#allocation2 + $0xb8] sm:$0xff]
  %v3332 = vld [vmem:[#allocation2 + $0xc0] sm:$0xff]
  %v3333 = vld [vmem:[#allocation2 + $0xc8] sm:$0xff]
  %v3334 = vld [vmem:[#allocation2 + $0xd0] sm:$0xff]
  %v3335 = vld [vmem:[#allocation2 + $0xd8] sm:$0xff]
  %v3336 = vld [vmem:[#allocation2 + $0xe0] sm:$0xff]
  %v3337 = vld [vmem:[#allocation2 + $0xe8] sm:$0xff]
  %v3338 = vld [vmem:[#allocation2 + $0xf0] sm:$0xff]
  %v3339 = vld [vmem:[#allocation2 + $0xf8] sm:$0xff]
  %v3340 = vadd.f32 %v3308, %v3182
  %v3341 = vadd.f32 %v3309, %v3185
  %v3342 = vadd.f32 %v3310, %v3190
  %v3343 = vadd.f32 %v3311, %v3193
  %v3344 = vadd.f32 %v3312, %v3198
  %v3345 = vadd.f32 %v3313, %v3201
  %v3346 = vadd.f32 %v3314, %v3206
  %v3347 = vadd.f32 %v3315, %v3209
  %v3348 = vadd.f32 %v3316, %v3214
  %v3349 = vadd.f32 %v3317, %v3217
  %v3350 = vadd.f32 %v3318, %v3222
  %v3351 = vadd.f32 %v3319, %v3225
  %v3352 = vadd.f32 %v3320, %v3230
  %v3353 = vadd.f32 %v3321, %v3233
  %v3354 = vadd.f32 %v3322, %v3238
  %v3355 = vadd.f32 %v3323, %v3241
  %v3356 = vadd.f32 %v3324, %v3246
  %v3357 = vadd.f32 %v3325, %v3249
  %v3358 = vadd.f32 %v3326, %v3254
  %v3359 = vadd.f32 %v3327, %v3257
  %v3360 = vadd.f32 %v3328, %v3262
  %v3361 = vadd.f32 %v3329, %v3265
  %v3362 = vadd.f32 %v3330, %v3270
  %v3363 = vadd.f32 %v3331, %v3273
  %v3364 = vadd.f32 %v3332, %v3278
  %v3365 = vadd.f32 %v3333, %v3281
  %v3366 = vadd.f32 %v3334, %v3286
  %v3367 = vadd.f32 %v3335, %v3289
  %v3368 = vadd.f32 %v3336, %v3294
  %v3369 = vadd.f32 %v3337, %v3297
  %v3370 = vadd.f32 %v3338, %v3302
  %v3371 = vadd.f32 %v3339, %v3305
  %3372 = vst.msk [vmem:[#allocation2] sm:$0xff] %vm342, %v3340
  %3373 = vst.msk [vmem:[#allocation2 + $0x8] sm:$0xff] %vm342, %v3341
  %3374 = vst.msk [vmem:[#allocation2 + $0x10] sm:$0xff] %vm342, %v3342
  %3375 = vst.msk [vmem:[#allocation2 + $0x18] sm:$0xff] %vm342, %v3343
  %3376 = vst.msk [vmem:[#allocation2 + $0x20] sm:$0xff] %vm342, %v3344
  %3377 = vst.msk [vmem:[#allocation2 + $0x28] sm:$0xff] %vm342, %v3345
  %3378 = vst.msk [vmem:[#allocation2 + $0x30] sm:$0xff] %vm342, %v3346
  %3379 = vst.msk [vmem:[#allocation2 + $0x38] sm:$0xff] %vm342, %v3347
  %3380 = vst.msk [vmem:[#allocation2 + $0x40] sm:$0xff] %vm342, %v3348
  %3381 = vst.msk [vmem:[#allocation2 + $0x48] sm:$0xff] %vm342, %v3349
  %3382 = vst.msk [vmem:[#allocation2 + $0x50] sm:$0xff] %vm342, %v3350
  %3383 = vst.msk [vmem:[#allocation2 + $0x58] sm:$0xff] %vm342, %v3351
  %3384 = vst.msk [vmem:[#allocation2 + $0x60] sm:$0xff] %vm342, %v3352
  %3385 = vst.msk [vmem:[#allocation2 + $0x68] sm:$0xff] %vm342, %v3353
  %3386 = vst.msk [vmem:[#allocation2 + $0x70] sm:$0xff] %vm342, %v3354
  %3387 = vst.msk [vmem:[#allocation2 + $0x78] sm:$0xff] %vm342, %v3355
  %3388 = vst.msk [vmem:[#allocation2 + $0x80] sm:$0xff] %vm342, %v3356
  %3389 = vst.msk [vmem:[#allocation2 + $0x88] sm:$0xff] %vm342, %v3357
  %3390 = vst.msk [vmem:[#allocation2 + $0x90] sm:$0xff] %vm342, %v3358
  %3391 = vst.msk [vmem:[#allocation2 + $0x98] sm:$0xff] %vm342, %v3359
  %3392 = vst.msk [vmem:[#allocation2 + $0xa0] sm:$0xff] %vm342, %v3360
  %3393 = vst.msk [vmem:[#allocation2 + $0xa8] sm:$0xff] %vm342, %v3361
  %3394 = vst.msk [vmem:[#allocation2 + $0xb0] sm:$0xff] %vm342, %v3362
  %3395 = vst.msk [vmem:[#allocation2 + $0xb8] sm:$0xff] %vm342, %v3363
  %3396 = vst.msk [vmem:[#allocation2 + $0xc0] sm:$0xff] %vm342, %v3364
  %3397 = vst.msk [vmem:[#allocation2 + $0xc8] sm:$0xff] %vm342, %v3365
  %3398 = vst.msk [vmem:[#allocation2 + $0xd0] sm:$0xff] %vm342, %v3366
  %3399 = vst.msk [vmem:[#allocation2 + $0xd8] sm:$0xff] %vm342, %v3367
  %3400 = vst.msk [vmem:[#allocation2 + $0xe0] sm:$0xff] %vm342, %v3368
  %3401 = vst.msk [vmem:[#allocation2 + $0xe8] sm:$0xff] %vm342, %v3369
  %3402 = vst.msk [vmem:[#allocation2 + $0xf0] sm:$0xff] %vm342, %v3370
  %3403 = vst.msk [vmem:[#allocation2 + $0xf8] sm:$0xff] %vm342, %v3371
  %v3404 = vld [vmem:[%s0 + $0x10] sm:$0xe]
  %v3405 = vld [vmem:[%s0 + $0x14] sm:$0xf]
  %v3406 = vld [vmem:[%s0 + $0x18] sm:$0xf]
  %v3407 = vld [vmem:[%s0 + $0x1c] sm:$0xf]
  %v3408 = vld [vmem:[%s0 + $0x20] sm:$0xf]
  %v3409 = vld [vmem:[%s0 + $0x24] sm:$0xf]
  %v3410 = vld [vmem:[%s0 + $0x28] sm:$0xf]
  %v3411 = vld [vmem:[%s0 + $0x2c] sm:$0xf]
  %v3412 = vld [vmem:[%s0 + $0x30] sm:$0xf]
  %v3413 = vld [vmem:[%s0 + $0x34] sm:$0xf]
  %v3414 = vld [vmem:[%s0 + $0x38] sm:$0xf]
  %v3415 = vld [vmem:[%s0 + $0x3c] sm:$0xf]
  %v3416 = vld [vmem:[%s0 + $0x40] sm:$0xf]
  %v3417 = vld [vmem:[%s0 + $0x44] sm:$0xf]
  %v3418 = vld [vmem:[%s0 + $0x48] sm:$0xf]
  %v3419 = vld [vmem:[%s0 + $0x4c] sm:$0xf]
  %v3420 = vld [vmem:[%s0 + $0x50] sm:$0xf]
  %v3421 = vld [vmem:[%s0 + $0x54] sm:$0xf]
  %v3422 = vld [vmem:[%s0 + $0x58] sm:$0xf]
  %v3423 = vld [vmem:[%s0 + $0x5c] sm:$0xf]
  %v3424 = vld [vmem:[%s0 + $0x60] sm:$0xf]
  %v3425 = vld [vmem:[%s0 + $0x64] sm:$0xf]
  %v3426 = vld [vmem:[%s0 + $0x68] sm:$0xf]
  %v3427 = vld [vmem:[%s0 + $0x6c] sm:$0xf]
  %v3428 = vld [vmem:[%s0 + $0x70] sm:$0xf]
  %v3429 = vld [vmem:[%s0 + $0x74] sm:$0xf]
  %v3430 = vld [vmem:[%s0 + $0x78] sm:$0xf]
  %v3431 = vld [vmem:[%s0 + $0x7c] sm:$0xf]
  %v3432 = vld [vmem:[%s0 + $0x80] sm:$0xf]
  %v3433 = vld [vmem:[%s0 + $0x84] sm:$0xf]
  %v3434 = vld [vmem:[%s0 + $0x88] sm:$0xf]
  %v3435 = vld [vmem:[%s0 + $0x8c] sm:$0xf]
  %v3436 = vld [vmem:[%s0 + $0x90] sm:$0x1]
  %s3437 = scalar_lea.vmem %s1, 16
  %v3438 = vld [vmem:[%s3437] sm:$0x3]
  %v3472 = vunpack.c.l.b16 %v3404
  %v3473 = vunpack.c.l.b16 %v3405
  %v3474 = vunpack.c.l.b16 %v3406
  %v3475 = vunpack.c.l.b16 %v3407
  %v3476 = vunpack.c.l.b16 %v3408
  %v3477 = vunpack.c.l.b16 %v3409
  %v3478 = vunpack.c.l.b16 %v3410
  %v3479 = vunpack.c.l.b16 %v3411
  %v3480 = vunpack.c.l.b16 %v3412
  %v3481 = vunpack.c.l.b16 %v3413
  %v3482 = vunpack.c.l.b16 %v3414
  %v3483 = vunpack.c.l.b16 %v3415
  %v3484 = vunpack.c.l.b16 %v3416
  %v3485 = vunpack.c.l.b16 %v3417
  %v3486 = vunpack.c.l.b16 %v3418
  %v3487 = vunpack.c.l.b16 %v3419
  %v3488 = vunpack.c.l.b16 %v3420
  %v3489 = vunpack.c.l.b16 %v3421
  %v3490 = vunpack.c.l.b16 %v3422
  %v3491 = vunpack.c.l.b16 %v3423
  %v3492 = vunpack.c.l.b16 %v3424
  %v3493 = vunpack.c.l.b16 %v3425
  %v3494 = vunpack.c.l.b16 %v3426
  %v3495 = vunpack.c.l.b16 %v3427
  %v3496 = vunpack.c.l.b16 %v3428
  %v3497 = vunpack.c.l.b16 %v3429
  %v3498 = vunpack.c.l.b16 %v3430
  %v3499 = vunpack.c.l.b16 %v3431
  %v3500 = vunpack.c.l.b16 %v3432
  %v3501 = vunpack.c.l.b16 %v3433
  %v3502 = vunpack.c.l.b16 %v3434
  %v3503 = vunpack.c.l.b16 %v3435
  %v3504 = vunpack.c.l.b16 %v3436
  %v3505 = vpack.c.b16 %v3473, %v3472
  %v3506 = vpack.c.b16 %v3475, %v3474
  %v3507 = vpack.c.b16 %v3477, %v3476
  %v3508 = vpack.c.b16 %v3479, %v3478
  %v3509 = vpack.c.b16 %v3481, %v3480
  %v3510 = vpack.c.b16 %v3483, %v3482
  %v3511 = vpack.c.b16 %v3485, %v3484
  %v3512 = vpack.c.b16 %v3487, %v3486
  %v3513 = vpack.c.b16 %v3489, %v3488
  %v3514 = vpack.c.b16 %v3491, %v3490
  %v3515 = vpack.c.b16 %v3493, %v3492
  %v3516 = vpack.c.b16 %v3495, %v3494
  %v3517 = vpack.c.b16 %v3497, %v3496
  %v3518 = vpack.c.b16 %v3499, %v3498
  %v3519 = vpack.c.b16 %v3501, %v3500
  %v3520 = vpack.c.b16 %v3503, %v3502
  %v3521 = vpack.c.b16 %v3504, %v3504
  %v3522 = vrot.slane %v3505, 1
  %v3523 = vrot.slane %v3506, 1
  %v3524 = vsel %vm915, %v3522, %v3523
  %v3525 = vrot.slane %v3507, 1
  %v3526 = vsel %vm915, %v3523, %v3525
  %v3527 = vrot.slane %v3508, 1
  %v3528 = vsel %vm915, %v3525, %v3527
  %v3529 = vrot.slane %v3509, 1
  %v3530 = vsel %vm915, %v3527, %v3529
  %v3531 = vrot.slane %v3510, 1
  %v3532 = vsel %vm915, %v3529, %v3531
  %v3533 = vrot.slane %v3511, 1
  %v3534 = vsel %vm915, %v3531, %v3533
  %v3535 = vrot.slane %v3512, 1
  %v3536 = vsel %vm915, %v3533, %v3535
  %v3537 = vrot.slane %v3513, 1
  %v3538 = vsel %vm915, %v3535, %v3537
  %v3539 = vrot.slane %v3514, 1
  %v3540 = vsel %vm915, %v3537, %v3539
  %v3541 = vrot.slane %v3515, 1
  %v3542 = vsel %vm915, %v3539, %v3541
  %v3543 = vrot.slane %v3516, 1
  %v3544 = vsel %vm915, %v3541, %v3543
  %v3545 = vrot.slane %v3517, 1
  %v3546 = vsel %vm915, %v3543, %v3545
  %v3547 = vrot.slane %v3518, 1
  %v3548 = vsel %vm915, %v3545, %v3547
  %v3549 = vrot.slane %v3519, 1
  %v3550 = vsel %vm915, %v3547, %v3549
  %v3551 = vrot.slane %v3520, 1
  %v3552 = vsel %vm915, %v3549, %v3551
  %v3553 = vrot.slane %v3521, 1
  %v3554 = vsel %vm915, %v3551, %v3553
  %v3556 = vsel %vm128, %v3524, 0
  %v3559 = vsel %vm128, %v3526, 0
  %v3562 = vsel %vm128, %v3528, 0
  %v3565 = vsel %vm128, %v3530, 0
  %v3568 = vsel %vm128, %v3532, 0
  %v3571 = vsel %vm128, %v3534, 0
  %v3574 = vsel %vm128, %v3536, 0
  %v3577 = vsel %vm128, %v3538, 0
  %v3580 = vsel %vm128, %v3540, 0
  %v3583 = vsel %vm128, %v3542, 0
  %v3586 = vsel %vm128, %v3544, 0
  %v3589 = vsel %vm128, %v3546, 0
  %v3592 = vsel %vm128, %v3548, 0
  %v3595 = vsel %vm128, %v3550, 0
  %v3598 = vsel %vm128, %v3552, 0
  %v3601 = vsel %vm128, %v3554, 0
  %v3604 = vsel %vm177, %v3438, 0
  %3606 = vmatprep.subr.bf16.mxu0 0
  %3607 = vmatpush1.bf16.msra.mxu0 0
  %3608 = vmatprep.subr.bf16.mxu0 0
  %3609 = vmatpush1.bf16.msra.mxu0 0
  %3610 = vmatprep.subr.bf16.mxu0 0
  %3611 = vmatpush1.bf16.msra.mxu0 0
  %3612 = vmatprep.subr.bf16.mxu0 0
  %3613 = vmatpush1.bf16.msra.mxu0 0
  %3614 = vmatprep.subr.bf16.mxu0 0
  %3615 = vmatpush1.bf16.msra.mxu0 0
  %3616 = vmatprep.subr.bf16.mxu0 0
  %3617 = vmatpush1.bf16.msra.mxu0 0
  %3618 = vmatprep.subr.bf16.mxu0 0
  %3619 = vmatpush1.bf16.msra.mxu0 0
  %3620 = vmatprep.subr.bf16.mxu0 0
  %3621 = vmatpush1.bf16.msra.mxu0 %v3604
  %3622 = vmatprep.subr.bf16.mxu0 0
  %3623 = vmatpush2.bf16.msra.mxu0 0
  %3624 = vmatprep.subr.bf16.mxu0 0
  %3625 = vmatpush2.bf16.msra.mxu0 0
  %3626 = vmatprep.subr.bf16.mxu0 0
  %3627 = vmatpush2.bf16.msra.mxu0 0
  %3628 = vmatprep.subr.bf16.mxu0 0
  %3629 = vmatpush2.bf16.msra.mxu0 0
  %3630 = vmatprep.subr.bf16.mxu0 0
  %3631 = vmatpush2.bf16.msra.mxu0 0
  %3632 = vmatprep.subr.bf16.mxu0 0
  %3633 = vmatpush2.bf16.msra.mxu0 0
  %3634 = vmatprep.subr.bf16.mxu0 0
  %3635 = vmatpush2.bf16.msra.mxu0 0
  %3636 = vmatprep.subr.bf16.mxu0 0
  %3637 = vmatpush2.bf16.msra.mxu0 0
  %3638 = vmatprep.mubr.bf16.mxu0 0
  %3639 = vmatmul.mubr.bf16.gmra.mxu0 %v3556
  %v3640 = vpop.f32.mrf.mxu0
  %v3641 = vadd.f32 0.0, %v3640
  %v3642 = vpop.f32.mrf.mxu0
  %v3643 = vpop.f32.mrf.mxu0
  %v3644 = vadd.f32 0.0, %v3643
  %v3645 = vpop.f32.mrf.mxu0
  %3646 = vmatprep.mubr.bf16.mxu0 0
  %3647 = vmatmul.mubr.bf16.gmra.mxu0 %v3559
  %v3648 = vpop.f32.mrf.mxu0
  %v3649 = vadd.f32 0.0, %v3648
  %v3650 = vpop.f32.mrf.mxu0
  %v3651 = vpop.f32.mrf.mxu0
  %v3652 = vadd.f32 0.0, %v3651
  %v3653 = vpop.f32.mrf.mxu0
  %3654 = vmatprep.mubr.bf16.mxu0 0
  %3655 = vmatmul.mubr.bf16.gmra.mxu0 %v3562
  %v3656 = vpop.f32.mrf.mxu0
  %v3657 = vadd.f32 0.0, %v3656
  %v3658 = vpop.f32.mrf.mxu0
  %v3659 = vpop.f32.mrf.mxu0
  %v3660 = vadd.f32 0.0, %v3659
  %v3661 = vpop.f32.mrf.mxu0
  %3662 = vmatprep.mubr.bf16.mxu0 0
  %3663 = vmatmul.mubr.bf16.gmra.mxu0 %v3565
  %v3664 = vpop.f32.mrf.mxu0
  %v3665 = vadd.f32 0.0, %v3664
  %v3666 = vpop.f32.mrf.mxu0
  %v3667 = vpop.f32.mrf.mxu0
  %v3668 = vadd.f32 0.0, %v3667
  %v3669 = vpop.f32.mrf.mxu0
  %3670 = vmatprep.mubr.bf16.mxu0 0
  %3671 = vmatmul.mubr.bf16.gmra.mxu0 %v3568
  %v3672 = vpop.f32.mrf.mxu0
  %v3673 = vadd.f32 0.0, %v3672
  %v3674 = vpop.f32.mrf.mxu0
  %v3675 = vpop.f32.mrf.mxu0
  %v3676 = vadd.f32 0.0, %v3675
  %v3677 = vpop.f32.mrf.mxu0
  %3678 = vmatprep.mubr.bf16.mxu0 0
  %3679 = vmatmul.mubr.bf16.gmra.mxu0 %v3571
  %v3680 = vpop.f32.mrf.mxu0
  %v3681 = vadd.f32 0.0, %v3680
  %v3682 = vpop.f32.mrf.mxu0
  %v3683 = vpop.f32.mrf.mxu0
  %v3684 = vadd.f32 0.0, %v3683
  %v3685 = vpop.f32.mrf.mxu0
  %3686 = vmatprep.mubr.bf16.mxu0 0
  %3687 = vmatmul.mubr.bf16.gmra.mxu0 %v3574
  %v3688 = vpop.f32.mrf.mxu0
  %v3689 = vadd.f32 0.0, %v3688
  %v3690 = vpop.f32.mrf.mxu0
  %v3691 = vpop.f32.mrf.mxu0
  %v3692 = vadd.f32 0.0, %v3691
  %v3693 = vpop.f32.mrf.mxu0
  %3694 = vmatprep.mubr.bf16.mxu0 0
  %3695 = vmatmul.mubr.bf16.gmra.mxu0 %v3577
  %v3696 = vpop.f32.mrf.mxu0
  %v3697 = vadd.f32 0.0, %v3696
  %v3698 = vpop.f32.mrf.mxu0
  %v3699 = vpop.f32.mrf.mxu0
  %v3700 = vadd.f32 0.0, %v3699
  %v3701 = vpop.f32.mrf.mxu0
  %3702 = vmatprep.mubr.bf16.mxu0 0
  %3703 = vmatmul.mubr.bf16.gmra.mxu0 %v3580
  %v3704 = vpop.f32.mrf.mxu0
  %v3705 = vadd.f32 0.0, %v3704
  %v3706 = vpop.f32.mrf.mxu0
  %v3707 = vpop.f32.mrf.mxu0
  %v3708 = vadd.f32 0.0, %v3707
  %v3709 = vpop.f32.mrf.mxu0
  %3710 = vmatprep.mubr.bf16.mxu0 0
  %3711 = vmatmul.mubr.bf16.gmra.mxu0 %v3583
  %v3712 = vpop.f32.mrf.mxu0
  %v3713 = vadd.f32 0.0, %v3712
  %v3714 = vpop.f32.mrf.mxu0
  %v3715 = vpop.f32.mrf.mxu0
  %v3716 = vadd.f32 0.0, %v3715
  %v3717 = vpop.f32.mrf.mxu0
  %3718 = vmatprep.mubr.bf16.mxu0 0
  %3719 = vmatmul.mubr.bf16.gmra.mxu0 %v3586
  %v3720 = vpop.f32.mrf.mxu0
  %v3721 = vadd.f32 0.0, %v3720
  %v3722 = vpop.f32.mrf.mxu0
  %v3723 = vpop.f32.mrf.mxu0
  %v3724 = vadd.f32 0.0, %v3723
  %v3725 = vpop.f32.mrf.mxu0
  %3726 = vmatprep.mubr.bf16.mxu0 0
  %3727 = vmatmul.mubr.bf16.gmra.mxu0 %v3589
  %v3728 = vpop.f32.mrf.mxu0
  %v3729 = vadd.f32 0.0, %v3728
  %v3730 = vpop.f32.mrf.mxu0
  %v3731 = vpop.f32.mrf.mxu0
  %v3732 = vadd.f32 0.0, %v3731
  %v3733 = vpop.f32.mrf.mxu0
  %3734 = vmatprep.mubr.bf16.mxu0 0
  %3735 = vmatmul.mubr.bf16.gmra.mxu0 %v3592
  %v3736 = vpop.f32.mrf.mxu0
  %v3737 = vadd.f32 0.0, %v3736
  %v3738 = vpop.f32.mrf.mxu0
  %v3739 = vpop.f32.mrf.mxu0
  %v3740 = vadd.f32 0.0, %v3739
  %v3741 = vpop.f32.mrf.mxu0
  %3742 = vmatprep.mubr.bf16.mxu0 0
  %3743 = vmatmul.mubr.bf16.gmra.mxu0 %v3595
  %v3744 = vpop.f32.mrf.mxu0
  %v3745 = vadd.f32 0.0, %v3744
  %v3746 = vpop.f32.mrf.mxu0
  %v3747 = vpop.f32.mrf.mxu0
  %v3748 = vadd.f32 0.0, %v3747
  %v3749 = vpop.f32.mrf.mxu0
  %3750 = vmatprep.mubr.bf16.mxu0 0
  %3751 = vmatmul.mubr.bf16.gmra.mxu0 %v3598
  %v3752 = vpop.f32.mrf.mxu0
  %v3753 = vadd.f32 0.0, %v3752
  %v3754 = vpop.f32.mrf.mxu0
  %v3755 = vpop.f32.mrf.mxu0
  %v3756 = vadd.f32 0.0, %v3755
  %v3757 = vpop.f32.mrf.mxu0
  %3758 = vmatprep.mubr.bf16.mxu0 0
  %3759 = vmatmul.mubr.bf16.gmra.mxu0 %v3601
  %v3760 = vpop.f32.mrf.mxu0
  %v3761 = vadd.f32 0.0, %v3760
  %v3762 = vpop.f32.mrf.mxu0
  %v3763 = vpop.f32.mrf.mxu0
  %v3764 = vadd.f32 0.0, %v3763
  %v3765 = vpop.f32.mrf.mxu0
  %3766 = vdwg.mxu0
  %v3767 = vld [vmem:[#allocation2] sm:$0xff]
  %v3768 = vld [vmem:[#allocation2 + $0x8] sm:$0xff]
  %v3769 = vld [vmem:[#allocation2 + $0x10] sm:$0xff]
  %v3770 = vld [vmem:[#allocation2 + $0x18] sm:$0xff]
  %v3771 = vld [vmem:[#allocation2 + $0x20] sm:$0xff]
  %v3772 = vld [vmem:[#allocation2 + $0x28] sm:$0xff]
  %v3773 = vld [vmem:[#allocation2 + $0x30] sm:$0xff]
  %v3774 = vld [vmem:[#allocation2 + $0x38] sm:$0xff]
  %v3775 = vld [vmem:[#allocation2 + $0x40] sm:$0xff]
  %v3776 = vld [vmem:[#allocation2 + $0x48] sm:$0xff]
  %v3777 = vld [vmem:[#allocation2 + $0x50] sm:$0xff]
  %v3778 = vld [vmem:[#allocation2 + $0x58] sm:$0xff]
  %v3779 = vld [vmem:[#allocation2 + $0x60] sm:$0xff]
  %v3780 = vld [vmem:[#allocation2 + $0x68] sm:$0xff]
  %v3781 = vld [vmem:[#allocation2 + $0x70] sm:$0xff]
  %v3782 = vld [vmem:[#allocation2 + $0x78] sm:$0xff]
  %v3783 = vld [vmem:[#allocation2 + $0x80] sm:$0xff]
  %v3784 = vld [vmem:[#allocation2 + $0x88] sm:$0xff]
  %v3785 = vld [vmem:[#allocation2 + $0x90] sm:$0xff]
  %v3786 = vld [vmem:[#allocation2 + $0x98] sm:$0xff]
  %v3787 = vld [vmem:[#allocation2 + $0xa0] sm:$0xff]
  %v3788 = vld [vmem:[#allocation2 + $0xa8] sm:$0xff]
  %v3789 = vld [vmem:[#allocation2 + $0xb0] sm:$0xff]
  %v3790 = vld [vmem:[#allocation2 + $0xb8] sm:$0xff]
  %v3791 = vld [vmem:[#allocation2 + $0xc0] sm:$0xff]
  %v3792 = vld [vmem:[#allocation2 + $0xc8] sm:$0xff]
  %v3793 = vld [vmem:[#allocation2 + $0xd0] sm:$0xff]
  %v3794 = vld [vmem:[#allocation2 + $0xd8] sm:$0xff]
  %v3795 = vld [vmem:[#allocation2 + $0xe0] sm:$0xff]
  %v3796 = vld [vmem:[#allocation2 + $0xe8] sm:$0xff]
  %v3797 = vld [vmem:[#allocation2 + $0xf0] sm:$0xff]
  %v3798 = vld [vmem:[#allocation2 + $0xf8] sm:$0xff]
  %v3799 = vadd.f32 %v3767, %v3641
  %v3800 = vadd.f32 %v3768, %v3644
  %v3801 = vadd.f32 %v3769, %v3649
  %v3802 = vadd.f32 %v3770, %v3652
  %v3803 = vadd.f32 %v3771, %v3657
  %v3804 = vadd.f32 %v3772, %v3660
  %v3805 = vadd.f32 %v3773, %v3665
  %v3806 = vadd.f32 %v3774, %v3668
  %v3807 = vadd.f32 %v3775, %v3673
  %v3808 = vadd.f32 %v3776, %v3676
  %v3809 = vadd.f32 %v3777, %v3681
  %v3810 = vadd.f32 %v3778, %v3684
  %v3811 = vadd.f32 %v3779, %v3689
  %v3812 = vadd.f32 %v3780, %v3692
  %v3813 = vadd.f32 %v3781, %v3697
  %v3814 = vadd.f32 %v3782, %v3700
  %v3815 = vadd.f32 %v3783, %v3705
  %v3816 = vadd.f32 %v3784, %v3708
  %v3817 = vadd.f32 %v3785, %v3713
  %v3818 = vadd.f32 %v3786, %v3716
  %v3819 = vadd.f32 %v3787, %v3721
  %v3820 = vadd.f32 %v3788, %v3724
  %v3821 = vadd.f32 %v3789, %v3729
  %v3822 = vadd.f32 %v3790, %v3732
  %v3823 = vadd.f32 %v3791, %v3737
  %v3824 = vadd.f32 %v3792, %v3740
  %v3825 = vadd.f32 %v3793, %v3745
  %v3826 = vadd.f32 %v3794, %v3748
  %v3827 = vadd.f32 %v3795, %v3753
  %v3828 = vadd.f32 %v3796, %v3756
  %v3829 = vadd.f32 %v3797, %v3761
  %v3830 = vadd.f32 %v3798, %v3764
  %3831 = vst.msk [vmem:[#allocation2] sm:$0xff] %vm342, %v3799
  %3832 = vst.msk [vmem:[#allocation2 + $0x8] sm:$0xff] %vm342, %v3800
  %3833 = vst.msk [vmem:[#allocation2 + $0x10] sm:$0xff] %vm342, %v3801
  %3834 = vst.msk [vmem:[#allocation2 + $0x18] sm:$0xff] %vm342, %v3802
  %3835 = vst.msk [vmem:[#allocation2 + $0x20] sm:$0xff] %vm342, %v3803
  %3836 = vst.msk [vmem:[#allocation2 + $0x28] sm:$0xff] %vm342, %v3804
  %3837 = vst.msk [vmem:[#allocation2 + $0x30] sm:$0xff] %vm342, %v3805
  %3838 = vst.msk [vmem:[#allocation2 + $0x38] sm:$0xff] %vm342, %v3806
  %3839 = vst.msk [vmem:[#allocation2 + $0x40] sm:$0xff] %vm342, %v3807
  %3840 = vst.msk [vmem:[#allocation2 + $0x48] sm:$0xff] %vm342, %v3808
  %3841 = vst.msk [vmem:[#allocation2 + $0x50] sm:$0xff] %vm342, %v3809
  %3842 = vst.msk [vmem:[#allocation2 + $0x58] sm:$0xff] %vm342, %v3810
  %3843 = vst.msk [vmem:[#allocation2 + $0x60] sm:$0xff] %vm342, %v3811
  %3844 = vst.msk [vmem:[#allocation2 + $0x68] sm:$0xff] %vm342, %v3812
  %3845 = vst.msk [vmem:[#allocation2 + $0x70] sm:$0xff] %vm342, %v3813
  %3846 = vst.msk [vmem:[#allocation2 + $0x78] sm:$0xff] %vm342, %v3814
  %3847 = vst.msk [vmem:[#allocation2 + $0x80] sm:$0xff] %vm342, %v3815
  %3848 = vst.msk [vmem:[#allocation2 + $0x88] sm:$0xff] %vm342, %v3816
  %3849 = vst.msk [vmem:[#allocation2 + $0x90] sm:$0xff] %vm342, %v3817
  %3850 = vst.msk [vmem:[#allocation2 + $0x98] sm:$0xff] %vm342, %v3818
  %3851 = vst.msk [vmem:[#allocation2 + $0xa0] sm:$0xff] %vm342, %v3819
  %3852 = vst.msk [vmem:[#allocation2 + $0xa8] sm:$0xff] %vm342, %v3820
  %3853 = vst.msk [vmem:[#allocation2 + $0xb0] sm:$0xff] %vm342, %v3821
  %3854 = vst.msk [vmem:[#allocation2 + $0xb8] sm:$0xff] %vm342, %v3822
  %3855 = vst.msk [vmem:[#allocation2 + $0xc0] sm:$0xff] %vm342, %v3823
  %3856 = vst.msk [vmem:[#allocation2 + $0xc8] sm:$0xff] %vm342, %v3824
  %3857 = vst.msk [vmem:[#allocation2 + $0xd0] sm:$0xff] %vm342, %v3825
  %3858 = vst.msk [vmem:[#allocation2 + $0xd8] sm:$0xff] %vm342, %v3826
  %3859 = vst.msk [vmem:[#allocation2 + $0xe0] sm:$0xff] %vm342, %v3827
  %3860 = vst.msk [vmem:[#allocation2 + $0xe8] sm:$0xff] %vm342, %v3828
  %3861 = vst.msk [vmem:[#allocation2 + $0xf0] sm:$0xff] %vm342, %v3829
  %3862 = vst.msk [vmem:[#allocation2 + $0xf8] sm:$0xff] %vm342, %v3830
  %v3863 = vld [vmem:[#allocation2] sm:$0xff]
  %v3864 = vld [vmem:[#allocation2 + $0x8] sm:$0xff]
  %v3865 = vld [vmem:[#allocation2 + $0x10] sm:$0xff]
  %v3866 = vld [vmem:[#allocation2 + $0x18] sm:$0xff]
  %v3867 = vld [vmem:[#allocation2 + $0x20] sm:$0xff]
  %v3868 = vld [vmem:[#allocation2 + $0x28] sm:$0xff]
  %v3869 = vld [vmem:[#allocation2 + $0x30] sm:$0xff]
  %v3870 = vld [vmem:[#allocation2 + $0x38] sm:$0xff]
  %v3871 = vld [vmem:[#allocation2 + $0x40] sm:$0xff]
  %v3872 = vld [vmem:[#allocation2 + $0x48] sm:$0xff]
  %v3873 = vld [vmem:[#allocation2 + $0x50] sm:$0xff]
  %v3874 = vld [vmem:[#allocation2 + $0x58] sm:$0xff]
  %v3875 = vld [vmem:[#allocation2 + $0x60] sm:$0xff]
  %v3876 = vld [vmem:[#allocation2 + $0x68] sm:$0xff]
  %v3877 = vld [vmem:[#allocation2 + $0x70] sm:$0xff]
  %v3878 = vld [vmem:[#allocation2 + $0x78] sm:$0xff]
  %v3879 = vld [vmem:[#allocation2 + $0x80] sm:$0xff]
  %v3880 = vld [vmem:[#allocation2 + $0x88] sm:$0xff]
  %v3881 = vld [vmem:[#allocation2 + $0x90] sm:$0xff]
  %v3882 = vld [vmem:[#allocation2 + $0x98] sm:$0xff]
  %v3883 = vld [vmem:[#allocation2 + $0xa0] sm:$0xff]
  %v3884 = vld [vmem:[#allocation2 + $0xa8] sm:$0xff]
  %v3885 = vld [vmem:[#allocation2 + $0xb0] sm:$0xff]
  %v3886 = vld [vmem:[#allocation2 + $0xb8] sm:$0xff]
  %v3887 = vld [vmem:[#allocation2 + $0xc0] sm:$0xff]
  %v3888 = vld [vmem:[#allocation2 + $0xc8] sm:$0xff]
  %v3889 = vld [vmem:[#allocation2 + $0xd0] sm:$0xff]
  %v3890 = vld [vmem:[#allocation2 + $0xd8] sm:$0xff]
  %v3891 = vld [vmem:[#allocation2 + $0xe0] sm:$0xff]
  %v3892 = vld [vmem:[#allocation2 + $0xe8] sm:$0xff]
  %v3893 = vld [vmem:[#allocation2 + $0xf0] sm:$0xff]
  %v3894 = vld [vmem:[#allocation2 + $0xf8] sm:$0xff]
  %v3895 = vld [vmem:[%s2] sm:$0x1]
  %v3897 = vlaneseq
  %v3898 = vshrl.u32 %v3897, 7
  %v3899 = vsub.s32 0, %v3898
  %v3900 = vrot.slane %v3895, %v3899
  %v3902 = vadd.f32 %v3863, %v3900
  %v3903 = vadd.f32 %v3864, %v3900
  %v3904 = vadd.f32 %v3865, %v3900
  %v3905 = vadd.f32 %v3866, %v3900
  %v3906 = vadd.f32 %v3867, %v3900
  %v3907 = vadd.f32 %v3868, %v3900
  %v3908 = vadd.f32 %v3869, %v3900
  %v3909 = vadd.f32 %v3870, %v3900
  %v3910 = vadd.f32 %v3871, %v3900
  %v3911 = vadd.f32 %v3872, %v3900
  %v3912 = vadd.f32 %v3873, %v3900
  %v3913 = vadd.f32 %v3874, %v3900
  %v3914 = vadd.f32 %v3875, %v3900
  %v3915 = vadd.f32 %v3876, %v3900
  %v3916 = vadd.f32 %v3877, %v3900
  %v3917 = vadd.f32 %v3878, %v3900
  %v3918 = vadd.f32 %v3879, %v3900
  %v3919 = vadd.f32 %v3880, %v3900
  %v3920 = vadd.f32 %v3881, %v3900
  %v3921 = vadd.f32 %v3882, %v3900
  %v3922 = vadd.f32 %v3883, %v3900
  %v3923 = vadd.f32 %v3884, %v3900
  %v3924 = vadd.f32 %v3885, %v3900
  %v3925 = vadd.f32 %v3886, %v3900
  %v3926 = vadd.f32 %v3887, %v3900
  %v3927 = vadd.f32 %v3888, %v3900
  %v3928 = vadd.f32 %v3889, %v3900
  %v3929 = vadd.f32 %v3890, %v3900
  %v3930 = vadd.f32 %v3891, %v3900
  %v3931 = vadd.f32 %v3892, %v3900
  %v3932 = vadd.f32 %v3893, %v3900
  %v3933 = vadd.f32 %v3894, %v3900
  %vm3934 = vcmp.ge.f32.partialorder %v3902, 0.0
  %vm3935 = vcmp.ge.f32.partialorder %v3903, 0.0
  %vm3936 = vcmp.ge.f32.partialorder %v3904, 0.0
  %vm3937 = vcmp.ge.f32.partialorder %v3905, 0.0
  %vm3938 = vcmp.ge.f32.partialorder %v3906, 0.0
  %vm3939 = vcmp.ge.f32.partialorder %v3907, 0.0
  %vm3940 = vcmp.ge.f32.partialorder %v3908, 0.0
  %vm3941 = vcmp.ge.f32.partialorder %v3909, 0.0
  %vm3942 = vcmp.ge.f32.partialorder %v3910, 0.0
  %vm3943 = vcmp.ge.f32.partialorder %v3911, 0.0
  %vm3944 = vcmp.ge.f32.partialorder %v3912, 0.0
  %vm3945 = vcmp.ge.f32.partialorder %v3913, 0.0
  %vm3946 = vcmp.ge.f32.partialorder %v3914, 0.0
  %vm3947 = vcmp.ge.f32.partialorder %v3915, 0.0
  %vm3948 = vcmp.ge.f32.partialorder %v3916, 0.0
  %vm3949 = vcmp.ge.f32.partialorder %v3917, 0.0
  %vm3950 = vcmp.ge.f32.partialorder %v3918, 0.0
  %vm3951 = vcmp.ge.f32.partialorder %v3919, 0.0
  %vm3952 = vcmp.ge.f32.partialorder %v3920, 0.0
  %vm3953 = vcmp.ge.f32.partialorder %v3921, 0.0
  %vm3954 = vcmp.ge.f32.partialorder %v3922, 0.0
  %vm3955 = vcmp.ge.f32.partialorder %v3923, 0.0
  %vm3956 = vcmp.ge.f32.partialorder %v3924, 0.0
  %vm3957 = vcmp.ge.f32.partialorder %v3925, 0.0
  %vm3958 = vcmp.ge.f32.partialorder %v3926, 0.0
  %vm3959 = vcmp.ge.f32.partialorder %v3927, 0.0
  %vm3960 = vcmp.ge.f32.partialorder %v3928, 0.0
  %vm3961 = vcmp.ge.f32.partialorder %v3929, 0.0
  %vm3962 = vcmp.ge.f32.partialorder %v3930, 0.0
  %vm3963 = vcmp.ge.f32.partialorder %v3931, 0.0
  %vm3964 = vcmp.ge.f32.partialorder %v3932, 0.0
  %vm3965 = vcmp.ge.f32.partialorder %v3933, 0.0
  %v3966 = vmul.f32 %v3902, 0.01
  %v3967 = vmul.f32 %v3903, 0.01
  %v3968 = vmul.f32 %v3904, 0.01
  %v3969 = vmul.f32 %v3905, 0.01
  %v3970 = vmul.f32 %v3906, 0.01
  %v3971 = vmul.f32 %v3907, 0.01
  %v3972 = vmul.f32 %v3908, 0.01
  %v3973 = vmul.f32 %v3909, 0.01
  %v3974 = vmul.f32 %v3910, 0.01
  %v3975 = vmul.f32 %v3911, 0.01
  %v3976 = vmul.f32 %v3912, 0.01
  %v3977 = vmul.f32 %v3913, 0.01
  %v3978 = vmul.f32 %v3914, 0.01
  %v3979 = vmul.f32 %v3915, 0.01
  %v3980 = vmul.f32 %v3916, 0.01
  %v3981 = vmul.f32 %v3917, 0.01
  %v3982 = vmul.f32 %v3918, 0.01
  %v3983 = vmul.f32 %v3919, 0.01
  %v3984 = vmul.f32 %v3920, 0.01
  %v3985 = vmul.f32 %v3921, 0.01
  %v3986 = vmul.f32 %v3922, 0.01
  %v3987 = vmul.f32 %v3923, 0.01
  %v3988 = vmul.f32 %v3924, 0.01
  %v3989 = vmul.f32 %v3925, 0.01
  %v3990 = vmul.f32 %v3926, 0.01
  %v3991 = vmul.f32 %v3927, 0.01
  %v3992 = vmul.f32 %v3928, 0.01
  %v3993 = vmul.f32 %v3929, 0.01
  %v3994 = vmul.f32 %v3930, 0.01
  %v3995 = vmul.f32 %v3931, 0.01
  %v3996 = vmul.f32 %v3932, 0.01
  %v3997 = vmul.f32 %v3933, 0.01
  %v3998 = vsel %vm3934, %v3902, %v3966
  %v3999 = vsel %vm3935, %v3903, %v3967
  %v4000 = vsel %vm3936, %v3904, %v3968
  %v4001 = vsel %vm3937, %v3905, %v3969
  %v4002 = vsel %vm3938, %v3906, %v3970
  %v4003 = vsel %vm3939, %v3907, %v3971
  %v4004 = vsel %vm3940, %v3908, %v3972
  %v4005 = vsel %vm3941, %v3909, %v3973
  %v4006 = vsel %vm3942, %v3910, %v3974
  %v4007 = vsel %vm3943, %v3911, %v3975
  %v4008 = vsel %vm3944, %v3912, %v3976
  %v4009 = vsel %vm3945, %v3913, %v3977
  %v4010 = vsel %vm3946, %v3914, %v3978
  %v4011 = vsel %vm3947, %v3915, %v3979
  %v4012 = vsel %vm3948, %v3916, %v3980
  %v4013 = vsel %vm3949, %v3917, %v3981
  %v4014 = vsel %vm3950, %v3918, %v3982
  %v4015 = vsel %vm3951, %v3919, %v3983
  %v4016 = vsel %vm3952, %v3920, %v3984
  %v4017 = vsel %vm3953, %v3921, %v3985
  %v4018 = vsel %vm3954, %v3922, %v3986
  %v4019 = vsel %vm3955, %v3923, %v3987
  %v4020 = vsel %vm3956, %v3924, %v3988
  %v4021 = vsel %vm3957, %v3925, %v3989
  %v4022 = vsel %vm3958, %v3926, %v3990
  %v4023 = vsel %vm3959, %v3927, %v3991
  %v4024 = vsel %vm3960, %v3928, %v3992
  %v4025 = vsel %vm3961, %v3929, %v3993
  %v4026 = vsel %vm3962, %v3930, %v3994
  %v4027 = vsel %vm3963, %v3931, %v3995
  %v4028 = vsel %vm3964, %v3932, %v3996
  %v4029 = vsel %vm3965, %v3933, %v3997
  %v4030 = vpack.c.bf16 %v3999, %v3998
  %v4031 = vpack.c.bf16 %v4001, %v4000
  %v4032 = vpack.c.bf16 %v4003, %v4002
  %v4033 = vpack.c.bf16 %v4005, %v4004
  %v4034 = vpack.c.bf16 %v4007, %v4006
  %v4035 = vpack.c.bf16 %v4009, %v4008
  %v4036 = vpack.c.bf16 %v4011, %v4010
  %v4037 = vpack.c.bf16 %v4013, %v4012
  %v4038 = vpack.c.bf16 %v4015, %v4014
  %v4039 = vpack.c.bf16 %v4017, %v4016
  %v4040 = vpack.c.bf16 %v4019, %v4018
  %v4041 = vpack.c.bf16 %v4021, %v4020
  %v4042 = vpack.c.bf16 %v4023, %v4022
  %v4043 = vpack.c.bf16 %v4025, %v4024
  %v4044 = vpack.c.bf16 %v4027, %v4026
  %v4045 = vpack.c.bf16 %v4029, %v4028
  %v4062 = vunpack.c.l.b16 %v4030
  %v4063 = vunpack.c.h.b16 %v4030
  %v4064 = vunpack.c.l.b16 %v4031
  %v4065 = vunpack.c.h.b16 %v4031
  %v4066 = vunpack.c.l.b16 %v4032
  %v4067 = vunpack.c.h.b16 %v4032
  %v4068 = vunpack.c.l.b16 %v4033
  %v4069 = vunpack.c.h.b16 %v4033
  %v4070 = vunpack.c.l.b16 %v4034
  %v4071 = vunpack.c.h.b16 %v4034
  %v4072 = vunpack.c.l.b16 %v4035
  %v4073 = vunpack.c.h.b16 %v4035
  %v4074 = vunpack.c.l.b16 %v4036
  %v4075 = vunpack.c.h.b16 %v4036
  %v4076 = vunpack.c.l.b16 %v4037
  %v4077 = vunpack.c.h.b16 %v4037
  %v4078 = vunpack.c.l.b16 %v4038
  %v4079 = vunpack.c.h.b16 %v4038
  %v4080 = vunpack.c.l.b16 %v4039
  %v4081 = vunpack.c.h.b16 %v4039
  %v4082 = vunpack.c.l.b16 %v4040
  %v4083 = vunpack.c.h.b16 %v4040
  %v4084 = vunpack.c.l.b16 %v4041
  %v4085 = vunpack.c.h.b16 %v4041
  %v4086 = vunpack.c.l.b16 %v4042
  %v4087 = vunpack.c.h.b16 %v4042
  %v4088 = vunpack.c.l.b16 %v4043
  %v4089 = vunpack.c.h.b16 %v4043
  %v4090 = vunpack.c.l.b16 %v4044
  %v4091 = vunpack.c.h.b16 %v4044
  %v4092 = vunpack.c.l.b16 %v4045
  %v4093 = vunpack.c.h.b16 %v4045
  %v4094 = vpack.c.b16 %v4062, %v4062
  %v4095 = vpack.c.b16 %v4063, %v4063
  %v4096 = vpack.c.b16 %v4064, %v4064
  %v4097 = vpack.c.b16 %v4065, %v4065
  %v4098 = vpack.c.b16 %v4066, %v4066
  %v4099 = vpack.c.b16 %v4067, %v4067
  %v4100 = vpack.c.b16 %v4068, %v4068
  %v4101 = vpack.c.b16 %v4069, %v4069
  %v4102 = vpack.c.b16 %v4070, %v4070
  %v4103 = vpack.c.b16 %v4071, %v4071
  %v4104 = vpack.c.b16 %v4072, %v4072
  %v4105 = vpack.c.b16 %v4073, %v4073
  %v4106 = vpack.c.b16 %v4074, %v4074
  %v4107 = vpack.c.b16 %v4075, %v4075
  %v4108 = vpack.c.b16 %v4076, %v4076
  %v4109 = vpack.c.b16 %v4077, %v4077
  %v4110 = vpack.c.b16 %v4078, %v4078
  %v4111 = vpack.c.b16 %v4079, %v4079
  %v4112 = vpack.c.b16 %v4080, %v4080
  %v4113 = vpack.c.b16 %v4081, %v4081
  %v4114 = vpack.c.b16 %v4082, %v4082
  %v4115 = vpack.c.b16 %v4083, %v4083
  %v4116 = vpack.c.b16 %v4084, %v4084
  %v4117 = vpack.c.b16 %v4085, %v4085
  %v4118 = vpack.c.b16 %v4086, %v4086
  %v4119 = vpack.c.b16 %v4087, %v4087
  %v4120 = vpack.c.b16 %v4088, %v4088
  %v4121 = vpack.c.b16 %v4089, %v4089
  %v4122 = vpack.c.b16 %v4090, %v4090
  %v4123 = vpack.c.b16 %v4091, %v4091
  %v4124 = vpack.c.b16 %v4092, %v4092
  %v4125 = vpack.c.b16 %v4093, %v4093
  %vm4158 = vcmask 60416
  %4159 = vst.msk [vmem:[%s3] sm:$0xf] %vm4158, %v4094
  %4160 = vst.msk [vmem:[%s3 + $0x4] sm:$0xf] %vm4158, %v4095
  %4161 = vst.msk [vmem:[%s3 + $0x8] sm:$0xf] %vm4158, %v4096
  %4162 = vst.msk [vmem:[%s3 + $0xc] sm:$0xf] %vm4158, %v4097
  %4163 = vst.msk [vmem:[%s3 + $0x10] sm:$0xf] %vm4158, %v4098
  %4164 = vst.msk [vmem:[%s3 + $0x14] sm:$0xf] %vm4158, %v4099
  %4165 = vst.msk [vmem:[%s3 + $0x18] sm:$0xf] %vm4158, %v4100
  %4166 = vst.msk [vmem:[%s3 + $0x1c] sm:$0xf] %vm4158, %v4101
  %4167 = vst.msk [vmem:[%s3 + $0x20] sm:$0xf] %vm4158, %v4102
  %4168 = vst.msk [vmem:[%s3 + $0x24] sm:$0xf] %vm4158, %v4103
  %4169 = vst.msk [vmem:[%s3 + $0x28] sm:$0xf] %vm4158, %v4104
  %4170 = vst.msk [vmem:[%s3 + $0x2c] sm:$0xf] %vm4158, %v4105
  %4171 = vst.msk [vmem:[%s3 + $0x30] sm:$0xf] %vm4158, %v4106
  %4172 = vst.msk [vmem:[%s3 + $0x34] sm:$0xf] %vm4158, %v4107
  %4173 = vst.msk [vmem:[%s3 + $0x38] sm:$0xf] %vm4158, %v4108
  %4174 = vst.msk [vmem:[%s3 + $0x3c] sm:$0xf] %vm4158, %v4109
  %4175 = vst.msk [vmem:[%s3 + $0x40] sm:$0xf] %vm4158, %v4110
  %4176 = vst.msk [vmem:[%s3 + $0x44] sm:$0xf] %vm4158, %v4111
  %4177 = vst.msk [vmem:[%s3 + $0x48] sm:$0xf] %vm4158, %v4112
  %4178 = vst.msk [vmem:[%s3 + $0x4c] sm:$0xf] %vm4158, %v4113
  %4179 = vst.msk [vmem:[%s3 + $0x50] sm:$0xf] %vm4158, %v4114
  %4180 = vst.msk [vmem:[%s3 + $0x54] sm:$0xf] %vm4158, %v4115
  %4181 = vst.msk [vmem:[%s3 + $0x58] sm:$0xf] %vm4158, %v4116
  %4182 = vst.msk [vmem:[%s3 + $0x5c] sm:$0xf] %vm4158, %v4117
  %4183 = vst.msk [vmem:[%s3 + $0x60] sm:$0xf] %vm4158, %v4118
  %4184 = vst.msk [vmem:[%s3 + $0x64] sm:$0xf] %vm4158, %v4119
  %4185 = vst.msk [vmem:[%s3 + $0x68] sm:$0xf] %vm4158, %v4120
  %4186 = vst.msk [vmem:[%s3 + $0x6c] sm:$0xf] %vm4158, %v4121
  %4187 = vst.msk [vmem:[%s3 + $0x70] sm:$0xf] %vm4158, %v4122
  %4188 = vst.msk [vmem:[%s3 + $0x74] sm:$0xf] %vm4158, %v4123
  %4189 = vst.msk [vmem:[%s3 + $0x78] sm:$0xf] %vm4158, %v4124
  %4190 = vst.msk [vmem:[%s3 + $0x7c] sm:$0xf] %vm4158, %v4125
  // Predicated region
  $region14: #{map2style_forward.5} parent=0 // pred_check
    _
  $region15: #{map2style_forward.5} parent=0 // pred_check_branch
    %4192 = sbr.rel (0) target = $region17
  $region16: #{map2style_forward.5} parent=0 // pred_region
    _
  $region17: #{map2style_forward.5} parent=0 // pred_fallthru
    _
  // Predicated region
  $region18: #{map2style_forward.5} parent=0 // pred_check
    _
  $region19: #{map2style_forward.5} parent=0 // pred_check_branch
    %4194 = sbr.rel (0) target = $region21
  $region20: #{map2style_forward.5} parent=0 // pred_region
    _
  $region21: #{map2style_forward.5} parent=0 // pred_fallthru
    _

</llo_original>
